<compile_context>
chip_gen: v7x
topology: tpu7x:2x2x1
jax: 0.10.0
libtpu: 0.0.40
codegen_flags: <defaults>
</compile_context>

<pallas_src>
import functools

import jax
import jax.numpy as jnp
from jax.experimental import pallas as pl
from jax.experimental.pallas import tpu as pltpu

N_EMB = 384            # matches module-level `nEmb` in the reference script
HIDDEN = 4 * N_EMB     # 1536
DROPOUT_P = 0.2        # eval-mode forward -> dropout is the identity
# TODO(synk): training-mode dropout (p=0.2) not applied; eval-mode forward only.

TM = 256               # rows per grid step: multiple of 128, MXU-aligned on all gens

# VMEM need (TM=256, C=384, H=1536, bf16 weights):
#   2x bf16 x tiles (0.38 MiB) + 2x f32 out tiles (0.75 MiB)
#   + 2x bf16 W1 + 2x bf16 W2 (4.5 MiB) + biases (~15 KiB)
#   + f32/bf16 hidden intermediates (~2.3 MiB)  => ~8 MiB.
# 40 MiB leaves large headroom yet stays well inside v7x's 64 MiB physical VMEM.
VMEM_LIMIT_BYTES = 40 << 20


def _ffn_kernel(x_ref, w1_ref, b1_ref, w2_ref, b2_ref, o_ref):
    """out = relu(x @ W1 + b1) @ W2 + b2 for one (TM, C) row tile."""
    x = x_ref[...]                                                 # (TM, C) bf16
    h = jnp.dot(x, w1_ref[...],
                preferred_element_type=jnp.float32)                # (TM, H) f32 (MXU)
    h = jnp.maximum(h + b1_ref[...], 0.0)                          # bias + ReLU in f32 (VPU)
    o = jnp.dot(h.astype(jnp.bfloat16), w2_ref[...],
                preferred_element_type=jnp.float32)                # (TM, C) f32 (MXU)
    o_ref[...] = (o + b2_ref[...]).astype(o_ref.dtype)


@jax.jit
def feed_forward(x, w1, b1, w2, b2):
    """x: (B, T, C) float32. Returns (B, T, C) float32 (eval-mode forward)."""
    B, T, C = x.shape
    assert C == N_EMB
    M = B * T

    n_tiles = pl.cdiv(M, TM)
    M_pad = n_tiles * TM

    x2d = x.reshape(M, C).astype(jnp.bfloat16)
    if M_pad != M:
        x2d = jnp.pad(x2d, ((0, M_pad - M), (0, 0)))

    w1b = w1.astype(jnp.bfloat16)
    w2b = w2.astype(jnp.bfloat16)
    b1f = b1.astype(jnp.float32)
    b2f = b2.astype(jnp.float32)

    flops = 4 * M_pad * C * HIDDEN                    # 2*M*C*H per matmul, x2
    bytes_accessed = (
        M_pad * C * 2                                 # x in (bf16)
        + M_pad * C * 4                               # out (f32)
        + (C * HIDDEN + HIDDEN * C) * 2               # weights (bf16)
        + (HIDDEN + C) * 4                            # biases (f32)
    )

    out2d = pl.pallas_call(
        _ffn_kernel,
        out_shape=jax.ShapeDtypeStruct((M_pad, C), jnp.float32),
        grid=(n_tiles,),
        in_specs=[
            pl.BlockSpec((TM, C), lambda i: (i, 0)),        # x: tiled over rows
            pl.BlockSpec((C, HIDDEN), lambda i: (0, 0)),    # W1: resident
            pl.BlockSpec((1, HIDDEN), lambda i: (0, 0)),    # b1: resident
            pl.BlockSpec((HIDDEN, C), lambda i: (0, 0)),    # W2: resident
            pl.BlockSpec((1, C), lambda i: (0, 0)),         # b2: resident
        ],
        out_specs=pl.BlockSpec((TM, C), lambda i: (i, 0)),
        compiler_params=pltpu.CompilerParams(
            dimension_semantics=("parallel",),              # megacore split on v7x
            vmem_limit_bytes=VMEM_LIMIT_BYTES,
        ),
        cost_estimate=pl.CostEstimate(
            flops=flops, transcendentals=0, bytes_accessed=bytes_accessed),
    )(x2d, w1b, b1f, w2b, b2f)

    return out2d[:M].reshape(B, T, C)


def init_params(key, n_emb):
    """Deterministic init matching nn.Linear's default U(-1/sqrt(fan_in), +)."""
    k1, k2, k3, k4 = jax.random.split(key, 4)
    hid = 4 * n_emb
    bound1 = 1.0 / jnp.sqrt(n_emb)
    bound2 = 1.0 / jnp.sqrt(hid)
    # weights stored (in, out), i.e. transpose of PyTorch nn.Linear .weight
    w1 = jax.random.uniform(k1, (n_emb, hid), jnp.float32, -bound1, bound1)
    b1 = jax.random.uniform(k2, (1, hid), jnp.float32, -bound1, bound1)
    w2 = jax.random.uniform(k3, (hid, n_emb), jnp.float32, -bound2, bound2)
    b2 = jax.random.uniform(k4, (1, n_emb), jnp.float32, -bound2, bound2)
    return w1, b1, w2, b2


if __name__ == "__main__":
    key = jax.random.PRNGKey(0)
    kx, kp = jax.random.split(key)

    B, T = 2, 8
    x = jax.random.normal(kx, (B, T, N_EMB), jnp.float32)
    w1, b1, w2, b2 = init_params(kp, N_EMB)

    out = jax.block_until_ready(feed_forward(x, w1, b1, w2, b2))
    assert out.shape == (B, T, N_EMB)
    assert out.dtype == jnp.float32

    # Reference with the same numerics as the kernel (bf16 MXU inputs, f32 acc).
    xb = x.reshape(-1, N_EMB).astype(jnp.bfloat16)
    h = jnp.dot(xb, w1.astype(jnp.bfloat16),
                preferred_element_type=jnp.float32) + b1
    h = jnp.maximum(h, 0.0)
    ref = jnp.dot(h.astype(jnp.bfloat16), w2.astype(jnp.bfloat16),
                  preferred_element_type=jnp.float32) + b2
    ref = ref.reshape(B, T, N_EMB)
    assert jnp.allclose(out, ref, atol=2e-2, rtol=2e-2), \
        float(jnp.max(jnp.abs(out - ref)))

    # Loose semantic sanity check against full-f32 math.
    ref32 = (jnp.maximum(x.reshape(-1, N_EMB) @ w1 + b1, 0.0) @ w2 + b2)
    ref32 = ref32.reshape(B, T, N_EMB)
    assert jnp.allclose(out, ref32, atol=6e-2, rtol=6e-2), \
        float(jnp.max(jnp.abs(out - ref32)))

    print("KERNEL_OK")
</pallas_src>

<mosaic_0001>
module attributes {stable_mosaic.version = 11 : i64} {
  func.func @_ffn_kernel(%arg0: i32, %arg1: memref<256x384xbf16, #tpu.memory_space<vmem>>, %arg2: memref<384x1536xbf16, #tpu.memory_space<vmem>>, %arg3: memref<1x1536xf32, #tpu.memory_space<vmem>>, %arg4: memref<1536x384xbf16, #tpu.memory_space<vmem>>, %arg5: memref<1x384xf32, #tpu.memory_space<vmem>>, %arg6: memref<256x384xf32, #tpu.memory_space<vmem>>) attributes {dimension_semantics = [#tpu.dimension_semantics<parallel>], iteration_bounds = array<i64: 1>, scalar_prefetch = 0 : i64, scratch_operands = 0 : i64, tpu.core_type = #tpu.core_type<tc>, window_params = [{transform_indices = @transform_0, window_bounds = array<i64: 256, 384>}, {pipeline_mode = #tpu.pipeline_mode<synchronous>, transform_indices = @transform_1, window_bounds = array<i64: 384, 1536>}, {pipeline_mode = #tpu.pipeline_mode<synchronous>, transform_indices = @transform_2, window_bounds = array<i64: 1, 1536>}, {pipeline_mode = #tpu.pipeline_mode<synchronous>, transform_indices = @transform_3, window_bounds = array<i64: 1536, 384>}, {pipeline_mode = #tpu.pipeline_mode<synchronous>, transform_indices = @transform_4, window_bounds = array<i64: 1, 384>}, {transform_indices = @transform_5, window_bounds = array<i64: 256, 384>}]} {
    %c0 = arith.constant 0 : index
    %c0_0 = arith.constant 0 : index
    %0 = vector.load %arg1[%c0, %c0_0] : memref<256x384xbf16, #tpu.memory_space<vmem>>, vector<256x384xbf16>
    %c0_1 = arith.constant 0 : index
    %c0_2 = arith.constant 0 : index
    %1 = vector.load %arg2[%c0_1, %c0_2] : memref<384x1536xbf16, #tpu.memory_space<vmem>>, vector<384x1536xbf16>
    %cst = arith.constant dense<0.000000e+00> : vector<256x1536xf32>
    %2 = tpu.matmul %0, %1, %cst {dimension_numbers = #tpu.dot_dimension_numbers<[1], [0], [0], [1], [0, 0, 1, 1], [], []>} : vector<256x384xbf16>, vector<384x1536xbf16>, vector<256x1536xf32> -> vector<256x1536xf32>
    %c0_3 = arith.constant 0 : index
    %c0_4 = arith.constant 0 : index
    %3 = vector.load %arg3[%c0_3, %c0_4] : memref<1x1536xf32, #tpu.memory_space<vmem>>, vector<1x1536xf32>
    %4 = vector.broadcast %3 : vector<1x1536xf32> to vector<256x1536xf32>
    %5 = arith.addf %2, %4 : vector<256x1536xf32>
    %cst_5 = arith.constant 0.000000e+00 : f32
    %6 = vector.broadcast %cst_5 : f32 to vector<256x1536xf32>
    %7 = arith.maximumf %5, %6 : vector<256x1536xf32>
    %8 = arith.truncf %7 : vector<256x1536xf32> to vector<256x1536xbf16>
    %c0_6 = arith.constant 0 : index
    %c0_7 = arith.constant 0 : index
    %9 = vector.load %arg4[%c0_6, %c0_7] : memref<1536x384xbf16, #tpu.memory_space<vmem>>, vector<1536x384xbf16>
    %cst_8 = arith.constant dense<0.000000e+00> : vector<256x384xf32>
    %10 = tpu.matmul %8, %9, %cst_8 {dimension_numbers = #tpu.dot_dimension_numbers<[1], [0], [0], [1], [0, 0, 1, 1], [], []>} : vector<256x1536xbf16>, vector<1536x384xbf16>, vector<256x384xf32> -> vector<256x384xf32>
    %c0_9 = arith.constant 0 : index
    %c0_10 = arith.constant 0 : index
    %11 = vector.load %arg5[%c0_9, %c0_10] : memref<1x384xf32, #tpu.memory_space<vmem>>, vector<1x384xf32>
    %12 = vector.broadcast %11 : vector<1x384xf32> to vector<256x384xf32>
    %13 = arith.addf %10, %12 : vector<256x384xf32>
    %c0_11 = arith.constant 0 : index
    %c0_12 = arith.constant 0 : index
    %14 = vector.load %arg6[%c0_11, %c0_12] : memref<256x384xf32, #tpu.memory_space<vmem>>, vector<256x384xf32>
    tpu.vector_store %arg6[%c0_11, %c0_12], %13 {strides = array<i32>} : memref<256x384xf32, #tpu.memory_space<vmem>>, vector<256x384xf32>,
    return
  }
  func.func @transform_0(%arg0: i32) -> (i32, i32) {
    %c0_i32 = arith.constant 0 : i32
    %c0_i32_0 = arith.constant 0 : i32
    return %arg0, %c0_i32 : i32, i32
  }
  func.func @transform_1(%arg0: i32) -> (i32, i32) {
    %c0_i32 = arith.constant 0 : i32
    %c0_i32_0 = arith.constant 0 : i32
    %c0_i32_1 = arith.constant 0 : i32
    return %c0_i32, %c0_i32_0 : i32, i32
  }
  func.func @transform_2(%arg0: i32) -> (i32, i32) {
    %c0_i32 = arith.constant 0 : i32
    %c0_i32_0 = arith.constant 0 : i32
    %c0_i32_1 = arith.constant 0 : i32
    return %c0_i32, %c0_i32_0 : i32, i32
  }
  func.func @transform_3(%arg0: i32) -> (i32, i32) {
    %c0_i32 = arith.constant 0 : i32
    %c0_i32_0 = arith.constant 0 : i32
    %c0_i32_1 = arith.constant 0 : i32
    return %c0_i32, %c0_i32_0 : i32, i32
  }
  func.func @transform_4(%arg0: i32) -> (i32, i32) {
    %c0_i32 = arith.constant 0 : i32
    %c0_i32_0 = arith.constant 0 : i32
    %c0_i32_1 = arith.constant 0 : i32
    return %c0_i32, %c0_i32_0 : i32, i32
  }
  func.func @transform_5(%arg0: i32) -> (i32, i32) {
    %c0_i32 = arith.constant 0 : i32
    %c0_i32_0 = arith.constant 0 : i32
    return %arg0, %c0_i32 : i32, i32
  }
}

</mosaic_0001>

<llo_original>
// kernel: feed_forward.1
$region0: #{feed_forward.1}
  #allocation0 [shape = 'u32[]', space=smem, size = 0x4, offset = 0x4, fixed_abs, tag = 'smem constant byte address 0x4 - core index']
  #allocation1 [shape = 'u32[144,128]{1,0:T(1,128)}', space=vmem, size = 0x12000, scoped, tag = 'internal scratch']
  %s0 = inlined_call_operand.vmem [shape: bf16[256,384], index: 0, kind: input, shape index: {}]
  %s1 = inlined_call_operand.vmem [shape: bf16[384,1536], index: 1, kind: input, shape index: {}]
  %s2 = inlined_call_operand.vmem [shape: f32[1,1536], index: 2, kind: input, shape index: {}]
  %s3 = inlined_call_operand.vmem [shape: bf16[1536,384], index: 3, kind: input, shape index: {}]
  %s4 = inlined_call_operand.vmem [shape: f32[1,384], index: 4, kind: input, shape index: {}]
  %s5 = inlined_call_operand.vmem [shape: f32[256,384], index: 5, kind: output, shape index: {}]
  %s6 = sld [smem:[#allocation0]]
  $region30: #{feed_forward.1} parent=0
    _
  %s8 = ssub.s32 1, %s6
  %s9 = scalar_select 0, %s8, %s6
  // Predicated region
  $region2: #{feed_forward.1} parent=0 // pred_check
    _
  $region3: #{feed_forward.1} parent=0 // pred_check_branch
    %11 = sbr.rel (0) target = $region5
  $region4: #{feed_forward.1} parent=0 // pred_region
    _
  $region5: #{feed_forward.1} parent=0 // pred_fallthru
    _
  // Predicated region
  $region6: #{feed_forward.1} parent=0 // pred_check
    _
  $region7: #{feed_forward.1} parent=0 // pred_check_branch
    %13 = sbr.rel (0) target = $region9
  $region8: #{feed_forward.1} parent=0 // pred_region
    _
  $region9: #{feed_forward.1} parent=0 // pred_fallthru
    _
  // Predicated region
  $region10: #{feed_forward.1} parent=0 // pred_check
    _
  $region11: #{feed_forward.1} parent=0 // pred_check_branch
    %15 = sbr.rel (0) target = $region13
  $region12: #{feed_forward.1} parent=0 // pred_region
    _
  $region13: #{feed_forward.1} parent=0 // pred_fallthru
    _
  // Predicated region
  $region14: #{feed_forward.1} parent=0 // pred_check
    _
  $region15: #{feed_forward.1} parent=0 // pred_check_branch
    %17 = sbr.rel (0) target = $region17
  $region16: #{feed_forward.1} parent=0 // pred_region
    _
  $region17: #{feed_forward.1} parent=0 // pred_fallthru
    _
  // Predicated region
  $region18: #{feed_forward.1} parent=0 // pred_check
    _
  $region19: #{feed_forward.1} parent=0 // pred_check_branch
    %19 = sbr.rel (0) target = $region21
  $region20: #{feed_forward.1} parent=0 // pred_region
    _
  $region21: #{feed_forward.1} parent=0 // pred_fallthru
    _
  %v21 = vld [vmem:[%s0] sm:$0xff]
  %v22 = vld [vmem:[%s0 + $0x8] sm:$0xf]
  %v23 = vld [vmem:[%s0 + $0xc] sm:$0xff]
  %v24 = vld [vmem:[%s0 + $0x14] sm:$0xf]
  %v25 = vld [vmem:[%s0 + $0x18] sm:$0xff]
  %v26 = vld [vmem:[%s0 + $0x20] sm:$0xf]
  %v27 = vld [vmem:[%s0 + $0x24] sm:$0xff]
  %v28 = vld [vmem:[%s0 + $0x2c] sm:$0xf]
  %v29 = vld [vmem:[%s0 + $0x30] sm:$0xff]
  %v30 = vld [vmem:[%s0 + $0x38] sm:$0xf]
  %v31 = vld [vmem:[%s0 + $0x3c] sm:$0xff]
  %v32 = vld [vmem:[%s0 + $0x44] sm:$0xf]
  %v33 = vld [vmem:[%s0 + $0x48] sm:$0xff]
  %v34 = vld [vmem:[%s0 + $0x50] sm:$0xf]
  %v35 = vld [vmem:[%s0 + $0x54] sm:$0xff]
  %v36 = vld [vmem:[%s0 + $0x5c] sm:$0xf]
  %v37 = vld [vmem:[%s0 + $0x60] sm:$0xff]
  %v38 = vld [vmem:[%s0 + $0x68] sm:$0xf]
  %v39 = vld [vmem:[%s0 + $0x6c] sm:$0xff]
  %v40 = vld [vmem:[%s0 + $0x74] sm:$0xf]
  %v41 = vld [vmem:[%s0 + $0x78] sm:$0xff]
  %v42 = vld [vmem:[%s0 + $0x80] sm:$0xf]
  %v43 = vld [vmem:[%s0 + $0x84] sm:$0xff]
  %v44 = vld [vmem:[%s0 + $0x8c] sm:$0xf]
  %v45 = vld [vmem:[%s0 + $0x90] sm:$0xff]
  %v46 = vld [vmem:[%s0 + $0x98] sm:$0xf]
  %v47 = vld [vmem:[%s0 + $0x9c] sm:$0xff]
  %v48 = vld [vmem:[%s0 + $0xa4] sm:$0xf]
  %v49 = vld [vmem:[%s0 + $0xa8] sm:$0xff]
  %v50 = vld [vmem:[%s0 + $0xb0] sm:$0xf]
  %v51 = vld [vmem:[%s0 + $0xb4] sm:$0xff]
  %v52 = vld [vmem:[%s0 + $0xbc] sm:$0xf]
  %v53 = vld [vmem:[%s0 + $0xc0] sm:$0xff]
  %v54 = vld [vmem:[%s0 + $0xc8] sm:$0xf]
  %v55 = vld [vmem:[%s0 + $0xcc] sm:$0xff]
  %v56 = vld [vmem:[%s0 + $0xd4] sm:$0xf]
  %v57 = vld [vmem:[%s0 + $0xd8] sm:$0xff]
  %v58 = vld [vmem:[%s0 + $0xe0] sm:$0xf]
  %v59 = vld [vmem:[%s0 + $0xe4] sm:$0xff]
  %v60 = vld [vmem:[%s0 + $0xec] sm:$0xf]
  %v61 = vld [vmem:[%s0 + $0xf0] sm:$0xff]
  %v62 = vld [vmem:[%s0 + $0xf8] sm:$0xf]
  %v63 = vld [vmem:[%s0 + $0xfc] sm:$0xff]
  %v64 = vld [vmem:[%s0 + $0x104] sm:$0xf]
  %v65 = vld [vmem:[%s0 + $0x108] sm:$0xff]
  %v66 = vld [vmem:[%s0 + $0x110] sm:$0xf]
  %v67 = vld [vmem:[%s0 + $0x114] sm:$0xff]
  %v68 = vld [vmem:[%s0 + $0x11c] sm:$0xf]
  %v69 = vld [vmem:[%s0 + $0x120] sm:$0xff]
  %v70 = vld [vmem:[%s0 + $0x128] sm:$0xf]
  %v71 = vld [vmem:[%s0 + $0x12c] sm:$0xff]
  %v72 = vld [vmem:[%s0 + $0x134] sm:$0xf]
  %v73 = vld [vmem:[%s0 + $0x138] sm:$0xff]
  %v74 = vld [vmem:[%s0 + $0x140] sm:$0xf]
  %v75 = vld [vmem:[%s0 + $0x144] sm:$0xff]
  %v76 = vld [vmem:[%s0 + $0x14c] sm:$0xf]
  %v77 = vld [vmem:[%s0 + $0x150] sm:$0xff]
  %v78 = vld [vmem:[%s0 + $0x158] sm:$0xf]
  %v79 = vld [vmem:[%s0 + $0x15c] sm:$0xff]
  %v80 = vld [vmem:[%s0 + $0x164] sm:$0xf]
  %v81 = vld [vmem:[%s0 + $0x168] sm:$0xff]
  %v82 = vld [vmem:[%s0 + $0x170] sm:$0xf]
  %v83 = vld [vmem:[%s0 + $0x174] sm:$0xff]
  %v84 = vld [vmem:[%s0 + $0x17c] sm:$0xf]
  %v85 = vld [vmem:[%s1] sm:$0xff]
  %v86 = vld [vmem:[%s1 + $0x8] sm:$0xff]
  %v87 = vld [vmem:[%s1 + $0x10] sm:$0xff]
  %v88 = vld [vmem:[%s1 + $0x18] sm:$0xff]
  %v89 = vld [vmem:[%s1 + $0x20] sm:$0xff]
  %v90 = vld [vmem:[%s1 + $0x28] sm:$0xff]
  %v91 = vld [vmem:[%s1 + $0x30] sm:$0xff]
  %v92 = vld [vmem:[%s1 + $0x38] sm:$0xff]
  %v93 = vld [vmem:[%s1 + $0x40] sm:$0xff]
  %v94 = vld [vmem:[%s1 + $0x48] sm:$0xff]
  %v95 = vld [vmem:[%s1 + $0x50] sm:$0xff]
  %v96 = vld [vmem:[%s1 + $0x58] sm:$0xff]
  %v97 = vld [vmem:[%s1 + $0x60] sm:$0xff]
  %v98 = vld [vmem:[%s1 + $0x68] sm:$0xff]
  %v99 = vld [vmem:[%s1 + $0x70] sm:$0xff]
  %v100 = vld [vmem:[%s1 + $0x78] sm:$0xff]
  %v101 = vld [vmem:[%s1 + $0x80] sm:$0xff]
  %v102 = vld [vmem:[%s1 + $0x88] sm:$0xff]
  %v103 = vld [vmem:[%s1 + $0x90] sm:$0xff]
  %v104 = vld [vmem:[%s1 + $0x98] sm:$0xff]
  %v105 = vld [vmem:[%s1 + $0xa0] sm:$0xff]
  %v106 = vld [vmem:[%s1 + $0xa8] sm:$0xff]
  %v107 = vld [vmem:[%s1 + $0xb0] sm:$0xff]
  %v108 = vld [vmem:[%s1 + $0xb8] sm:$0xff]
  %v109 = vld [vmem:[%s1 + $0xc0] sm:$0xff]
  %v110 = vld [vmem:[%s1 + $0xc8] sm:$0xff]
  %v111 = vld [vmem:[%s1 + $0xd0] sm:$0xff]
  %v112 = vld [vmem:[%s1 + $0xd8] sm:$0xff]
  %v113 = vld [vmem:[%s1 + $0xe0] sm:$0xff]
  %v114 = vld [vmem:[%s1 + $0xe8] sm:$0xff]
  %v115 = vld [vmem:[%s1 + $0xf0] sm:$0xff]
  %v116 = vld [vmem:[%s1 + $0xf8] sm:$0xff]
  %v117 = vld [vmem:[%s1 + $0x100] sm:$0xff]
  %v118 = vld [vmem:[%s1 + $0x108] sm:$0xff]
  %v119 = vld [vmem:[%s1 + $0x110] sm:$0xff]
  %v120 = vld [vmem:[%s1 + $0x118] sm:$0xff]
  %v121 = vld [vmem:[%s1 + $0x120] sm:$0xff]
  %v122 = vld [vmem:[%s1 + $0x128] sm:$0xff]
  %v123 = vld [vmem:[%s1 + $0x130] sm:$0xff]
  %v124 = vld [vmem:[%s1 + $0x138] sm:$0xff]
  %v125 = vld [vmem:[%s1 + $0x140] sm:$0xff]
  %v126 = vld [vmem:[%s1 + $0x148] sm:$0xff]
  %v127 = vld [vmem:[%s1 + $0x150] sm:$0xff]
  %v128 = vld [vmem:[%s1 + $0x158] sm:$0xff]
  %v129 = vld [vmem:[%s1 + $0x160] sm:$0xff]
  %v130 = vld [vmem:[%s1 + $0x168] sm:$0xff]
  %v131 = vld [vmem:[%s1 + $0x170] sm:$0xff]
  %v132 = vld [vmem:[%s1 + $0x178] sm:$0xff]
  %v133 = vld [vmem:[%s1 + $0x180] sm:$0xff]
  %v134 = vld [vmem:[%s1 + $0x188] sm:$0xff]
  %v135 = vld [vmem:[%s1 + $0x190] sm:$0xff]
  %v136 = vld [vmem:[%s1 + $0x198] sm:$0xff]
  %v137 = vld [vmem:[%s1 + $0x1a0] sm:$0xff]
  %v138 = vld [vmem:[%s1 + $0x1a8] sm:$0xff]
  %v139 = vld [vmem:[%s1 + $0x1b0] sm:$0xff]
  %v140 = vld [vmem:[%s1 + $0x1b8] sm:$0xff]
  %v141 = vld [vmem:[%s1 + $0x1c0] sm:$0xff]
  %v142 = vld [vmem:[%s1 + $0x1c8] sm:$0xff]
  %v143 = vld [vmem:[%s1 + $0x1d0] sm:$0xff]
  %v144 = vld [vmem:[%s1 + $0x1d8] sm:$0xff]
  %v145 = vld [vmem:[%s1 + $0x1e0] sm:$0xff]
  %v146 = vld [vmem:[%s1 + $0x1e8] sm:$0xff]
  %v147 = vld [vmem:[%s1 + $0x1f0] sm:$0xff]
  %v148 = vld [vmem:[%s1 + $0x1f8] sm:$0xff]
  %v149 = vld [vmem:[%s1 + $0x200] sm:$0xff]
  %v150 = vld [vmem:[%s1 + $0x208] sm:$0xff]
  %v151 = vld [vmem:[%s1 + $0x210] sm:$0xff]
  %v152 = vld [vmem:[%s1 + $0x218] sm:$0xff]
  %v153 = vld [vmem:[%s1 + $0x220] sm:$0xff]
  %v154 = vld [vmem:[%s1 + $0x228] sm:$0xff]
  %v155 = vld [vmem:[%s1 + $0x230] sm:$0xff]
  %v156 = vld [vmem:[%s1 + $0x238] sm:$0xff]
  %v157 = vld [vmem:[%s1 + $0x240] sm:$0xff]
  %v158 = vld [vmem:[%s1 + $0x248] sm:$0xff]
  %v159 = vld [vmem:[%s1 + $0x250] sm:$0xff]
  %v160 = vld [vmem:[%s1 + $0x258] sm:$0xff]
  %v161 = vld [vmem:[%s1 + $0x260] sm:$0xff]
  %v162 = vld [vmem:[%s1 + $0x268] sm:$0xff]
  %v163 = vld [vmem:[%s1 + $0x270] sm:$0xff]
  %v164 = vld [vmem:[%s1 + $0x278] sm:$0xff]
  %v165 = vld [vmem:[%s1 + $0x280] sm:$0xff]
  %v166 = vld [vmem:[%s1 + $0x288] sm:$0xff]
  %v167 = vld [vmem:[%s1 + $0x290] sm:$0xff]
  %v168 = vld [vmem:[%s1 + $0x298] sm:$0xff]
  %v169 = vld [vmem:[%s1 + $0x2a0] sm:$0xff]
  %v170 = vld [vmem:[%s1 + $0x2a8] sm:$0xff]
  %v171 = vld [vmem:[%s1 + $0x2b0] sm:$0xff]
  %v172 = vld [vmem:[%s1 + $0x2b8] sm:$0xff]
  %v173 = vld [vmem:[%s1 + $0x2c0] sm:$0xff]
  %v174 = vld [vmem:[%s1 + $0x2c8] sm:$0xff]
  %v175 = vld [vmem:[%s1 + $0x2d0] sm:$0xff]
  %v176 = vld [vmem:[%s1 + $0x2d8] sm:$0xff]
  %v177 = vld [vmem:[%s1 + $0x2e0] sm:$0xff]
  %v178 = vld [vmem:[%s1 + $0x2e8] sm:$0xff]
  %v179 = vld [vmem:[%s1 + $0x2f0] sm:$0xff]
  %v180 = vld [vmem:[%s1 + $0x2f8] sm:$0xff]
  %v181 = vld [vmem:[%s1 + $0x300] sm:$0xff]
  %v182 = vld [vmem:[%s1 + $0x308] sm:$0xff]
  %v183 = vld [vmem:[%s1 + $0x310] sm:$0xff]
  %v184 = vld [vmem:[%s1 + $0x318] sm:$0xff]
  %v185 = vld [vmem:[%s1 + $0x320] sm:$0xff]
  %v186 = vld [vmem:[%s1 + $0x328] sm:$0xff]
  %v187 = vld [vmem:[%s1 + $0x330] sm:$0xff]
  %v188 = vld [vmem:[%s1 + $0x338] sm:$0xff]
  %v189 = vld [vmem:[%s1 + $0x340] sm:$0xff]
  %v190 = vld [vmem:[%s1 + $0x348] sm:$0xff]
  %v191 = vld [vmem:[%s1 + $0x350] sm:$0xff]
  %v192 = vld [vmem:[%s1 + $0x358] sm:$0xff]
  %v193 = vld [vmem:[%s1 + $0x360] sm:$0xff]
  %v194 = vld [vmem:[%s1 + $0x368] sm:$0xff]
  %v195 = vld [vmem:[%s1 + $0x370] sm:$0xff]
  %v196 = vld [vmem:[%s1 + $0x378] sm:$0xff]
  %v197 = vld [vmem:[%s1 + $0x380] sm:$0xff]
  %v198 = vld [vmem:[%s1 + $0x388] sm:$0xff]
  %v199 = vld [vmem:[%s1 + $0x390] sm:$0xff]
  %v200 = vld [vmem:[%s1 + $0x398] sm:$0xff]
  %v201 = vld [vmem:[%s1 + $0x3a0] sm:$0xff]
  %v202 = vld [vmem:[%s1 + $0x3a8] sm:$0xff]
  %v203 = vld [vmem:[%s1 + $0x3b0] sm:$0xff]
  %v204 = vld [vmem:[%s1 + $0x3b8] sm:$0xff]
  %v205 = vld [vmem:[%s1 + $0x3c0] sm:$0xff]
  %v206 = vld [vmem:[%s1 + $0x3c8] sm:$0xff]
  %v207 = vld [vmem:[%s1 + $0x3d0] sm:$0xff]
  %v208 = vld [vmem:[%s1 + $0x3d8] sm:$0xff]
  %v209 = vld [vmem:[%s1 + $0x3e0] sm:$0xff]
  %v210 = vld [vmem:[%s1 + $0x3e8] sm:$0xff]
  %v211 = vld [vmem:[%s1 + $0x3f0] sm:$0xff]
  %v212 = vld [vmem:[%s1 + $0x3f8] sm:$0xff]
  %v213 = vld [vmem:[%s1 + $0x400] sm:$0xff]
  %v214 = vld [vmem:[%s1 + $0x408] sm:$0xff]
  %v215 = vld [vmem:[%s1 + $0x410] sm:$0xff]
  %v216 = vld [vmem:[%s1 + $0x418] sm:$0xff]
  %v217 = vld [vmem:[%s1 + $0x420] sm:$0xff]
  %v218 = vld [vmem:[%s1 + $0x428] sm:$0xff]
  %v219 = vld [vmem:[%s1 + $0x430] sm:$0xff]
  %v220 = vld [vmem:[%s1 + $0x438] sm:$0xff]
  %v221 = vld [vmem:[%s1 + $0x440] sm:$0xff]
  %v222 = vld [vmem:[%s1 + $0x448] sm:$0xff]
  %v223 = vld [vmem:[%s1 + $0x450] sm:$0xff]
  %v224 = vld [vmem:[%s1 + $0x458] sm:$0xff]
  %v225 = vld [vmem:[%s1 + $0x460] sm:$0xff]
  %v226 = vld [vmem:[%s1 + $0x468] sm:$0xff]
  %v227 = vld [vmem:[%s1 + $0x470] sm:$0xff]
  %v228 = vld [vmem:[%s1 + $0x478] sm:$0xff]
  %v229 = vld [vmem:[%s1 + $0x480] sm:$0xff]
  %v230 = vld [vmem:[%s1 + $0x488] sm:$0xff]
  %v231 = vld [vmem:[%s1 + $0x490] sm:$0xff]
  %v232 = vld [vmem:[%s1 + $0x498] sm:$0xff]
  %v233 = vld [vmem:[%s1 + $0x4a0] sm:$0xff]
  %v234 = vld [vmem:[%s1 + $0x4a8] sm:$0xff]
  %v235 = vld [vmem:[%s1 + $0x4b0] sm:$0xff]
  %v236 = vld [vmem:[%s1 + $0x4b8] sm:$0xff]
  %v237 = vld [vmem:[%s1 + $0x4c0] sm:$0xff]
  %v238 = vld [vmem:[%s1 + $0x4c8] sm:$0xff]
  %v239 = vld [vmem:[%s1 + $0x4d0] sm:$0xff]
  %v240 = vld [vmem:[%s1 + $0x4d8] sm:$0xff]
  %v241 = vld [vmem:[%s1 + $0x4e0] sm:$0xff]
  %v242 = vld [vmem:[%s1 + $0x4e8] sm:$0xff]
  %v243 = vld [vmem:[%s1 + $0x4f0] sm:$0xff]
  %v244 = vld [vmem:[%s1 + $0x4f8] sm:$0xff]
  %v245 = vld [vmem:[%s1 + $0x500] sm:$0xff]
  %v246 = vld [vmem:[%s1 + $0x508] sm:$0xff]
  %v247 = vld [vmem:[%s1 + $0x510] sm:$0xff]
  %v248 = vld [vmem:[%s1 + $0x518] sm:$0xff]
  %v249 = vld [vmem:[%s1 + $0x520] sm:$0xff]
  %v250 = vld [vmem:[%s1 + $0x528] sm:$0xff]
  %v251 = vld [vmem:[%s1 + $0x530] sm:$0xff]
  %v252 = vld [vmem:[%s1 + $0x538] sm:$0xff]
  %v253 = vld [vmem:[%s1 + $0x540] sm:$0xff]
  %v254 = vld [vmem:[%s1 + $0x548] sm:$0xff]
  %v255 = vld [vmem:[%s1 + $0x550] sm:$0xff]
  %v256 = vld [vmem:[%s1 + $0x558] sm:$0xff]
  %v257 = vld [vmem:[%s1 + $0x560] sm:$0xff]
  %v258 = vld [vmem:[%s1 + $0x568] sm:$0xff]
  %v259 = vld [vmem:[%s1 + $0x570] sm:$0xff]
  %v260 = vld [vmem:[%s1 + $0x578] sm:$0xff]
  %v261 = vld [vmem:[%s1 + $0x580] sm:$0xff]
  %v262 = vld [vmem:[%s1 + $0x588] sm:$0xff]
  %v263 = vld [vmem:[%s1 + $0x590] sm:$0xff]
  %v264 = vld [vmem:[%s1 + $0x598] sm:$0xff]
  %v265 = vld [vmem:[%s1 + $0x5a0] sm:$0xff]
  %v266 = vld [vmem:[%s1 + $0x5a8] sm:$0xff]
  %v267 = vld [vmem:[%s1 + $0x5b0] sm:$0xff]
  %v268 = vld [vmem:[%s1 + $0x5b8] sm:$0xff]
  %v269 = vld [vmem:[%s1 + $0x5c0] sm:$0xff]
  %v270 = vld [vmem:[%s1 + $0x5c8] sm:$0xff]
  %v271 = vld [vmem:[%s1 + $0x5d0] sm:$0xff]
  %v272 = vld [vmem:[%s1 + $0x5d8] sm:$0xff]
  %v273 = vld [vmem:[%s1 + $0x5e0] sm:$0xff]
  %v274 = vld [vmem:[%s1 + $0x5e8] sm:$0xff]
  %v275 = vld [vmem:[%s1 + $0x5f0] sm:$0xff]
  %v276 = vld [vmem:[%s1 + $0x5f8] sm:$0xff]
  %v277 = vld [vmem:[%s1 + $0x600] sm:$0xff]
  %v278 = vld [vmem:[%s1 + $0x608] sm:$0xff]
  %v279 = vld [vmem:[%s1 + $0x610] sm:$0xff]
  %v280 = vld [vmem:[%s1 + $0x618] sm:$0xff]
  %v281 = vld [vmem:[%s1 + $0x620] sm:$0xff]
  %v282 = vld [vmem:[%s1 + $0x628] sm:$0xff]
  %v283 = vld [vmem:[%s1 + $0x630] sm:$0xff]
  %v284 = vld [vmem:[%s1 + $0x638] sm:$0xff]
  %v285 = vld [vmem:[%s1 + $0x640] sm:$0xff]
  %v286 = vld [vmem:[%s1 + $0x648] sm:$0xff]
  %v287 = vld [vmem:[%s1 + $0x650] sm:$0xff]
  %v288 = vld [vmem:[%s1 + $0x658] sm:$0xff]
  %v289 = vld [vmem:[%s1 + $0x660] sm:$0xff]
  %v290 = vld [vmem:[%s1 + $0x668] sm:$0xff]
  %v291 = vld [vmem:[%s1 + $0x670] sm:$0xff]
  %v292 = vld [vmem:[%s1 + $0x678] sm:$0xff]
  %v293 = vld [vmem:[%s1 + $0x680] sm:$0xff]
  %v294 = vld [vmem:[%s1 + $0x688] sm:$0xff]
  %v295 = vld [vmem:[%s1 + $0x690] sm:$0xff]
  %v296 = vld [vmem:[%s1 + $0x698] sm:$0xff]
  %v297 = vld [vmem:[%s1 + $0x6a0] sm:$0xff]
  %v298 = vld [vmem:[%s1 + $0x6a8] sm:$0xff]
  %v299 = vld [vmem:[%s1 + $0x6b0] sm:$0xff]
  %v300 = vld [vmem:[%s1 + $0x6b8] sm:$0xff]
  %v301 = vld [vmem:[%s1 + $0x6c0] sm:$0xff]
  %v302 = vld [vmem:[%s1 + $0x6c8] sm:$0xff]
  %v303 = vld [vmem:[%s1 + $0x6d0] sm:$0xff]
  %v304 = vld [vmem:[%s1 + $0x6d8] sm:$0xff]
  %v305 = vld [vmem:[%s1 + $0x6e0] sm:$0xff]
  %v306 = vld [vmem:[%s1 + $0x6e8] sm:$0xff]
  %v307 = vld [vmem:[%s1 + $0x6f0] sm:$0xff]
  %v308 = vld [vmem:[%s1 + $0x6f8] sm:$0xff]
  %v309 = vld [vmem:[%s1 + $0x700] sm:$0xff]
  %v310 = vld [vmem:[%s1 + $0x708] sm:$0xff]
  %v311 = vld [vmem:[%s1 + $0x710] sm:$0xff]
  %v312 = vld [vmem:[%s1 + $0x718] sm:$0xff]
  %v313 = vld [vmem:[%s1 + $0x720] sm:$0xff]
  %v314 = vld [vmem:[%s1 + $0x728] sm:$0xff]
  %v315 = vld [vmem:[%s1 + $0x730] sm:$0xff]
  %v316 = vld [vmem:[%s1 + $0x738] sm:$0xff]
  %v317 = vld [vmem:[%s1 + $0x740] sm:$0xff]
  %v318 = vld [vmem:[%s1 + $0x748] sm:$0xff]
  %v319 = vld [vmem:[%s1 + $0x750] sm:$0xff]
  %v320 = vld [vmem:[%s1 + $0x758] sm:$0xff]
  %v321 = vld [vmem:[%s1 + $0x760] sm:$0xff]
  %v322 = vld [vmem:[%s1 + $0x768] sm:$0xff]
  %v323 = vld [vmem:[%s1 + $0x770] sm:$0xff]
  %v324 = vld [vmem:[%s1 + $0x778] sm:$0xff]
  %v325 = vld [vmem:[%s1 + $0x780] sm:$0xff]
  %v326 = vld [vmem:[%s1 + $0x788] sm:$0xff]
  %v327 = vld [vmem:[%s1 + $0x790] sm:$0xff]
  %v328 = vld [vmem:[%s1 + $0x798] sm:$0xff]
  %v329 = vld [vmem:[%s1 + $0x7a0] sm:$0xff]
  %v330 = vld [vmem:[%s1 + $0x7a8] sm:$0xff]
  %v331 = vld [vmem:[%s1 + $0x7b0] sm:$0xff]
  %v332 = vld [vmem:[%s1 + $0x7b8] sm:$0xff]
  %v333 = vld [vmem:[%s1 + $0x7c0] sm:$0xff]
  %v334 = vld [vmem:[%s1 + $0x7c8] sm:$0xff]
  %v335 = vld [vmem:[%s1 + $0x7d0] sm:$0xff]
  %v336 = vld [vmem:[%s1 + $0x7d8] sm:$0xff]
  %v337 = vld [vmem:[%s1 + $0x7e0] sm:$0xff]
  %v338 = vld [vmem:[%s1 + $0x7e8] sm:$0xff]
  %v339 = vld [vmem:[%s1 + $0x7f0] sm:$0xff]
  %v340 = vld [vmem:[%s1 + $0x7f8] sm:$0xff]
  %v341 = vld [vmem:[%s1 + $0x800] sm:$0xff]
  %v342 = vld [vmem:[%s1 + $0x808] sm:$0xff]
  %v343 = vld [vmem:[%s1 + $0x810] sm:$0xff]
  %v344 = vld [vmem:[%s1 + $0x818] sm:$0xff]
  %v345 = vld [vmem:[%s1 + $0x820] sm:$0xff]
  %v346 = vld [vmem:[%s1 + $0x828] sm:$0xff]
  %v347 = vld [vmem:[%s1 + $0x830] sm:$0xff]
  %v348 = vld [vmem:[%s1 + $0x838] sm:$0xff]
  %v349 = vld [vmem:[%s1 + $0x840] sm:$0xff]
  %v350 = vld [vmem:[%s1 + $0x848] sm:$0xff]
  %v351 = vld [vmem:[%s1 + $0x850] sm:$0xff]
  %v352 = vld [vmem:[%s1 + $0x858] sm:$0xff]
  %v353 = vld [vmem:[%s1 + $0x860] sm:$0xff]
  %v354 = vld [vmem:[%s1 + $0x868] sm:$0xff]
  %v355 = vld [vmem:[%s1 + $0x870] sm:$0xff]
  %v356 = vld [vmem:[%s1 + $0x878] sm:$0xff]
  %v357 = vld [vmem:[%s1 + $0x880] sm:$0xff]
  %v358 = vld [vmem:[%s1 + $0x888] sm:$0xff]
  %v359 = vld [vmem:[%s1 + $0x890] sm:$0xff]
  %v360 = vld [vmem:[%s1 + $0x898] sm:$0xff]
  %v361 = vld [vmem:[%s1 + $0x8a0] sm:$0xff]
  %v362 = vld [vmem:[%s1 + $0x8a8] sm:$0xff]
  %v363 = vld [vmem:[%s1 + $0x8b0] sm:$0xff]
  %v364 = vld [vmem:[%s1 + $0x8b8] sm:$0xff]
  %v365 = vld [vmem:[%s1 + $0x8c0] sm:$0xff]
  %v366 = vld [vmem:[%s1 + $0x8c8] sm:$0xff]
  %v367 = vld [vmem:[%s1 + $0x8d0] sm:$0xff]
  %v368 = vld [vmem:[%s1 + $0x8d8] sm:$0xff]
  %v369 = vld [vmem:[%s1 + $0x8e0] sm:$0xff]
  %v370 = vld [vmem:[%s1 + $0x8e8] sm:$0xff]
  %v371 = vld [vmem:[%s1 + $0x8f0] sm:$0xff]
  %v372 = vld [vmem:[%s1 + $0x8f8] sm:$0xff]
  %v373 = vld [vmem:[%s2] sm:$0xff]
  %v374 = vld [vmem:[%s2 + $0x8] sm:$0xf]
  %v377 = vlaneseq
  %v378 = vshrl.u32 %v377, 7
  %v379 = vsub.s32 0, %v378
  %v380 = vrot.slane %v373, %v379
  %v381 = vlaneseq
  %v382 = vshrl.u32 %v381, 7
  %v383 = vsub.s32 1, %v382
  %v384 = vrot.slane %v373, %v383
  %v385 = vlaneseq
  %v386 = vshrl.u32 %v385, 7
  %v387 = vsub.s32 2, %v386
  %v388 = vrot.slane %v373, %v387
  %v389 = vlaneseq
  %v390 = vshrl.u32 %v389, 7
  %v391 = vsub.s32 3, %v390
  %v392 = vrot.slane %v373, %v391
  %v393 = vlaneseq
  %v394 = vshrl.u32 %v393, 7
  %v395 = vsub.s32 4, %v394
  %v396 = vrot.slane %v373, %v395
  %v397 = vlaneseq
  %v398 = vshrl.u32 %v397, 7
  %v399 = vsub.s32 5, %v398
  %v400 = vrot.slane %v373, %v399
  %v401 = vlaneseq
  %v402 = vshrl.u32 %v401, 7
  %v403 = vsub.s32 6, %v402
  %v404 = vrot.slane %v373, %v403
  %v405 = vlaneseq
  %v406 = vshrl.u32 %v405, 7
  %v407 = vsub.s32 7, %v406
  %v408 = vrot.slane %v373, %v407
  %v409 = vlaneseq
  %v410 = vshrl.u32 %v409, 7
  %v411 = vsub.s32 0, %v410
  %v412 = vrot.slane %v374, %v411
  %v413 = vlaneseq
  %v414 = vshrl.u32 %v413, 7
  %v415 = vsub.s32 1, %v414
  %v416 = vrot.slane %v374, %v415
  %v417 = vlaneseq
  %v418 = vshrl.u32 %v417, 7
  %v419 = vsub.s32 2, %v418
  %v420 = vrot.slane %v374, %v419
  %v421 = vlaneseq
  %v422 = vshrl.u32 %v421, 7
  %v423 = vsub.s32 3, %v422
  %v424 = vrot.slane %v374, %v423
  %v501 = vunpack.c.l.b16 %v21
  %v502 = vunpack.c.h.b16 %v21
  %v503 = vunpack.c.l.b16 %v22
  %v504 = vunpack.c.l.b16 %v23
  %v505 = vunpack.c.h.b16 %v23
  %v506 = vunpack.c.l.b16 %v24
  %v507 = vunpack.c.l.b16 %v25
  %v508 = vunpack.c.h.b16 %v25
  %v509 = vunpack.c.l.b16 %v26
  %v510 = vunpack.c.l.b16 %v27
  %v511 = vunpack.c.h.b16 %v27
  %v512 = vunpack.c.l.b16 %v28
  %v513 = vunpack.c.l.b16 %v29
  %v514 = vunpack.c.h.b16 %v29
  %v515 = vunpack.c.l.b16 %v30
  %v516 = vunpack.c.l.b16 %v31
  %v517 = vunpack.c.h.b16 %v31
  %v518 = vunpack.c.l.b16 %v32
  %v519 = vunpack.c.l.b16 %v33
  %v520 = vunpack.c.h.b16 %v33
  %v521 = vunpack.c.l.b16 %v34
  %v522 = vunpack.c.l.b16 %v35
  %v523 = vunpack.c.h.b16 %v35
  %v524 = vunpack.c.l.b16 %v36
  %v525 = vunpack.c.l.b16 %v37
  %v526 = vunpack.c.h.b16 %v37
  %v527 = vunpack.c.l.b16 %v38
  %v528 = vunpack.c.l.b16 %v39
  %v529 = vunpack.c.h.b16 %v39
  %v530 = vunpack.c.l.b16 %v40
  %v531 = vunpack.c.l.b16 %v41
  %v532 = vunpack.c.h.b16 %v41
  %v533 = vunpack.c.l.b16 %v42
  %v534 = vunpack.c.l.b16 %v43
  %v535 = vunpack.c.h.b16 %v43
  %v536 = vunpack.c.l.b16 %v44
  %v537 = vunpack.c.l.b16 %v45
  %v538 = vunpack.c.h.b16 %v45
  %v539 = vunpack.c.l.b16 %v46
  %v540 = vunpack.c.l.b16 %v47
  %v541 = vunpack.c.h.b16 %v47
  %v542 = vunpack.c.l.b16 %v48
  %v543 = vunpack.c.l.b16 %v49
  %v544 = vunpack.c.h.b16 %v49
  %v545 = vunpack.c.l.b16 %v50
  %v546 = vunpack.c.l.b16 %v51
  %v547 = vunpack.c.h.b16 %v51
  %v548 = vunpack.c.l.b16 %v52
  %v549 = vunpack.c.l.b16 %v53
  %v550 = vunpack.c.h.b16 %v53
  %v551 = vunpack.c.l.b16 %v54
  %v552 = vunpack.c.l.b16 %v55
  %v553 = vunpack.c.h.b16 %v55
  %v554 = vunpack.c.l.b16 %v56
  %v555 = vunpack.c.l.b16 %v57
  %v556 = vunpack.c.h.b16 %v57
  %v557 = vunpack.c.l.b16 %v58
  %v558 = vunpack.c.l.b16 %v59
  %v559 = vunpack.c.h.b16 %v59
  %v560 = vunpack.c.l.b16 %v60
  %v561 = vunpack.c.l.b16 %v61
  %v562 = vunpack.c.h.b16 %v61
  %v563 = vunpack.c.l.b16 %v62
  %v564 = vunpack.c.l.b16 %v63
  %v565 = vunpack.c.h.b16 %v63
  %v566 = vunpack.c.l.b16 %v64
  %v567 = vunpack.c.l.b16 %v65
  %v568 = vunpack.c.h.b16 %v65
  %v569 = vunpack.c.l.b16 %v66
  %v570 = vunpack.c.l.b16 %v67
  %v571 = vunpack.c.h.b16 %v67
  %v572 = vunpack.c.l.b16 %v68
  %v573 = vunpack.c.l.b16 %v69
  %v574 = vunpack.c.h.b16 %v69
  %v575 = vunpack.c.l.b16 %v70
  %v576 = vunpack.c.l.b16 %v71
  %v577 = vunpack.c.h.b16 %v71
  %v578 = vunpack.c.l.b16 %v72
  %v579 = vunpack.c.l.b16 %v73
  %v580 = vunpack.c.h.b16 %v73
  %v581 = vunpack.c.l.b16 %v74
  %v582 = vunpack.c.l.b16 %v75
  %v583 = vunpack.c.h.b16 %v75
  %v584 = vunpack.c.l.b16 %v76
  %v585 = vunpack.c.l.b16 %v77
  %v586 = vunpack.c.h.b16 %v77
  %v587 = vunpack.c.l.b16 %v78
  %v588 = vunpack.c.l.b16 %v79
  %v589 = vunpack.c.h.b16 %v79
  %v590 = vunpack.c.l.b16 %v80
  %v591 = vunpack.c.l.b16 %v81
  %v592 = vunpack.c.h.b16 %v81
  %v593 = vunpack.c.l.b16 %v82
  %v594 = vunpack.c.l.b16 %v83
  %v595 = vunpack.c.h.b16 %v83
  %v596 = vunpack.c.l.b16 %v84
  %v597 = vpack.c.b16 %v504, %v501
  %v598 = vpack.c.b16 %v505, %v502
  %v599 = vpack.c.b16 %v506, %v503
  %v600 = vpack.c.b16 %v510, %v507
  %v601 = vpack.c.b16 %v511, %v508
  %v602 = vpack.c.b16 %v512, %v509
  %v603 = vpack.c.b16 %v516, %v513
  %v604 = vpack.c.b16 %v517, %v514
  %v605 = vpack.c.b16 %v518, %v515
  %v606 = vpack.c.b16 %v522, %v519
  %v607 = vpack.c.b16 %v523, %v520
  %v608 = vpack.c.b16 %v524, %v521
  %v609 = vpack.c.b16 %v528, %v525
  %v610 = vpack.c.b16 %v529, %v526
  %v611 = vpack.c.b16 %v530, %v527
  %v612 = vpack.c.b16 %v534, %v531
  %v613 = vpack.c.b16 %v535, %v532
  %v614 = vpack.c.b16 %v536, %v533
  %v615 = vpack.c.b16 %v540, %v537
  %v616 = vpack.c.b16 %v541, %v538
  %v617 = vpack.c.b16 %v542, %v539
  %v618 = vpack.c.b16 %v546, %v543
  %v619 = vpack.c.b16 %v547, %v544
  %v620 = vpack.c.b16 %v548, %v545
  %v621 = vpack.c.b16 %v552, %v549
  %v622 = vpack.c.b16 %v553, %v550
  %v623 = vpack.c.b16 %v554, %v551
  %v624 = vpack.c.b16 %v558, %v555
  %v625 = vpack.c.b16 %v559, %v556
  %v626 = vpack.c.b16 %v560, %v557
  %v627 = vpack.c.b16 %v564, %v561
  %v628 = vpack.c.b16 %v565, %v562
  %v629 = vpack.c.b16 %v566, %v563
  %v630 = vpack.c.b16 %v570, %v567
  %v631 = vpack.c.b16 %v571, %v568
  %v632 = vpack.c.b16 %v572, %v569
  %v633 = vpack.c.b16 %v576, %v573
  %v634 = vpack.c.b16 %v577, %v574
  %v635 = vpack.c.b16 %v578, %v575
  %v636 = vpack.c.b16 %v582, %v579
  %v637 = vpack.c.b16 %v583, %v580
  %v638 = vpack.c.b16 %v584, %v581
  %v639 = vpack.c.b16 %v588, %v585
  %v640 = vpack.c.b16 %v589, %v586
  %v641 = vpack.c.b16 %v590, %v587
  %v642 = vpack.c.b16 %v594, %v591
  %v643 = vpack.c.b16 %v595, %v592
  %v644 = vpack.c.b16 %v596, %v593
  %v981 = vunpack.c.l.b16 %v85
  %v982 = vunpack.c.h.b16 %v85
  %v983 = vunpack.c.l.b16 %v86
  %v984 = vunpack.c.h.b16 %v86
  %v985 = vunpack.c.l.b16 %v87
  %v986 = vunpack.c.h.b16 %v87
  %v987 = vunpack.c.l.b16 %v88
  %v988 = vunpack.c.h.b16 %v88
  %v989 = vunpack.c.l.b16 %v89
  %v990 = vunpack.c.h.b16 %v89
  %v991 = vunpack.c.l.b16 %v90
  %v992 = vunpack.c.h.b16 %v90
  %v993 = vunpack.c.l.b16 %v91
  %v994 = vunpack.c.h.b16 %v91
  %v995 = vunpack.c.l.b16 %v92
  %v996 = vunpack.c.h.b16 %v92
  %v997 = vunpack.c.l.b16 %v93
  %v998 = vunpack.c.h.b16 %v93
  %v999 = vunpack.c.l.b16 %v94
  %v1000 = vunpack.c.h.b16 %v94
  %v1001 = vunpack.c.l.b16 %v95
  %v1002 = vunpack.c.h.b16 %v95
  %v1003 = vunpack.c.l.b16 %v96
  %v1004 = vunpack.c.h.b16 %v96
  %v1005 = vunpack.c.l.b16 %v97
  %v1006 = vunpack.c.h.b16 %v97
  %v1007 = vunpack.c.l.b16 %v98
  %v1008 = vunpack.c.h.b16 %v98
  %v1009 = vunpack.c.l.b16 %v99
  %v1010 = vunpack.c.h.b16 %v99
  %v1011 = vunpack.c.l.b16 %v100
  %v1012 = vunpack.c.h.b16 %v100
  %v1013 = vunpack.c.l.b16 %v101
  %v1014 = vunpack.c.h.b16 %v101
  %v1015 = vunpack.c.l.b16 %v102
  %v1016 = vunpack.c.h.b16 %v102
  %v1017 = vunpack.c.l.b16 %v103
  %v1018 = vunpack.c.h.b16 %v103
  %v1019 = vunpack.c.l.b16 %v104
  %v1020 = vunpack.c.h.b16 %v104
  %v1021 = vunpack.c.l.b16 %v105
  %v1022 = vunpack.c.h.b16 %v105
  %v1023 = vunpack.c.l.b16 %v106
  %v1024 = vunpack.c.h.b16 %v106
  %v1025 = vunpack.c.l.b16 %v107
  %v1026 = vunpack.c.h.b16 %v107
  %v1027 = vunpack.c.l.b16 %v108
  %v1028 = vunpack.c.h.b16 %v108
  %v1029 = vunpack.c.l.b16 %v109
  %v1030 = vunpack.c.h.b16 %v109
  %v1031 = vunpack.c.l.b16 %v110
  %v1032 = vunpack.c.h.b16 %v110
  %v1033 = vunpack.c.l.b16 %v111
  %v1034 = vunpack.c.h.b16 %v111
  %v1035 = vunpack.c.l.b16 %v112
  %v1036 = vunpack.c.h.b16 %v112
  %v1037 = vunpack.c.l.b16 %v113
  %v1038 = vunpack.c.h.b16 %v113
  %v1039 = vunpack.c.l.b16 %v114
  %v1040 = vunpack.c.h.b16 %v114
  %v1041 = vunpack.c.l.b16 %v115
  %v1042 = vunpack.c.h.b16 %v115
  %v1043 = vunpack.c.l.b16 %v116
  %v1044 = vunpack.c.h.b16 %v116
  %v1045 = vunpack.c.l.b16 %v117
  %v1046 = vunpack.c.h.b16 %v117
  %v1047 = vunpack.c.l.b16 %v118
  %v1048 = vunpack.c.h.b16 %v118
  %v1049 = vunpack.c.l.b16 %v119
  %v1050 = vunpack.c.h.b16 %v119
  %v1051 = vunpack.c.l.b16 %v120
  %v1052 = vunpack.c.h.b16 %v120
  %v1053 = vunpack.c.l.b16 %v121
  %v1054 = vunpack.c.h.b16 %v121
  %v1055 = vunpack.c.l.b16 %v122
  %v1056 = vunpack.c.h.b16 %v122
  %v1057 = vunpack.c.l.b16 %v123
  %v1058 = vunpack.c.h.b16 %v123
  %v1059 = vunpack.c.l.b16 %v124
  %v1060 = vunpack.c.h.b16 %v124
  %v1061 = vunpack.c.l.b16 %v125
  %v1062 = vunpack.c.h.b16 %v125
  %v1063 = vunpack.c.l.b16 %v126
  %v1064 = vunpack.c.h.b16 %v126
  %v1065 = vunpack.c.l.b16 %v127
  %v1066 = vunpack.c.h.b16 %v127
  %v1067 = vunpack.c.l.b16 %v128
  %v1068 = vunpack.c.h.b16 %v128
  %v1069 = vunpack.c.l.b16 %v129
  %v1070 = vunpack.c.h.b16 %v129
  %v1071 = vunpack.c.l.b16 %v130
  %v1072 = vunpack.c.h.b16 %v130
  %v1073 = vunpack.c.l.b16 %v131
  %v1074 = vunpack.c.h.b16 %v131
  %v1075 = vunpack.c.l.b16 %v132
  %v1076 = vunpack.c.h.b16 %v132
  %v1077 = vunpack.c.l.b16 %v133
  %v1078 = vunpack.c.h.b16 %v133
  %v1079 = vunpack.c.l.b16 %v134
  %v1080 = vunpack.c.h.b16 %v134
  %v1081 = vunpack.c.l.b16 %v135
  %v1082 = vunpack.c.h.b16 %v135
  %v1083 = vunpack.c.l.b16 %v136
  %v1084 = vunpack.c.h.b16 %v136
  %v1085 = vunpack.c.l.b16 %v137
  %v1086 = vunpack.c.h.b16 %v137
  %v1087 = vunpack.c.l.b16 %v138
  %v1088 = vunpack.c.h.b16 %v138
  %v1089 = vunpack.c.l.b16 %v139
  %v1090 = vunpack.c.h.b16 %v139
  %v1091 = vunpack.c.l.b16 %v140
  %v1092 = vunpack.c.h.b16 %v140
  %v1093 = vunpack.c.l.b16 %v141
  %v1094 = vunpack.c.h.b16 %v141
  %v1095 = vunpack.c.l.b16 %v142
  %v1096 = vunpack.c.h.b16 %v142
  %v1097 = vunpack.c.l.b16 %v143
  %v1098 = vunpack.c.h.b16 %v143
  %v1099 = vunpack.c.l.b16 %v144
  %v1100 = vunpack.c.h.b16 %v144
  %v1101 = vunpack.c.l.b16 %v145
  %v1102 = vunpack.c.h.b16 %v145
  %v1103 = vunpack.c.l.b16 %v146
  %v1104 = vunpack.c.h.b16 %v146
  %v1105 = vunpack.c.l.b16 %v147
  %v1106 = vunpack.c.h.b16 %v147
  %v1107 = vunpack.c.l.b16 %v148
  %v1108 = vunpack.c.h.b16 %v148
  %v1109 = vunpack.c.l.b16 %v149
  %v1110 = vunpack.c.h.b16 %v149
  %v1111 = vunpack.c.l.b16 %v150
  %v1112 = vunpack.c.h.b16 %v150
  %v1113 = vunpack.c.l.b16 %v151
  %v1114 = vunpack.c.h.b16 %v151
  %v1115 = vunpack.c.l.b16 %v152
  %v1116 = vunpack.c.h.b16 %v152
  %v1117 = vunpack.c.l.b16 %v153
  %v1118 = vunpack.c.h.b16 %v153
  %v1119 = vunpack.c.l.b16 %v154
  %v1120 = vunpack.c.h.b16 %v154
  %v1121 = vunpack.c.l.b16 %v155
  %v1122 = vunpack.c.h.b16 %v155
  %v1123 = vunpack.c.l.b16 %v156
  %v1124 = vunpack.c.h.b16 %v156
  %v1125 = vunpack.c.l.b16 %v157
  %v1126 = vunpack.c.h.b16 %v157
  %v1127 = vunpack.c.l.b16 %v158
  %v1128 = vunpack.c.h.b16 %v158
  %v1129 = vunpack.c.l.b16 %v159
  %v1130 = vunpack.c.h.b16 %v159
  %v1131 = vunpack.c.l.b16 %v160
  %v1132 = vunpack.c.h.b16 %v160
  %v1133 = vunpack.c.l.b16 %v161
  %v1134 = vunpack.c.h.b16 %v161
  %v1135 = vunpack.c.l.b16 %v162
  %v1136 = vunpack.c.h.b16 %v162
  %v1137 = vunpack.c.l.b16 %v163
  %v1138 = vunpack.c.h.b16 %v163
  %v1139 = vunpack.c.l.b16 %v164
  %v1140 = vunpack.c.h.b16 %v164
  %v1141 = vunpack.c.l.b16 %v165
  %v1142 = vunpack.c.h.b16 %v165
  %v1143 = vunpack.c.l.b16 %v166
  %v1144 = vunpack.c.h.b16 %v166
  %v1145 = vunpack.c.l.b16 %v167
  %v1146 = vunpack.c.h.b16 %v167
  %v1147 = vunpack.c.l.b16 %v168
  %v1148 = vunpack.c.h.b16 %v168
  %v1149 = vunpack.c.l.b16 %v169
  %v1150 = vunpack.c.h.b16 %v169
  %v1151 = vunpack.c.l.b16 %v170
  %v1152 = vunpack.c.h.b16 %v170
  %v1153 = vunpack.c.l.b16 %v171
  %v1154 = vunpack.c.h.b16 %v171
  %v1155 = vunpack.c.l.b16 %v172
  %v1156 = vunpack.c.h.b16 %v172
  %v1157 = vunpack.c.l.b16 %v173
  %v1158 = vunpack.c.h.b16 %v173
  %v1159 = vunpack.c.l.b16 %v174
  %v1160 = vunpack.c.h.b16 %v174
  %v1161 = vunpack.c.l.b16 %v175
  %v1162 = vunpack.c.h.b16 %v175
  %v1163 = vunpack.c.l.b16 %v176
  %v1164 = vunpack.c.h.b16 %v176
  %v1165 = vunpack.c.l.b16 %v177
  %v1166 = vunpack.c.h.b16 %v177
  %v1167 = vunpack.c.l.b16 %v178
  %v1168 = vunpack.c.h.b16 %v178
  %v1169 = vunpack.c.l.b16 %v179
  %v1170 = vunpack.c.h.b16 %v179
  %v1171 = vunpack.c.l.b16 %v180
  %v1172 = vunpack.c.h.b16 %v180
  %v1173 = vunpack.c.l.b16 %v181
  %v1174 = vunpack.c.h.b16 %v181
  %v1175 = vunpack.c.l.b16 %v182
  %v1176 = vunpack.c.h.b16 %v182
  %v1177 = vunpack.c.l.b16 %v183
  %v1178 = vunpack.c.h.b16 %v183
  %v1179 = vunpack.c.l.b16 %v184
  %v1180 = vunpack.c.h.b16 %v184
  %v1181 = vunpack.c.l.b16 %v185
  %v1182 = vunpack.c.h.b16 %v185
  %v1183 = vunpack.c.l.b16 %v186
  %v1184 = vunpack.c.h.b16 %v186
  %v1185 = vunpack.c.l.b16 %v187
  %v1186 = vunpack.c.h.b16 %v187
  %v1187 = vunpack.c.l.b16 %v188
  %v1188 = vunpack.c.h.b16 %v188
  %v1189 = vunpack.c.l.b16 %v189
  %v1190 = vunpack.c.h.b16 %v189
  %v1191 = vunpack.c.l.b16 %v190
  %v1192 = vunpack.c.h.b16 %v190
  %v1193 = vunpack.c.l.b16 %v191
  %v1194 = vunpack.c.h.b16 %v191
  %v1195 = vunpack.c.l.b16 %v192
  %v1196 = vunpack.c.h.b16 %v192
  %v1197 = vunpack.c.l.b16 %v193
  %v1198 = vunpack.c.h.b16 %v193
  %v1199 = vunpack.c.l.b16 %v194
  %v1200 = vunpack.c.h.b16 %v194
  %v1201 = vunpack.c.l.b16 %v195
  %v1202 = vunpack.c.h.b16 %v195
  %v1203 = vunpack.c.l.b16 %v196
  %v1204 = vunpack.c.h.b16 %v196
  %v1205 = vunpack.c.l.b16 %v197
  %v1206 = vunpack.c.h.b16 %v197
  %v1207 = vunpack.c.l.b16 %v198
  %v1208 = vunpack.c.h.b16 %v198
  %v1209 = vunpack.c.l.b16 %v199
  %v1210 = vunpack.c.h.b16 %v199
  %v1211 = vunpack.c.l.b16 %v200
  %v1212 = vunpack.c.h.b16 %v200
  %v1213 = vunpack.c.l.b16 %v201
  %v1214 = vunpack.c.h.b16 %v201
  %v1215 = vunpack.c.l.b16 %v202
  %v1216 = vunpack.c.h.b16 %v202
  %v1217 = vunpack.c.l.b16 %v203
  %v1218 = vunpack.c.h.b16 %v203
  %v1219 = vunpack.c.l.b16 %v204
  %v1220 = vunpack.c.h.b16 %v204
  %v1221 = vunpack.c.l.b16 %v205
  %v1222 = vunpack.c.h.b16 %v205
  %v1223 = vunpack.c.l.b16 %v206
  %v1224 = vunpack.c.h.b16 %v206
  %v1225 = vunpack.c.l.b16 %v207
  %v1226 = vunpack.c.h.b16 %v207
  %v1227 = vunpack.c.l.b16 %v208
  %v1228 = vunpack.c.h.b16 %v208
  %v1229 = vunpack.c.l.b16 %v209
  %v1230 = vunpack.c.h.b16 %v209
  %v1231 = vunpack.c.l.b16 %v210
  %v1232 = vunpack.c.h.b16 %v210
  %v1233 = vunpack.c.l.b16 %v211
  %v1234 = vunpack.c.h.b16 %v211
  %v1235 = vunpack.c.l.b16 %v212
  %v1236 = vunpack.c.h.b16 %v212
  %v1237 = vunpack.c.l.b16 %v213
  %v1238 = vunpack.c.h.b16 %v213
  %v1239 = vunpack.c.l.b16 %v214
  %v1240 = vunpack.c.h.b16 %v214
  %v1241 = vunpack.c.l.b16 %v215
  %v1242 = vunpack.c.h.b16 %v215
  %v1243 = vunpack.c.l.b16 %v216
  %v1244 = vunpack.c.h.b16 %v216
  %v1245 = vunpack.c.l.b16 %v217
  %v1246 = vunpack.c.h.b16 %v217
  %v1247 = vunpack.c.l.b16 %v218
  %v1248 = vunpack.c.h.b16 %v218
  %v1249 = vunpack.c.l.b16 %v219
  %v1250 = vunpack.c.h.b16 %v219
  %v1251 = vunpack.c.l.b16 %v220
  %v1252 = vunpack.c.h.b16 %v220
  %v1253 = vunpack.c.l.b16 %v221
  %v1254 = vunpack.c.h.b16 %v221
  %v1255 = vunpack.c.l.b16 %v222
  %v1256 = vunpack.c.h.b16 %v222
  %v1257 = vunpack.c.l.b16 %v223
  %v1258 = vunpack.c.h.b16 %v223
  %v1259 = vunpack.c.l.b16 %v224
  %v1260 = vunpack.c.h.b16 %v224
  %v1261 = vunpack.c.l.b16 %v225
  %v1262 = vunpack.c.h.b16 %v225
  %v1263 = vunpack.c.l.b16 %v226
  %v1264 = vunpack.c.h.b16 %v226
  %v1265 = vunpack.c.l.b16 %v227
  %v1266 = vunpack.c.h.b16 %v227
  %v1267 = vunpack.c.l.b16 %v228
  %v1268 = vunpack.c.h.b16 %v228
  %v1269 = vunpack.c.l.b16 %v229
  %v1270 = vunpack.c.h.b16 %v229
  %v1271 = vunpack.c.l.b16 %v230
  %v1272 = vunpack.c.h.b16 %v230
  %v1273 = vunpack.c.l.b16 %v231
  %v1274 = vunpack.c.h.b16 %v231
  %v1275 = vunpack.c.l.b16 %v232
  %v1276 = vunpack.c.h.b16 %v232
  %v1277 = vunpack.c.l.b16 %v233
  %v1278 = vunpack.c.h.b16 %v233
  %v1279 = vunpack.c.l.b16 %v234
  %v1280 = vunpack.c.h.b16 %v234
  %v1281 = vunpack.c.l.b16 %v235
  %v1282 = vunpack.c.h.b16 %v235
  %v1283 = vunpack.c.l.b16 %v236
  %v1284 = vunpack.c.h.b16 %v236
  %v1285 = vunpack.c.l.b16 %v237
  %v1286 = vunpack.c.h.b16 %v237
  %v1287 = vunpack.c.l.b16 %v238
  %v1288 = vunpack.c.h.b16 %v238
  %v1289 = vunpack.c.l.b16 %v239
  %v1290 = vunpack.c.h.b16 %v239
  %v1291 = vunpack.c.l.b16 %v240
  %v1292 = vunpack.c.h.b16 %v240
  %v1293 = vunpack.c.l.b16 %v241
  %v1294 = vunpack.c.h.b16 %v241
  %v1295 = vunpack.c.l.b16 %v242
  %v1296 = vunpack.c.h.b16 %v242
  %v1297 = vunpack.c.l.b16 %v243
  %v1298 = vunpack.c.h.b16 %v243
  %v1299 = vunpack.c.l.b16 %v244
  %v1300 = vunpack.c.h.b16 %v244
  %v1301 = vunpack.c.l.b16 %v245
  %v1302 = vunpack.c.h.b16 %v245
  %v1303 = vunpack.c.l.b16 %v246
  %v1304 = vunpack.c.h.b16 %v246
  %v1305 = vunpack.c.l.b16 %v247
  %v1306 = vunpack.c.h.b16 %v247
  %v1307 = vunpack.c.l.b16 %v248
  %v1308 = vunpack.c.h.b16 %v248
  %v1309 = vunpack.c.l.b16 %v249
  %v1310 = vunpack.c.h.b16 %v249
  %v1311 = vunpack.c.l.b16 %v250
  %v1312 = vunpack.c.h.b16 %v250
  %v1313 = vunpack.c.l.b16 %v251
  %v1314 = vunpack.c.h.b16 %v251
  %v1315 = vunpack.c.l.b16 %v252
  %v1316 = vunpack.c.h.b16 %v252
  %v1317 = vunpack.c.l.b16 %v253
  %v1318 = vunpack.c.h.b16 %v253
  %v1319 = vunpack.c.l.b16 %v254
  %v1320 = vunpack.c.h.b16 %v254
  %v1321 = vunpack.c.l.b16 %v255
  %v1322 = vunpack.c.h.b16 %v255
  %v1323 = vunpack.c.l.b16 %v256
  %v1324 = vunpack.c.h.b16 %v256
  %v1325 = vunpack.c.l.b16 %v257
  %v1326 = vunpack.c.h.b16 %v257
  %v1327 = vunpack.c.l.b16 %v258
  %v1328 = vunpack.c.h.b16 %v258
  %v1329 = vunpack.c.l.b16 %v259
  %v1330 = vunpack.c.h.b16 %v259
  %v1331 = vunpack.c.l.b16 %v260
  %v1332 = vunpack.c.h.b16 %v260
  %v1333 = vunpack.c.l.b16 %v261
  %v1334 = vunpack.c.h.b16 %v261
  %v1335 = vunpack.c.l.b16 %v262
  %v1336 = vunpack.c.h.b16 %v262
  %v1337 = vunpack.c.l.b16 %v263
  %v1338 = vunpack.c.h.b16 %v263
  %v1339 = vunpack.c.l.b16 %v264
  %v1340 = vunpack.c.h.b16 %v264
  %v1341 = vunpack.c.l.b16 %v265
  %v1342 = vunpack.c.h.b16 %v265
  %v1343 = vunpack.c.l.b16 %v266
  %v1344 = vunpack.c.h.b16 %v266
  %v1345 = vunpack.c.l.b16 %v267
  %v1346 = vunpack.c.h.b16 %v267
  %v1347 = vunpack.c.l.b16 %v268
  %v1348 = vunpack.c.h.b16 %v268
  %v1349 = vunpack.c.l.b16 %v269
  %v1350 = vunpack.c.h.b16 %v269
  %v1351 = vunpack.c.l.b16 %v270
  %v1352 = vunpack.c.h.b16 %v270
  %v1353 = vunpack.c.l.b16 %v271
  %v1354 = vunpack.c.h.b16 %v271
  %v1355 = vunpack.c.l.b16 %v272
  %v1356 = vunpack.c.h.b16 %v272
  %v1357 = vunpack.c.l.b16 %v273
  %v1358 = vunpack.c.h.b16 %v273
  %v1359 = vunpack.c.l.b16 %v274
  %v1360 = vunpack.c.h.b16 %v274
  %v1361 = vunpack.c.l.b16 %v275
  %v1362 = vunpack.c.h.b16 %v275
  %v1363 = vunpack.c.l.b16 %v276
  %v1364 = vunpack.c.h.b16 %v276
  %v1365 = vunpack.c.l.b16 %v277
  %v1366 = vunpack.c.h.b16 %v277
  %v1367 = vunpack.c.l.b16 %v278
  %v1368 = vunpack.c.h.b16 %v278
  %v1369 = vunpack.c.l.b16 %v279
  %v1370 = vunpack.c.h.b16 %v279
  %v1371 = vunpack.c.l.b16 %v280
  %v1372 = vunpack.c.h.b16 %v280
  %v1373 = vunpack.c.l.b16 %v281
  %v1374 = vunpack.c.h.b16 %v281
  %v1375 = vunpack.c.l.b16 %v282
  %v1376 = vunpack.c.h.b16 %v282
  %v1377 = vunpack.c.l.b16 %v283
  %v1378 = vunpack.c.h.b16 %v283
  %v1379 = vunpack.c.l.b16 %v284
  %v1380 = vunpack.c.h.b16 %v284
  %v1381 = vunpack.c.l.b16 %v285
  %v1382 = vunpack.c.h.b16 %v285
  %v1383 = vunpack.c.l.b16 %v286
  %v1384 = vunpack.c.h.b16 %v286
  %v1385 = vunpack.c.l.b16 %v287
  %v1386 = vunpack.c.h.b16 %v287
  %v1387 = vunpack.c.l.b16 %v288
  %v1388 = vunpack.c.h.b16 %v288
  %v1389 = vunpack.c.l.b16 %v289
  %v1390 = vunpack.c.h.b16 %v289
  %v1391 = vunpack.c.l.b16 %v290
  %v1392 = vunpack.c.h.b16 %v290
  %v1393 = vunpack.c.l.b16 %v291
  %v1394 = vunpack.c.h.b16 %v291
  %v1395 = vunpack.c.l.b16 %v292
  %v1396 = vunpack.c.h.b16 %v292
  %v1397 = vunpack.c.l.b16 %v293
  %v1398 = vunpack.c.h.b16 %v293
  %v1399 = vunpack.c.l.b16 %v294
  %v1400 = vunpack.c.h.b16 %v294
  %v1401 = vunpack.c.l.b16 %v295
  %v1402 = vunpack.c.h.b16 %v295
  %v1403 = vunpack.c.l.b16 %v296
  %v1404 = vunpack.c.h.b16 %v296
  %v1405 = vunpack.c.l.b16 %v297
  %v1406 = vunpack.c.h.b16 %v297
  %v1407 = vunpack.c.l.b16 %v298
  %v1408 = vunpack.c.h.b16 %v298
  %v1409 = vunpack.c.l.b16 %v299
  %v1410 = vunpack.c.h.b16 %v299
  %v1411 = vunpack.c.l.b16 %v300
  %v1412 = vunpack.c.h.b16 %v300
  %v1413 = vunpack.c.l.b16 %v301
  %v1414 = vunpack.c.h.b16 %v301
  %v1415 = vunpack.c.l.b16 %v302
  %v1416 = vunpack.c.h.b16 %v302
  %v1417 = vunpack.c.l.b16 %v303
  %v1418 = vunpack.c.h.b16 %v303
  %v1419 = vunpack.c.l.b16 %v304
  %v1420 = vunpack.c.h.b16 %v304
  %v1421 = vunpack.c.l.b16 %v305
  %v1422 = vunpack.c.h.b16 %v305
  %v1423 = vunpack.c.l.b16 %v306
  %v1424 = vunpack.c.h.b16 %v306
  %v1425 = vunpack.c.l.b16 %v307
  %v1426 = vunpack.c.h.b16 %v307
  %v1427 = vunpack.c.l.b16 %v308
  %v1428 = vunpack.c.h.b16 %v308
  %v1429 = vunpack.c.l.b16 %v309
  %v1430 = vunpack.c.h.b16 %v309
  %v1431 = vunpack.c.l.b16 %v310
  %v1432 = vunpack.c.h.b16 %v310
  %v1433 = vunpack.c.l.b16 %v311
  %v1434 = vunpack.c.h.b16 %v311
  %v1435 = vunpack.c.l.b16 %v312
  %v1436 = vunpack.c.h.b16 %v312
  %v1437 = vunpack.c.l.b16 %v313
  %v1438 = vunpack.c.h.b16 %v313
  %v1439 = vunpack.c.l.b16 %v314
  %v1440 = vunpack.c.h.b16 %v314
  %v1441 = vunpack.c.l.b16 %v315
  %v1442 = vunpack.c.h.b16 %v315
  %v1443 = vunpack.c.l.b16 %v316
  %v1444 = vunpack.c.h.b16 %v316
  %v1445 = vunpack.c.l.b16 %v317
  %v1446 = vunpack.c.h.b16 %v317
  %v1447 = vunpack.c.l.b16 %v318
  %v1448 = vunpack.c.h.b16 %v318
  %v1449 = vunpack.c.l.b16 %v319
  %v1450 = vunpack.c.h.b16 %v319
  %v1451 = vunpack.c.l.b16 %v320
  %v1452 = vunpack.c.h.b16 %v320
  %v1453 = vunpack.c.l.b16 %v321
  %v1454 = vunpack.c.h.b16 %v321
  %v1455 = vunpack.c.l.b16 %v322
  %v1456 = vunpack.c.h.b16 %v322
  %v1457 = vunpack.c.l.b16 %v323
  %v1458 = vunpack.c.h.b16 %v323
  %v1459 = vunpack.c.l.b16 %v324
  %v1460 = vunpack.c.h.b16 %v324
  %v1461 = vunpack.c.l.b16 %v325
  %v1462 = vunpack.c.h.b16 %v325
  %v1463 = vunpack.c.l.b16 %v326
  %v1464 = vunpack.c.h.b16 %v326
  %v1465 = vunpack.c.l.b16 %v327
  %v1466 = vunpack.c.h.b16 %v327
  %v1467 = vunpack.c.l.b16 %v328
  %v1468 = vunpack.c.h.b16 %v328
  %v1469 = vunpack.c.l.b16 %v329
  %v1470 = vunpack.c.h.b16 %v329
  %v1471 = vunpack.c.l.b16 %v330
  %v1472 = vunpack.c.h.b16 %v330
  %v1473 = vunpack.c.l.b16 %v331
  %v1474 = vunpack.c.h.b16 %v331
  %v1475 = vunpack.c.l.b16 %v332
  %v1476 = vunpack.c.h.b16 %v332
  %v1477 = vunpack.c.l.b16 %v333
  %v1478 = vunpack.c.h.b16 %v333
  %v1479 = vunpack.c.l.b16 %v334
  %v1480 = vunpack.c.h.b16 %v334
  %v1481 = vunpack.c.l.b16 %v335
  %v1482 = vunpack.c.h.b16 %v335
  %v1483 = vunpack.c.l.b16 %v336
  %v1484 = vunpack.c.h.b16 %v336
  %v1485 = vunpack.c.l.b16 %v337
  %v1486 = vunpack.c.h.b16 %v337
  %v1487 = vunpack.c.l.b16 %v338
  %v1488 = vunpack.c.h.b16 %v338
  %v1489 = vunpack.c.l.b16 %v339
  %v1490 = vunpack.c.h.b16 %v339
  %v1491 = vunpack.c.l.b16 %v340
  %v1492 = vunpack.c.h.b16 %v340
  %v1493 = vunpack.c.l.b16 %v341
  %v1494 = vunpack.c.h.b16 %v341
  %v1495 = vunpack.c.l.b16 %v342
  %v1496 = vunpack.c.h.b16 %v342
  %v1497 = vunpack.c.l.b16 %v343
  %v1498 = vunpack.c.h.b16 %v343
  %v1499 = vunpack.c.l.b16 %v344
  %v1500 = vunpack.c.h.b16 %v344
  %v1501 = vunpack.c.l.b16 %v345
  %v1502 = vunpack.c.h.b16 %v345
  %v1503 = vunpack.c.l.b16 %v346
  %v1504 = vunpack.c.h.b16 %v346
  %v1505 = vunpack.c.l.b16 %v347
  %v1506 = vunpack.c.h.b16 %v347
  %v1507 = vunpack.c.l.b16 %v348
  %v1508 = vunpack.c.h.b16 %v348
  %v1509 = vunpack.c.l.b16 %v349
  %v1510 = vunpack.c.h.b16 %v349
  %v1511 = vunpack.c.l.b16 %v350
  %v1512 = vunpack.c.h.b16 %v350
  %v1513 = vunpack.c.l.b16 %v351
  %v1514 = vunpack.c.h.b16 %v351
  %v1515 = vunpack.c.l.b16 %v352
  %v1516 = vunpack.c.h.b16 %v352
  %v1517 = vunpack.c.l.b16 %v353
  %v1518 = vunpack.c.h.b16 %v353
  %v1519 = vunpack.c.l.b16 %v354
  %v1520 = vunpack.c.h.b16 %v354
  %v1521 = vunpack.c.l.b16 %v355
  %v1522 = vunpack.c.h.b16 %v355
  %v1523 = vunpack.c.l.b16 %v356
  %v1524 = vunpack.c.h.b16 %v356
  %v1525 = vunpack.c.l.b16 %v357
  %v1526 = vunpack.c.h.b16 %v357
  %v1527 = vunpack.c.l.b16 %v358
  %v1528 = vunpack.c.h.b16 %v358
  %v1529 = vunpack.c.l.b16 %v359
  %v1530 = vunpack.c.h.b16 %v359
  %v1531 = vunpack.c.l.b16 %v360
  %v1532 = vunpack.c.h.b16 %v360
  %v1533 = vunpack.c.l.b16 %v361
  %v1534 = vunpack.c.h.b16 %v361
  %v1535 = vunpack.c.l.b16 %v362
  %v1536 = vunpack.c.h.b16 %v362
  %v1537 = vunpack.c.l.b16 %v363
  %v1538 = vunpack.c.h.b16 %v363
  %v1539 = vunpack.c.l.b16 %v364
  %v1540 = vunpack.c.h.b16 %v364
  %v1541 = vunpack.c.l.b16 %v365
  %v1542 = vunpack.c.h.b16 %v365
  %v1543 = vunpack.c.l.b16 %v366
  %v1544 = vunpack.c.h.b16 %v366
  %v1545 = vunpack.c.l.b16 %v367
  %v1546 = vunpack.c.h.b16 %v367
  %v1547 = vunpack.c.l.b16 %v368
  %v1548 = vunpack.c.h.b16 %v368
  %v1549 = vunpack.c.l.b16 %v369
  %v1550 = vunpack.c.h.b16 %v369
  %v1551 = vunpack.c.l.b16 %v370
  %v1552 = vunpack.c.h.b16 %v370
  %v1553 = vunpack.c.l.b16 %v371
  %v1554 = vunpack.c.h.b16 %v371
  %v1555 = vunpack.c.l.b16 %v372
  %v1556 = vunpack.c.h.b16 %v372
  %v1557 = vpack.c.b16 %v993, %v981
  %v1558 = vpack.c.b16 %v994, %v982
  %v1559 = vpack.c.b16 %v995, %v983
  %v1560 = vpack.c.b16 %v996, %v984
  %v1561 = vpack.c.b16 %v997, %v985
  %v1562 = vpack.c.b16 %v998, %v986
  %v1563 = vpack.c.b16 %v999, %v987
  %v1564 = vpack.c.b16 %v1000, %v988
  %v1565 = vpack.c.b16 %v1001, %v989
  %v1566 = vpack.c.b16 %v1002, %v990
  %v1567 = vpack.c.b16 %v1003, %v991
  %v1568 = vpack.c.b16 %v1004, %v992
  %v1569 = vpack.c.b16 %v1017, %v1005
  %v1570 = vpack.c.b16 %v1018, %v1006
  %v1571 = vpack.c.b16 %v1019, %v1007
  %v1572 = vpack.c.b16 %v1020, %v1008
  %v1573 = vpack.c.b16 %v1021, %v1009
  %v1574 = vpack.c.b16 %v1022, %v1010
  %v1575 = vpack.c.b16 %v1023, %v1011
  %v1576 = vpack.c.b16 %v1024, %v1012
  %v1577 = vpack.c.b16 %v1025, %v1013
  %v1578 = vpack.c.b16 %v1026, %v1014
  %v1579 = vpack.c.b16 %v1027, %v1015
  %v1580 = vpack.c.b16 %v1028, %v1016
  %v1581 = vpack.c.b16 %v1041, %v1029
  %v1582 = vpack.c.b16 %v1042, %v1030
  %v1583 = vpack.c.b16 %v1043, %v1031
  %v1584 = vpack.c.b16 %v1044, %v1032
  %v1585 = vpack.c.b16 %v1045, %v1033
  %v1586 = vpack.c.b16 %v1046, %v1034
  %v1587 = vpack.c.b16 %v1047, %v1035
  %v1588 = vpack.c.b16 %v1048, %v1036
  %v1589 = vpack.c.b16 %v1049, %v1037
  %v1590 = vpack.c.b16 %v1050, %v1038
  %v1591 = vpack.c.b16 %v1051, %v1039
  %v1592 = vpack.c.b16 %v1052, %v1040
  %v1593 = vpack.c.b16 %v1065, %v1053
  %v1594 = vpack.c.b16 %v1066, %v1054
  %v1595 = vpack.c.b16 %v1067, %v1055
  %v1596 = vpack.c.b16 %v1068, %v1056
  %v1597 = vpack.c.b16 %v1069, %v1057
  %v1598 = vpack.c.b16 %v1070, %v1058
  %v1599 = vpack.c.b16 %v1071, %v1059
  %v1600 = vpack.c.b16 %v1072, %v1060
  %v1601 = vpack.c.b16 %v1073, %v1061
  %v1602 = vpack.c.b16 %v1074, %v1062
  %v1603 = vpack.c.b16 %v1075, %v1063
  %v1604 = vpack.c.b16 %v1076, %v1064
  %v1605 = vpack.c.b16 %v1089, %v1077
  %v1606 = vpack.c.b16 %v1090, %v1078
  %v1607 = vpack.c.b16 %v1091, %v1079
  %v1608 = vpack.c.b16 %v1092, %v1080
  %v1609 = vpack.c.b16 %v1093, %v1081
  %v1610 = vpack.c.b16 %v1094, %v1082
  %v1611 = vpack.c.b16 %v1095, %v1083
  %v1612 = vpack.c.b16 %v1096, %v1084
  %v1613 = vpack.c.b16 %v1097, %v1085
  %v1614 = vpack.c.b16 %v1098, %v1086
  %v1615 = vpack.c.b16 %v1099, %v1087
  %v1616 = vpack.c.b16 %v1100, %v1088
  %v1617 = vpack.c.b16 %v1113, %v1101
  %v1618 = vpack.c.b16 %v1114, %v1102
  %v1619 = vpack.c.b16 %v1115, %v1103
  %v1620 = vpack.c.b16 %v1116, %v1104
  %v1621 = vpack.c.b16 %v1117, %v1105
  %v1622 = vpack.c.b16 %v1118, %v1106
  %v1623 = vpack.c.b16 %v1119, %v1107
  %v1624 = vpack.c.b16 %v1120, %v1108
  %v1625 = vpack.c.b16 %v1121, %v1109
  %v1626 = vpack.c.b16 %v1122, %v1110
  %v1627 = vpack.c.b16 %v1123, %v1111
  %v1628 = vpack.c.b16 %v1124, %v1112
  %v1629 = vpack.c.b16 %v1137, %v1125
  %v1630 = vpack.c.b16 %v1138, %v1126
  %v1631 = vpack.c.b16 %v1139, %v1127
  %v1632 = vpack.c.b16 %v1140, %v1128
  %v1633 = vpack.c.b16 %v1141, %v1129
  %v1634 = vpack.c.b16 %v1142, %v1130
  %v1635 = vpack.c.b16 %v1143, %v1131
  %v1636 = vpack.c.b16 %v1144, %v1132
  %v1637 = vpack.c.b16 %v1145, %v1133
  %v1638 = vpack.c.b16 %v1146, %v1134
  %v1639 = vpack.c.b16 %v1147, %v1135
  %v1640 = vpack.c.b16 %v1148, %v1136
  %v1641 = vpack.c.b16 %v1161, %v1149
  %v1642 = vpack.c.b16 %v1162, %v1150
  %v1643 = vpack.c.b16 %v1163, %v1151
  %v1644 = vpack.c.b16 %v1164, %v1152
  %v1645 = vpack.c.b16 %v1165, %v1153
  %v1646 = vpack.c.b16 %v1166, %v1154
  %v1647 = vpack.c.b16 %v1167, %v1155
  %v1648 = vpack.c.b16 %v1168, %v1156
  %v1649 = vpack.c.b16 %v1169, %v1157
  %v1650 = vpack.c.b16 %v1170, %v1158
  %v1651 = vpack.c.b16 %v1171, %v1159
  %v1652 = vpack.c.b16 %v1172, %v1160
  %v1653 = vpack.c.b16 %v1185, %v1173
  %v1654 = vpack.c.b16 %v1186, %v1174
  %v1655 = vpack.c.b16 %v1187, %v1175
  %v1656 = vpack.c.b16 %v1188, %v1176
  %v1657 = vpack.c.b16 %v1189, %v1177
  %v1658 = vpack.c.b16 %v1190, %v1178
  %v1659 = vpack.c.b16 %v1191, %v1179
  %v1660 = vpack.c.b16 %v1192, %v1180
  %v1661 = vpack.c.b16 %v1193, %v1181
  %v1662 = vpack.c.b16 %v1194, %v1182
  %v1663 = vpack.c.b16 %v1195, %v1183
  %v1664 = vpack.c.b16 %v1196, %v1184
  %v1665 = vpack.c.b16 %v1209, %v1197
  %v1666 = vpack.c.b16 %v1210, %v1198
  %v1667 = vpack.c.b16 %v1211, %v1199
  %v1668 = vpack.c.b16 %v1212, %v1200
  %v1669 = vpack.c.b16 %v1213, %v1201
  %v1670 = vpack.c.b16 %v1214, %v1202
  %v1671 = vpack.c.b16 %v1215, %v1203
  %v1672 = vpack.c.b16 %v1216, %v1204
  %v1673 = vpack.c.b16 %v1217, %v1205
  %v1674 = vpack.c.b16 %v1218, %v1206
  %v1675 = vpack.c.b16 %v1219, %v1207
  %v1676 = vpack.c.b16 %v1220, %v1208
  %v1677 = vpack.c.b16 %v1233, %v1221
  %v1678 = vpack.c.b16 %v1234, %v1222
  %v1679 = vpack.c.b16 %v1235, %v1223
  %v1680 = vpack.c.b16 %v1236, %v1224
  %v1681 = vpack.c.b16 %v1237, %v1225
  %v1682 = vpack.c.b16 %v1238, %v1226
  %v1683 = vpack.c.b16 %v1239, %v1227
  %v1684 = vpack.c.b16 %v1240, %v1228
  %v1685 = vpack.c.b16 %v1241, %v1229
  %v1686 = vpack.c.b16 %v1242, %v1230
  %v1687 = vpack.c.b16 %v1243, %v1231
  %v1688 = vpack.c.b16 %v1244, %v1232
  %v1689 = vpack.c.b16 %v1257, %v1245
  %v1690 = vpack.c.b16 %v1258, %v1246
  %v1691 = vpack.c.b16 %v1259, %v1247
  %v1692 = vpack.c.b16 %v1260, %v1248
  %v1693 = vpack.c.b16 %v1261, %v1249
  %v1694 = vpack.c.b16 %v1262, %v1250
  %v1695 = vpack.c.b16 %v1263, %v1251
  %v1696 = vpack.c.b16 %v1264, %v1252
  %v1697 = vpack.c.b16 %v1265, %v1253
  %v1698 = vpack.c.b16 %v1266, %v1254
  %v1699 = vpack.c.b16 %v1267, %v1255
  %v1700 = vpack.c.b16 %v1268, %v1256
  %v1701 = vpack.c.b16 %v1281, %v1269
  %v1702 = vpack.c.b16 %v1282, %v1270
  %v1703 = vpack.c.b16 %v1283, %v1271
  %v1704 = vpack.c.b16 %v1284, %v1272
  %v1705 = vpack.c.b16 %v1285, %v1273
  %v1706 = vpack.c.b16 %v1286, %v1274
  %v1707 = vpack.c.b16 %v1287, %v1275
  %v1708 = vpack.c.b16 %v1288, %v1276
  %v1709 = vpack.c.b16 %v1289, %v1277
  %v1710 = vpack.c.b16 %v1290, %v1278
  %v1711 = vpack.c.b16 %v1291, %v1279
  %v1712 = vpack.c.b16 %v1292, %v1280
  %v1713 = vpack.c.b16 %v1305, %v1293
  %v1714 = vpack.c.b16 %v1306, %v1294
  %v1715 = vpack.c.b16 %v1307, %v1295
  %v1716 = vpack.c.b16 %v1308, %v1296
  %v1717 = vpack.c.b16 %v1309, %v1297
  %v1718 = vpack.c.b16 %v1310, %v1298
  %v1719 = vpack.c.b16 %v1311, %v1299
  %v1720 = vpack.c.b16 %v1312, %v1300
  %v1721 = vpack.c.b16 %v1313, %v1301
  %v1722 = vpack.c.b16 %v1314, %v1302
  %v1723 = vpack.c.b16 %v1315, %v1303
  %v1724 = vpack.c.b16 %v1316, %v1304
  %v1725 = vpack.c.b16 %v1329, %v1317
  %v1726 = vpack.c.b16 %v1330, %v1318
  %v1727 = vpack.c.b16 %v1331, %v1319
  %v1728 = vpack.c.b16 %v1332, %v1320
  %v1729 = vpack.c.b16 %v1333, %v1321
  %v1730 = vpack.c.b16 %v1334, %v1322
  %v1731 = vpack.c.b16 %v1335, %v1323
  %v1732 = vpack.c.b16 %v1336, %v1324
  %v1733 = vpack.c.b16 %v1337, %v1325
  %v1734 = vpack.c.b16 %v1338, %v1326
  %v1735 = vpack.c.b16 %v1339, %v1327
  %v1736 = vpack.c.b16 %v1340, %v1328
  %v1737 = vpack.c.b16 %v1353, %v1341
  %v1738 = vpack.c.b16 %v1354, %v1342
  %v1739 = vpack.c.b16 %v1355, %v1343
  %v1740 = vpack.c.b16 %v1356, %v1344
  %v1741 = vpack.c.b16 %v1357, %v1345
  %v1742 = vpack.c.b16 %v1358, %v1346
  %v1743 = vpack.c.b16 %v1359, %v1347
  %v1744 = vpack.c.b16 %v1360, %v1348
  %v1745 = vpack.c.b16 %v1361, %v1349
  %v1746 = vpack.c.b16 %v1362, %v1350
  %v1747 = vpack.c.b16 %v1363, %v1351
  %v1748 = vpack.c.b16 %v1364, %v1352
  %v1749 = vpack.c.b16 %v1377, %v1365
  %v1750 = vpack.c.b16 %v1378, %v1366
  %v1751 = vpack.c.b16 %v1379, %v1367
  %v1752 = vpack.c.b16 %v1380, %v1368
  %v1753 = vpack.c.b16 %v1381, %v1369
  %v1754 = vpack.c.b16 %v1382, %v1370
  %v1755 = vpack.c.b16 %v1383, %v1371
  %v1756 = vpack.c.b16 %v1384, %v1372
  %v1757 = vpack.c.b16 %v1385, %v1373
  %v1758 = vpack.c.b16 %v1386, %v1374
  %v1759 = vpack.c.b16 %v1387, %v1375
  %v1760 = vpack.c.b16 %v1388, %v1376
  %v1761 = vpack.c.b16 %v1401, %v1389
  %v1762 = vpack.c.b16 %v1402, %v1390
  %v1763 = vpack.c.b16 %v1403, %v1391
  %v1764 = vpack.c.b16 %v1404, %v1392
  %v1765 = vpack.c.b16 %v1405, %v1393
  %v1766 = vpack.c.b16 %v1406, %v1394
  %v1767 = vpack.c.b16 %v1407, %v1395
  %v1768 = vpack.c.b16 %v1408, %v1396
  %v1769 = vpack.c.b16 %v1409, %v1397
  %v1770 = vpack.c.b16 %v1410, %v1398
  %v1771 = vpack.c.b16 %v1411, %v1399
  %v1772 = vpack.c.b16 %v1412, %v1400
  %v1773 = vpack.c.b16 %v1425, %v1413
  %v1774 = vpack.c.b16 %v1426, %v1414
  %v1775 = vpack.c.b16 %v1427, %v1415
  %v1776 = vpack.c.b16 %v1428, %v1416
  %v1777 = vpack.c.b16 %v1429, %v1417
  %v1778 = vpack.c.b16 %v1430, %v1418
  %v1779 = vpack.c.b16 %v1431, %v1419
  %v1780 = vpack.c.b16 %v1432, %v1420
  %v1781 = vpack.c.b16 %v1433, %v1421
  %v1782 = vpack.c.b16 %v1434, %v1422
  %v1783 = vpack.c.b16 %v1435, %v1423
  %v1784 = vpack.c.b16 %v1436, %v1424
  %v1785 = vpack.c.b16 %v1449, %v1437
  %v1786 = vpack.c.b16 %v1450, %v1438
  %v1787 = vpack.c.b16 %v1451, %v1439
  %v1788 = vpack.c.b16 %v1452, %v1440
  %v1789 = vpack.c.b16 %v1453, %v1441
  %v1790 = vpack.c.b16 %v1454, %v1442
  %v1791 = vpack.c.b16 %v1455, %v1443
  %v1792 = vpack.c.b16 %v1456, %v1444
  %v1793 = vpack.c.b16 %v1457, %v1445
  %v1794 = vpack.c.b16 %v1458, %v1446
  %v1795 = vpack.c.b16 %v1459, %v1447
  %v1796 = vpack.c.b16 %v1460, %v1448
  %v1797 = vpack.c.b16 %v1473, %v1461
  %v1798 = vpack.c.b16 %v1474, %v1462
  %v1799 = vpack.c.b16 %v1475, %v1463
  %v1800 = vpack.c.b16 %v1476, %v1464
  %v1801 = vpack.c.b16 %v1477, %v1465
  %v1802 = vpack.c.b16 %v1478, %v1466
  %v1803 = vpack.c.b16 %v1479, %v1467
  %v1804 = vpack.c.b16 %v1480, %v1468
  %v1805 = vpack.c.b16 %v1481, %v1469
  %v1806 = vpack.c.b16 %v1482, %v1470
  %v1807 = vpack.c.b16 %v1483, %v1471
  %v1808 = vpack.c.b16 %v1484, %v1472
  %v1809 = vpack.c.b16 %v1497, %v1485
  %v1810 = vpack.c.b16 %v1498, %v1486
  %v1811 = vpack.c.b16 %v1499, %v1487
  %v1812 = vpack.c.b16 %v1500, %v1488
  %v1813 = vpack.c.b16 %v1501, %v1489
  %v1814 = vpack.c.b16 %v1502, %v1490
  %v1815 = vpack.c.b16 %v1503, %v1491
  %v1816 = vpack.c.b16 %v1504, %v1492
  %v1817 = vpack.c.b16 %v1505, %v1493
  %v1818 = vpack.c.b16 %v1506, %v1494
  %v1819 = vpack.c.b16 %v1507, %v1495
  %v1820 = vpack.c.b16 %v1508, %v1496
  %v1821 = vpack.c.b16 %v1521, %v1509
  %v1822 = vpack.c.b16 %v1522, %v1510
  %v1823 = vpack.c.b16 %v1523, %v1511
  %v1824 = vpack.c.b16 %v1524, %v1512
  %v1825 = vpack.c.b16 %v1525, %v1513
  %v1826 = vpack.c.b16 %v1526, %v1514
  %v1827 = vpack.c.b16 %v1527, %v1515
  %v1828 = vpack.c.b16 %v1528, %v1516
  %v1829 = vpack.c.b16 %v1529, %v1517
  %v1830 = vpack.c.b16 %v1530, %v1518
  %v1831 = vpack.c.b16 %v1531, %v1519
  %v1832 = vpack.c.b16 %v1532, %v1520
  %v1833 = vpack.c.b16 %v1545, %v1533
  %v1834 = vpack.c.b16 %v1546, %v1534
  %v1835 = vpack.c.b16 %v1547, %v1535
  %v1836 = vpack.c.b16 %v1548, %v1536
  %v1837 = vpack.c.b16 %v1549, %v1537
  %v1838 = vpack.c.b16 %v1550, %v1538
  %v1839 = vpack.c.b16 %v1551, %v1539
  %v1840 = vpack.c.b16 %v1552, %v1540
  %v1841 = vpack.c.b16 %v1553, %v1541
  %v1842 = vpack.c.b16 %v1554, %v1542
  %v1843 = vpack.c.b16 %v1555, %v1543
  %v1844 = vpack.c.b16 %v1556, %v1544
  %2133 = vmatprep.subr.bf16.mxu0 %v1558
  %2134 = vmatpush1.bf16.msra.mxu0 %v1557
  %2135 = vmatprep.subr.bf16.mxu0 %v1570
  %2136 = vmatpush1.bf16.msra.mxu0 %v1569
  %2137 = vmatprep.subr.bf16.mxu0 %v1582
  %2138 = vmatpush1.bf16.msra.mxu0 %v1581
  %2139 = vmatprep.subr.bf16.mxu0 %v1594
  %2140 = vmatpush1.bf16.msra.mxu0 %v1593
  %2141 = vmatprep.subr.bf16.mxu0 %v1606
  %2142 = vmatpush1.bf16.msra.mxu0 %v1605
  %2143 = vmatprep.subr.bf16.mxu0 %v1618
  %2144 = vmatpush1.bf16.msra.mxu0 %v1617
  %2145 = vmatprep.subr.bf16.mxu0 %v1630
  %2146 = vmatpush1.bf16.msra.mxu0 %v1629
  %2147 = vmatprep.subr.bf16.mxu0 %v1642
  %2148 = vmatpush1.bf16.msra.mxu0 %v1641
  %2149 = vmatprep.subr.bf16.mxu0 %v1654
  %2150 = vmatpush1.bf16.msra.mxu0 %v1653
  %2151 = vmatprep.subr.bf16.mxu0 %v1666
  %2152 = vmatpush1.bf16.msra.mxu0 %v1665
  %2153 = vmatprep.subr.bf16.mxu0 %v1678
  %2154 = vmatpush1.bf16.msra.mxu0 %v1677
  %2155 = vmatprep.subr.bf16.mxu0 %v1690
  %2156 = vmatpush1.bf16.msra.mxu0 %v1689
  %2157 = vmatprep.subr.bf16.mxu0 %v1702
  %2158 = vmatpush1.bf16.msra.mxu0 %v1701
  %2159 = vmatprep.subr.bf16.mxu0 %v1714
  %2160 = vmatpush1.bf16.msra.mxu0 %v1713
  %2161 = vmatprep.subr.bf16.mxu0 %v1726
  %2162 = vmatpush1.bf16.msra.mxu0 %v1725
  %2163 = vmatprep.subr.bf16.mxu0 %v1738
  %2164 = vmatpush1.bf16.msra.mxu0 %v1737
  %2165 = vmatprep.mubr.bf16.mxu0 %v598
  %2166 = vmatmul.mubr.bf16.gmra.mrb[0].mxu0 %v597
  %v2167 = vpop.f32.mrb[0].mxu0
  %v2168 = vadd.f32 %v380, %v2167
  %v2169 = vpop.f32.mrb[0].mxu0
  %v2170 = vadd.f32 %v384, %v2169
  %v2171 = vpop.f32.mrb[0].mxu0
  %v2172 = vadd.f32 %v380, %v2171
  %v2173 = vpop.f32.mrb[0].mxu0
  %v2174 = vadd.f32 %v384, %v2173
  %2175 = vmatprep.mubr.bf16.mxu0 %v601
  %2176 = vmatmul.mubr.bf16.gmra.mrb[0].mxu0 %v600
  %v2177 = vpop.f32.mrb[0].mxu0
  %v2178 = vadd.f32 %v380, %v2177
  %v2179 = vpop.f32.mrb[0].mxu0
  %v2180 = vadd.f32 %v384, %v2179
  %v2181 = vpop.f32.mrb[0].mxu0
  %v2182 = vadd.f32 %v380, %v2181
  %v2183 = vpop.f32.mrb[0].mxu0
  %v2184 = vadd.f32 %v384, %v2183
  %2185 = vmatprep.mubr.bf16.mxu0 %v604
  %2186 = vmatmul.mubr.bf16.gmra.mrb[0].mxu0 %v603
  %v2187 = vpop.f32.mrb[0].mxu0
  %v2188 = vadd.f32 %v380, %v2187
  %v2189 = vpop.f32.mrb[0].mxu0
  %v2190 = vadd.f32 %v384, %v2189
  %v2191 = vpop.f32.mrb[0].mxu0
  %v2192 = vadd.f32 %v380, %v2191
  %v2193 = vpop.f32.mrb[0].mxu0
  %v2194 = vadd.f32 %v384, %v2193
  %2195 = vmatprep.mubr.bf16.mxu0 %v607
  %2196 = vmatmul.mubr.bf16.gmra.mrb[0].mxu0 %v606
  %v2197 = vpop.f32.mrb[0].mxu0
  %v2198 = vadd.f32 %v380, %v2197
  %v2199 = vpop.f32.mrb[0].mxu0
  %v2200 = vadd.f32 %v384, %v2199
  %v2201 = vpop.f32.mrb[0].mxu0
  %v2202 = vadd.f32 %v380, %v2201
  %v2203 = vpop.f32.mrb[0].mxu0
  %v2204 = vadd.f32 %v384, %v2203
  %2205 = vmatprep.mubr.bf16.mxu0 %v610
  %2206 = vmatmul.mubr.bf16.gmra.mrb[0].mxu0 %v609
  %v2207 = vpop.f32.mrb[0].mxu0
  %v2208 = vadd.f32 %v380, %v2207
  %v2209 = vpop.f32.mrb[0].mxu0
  %v2210 = vadd.f32 %v384, %v2209
  %v2211 = vpop.f32.mrb[0].mxu0
  %v2212 = vadd.f32 %v380, %v2211
  %v2213 = vpop.f32.mrb[0].mxu0
  %v2214 = vadd.f32 %v384, %v2213
  %2215 = vmatprep.mubr.bf16.mxu0 %v613
  %2216 = vmatmul.mubr.bf16.gmra.mrb[0].mxu0 %v612
  %v2217 = vpop.f32.mrb[0].mxu0
  %v2218 = vadd.f32 %v380, %v2217
  %v2219 = vpop.f32.mrb[0].mxu0
  %v2220 = vadd.f32 %v384, %v2219
  %v2221 = vpop.f32.mrb[0].mxu0
  %v2222 = vadd.f32 %v380, %v2221
  %v2223 = vpop.f32.mrb[0].mxu0
  %v2224 = vadd.f32 %v384, %v2223
  %2225 = vmatprep.mubr.bf16.mxu0 %v616
  %2226 = vmatmul.mubr.bf16.gmra.mrb[0].mxu0 %v615
  %v2227 = vpop.f32.mrb[0].mxu0
  %v2228 = vadd.f32 %v380, %v2227
  %v2229 = vpop.f32.mrb[0].mxu0
  %v2230 = vadd.f32 %v384, %v2229
  %v2231 = vpop.f32.mrb[0].mxu0
  %v2232 = vadd.f32 %v380, %v2231
  %v2233 = vpop.f32.mrb[0].mxu0
  %v2234 = vadd.f32 %v384, %v2233
  %2235 = vmatprep.mubr.bf16.mxu0 %v619
  %2236 = vmatmul.mubr.bf16.gmra.mrb[0].mxu0 %v618
  %v2237 = vpop.f32.mrb[0].mxu0
  %v2238 = vadd.f32 %v380, %v2237
  %v2239 = vpop.f32.mrb[0].mxu0
  %v2240 = vadd.f32 %v384, %v2239
  %v2241 = vpop.f32.mrb[0].mxu0
  %v2242 = vadd.f32 %v380, %v2241
  %v2243 = vpop.f32.mrb[0].mxu0
  %v2244 = vadd.f32 %v384, %v2243
  %2245 = vmatprep.mubr.bf16.mxu0 %v622
  %2246 = vmatmul.mubr.bf16.gmra.mrb[0].mxu0 %v621
  %v2247 = vpop.f32.mrb[0].mxu0
  %v2248 = vadd.f32 %v380, %v2247
  %v2249 = vpop.f32.mrb[0].mxu0
  %v2250 = vadd.f32 %v384, %v2249
  %v2251 = vpop.f32.mrb[0].mxu0
  %v2252 = vadd.f32 %v380, %v2251
  %v2253 = vpop.f32.mrb[0].mxu0
  %v2254 = vadd.f32 %v384, %v2253
  %2255 = vmatprep.mubr.bf16.mxu0 %v625
  %2256 = vmatmul.mubr.bf16.gmra.mrb[0].mxu0 %v624
  %v2257 = vpop.f32.mrb[0].mxu0
  %v2258 = vadd.f32 %v380, %v2257
  %v2259 = vpop.f32.mrb[0].mxu0
  %v2260 = vadd.f32 %v384, %v2259
  %v2261 = vpop.f32.mrb[0].mxu0
  %v2262 = vadd.f32 %v380, %v2261
  %v2263 = vpop.f32.mrb[0].mxu0
  %v2264 = vadd.f32 %v384, %v2263
  %2265 = vmatprep.mubr.bf16.mxu0 %v628
  %2266 = vmatmul.mubr.bf16.gmra.mrb[0].mxu0 %v627
  %v2267 = vpop.f32.mrb[0].mxu0
  %v2268 = vadd.f32 %v380, %v2267
  %v2269 = vpop.f32.mrb[0].mxu0
  %v2270 = vadd.f32 %v384, %v2269
  %v2271 = vpop.f32.mrb[0].mxu0
  %v2272 = vadd.f32 %v380, %v2271
  %v2273 = vpop.f32.mrb[0].mxu0
  %v2274 = vadd.f32 %v384, %v2273
  %2275 = vmatprep.mubr.bf16.mxu0 %v631
  %2276 = vmatmul.mubr.bf16.gmra.mrb[0].mxu0 %v630
  %v2277 = vpop.f32.mrb[0].mxu0
  %v2278 = vadd.f32 %v380, %v2277
  %v2279 = vpop.f32.mrb[0].mxu0
  %v2280 = vadd.f32 %v384, %v2279
  %v2281 = vpop.f32.mrb[0].mxu0
  %v2282 = vadd.f32 %v380, %v2281
  %v2283 = vpop.f32.mrb[0].mxu0
  %v2284 = vadd.f32 %v384, %v2283
  %2285 = vmatprep.mubr.bf16.mxu0 %v634
  %2286 = vmatmul.mubr.bf16.gmra.mrb[0].mxu0 %v633
  %v2287 = vpop.f32.mrb[0].mxu0
  %v2288 = vadd.f32 %v380, %v2287
  %v2289 = vpop.f32.mrb[0].mxu0
  %v2290 = vadd.f32 %v384, %v2289
  %v2291 = vpop.f32.mrb[0].mxu0
  %v2292 = vadd.f32 %v380, %v2291
  %v2293 = vpop.f32.mrb[0].mxu0
  %v2294 = vadd.f32 %v384, %v2293
  %2295 = vmatprep.mubr.bf16.mxu0 %v637
  %2296 = vmatmul.mubr.bf16.gmra.mrb[0].mxu0 %v636
  %v2297 = vpop.f32.mrb[0].mxu0
  %v2298 = vadd.f32 %v380, %v2297
  %v2299 = vpop.f32.mrb[0].mxu0
  %v2300 = vadd.f32 %v384, %v2299
  %v2301 = vpop.f32.mrb[0].mxu0
  %v2302 = vadd.f32 %v380, %v2301
  %v2303 = vpop.f32.mrb[0].mxu0
  %v2304 = vadd.f32 %v384, %v2303
  %2305 = vmatprep.mubr.bf16.mxu0 %v640
  %2306 = vmatmul.mubr.bf16.gmra.mrb[0].mxu0 %v639
  %v2307 = vpop.f32.mrb[0].mxu0
  %v2308 = vadd.f32 %v380, %v2307
  %v2309 = vpop.f32.mrb[0].mxu0
  %v2310 = vadd.f32 %v384, %v2309
  %v2311 = vpop.f32.mrb[0].mxu0
  %v2312 = vadd.f32 %v380, %v2311
  %v2313 = vpop.f32.mrb[0].mxu0
  %v2314 = vadd.f32 %v384, %v2313
  %2315 = vmatprep.mubr.bf16.mxu0 %v643
  %2316 = vmatmul.mubr.bf16.gmra.mrb[0].mxu0 %v642
  %v2317 = vpop.f32.mrb[0].mxu0
  %v2318 = vadd.f32 %v380, %v2317
  %v2319 = vpop.f32.mrb[0].mxu0
  %v2320 = vadd.f32 %v384, %v2319
  %v2321 = vpop.f32.mrb[0].mxu0
  %v2322 = vadd.f32 %v380, %v2321
  %v2323 = vpop.f32.mrb[0].mxu0
  %v2324 = vadd.f32 %v384, %v2323
  %2325 = vdwg.mxu0
  %2326 = vmatprep.subr.bf16.mxu0 %v1750
  %2327 = vmatpush1.bf16.msra.mxu0 %v1749
  %2328 = vmatprep.subr.bf16.mxu0 %v1762
  %2329 = vmatpush1.bf16.msra.mxu0 %v1761
  %2330 = vmatprep.subr.bf16.mxu0 %v1774
  %2331 = vmatpush1.bf16.msra.mxu0 %v1773
  %2332 = vmatprep.subr.bf16.mxu0 %v1786
  %2333 = vmatpush1.bf16.msra.mxu0 %v1785
  %2334 = vmatprep.subr.bf16.mxu0 %v1798
  %2335 = vmatpush1.bf16.msra.mxu0 %v1797
  %2336 = vmatprep.subr.bf16.mxu0 %v1810
  %2337 = vmatpush1.bf16.msra.mxu0 %v1809
  %2338 = vmatprep.subr.bf16.mxu0 %v1822
  %2339 = vmatpush1.bf16.msra.mxu0 %v1821
  %2340 = vmatprep.subr.bf16.mxu0 %v1834
  %2341 = vmatpush1.bf16.msra.mxu0 %v1833
  %2342 = vmatprep.subr.bf16.mxu0 0
  %2343 = vmatpush1.bf16.msra.mxu0 0
  %2344 = vmatprep.subr.bf16.mxu0 0
  %2345 = vmatpush1.bf16.msra.mxu0 0
  %2346 = vmatprep.subr.bf16.mxu0 0
  %2347 = vmatpush1.bf16.msra.mxu0 0
  %2348 = vmatprep.subr.bf16.mxu0 0
  %2349 = vmatpush1.bf16.msra.mxu0 0
  %2350 = vmatprep.subr.bf16.mxu0 0
  %2351 = vmatpush1.bf16.msra.mxu0 0
  %2352 = vmatprep.subr.bf16.mxu0 0
  %2353 = vmatpush1.bf16.msra.mxu0 0
  %2354 = vmatprep.subr.bf16.mxu0 0
  %2355 = vmatpush1.bf16.msra.mxu0 0
  %2356 = vmatprep.subr.bf16.mxu0 0
  %2357 = vmatpush1.bf16.msra.mxu0 0
  %2358 = vmatprep.mubr.bf16.mxu0 0
  %2359 = vmatmul.mubr.bf16.gmra.mrb[0].mxu0 %v599
  %v2360 = vpop.f32.mrb[0].mxu0
  %v2361 = vadd.f32 %v2168, %v2360
  %v2362 = vpop.f32.mrb[0].mxu0
  %v2363 = vadd.f32 %v2170, %v2362
  %v2364 = vpop.f32.mrb[0].mxu0
  %v2365 = vadd.f32 %v2172, %v2364
  %v2366 = vpop.f32.mrb[0].mxu0
  %v2367 = vadd.f32 %v2174, %v2366
  %2368 = vmatprep.mubr.bf16.mxu0 0
  %2369 = vmatmul.mubr.bf16.gmra.mrb[0].mxu0 %v602
  %v2370 = vpop.f32.mrb[0].mxu0
  %v2371 = vadd.f32 %v2178, %v2370
  %v2372 = vpop.f32.mrb[0].mxu0
  %v2373 = vadd.f32 %v2180, %v2372
  %v2374 = vpop.f32.mrb[0].mxu0
  %v2375 = vadd.f32 %v2182, %v2374
  %v2376 = vpop.f32.mrb[0].mxu0
  %v2377 = vadd.f32 %v2184, %v2376
  %2378 = vmatprep.mubr.bf16.mxu0 0
  %2379 = vmatmul.mubr.bf16.gmra.mrb[0].mxu0 %v605
  %v2380 = vpop.f32.mrb[0].mxu0
  %v2381 = vadd.f32 %v2188, %v2380
  %v2382 = vpop.f32.mrb[0].mxu0
  %v2383 = vadd.f32 %v2190, %v2382
  %v2384 = vpop.f32.mrb[0].mxu0
  %v2385 = vadd.f32 %v2192, %v2384
  %v2386 = vpop.f32.mrb[0].mxu0
  %v2387 = vadd.f32 %v2194, %v2386
  %2388 = vmatprep.mubr.bf16.mxu0 0
  %2389 = vmatmul.mubr.bf16.gmra.mrb[0].mxu0 %v608
  %v2390 = vpop.f32.mrb[0].mxu0
  %v2391 = vadd.f32 %v2198, %v2390
  %v2392 = vpop.f32.mrb[0].mxu0
  %v2393 = vadd.f32 %v2200, %v2392
  %v2394 = vpop.f32.mrb[0].mxu0
  %v2395 = vadd.f32 %v2202, %v2394
  %v2396 = vpop.f32.mrb[0].mxu0
  %v2397 = vadd.f32 %v2204, %v2396
  %2398 = vmatprep.mubr.bf16.mxu0 0
  %2399 = vmatmul.mubr.bf16.gmra.mrb[0].mxu0 %v611
  %v2400 = vpop.f32.mrb[0].mxu0
  %v2401 = vadd.f32 %v2208, %v2400
  %v2402 = vpop.f32.mrb[0].mxu0
  %v2403 = vadd.f32 %v2210, %v2402
  %v2404 = vpop.f32.mrb[0].mxu0
  %v2405 = vadd.f32 %v2212, %v2404
  %v2406 = vpop.f32.mrb[0].mxu0
  %v2407 = vadd.f32 %v2214, %v2406
  %2408 = vmatprep.mubr.bf16.mxu0 0
  %2409 = vmatmul.mubr.bf16.gmra.mrb[0].mxu0 %v614
  %v2410 = vpop.f32.mrb[0].mxu0
  %v2411 = vadd.f32 %v2218, %v2410
  %v2412 = vpop.f32.mrb[0].mxu0
  %v2413 = vadd.f32 %v2220, %v2412
  %v2414 = vpop.f32.mrb[0].mxu0
  %v2415 = vadd.f32 %v2222, %v2414
  %v2416 = vpop.f32.mrb[0].mxu0
  %v2417 = vadd.f32 %v2224, %v2416
  %2418 = vmatprep.mubr.bf16.mxu0 0
  %2419 = vmatmul.mubr.bf16.gmra.mrb[0].mxu0 %v617
  %v2420 = vpop.f32.mrb[0].mxu0
  %v2421 = vadd.f32 %v2228, %v2420
  %v2422 = vpop.f32.mrb[0].mxu0
  %v2423 = vadd.f32 %v2230, %v2422
  %v2424 = vpop.f32.mrb[0].mxu0
  %v2425 = vadd.f32 %v2232, %v2424
  %v2426 = vpop.f32.mrb[0].mxu0
  %v2427 = vadd.f32 %v2234, %v2426
  %2428 = vmatprep.mubr.bf16.mxu0 0
  %2429 = vmatmul.mubr.bf16.gmra.mrb[0].mxu0 %v620
  %v2430 = vpop.f32.mrb[0].mxu0
  %v2431 = vadd.f32 %v2238, %v2430
  %v2432 = vpop.f32.mrb[0].mxu0
  %v2433 = vadd.f32 %v2240, %v2432
  %v2434 = vpop.f32.mrb[0].mxu0
  %v2435 = vadd.f32 %v2242, %v2434
  %v2436 = vpop.f32.mrb[0].mxu0
  %v2437 = vadd.f32 %v2244, %v2436
  %2438 = vmatprep.mubr.bf16.mxu0 0
  %2439 = vmatmul.mubr.bf16.gmra.mrb[0].mxu0 %v623
  %v2440 = vpop.f32.mrb[0].mxu0
  %v2441 = vadd.f32 %v2248, %v2440
  %v2442 = vpop.f32.mrb[0].mxu0
  %v2443 = vadd.f32 %v2250, %v2442
  %v2444 = vpop.f32.mrb[0].mxu0
  %v2445 = vadd.f32 %v2252, %v2444
  %v2446 = vpop.f32.mrb[0].mxu0
  %v2447 = vadd.f32 %v2254, %v2446
  %2448 = vmatprep.mubr.bf16.mxu0 0
  %2449 = vmatmul.mubr.bf16.gmra.mrb[0].mxu0 %v626
  %v2450 = vpop.f32.mrb[0].mxu0
  %v2451 = vadd.f32 %v2258, %v2450
  %v2452 = vpop.f32.mrb[0].mxu0
  %v2453 = vadd.f32 %v2260, %v2452
  %v2454 = vpop.f32.mrb[0].mxu0
  %v2455 = vadd.f32 %v2262, %v2454
  %v2456 = vpop.f32.mrb[0].mxu0
  %v2457 = vadd.f32 %v2264, %v2456
  %2458 = vmatprep.mubr.bf16.mxu0 0
  %2459 = vmatmul.mubr.bf16.gmra.mrb[0].mxu0 %v629
  %v2460 = vpop.f32.mrb[0].mxu0
  %v2461 = vadd.f32 %v2268, %v2460
  %v2462 = vpop.f32.mrb[0].mxu0
  %v2463 = vadd.f32 %v2270, %v2462
  %v2464 = vpop.f32.mrb[0].mxu0
  %v2465 = vadd.f32 %v2272, %v2464
  %v2466 = vpop.f32.mrb[0].mxu0
  %v2467 = vadd.f32 %v2274, %v2466
  %2468 = vmatprep.mubr.bf16.mxu0 0
  %2469 = vmatmul.mubr.bf16.gmra.mrb[0].mxu0 %v632
  %v2470 = vpop.f32.mrb[0].mxu0
  %v2471 = vadd.f32 %v2278, %v2470
  %v2472 = vpop.f32.mrb[0].mxu0
  %v2473 = vadd.f32 %v2280, %v2472
  %v2474 = vpop.f32.mrb[0].mxu0
  %v2475 = vadd.f32 %v2282, %v2474
  %v2476 = vpop.f32.mrb[0].mxu0
  %v2477 = vadd.f32 %v2284, %v2476
  %2478 = vmatprep.mubr.bf16.mxu0 0
  %2479 = vmatmul.mubr.bf16.gmra.mrb[0].mxu0 %v635
  %v2480 = vpop.f32.mrb[0].mxu0
  %v2481 = vadd.f32 %v2288, %v2480
  %v2482 = vpop.f32.mrb[0].mxu0
  %v2483 = vadd.f32 %v2290, %v2482
  %v2484 = vpop.f32.mrb[0].mxu0
  %v2485 = vadd.f32 %v2292, %v2484
  %v2486 = vpop.f32.mrb[0].mxu0
  %v2487 = vadd.f32 %v2294, %v2486
  %2488 = vmatprep.mubr.bf16.mxu0 0
  %2489 = vmatmul.mubr.bf16.gmra.mrb[0].mxu0 %v638
  %v2490 = vpop.f32.mrb[0].mxu0
  %v2491 = vadd.f32 %v2298, %v2490
  %v2492 = vpop.f32.mrb[0].mxu0
  %v2493 = vadd.f32 %v2300, %v2492
  %v2494 = vpop.f32.mrb[0].mxu0
  %v2495 = vadd.f32 %v2302, %v2494
  %v2496 = vpop.f32.mrb[0].mxu0
  %v2497 = vadd.f32 %v2304, %v2496
  %2498 = vmatprep.mubr.bf16.mxu0 0
  %2499 = vmatmul.mubr.bf16.gmra.mrb[0].mxu0 %v641
  %v2500 = vpop.f32.mrb[0].mxu0
  %v2501 = vadd.f32 %v2308, %v2500
  %v2502 = vpop.f32.mrb[0].mxu0
  %v2503 = vadd.f32 %v2310, %v2502
  %v2504 = vpop.f32.mrb[0].mxu0
  %v2505 = vadd.f32 %v2312, %v2504
  %v2506 = vpop.f32.mrb[0].mxu0
  %v2507 = vadd.f32 %v2314, %v2506
  %2508 = vmatprep.mubr.bf16.mxu0 0
  %2509 = vmatmul.mubr.bf16.gmra.mrb[0].mxu0 %v644
  %v2510 = vpop.f32.mrb[0].mxu0
  %v2511 = vadd.f32 %v2318, %v2510
  %v2512 = vpop.f32.mrb[0].mxu0
  %v2513 = vadd.f32 %v2320, %v2512
  %v2514 = vpop.f32.mrb[0].mxu0
  %v2515 = vadd.f32 %v2322, %v2514
  %v2516 = vpop.f32.mrb[0].mxu0
  %v2517 = vadd.f32 %v2324, %v2516
  %2518 = vdwg.mxu0
  %2519 = vmatprep.subr.bf16.mxu0 %v1560
  %2520 = vmatpush1.bf16.msra.mxu0 %v1559
  %2521 = vmatprep.subr.bf16.mxu0 %v1572
  %2522 = vmatpush1.bf16.msra.mxu0 %v1571
  %2523 = vmatprep.subr.bf16.mxu0 %v1584
  %2524 = vmatpush1.bf16.msra.mxu0 %v1583
  %2525 = vmatprep.subr.bf16.mxu0 %v1596
  %2526 = vmatpush1.bf16.msra.mxu0 %v1595
  %2527 = vmatprep.subr.bf16.mxu0 %v1608
  %2528 = vmatpush1.bf16.msra.mxu0 %v1607
  %2529 = vmatprep.subr.bf16.mxu0 %v1620
  %2530 = vmatpush1.bf16.msra.mxu0 %v1619
  %2531 = vmatprep.subr.bf16.mxu0 %v1632
  %2532 = vmatpush1.bf16.msra.mxu0 %v1631
  %2533 = vmatprep.subr.bf16.mxu0 %v1644
  %2534 = vmatpush1.bf16.msra.mxu0 %v1643
  %2535 = vmatprep.subr.bf16.mxu0 %v1656
  %2536 = vmatpush1.bf16.msra.mxu0 %v1655
  %2537 = vmatprep.subr.bf16.mxu0 %v1668
  %2538 = vmatpush1.bf16.msra.mxu0 %v1667
  %2539 = vmatprep.subr.bf16.mxu0 %v1680
  %2540 = vmatpush1.bf16.msra.mxu0 %v1679
  %2541 = vmatprep.subr.bf16.mxu0 %v1692
  %2542 = vmatpush1.bf16.msra.mxu0 %v1691
  %2543 = vmatprep.subr.bf16.mxu0 %v1704
  %2544 = vmatpush1.bf16.msra.mxu0 %v1703
  %2545 = vmatprep.subr.bf16.mxu0 %v1716
  %2546 = vmatpush1.bf16.msra.mxu0 %v1715
  %2547 = vmatprep.subr.bf16.mxu0 %v1728
  %2548 = vmatpush1.bf16.msra.mxu0 %v1727
  %2549 = vmatprep.subr.bf16.mxu0 %v1740
  %2550 = vmatpush1.bf16.msra.mxu0 %v1739
  %2551 = vmatprep.mubr.bf16.mxu0 %v598
  %2552 = vmatmul.mubr.bf16.gmra.mrb[0].mxu0 %v597
  %v2553 = vpop.f32.mrb[0].mxu0
  %v2554 = vadd.f32 %v388, %v2553
  %v2555 = vpop.f32.mrb[0].mxu0
  %v2556 = vadd.f32 %v392, %v2555
  %v2557 = vpop.f32.mrb[0].mxu0
  %v2558 = vadd.f32 %v388, %v2557
  %v2559 = vpop.f32.mrb[0].mxu0
  %v2560 = vadd.f32 %v392, %v2559
  %2561 = vmatprep.mubr.bf16.mxu0 %v601
  %2562 = vmatmul.mubr.bf16.gmra.mrb[0].mxu0 %v600
  %v2563 = vpop.f32.mrb[0].mxu0
  %v2564 = vadd.f32 %v388, %v2563
  %v2565 = vpop.f32.mrb[0].mxu0
  %v2566 = vadd.f32 %v392, %v2565
  %v2567 = vpop.f32.mrb[0].mxu0
  %v2568 = vadd.f32 %v388, %v2567
  %v2569 = vpop.f32.mrb[0].mxu0
  %v2570 = vadd.f32 %v392, %v2569
  %2571 = vmatprep.mubr.bf16.mxu0 %v604
  %2572 = vmatmul.mubr.bf16.gmra.mrb[0].mxu0 %v603
  %v2573 = vpop.f32.mrb[0].mxu0
  %v2574 = vadd.f32 %v388, %v2573
  %v2575 = vpop.f32.mrb[0].mxu0
  %v2576 = vadd.f32 %v392, %v2575
  %v2577 = vpop.f32.mrb[0].mxu0
  %v2578 = vadd.f32 %v388, %v2577
  %v2579 = vpop.f32.mrb[0].mxu0
  %v2580 = vadd.f32 %v392, %v2579
  %2581 = vmatprep.mubr.bf16.mxu0 %v607
  %2582 = vmatmul.mubr.bf16.gmra.mrb[0].mxu0 %v606
  %v2583 = vpop.f32.mrb[0].mxu0
  %v2584 = vadd.f32 %v388, %v2583
  %v2585 = vpop.f32.mrb[0].mxu0
  %v2586 = vadd.f32 %v392, %v2585
  %v2587 = vpop.f32.mrb[0].mxu0
  %v2588 = vadd.f32 %v388, %v2587
  %v2589 = vpop.f32.mrb[0].mxu0
  %v2590 = vadd.f32 %v392, %v2589
  %2591 = vmatprep.mubr.bf16.mxu0 %v610
  %2592 = vmatmul.mubr.bf16.gmra.mrb[0].mxu0 %v609
  %v2593 = vpop.f32.mrb[0].mxu0
  %v2594 = vadd.f32 %v388, %v2593
  %v2595 = vpop.f32.mrb[0].mxu0
  %v2596 = vadd.f32 %v392, %v2595
  %v2597 = vpop.f32.mrb[0].mxu0
  %v2598 = vadd.f32 %v388, %v2597
  %v2599 = vpop.f32.mrb[0].mxu0
  %v2600 = vadd.f32 %v392, %v2599
  %2601 = vmatprep.mubr.bf16.mxu0 %v613
  %2602 = vmatmul.mubr.bf16.gmra.mrb[0].mxu0 %v612
  %v2603 = vpop.f32.mrb[0].mxu0
  %v2604 = vadd.f32 %v388, %v2603
  %v2605 = vpop.f32.mrb[0].mxu0
  %v2606 = vadd.f32 %v392, %v2605
  %v2607 = vpop.f32.mrb[0].mxu0
  %v2608 = vadd.f32 %v388, %v2607
  %v2609 = vpop.f32.mrb[0].mxu0
  %v2610 = vadd.f32 %v392, %v2609
  %2611 = vmatprep.mubr.bf16.mxu0 %v616
  %2612 = vmatmul.mubr.bf16.gmra.mrb[0].mxu0 %v615
  %v2613 = vpop.f32.mrb[0].mxu0
  %v2614 = vadd.f32 %v388, %v2613
  %v2615 = vpop.f32.mrb[0].mxu0
  %v2616 = vadd.f32 %v392, %v2615
  %v2617 = vpop.f32.mrb[0].mxu0
  %v2618 = vadd.f32 %v388, %v2617
  %v2619 = vpop.f32.mrb[0].mxu0
  %v2620 = vadd.f32 %v392, %v2619
  %2621 = vmatprep.mubr.bf16.mxu0 %v619
  %2622 = vmatmul.mubr.bf16.gmra.mrb[0].mxu0 %v618
  %v2623 = vpop.f32.mrb[0].mxu0
  %v2624 = vadd.f32 %v388, %v2623
  %v2625 = vpop.f32.mrb[0].mxu0
  %v2626 = vadd.f32 %v392, %v2625
  %v2627 = vpop.f32.mrb[0].mxu0
  %v2628 = vadd.f32 %v388, %v2627
  %v2629 = vpop.f32.mrb[0].mxu0
  %v2630 = vadd.f32 %v392, %v2629
  %2631 = vmatprep.mubr.bf16.mxu0 %v622
  %2632 = vmatmul.mubr.bf16.gmra.mrb[0].mxu0 %v621
  %v2633 = vpop.f32.mrb[0].mxu0
  %v2634 = vadd.f32 %v388, %v2633
  %v2635 = vpop.f32.mrb[0].mxu0
  %v2636 = vadd.f32 %v392, %v2635
  %v2637 = vpop.f32.mrb[0].mxu0
  %v2638 = vadd.f32 %v388, %v2637
  %v2639 = vpop.f32.mrb[0].mxu0
  %v2640 = vadd.f32 %v392, %v2639
  %2641 = vmatprep.mubr.bf16.mxu0 %v625
  %2642 = vmatmul.mubr.bf16.gmra.mrb[0].mxu0 %v624
  %v2643 = vpop.f32.mrb[0].mxu0
  %v2644 = vadd.f32 %v388, %v2643
  %v2645 = vpop.f32.mrb[0].mxu0
  %v2646 = vadd.f32 %v392, %v2645
  %v2647 = vpop.f32.mrb[0].mxu0
  %v2648 = vadd.f32 %v388, %v2647
  %v2649 = vpop.f32.mrb[0].mxu0
  %v2650 = vadd.f32 %v392, %v2649
  %2651 = vmatprep.mubr.bf16.mxu0 %v628
  %2652 = vmatmul.mubr.bf16.gmra.mrb[0].mxu0 %v627
  %v2653 = vpop.f32.mrb[0].mxu0
  %v2654 = vadd.f32 %v388, %v2653
  %v2655 = vpop.f32.mrb[0].mxu0
  %v2656 = vadd.f32 %v392, %v2655
  %v2657 = vpop.f32.mrb[0].mxu0
  %v2658 = vadd.f32 %v388, %v2657
  %v2659 = vpop.f32.mrb[0].mxu0
  %v2660 = vadd.f32 %v392, %v2659
  %2661 = vmatprep.mubr.bf16.mxu0 %v631
  %2662 = vmatmul.mubr.bf16.gmra.mrb[0].mxu0 %v630
  %v2663 = vpop.f32.mrb[0].mxu0
  %v2664 = vadd.f32 %v388, %v2663
  %v2665 = vpop.f32.mrb[0].mxu0
  %v2666 = vadd.f32 %v392, %v2665
  %v2667 = vpop.f32.mrb[0].mxu0
  %v2668 = vadd.f32 %v388, %v2667
  %v2669 = vpop.f32.mrb[0].mxu0
  %v2670 = vadd.f32 %v392, %v2669
  %2671 = vmatprep.mubr.bf16.mxu0 %v634
  %2672 = vmatmul.mubr.bf16.gmra.mrb[0].mxu0 %v633
  %v2673 = vpop.f32.mrb[0].mxu0
  %v2674 = vadd.f32 %v388, %v2673
  %v2675 = vpop.f32.mrb[0].mxu0
  %v2676 = vadd.f32 %v392, %v2675
  %v2677 = vpop.f32.mrb[0].mxu0
  %v2678 = vadd.f32 %v388, %v2677
  %v2679 = vpop.f32.mrb[0].mxu0
  %v2680 = vadd.f32 %v392, %v2679
  %2681 = vmatprep.mubr.bf16.mxu0 %v637
  %2682 = vmatmul.mubr.bf16.gmra.mrb[0].mxu0 %v636
  %v2683 = vpop.f32.mrb[0].mxu0
  %v2684 = vadd.f32 %v388, %v2683
  %v2685 = vpop.f32.mrb[0].mxu0
  %v2686 = vadd.f32 %v392, %v2685
  %v2687 = vpop.f32.mrb[0].mxu0
  %v2688 = vadd.f32 %v388, %v2687
  %v2689 = vpop.f32.mrb[0].mxu0
  %v2690 = vadd.f32 %v392, %v2689
  %2691 = vmatprep.mubr.bf16.mxu0 %v640
  %2692 = vmatmul.mubr.bf16.gmra.mrb[0].mxu0 %v639
  %v2693 = vpop.f32.mrb[0].mxu0
  %v2694 = vadd.f32 %v388, %v2693
  %v2695 = vpop.f32.mrb[0].mxu0
  %v2696 = vadd.f32 %v392, %v2695
  %v2697 = vpop.f32.mrb[0].mxu0
  %v2698 = vadd.f32 %v388, %v2697
  %v2699 = vpop.f32.mrb[0].mxu0
  %v2700 = vadd.f32 %v392, %v2699
  %2701 = vmatprep.mubr.bf16.mxu0 %v643
  %2702 = vmatmul.mubr.bf16.gmra.mrb[0].mxu0 %v642
  %v2703 = vpop.f32.mrb[0].mxu0
  %v2704 = vadd.f32 %v388, %v2703
  %v2705 = vpop.f32.mrb[0].mxu0
  %v2706 = vadd.f32 %v392, %v2705
  %v2707 = vpop.f32.mrb[0].mxu0
  %v2708 = vadd.f32 %v388, %v2707
  %v2709 = vpop.f32.mrb[0].mxu0
  %v2710 = vadd.f32 %v392, %v2709
  %2711 = vdwg.mxu0
  %2712 = vmatprep.subr.bf16.mxu0 %v1752
  %2713 = vmatpush1.bf16.msra.mxu0 %v1751
  %2714 = vmatprep.subr.bf16.mxu0 %v1764
  %2715 = vmatpush1.bf16.msra.mxu0 %v1763
  %2716 = vmatprep.subr.bf16.mxu0 %v1776
  %2717 = vmatpush1.bf16.msra.mxu0 %v1775
  %2718 = vmatprep.subr.bf16.mxu0 %v1788
  %2719 = vmatpush1.bf16.msra.mxu0 %v1787
  %2720 = vmatprep.subr.bf16.mxu0 %v1800
  %2721 = vmatpush1.bf16.msra.mxu0 %v1799
  %2722 = vmatprep.subr.bf16.mxu0 %v1812
  %2723 = vmatpush1.bf16.msra.mxu0 %v1811
  %2724 = vmatprep.subr.bf16.mxu0 %v1824
  %2725 = vmatpush1.bf16.msra.mxu0 %v1823
  %2726 = vmatprep.subr.bf16.mxu0 %v1836
  %2727 = vmatpush1.bf16.msra.mxu0 %v1835
  %2728 = vmatprep.subr.bf16.mxu0 0
  %2729 = vmatpush1.bf16.msra.mxu0 0
  %2730 = vmatprep.subr.bf16.mxu0 0
  %2731 = vmatpush1.bf16.msra.mxu0 0
  %2732 = vmatprep.subr.bf16.mxu0 0
  %2733 = vmatpush1.bf16.msra.mxu0 0
  %2734 = vmatprep.subr.bf16.mxu0 0
  %2735 = vmatpush1.bf16.msra.mxu0 0
  %2736 = vmatprep.subr.bf16.mxu0 0
  %2737 = vmatpush1.bf16.msra.mxu0 0
  %2738 = vmatprep.subr.bf16.mxu0 0
  %2739 = vmatpush1.bf16.msra.mxu0 0
  %2740 = vmatprep.subr.bf16.mxu0 0
  %2741 = vmatpush1.bf16.msra.mxu0 0
  %2742 = vmatprep.subr.bf16.mxu0 0
  %2743 = vmatpush1.bf16.msra.mxu0 0
  %2744 = vmatprep.mubr.bf16.mxu0 0
  %2745 = vmatmul.mubr.bf16.gmra.mrb[0].mxu0 %v599
  %v2746 = vpop.f32.mrb[0].mxu0
  %v2747 = vadd.f32 %v2554, %v2746
  %v2748 = vpop.f32.mrb[0].mxu0
  %v2749 = vadd.f32 %v2556, %v2748
  %v2750 = vpop.f32.mrb[0].mxu0
  %v2751 = vadd.f32 %v2558, %v2750
  %v2752 = vpop.f32.mrb[0].mxu0
  %v2753 = vadd.f32 %v2560, %v2752
  %2754 = vmatprep.mubr.bf16.mxu0 0
  %2755 = vmatmul.mubr.bf16.gmra.mrb[0].mxu0 %v602
  %v2756 = vpop.f32.mrb[0].mxu0
  %v2757 = vadd.f32 %v2564, %v2756
  %v2758 = vpop.f32.mrb[0].mxu0
  %v2759 = vadd.f32 %v2566, %v2758
  %v2760 = vpop.f32.mrb[0].mxu0
  %v2761 = vadd.f32 %v2568, %v2760
  %v2762 = vpop.f32.mrb[0].mxu0
  %v2763 = vadd.f32 %v2570, %v2762
  %2764 = vmatprep.mubr.bf16.mxu0 0
  %2765 = vmatmul.mubr.bf16.gmra.mrb[0].mxu0 %v605
  %v2766 = vpop.f32.mrb[0].mxu0
  %v2767 = vadd.f32 %v2574, %v2766
  %v2768 = vpop.f32.mrb[0].mxu0
  %v2769 = vadd.f32 %v2576, %v2768
  %v2770 = vpop.f32.mrb[0].mxu0
  %v2771 = vadd.f32 %v2578, %v2770
  %v2772 = vpop.f32.mrb[0].mxu0
  %v2773 = vadd.f32 %v2580, %v2772
  %2774 = vmatprep.mubr.bf16.mxu0 0
  %2775 = vmatmul.mubr.bf16.gmra.mrb[0].mxu0 %v608
  %v2776 = vpop.f32.mrb[0].mxu0
  %v2777 = vadd.f32 %v2584, %v2776
  %v2778 = vpop.f32.mrb[0].mxu0
  %v2779 = vadd.f32 %v2586, %v2778
  %v2780 = vpop.f32.mrb[0].mxu0
  %v2781 = vadd.f32 %v2588, %v2780
  %v2782 = vpop.f32.mrb[0].mxu0
  %v2783 = vadd.f32 %v2590, %v2782
  %2784 = vmatprep.mubr.bf16.mxu0 0
  %2785 = vmatmul.mubr.bf16.gmra.mrb[0].mxu0 %v611
  %v2786 = vpop.f32.mrb[0].mxu0
  %v2787 = vadd.f32 %v2594, %v2786
  %v2788 = vpop.f32.mrb[0].mxu0
  %v2789 = vadd.f32 %v2596, %v2788
  %v2790 = vpop.f32.mrb[0].mxu0
  %v2791 = vadd.f32 %v2598, %v2790
  %v2792 = vpop.f32.mrb[0].mxu0
  %v2793 = vadd.f32 %v2600, %v2792
  %2794 = vmatprep.mubr.bf16.mxu0 0
  %2795 = vmatmul.mubr.bf16.gmra.mrb[0].mxu0 %v614
  %v2796 = vpop.f32.mrb[0].mxu0
  %v2797 = vadd.f32 %v2604, %v2796
  %v2798 = vpop.f32.mrb[0].mxu0
  %v2799 = vadd.f32 %v2606, %v2798
  %v2800 = vpop.f32.mrb[0].mxu0
  %v2801 = vadd.f32 %v2608, %v2800
  %v2802 = vpop.f32.mrb[0].mxu0
  %v2803 = vadd.f32 %v2610, %v2802
  %2804 = vmatprep.mubr.bf16.mxu0 0
  %2805 = vmatmul.mubr.bf16.gmra.mrb[0].mxu0 %v617
  %v2806 = vpop.f32.mrb[0].mxu0
  %v2807 = vadd.f32 %v2614, %v2806
  %v2808 = vpop.f32.mrb[0].mxu0
  %v2809 = vadd.f32 %v2616, %v2808
  %v2810 = vpop.f32.mrb[0].mxu0
  %v2811 = vadd.f32 %v2618, %v2810
  %v2812 = vpop.f32.mrb[0].mxu0
  %v2813 = vadd.f32 %v2620, %v2812
  %2814 = vmatprep.mubr.bf16.mxu0 0
  %2815 = vmatmul.mubr.bf16.gmra.mrb[0].mxu0 %v620
  %v2816 = vpop.f32.mrb[0].mxu0
  %v2817 = vadd.f32 %v2624, %v2816
  %v2818 = vpop.f32.mrb[0].mxu0
  %v2819 = vadd.f32 %v2626, %v2818
  %v2820 = vpop.f32.mrb[0].mxu0
  %v2821 = vadd.f32 %v2628, %v2820
  %v2822 = vpop.f32.mrb[0].mxu0
  %v2823 = vadd.f32 %v2630, %v2822
  %2824 = vmatprep.mubr.bf16.mxu0 0
  %2825 = vmatmul.mubr.bf16.gmra.mrb[0].mxu0 %v623
  %v2826 = vpop.f32.mrb[0].mxu0
  %v2827 = vadd.f32 %v2634, %v2826
  %v2828 = vpop.f32.mrb[0].mxu0
  %v2829 = vadd.f32 %v2636, %v2828
  %v2830 = vpop.f32.mrb[0].mxu0
  %v2831 = vadd.f32 %v2638, %v2830
  %v2832 = vpop.f32.mrb[0].mxu0
  %v2833 = vadd.f32 %v2640, %v2832
  %2834 = vmatprep.mubr.bf16.mxu0 0
  %2835 = vmatmul.mubr.bf16.gmra.mrb[0].mxu0 %v626
  %v2836 = vpop.f32.mrb[0].mxu0
  %v2837 = vadd.f32 %v2644, %v2836
  %v2838 = vpop.f32.mrb[0].mxu0
  %v2839 = vadd.f32 %v2646, %v2838
  %v2840 = vpop.f32.mrb[0].mxu0
  %v2841 = vadd.f32 %v2648, %v2840
  %v2842 = vpop.f32.mrb[0].mxu0
  %v2843 = vadd.f32 %v2650, %v2842
  %2844 = vmatprep.mubr.bf16.mxu0 0
  %2845 = vmatmul.mubr.bf16.gmra.mrb[0].mxu0 %v629
  %v2846 = vpop.f32.mrb[0].mxu0
  %v2847 = vadd.f32 %v2654, %v2846
  %v2848 = vpop.f32.mrb[0].mxu0
  %v2849 = vadd.f32 %v2656, %v2848
  %v2850 = vpop.f32.mrb[0].mxu0
  %v2851 = vadd.f32 %v2658, %v2850
  %v2852 = vpop.f32.mrb[0].mxu0
  %v2853 = vadd.f32 %v2660, %v2852
  %2854 = vmatprep.mubr.bf16.mxu0 0
  %2855 = vmatmul.mubr.bf16.gmra.mrb[0].mxu0 %v632
  %v2856 = vpop.f32.mrb[0].mxu0
  %v2857 = vadd.f32 %v2664, %v2856
  %v2858 = vpop.f32.mrb[0].mxu0
  %v2859 = vadd.f32 %v2666, %v2858
  %v2860 = vpop.f32.mrb[0].mxu0
  %v2861 = vadd.f32 %v2668, %v2860
  %v2862 = vpop.f32.mrb[0].mxu0
  %v2863 = vadd.f32 %v2670, %v2862
  %2864 = vmatprep.mubr.bf16.mxu0 0
  %2865 = vmatmul.mubr.bf16.gmra.mrb[0].mxu0 %v635
  %v2866 = vpop.f32.mrb[0].mxu0
  %v2867 = vadd.f32 %v2674, %v2866
  %v2868 = vpop.f32.mrb[0].mxu0
  %v2869 = vadd.f32 %v2676, %v2868
  %v2870 = vpop.f32.mrb[0].mxu0
  %v2871 = vadd.f32 %v2678, %v2870
  %v2872 = vpop.f32.mrb[0].mxu0
  %v2873 = vadd.f32 %v2680, %v2872
  %2874 = vmatprep.mubr.bf16.mxu0 0
  %2875 = vmatmul.mubr.bf16.gmra.mrb[0].mxu0 %v638
  %v2876 = vpop.f32.mrb[0].mxu0
  %v2877 = vadd.f32 %v2684, %v2876
  %v2878 = vpop.f32.mrb[0].mxu0
  %v2879 = vadd.f32 %v2686, %v2878
  %v2880 = vpop.f32.mrb[0].mxu0
  %v2881 = vadd.f32 %v2688, %v2880
  %v2882 = vpop.f32.mrb[0].mxu0
  %v2883 = vadd.f32 %v2690, %v2882
  %2884 = vmatprep.mubr.bf16.mxu0 0
  %2885 = vmatmul.mubr.bf16.gmra.mrb[0].mxu0 %v641
  %v2886 = vpop.f32.mrb[0].mxu0
  %v2887 = vadd.f32 %v2694, %v2886
  %v2888 = vpop.f32.mrb[0].mxu0
  %v2889 = vadd.f32 %v2696, %v2888
  %v2890 = vpop.f32.mrb[0].mxu0
  %v2891 = vadd.f32 %v2698, %v2890
  %v2892 = vpop.f32.mrb[0].mxu0
  %v2893 = vadd.f32 %v2700, %v2892
  %2894 = vmatprep.mubr.bf16.mxu0 0
  %2895 = vmatmul.mubr.bf16.gmra.mrb[0].mxu0 %v644
  %v2896 = vpop.f32.mrb[0].mxu0
  %v2897 = vadd.f32 %v2704, %v2896
  %v2898 = vpop.f32.mrb[0].mxu0
  %v2899 = vadd.f32 %v2706, %v2898
  %v2900 = vpop.f32.mrb[0].mxu0
  %v2901 = vadd.f32 %v2708, %v2900
  %v2902 = vpop.f32.mrb[0].mxu0
  %v2903 = vadd.f32 %v2710, %v2902
  %2904 = vdwg.mxu0
  %2905 = vmatprep.subr.bf16.mxu0 %v1562
  %2906 = vmatpush1.bf16.msra.mxu0 %v1561
  %2907 = vmatprep.subr.bf16.mxu0 %v1574
  %2908 = vmatpush1.bf16.msra.mxu0 %v1573
  %2909 = vmatprep.subr.bf16.mxu0 %v1586
  %2910 = vmatpush1.bf16.msra.mxu0 %v1585
  %2911 = vmatprep.subr.bf16.mxu0 %v1598
  %2912 = vmatpush1.bf16.msra.mxu0 %v1597
  %2913 = vmatprep.subr.bf16.mxu0 %v1610
  %2914 = vmatpush1.bf16.msra.mxu0 %v1609
  %2915 = vmatprep.subr.bf16.mxu0 %v1622
  %2916 = vmatpush1.bf16.msra.mxu0 %v1621
  %2917 = vmatprep.subr.bf16.mxu0 %v1634
  %2918 = vmatpush1.bf16.msra.mxu0 %v1633
  %2919 = vmatprep.subr.bf16.mxu0 %v1646
  %2920 = vmatpush1.bf16.msra.mxu0 %v1645
  %2921 = vmatprep.subr.bf16.mxu0 %v1658
  %2922 = vmatpush1.bf16.msra.mxu0 %v1657
  %2923 = vmatprep.subr.bf16.mxu0 %v1670
  %2924 = vmatpush1.bf16.msra.mxu0 %v1669
  %2925 = vmatprep.subr.bf16.mxu0 %v1682
  %2926 = vmatpush1.bf16.msra.mxu0 %v1681
  %2927 = vmatprep.subr.bf16.mxu0 %v1694
  %2928 = vmatpush1.bf16.msra.mxu0 %v1693
  %2929 = vmatprep.subr.bf16.mxu0 %v1706
  %2930 = vmatpush1.bf16.msra.mxu0 %v1705
  %2931 = vmatprep.subr.bf16.mxu0 %v1718
  %2932 = vmatpush1.bf16.msra.mxu0 %v1717
  %2933 = vmatprep.subr.bf16.mxu0 %v1730
  %2934 = vmatpush1.bf16.msra.mxu0 %v1729
  %2935 = vmatprep.subr.bf16.mxu0 %v1742
  %2936 = vmatpush1.bf16.msra.mxu0 %v1741
  %2937 = vmatprep.mubr.bf16.mxu0 %v598
  %2938 = vmatmul.mubr.bf16.gmra.mrb[0].mxu0 %v597
  %v2939 = vpop.f32.mrb[0].mxu0
  %v2940 = vadd.f32 %v396, %v2939
  %v2941 = vpop.f32.mrb[0].mxu0
  %v2942 = vadd.f32 %v400, %v2941
  %v2943 = vpop.f32.mrb[0].mxu0
  %v2944 = vadd.f32 %v396, %v2943
  %v2945 = vpop.f32.mrb[0].mxu0
  %v2946 = vadd.f32 %v400, %v2945
  %2947 = vmatprep.mubr.bf16.mxu0 %v601
  %2948 = vmatmul.mubr.bf16.gmra.mrb[0].mxu0 %v600
  %v2949 = vpop.f32.mrb[0].mxu0
  %v2950 = vadd.f32 %v396, %v2949
  %v2951 = vpop.f32.mrb[0].mxu0
  %v2952 = vadd.f32 %v400, %v2951
  %v2953 = vpop.f32.mrb[0].mxu0
  %v2954 = vadd.f32 %v396, %v2953
  %v2955 = vpop.f32.mrb[0].mxu0
  %v2956 = vadd.f32 %v400, %v2955
  %2957 = vmatprep.mubr.bf16.mxu0 %v604
  %2958 = vmatmul.mubr.bf16.gmra.mrb[0].mxu0 %v603
  %v2959 = vpop.f32.mrb[0].mxu0
  %v2960 = vadd.f32 %v396, %v2959
  %v2961 = vpop.f32.mrb[0].mxu0
  %v2962 = vadd.f32 %v400, %v2961
  %v2963 = vpop.f32.mrb[0].mxu0
  %v2964 = vadd.f32 %v396, %v2963
  %v2965 = vpop.f32.mrb[0].mxu0
  %v2966 = vadd.f32 %v400, %v2965
  %2967 = vmatprep.mubr.bf16.mxu0 %v607
  %2968 = vmatmul.mubr.bf16.gmra.mrb[0].mxu0 %v606
  %v2969 = vpop.f32.mrb[0].mxu0
  %v2970 = vadd.f32 %v396, %v2969
  %v2971 = vpop.f32.mrb[0].mxu0
  %v2972 = vadd.f32 %v400, %v2971
  %v2973 = vpop.f32.mrb[0].mxu0
  %v2974 = vadd.f32 %v396, %v2973
  %v2975 = vpop.f32.mrb[0].mxu0
  %v2976 = vadd.f32 %v400, %v2975
  %2977 = vmatprep.mubr.bf16.mxu0 %v610
  %2978 = vmatmul.mubr.bf16.gmra.mrb[0].mxu0 %v609
  %v2979 = vpop.f32.mrb[0].mxu0
  %v2980 = vadd.f32 %v396, %v2979
  %v2981 = vpop.f32.mrb[0].mxu0
  %v2982 = vadd.f32 %v400, %v2981
  %v2983 = vpop.f32.mrb[0].mxu0
  %v2984 = vadd.f32 %v396, %v2983
  %v2985 = vpop.f32.mrb[0].mxu0
  %v2986 = vadd.f32 %v400, %v2985
  %2987 = vmatprep.mubr.bf16.mxu0 %v613
  %2988 = vmatmul.mubr.bf16.gmra.mrb[0].mxu0 %v612
  %v2989 = vpop.f32.mrb[0].mxu0
  %v2990 = vadd.f32 %v396, %v2989
  %v2991 = vpop.f32.mrb[0].mxu0
  %v2992 = vadd.f32 %v400, %v2991
  %v2993 = vpop.f32.mrb[0].mxu0
  %v2994 = vadd.f32 %v396, %v2993
  %v2995 = vpop.f32.mrb[0].mxu0
  %v2996 = vadd.f32 %v400, %v2995
  %2997 = vmatprep.mubr.bf16.mxu0 %v616
  %2998 = vmatmul.mubr.bf16.gmra.mrb[0].mxu0 %v615
  %v2999 = vpop.f32.mrb[0].mxu0
  %v3000 = vadd.f32 %v396, %v2999
  %v3001 = vpop.f32.mrb[0].mxu0
  %v3002 = vadd.f32 %v400, %v3001
  %v3003 = vpop.f32.mrb[0].mxu0
  %v3004 = vadd.f32 %v396, %v3003
  %v3005 = vpop.f32.mrb[0].mxu0
  %v3006 = vadd.f32 %v400, %v3005
  %3007 = vmatprep.mubr.bf16.mxu0 %v619
  %3008 = vmatmul.mubr.bf16.gmra.mrb[0].mxu0 %v618
  %v3009 = vpop.f32.mrb[0].mxu0
  %v3010 = vadd.f32 %v396, %v3009
  %v3011 = vpop.f32.mrb[0].mxu0
  %v3012 = vadd.f32 %v400, %v3011
  %v3013 = vpop.f32.mrb[0].mxu0
  %v3014 = vadd.f32 %v396, %v3013
  %v3015 = vpop.f32.mrb[0].mxu0
  %v3016 = vadd.f32 %v400, %v3015
  %3017 = vmatprep.mubr.bf16.mxu0 %v622
  %3018 = vmatmul.mubr.bf16.gmra.mrb[0].mxu0 %v621
  %v3019 = vpop.f32.mrb[0].mxu0
  %v3020 = vadd.f32 %v396, %v3019
  %v3021 = vpop.f32.mrb[0].mxu0
  %v3022 = vadd.f32 %v400, %v3021
  %v3023 = vpop.f32.mrb[0].mxu0
  %v3024 = vadd.f32 %v396, %v3023
  %v3025 = vpop.f32.mrb[0].mxu0
  %v3026 = vadd.f32 %v400, %v3025
  %3027 = vmatprep.mubr.bf16.mxu0 %v625
  %3028 = vmatmul.mubr.bf16.gmra.mrb[0].mxu0 %v624
  %v3029 = vpop.f32.mrb[0].mxu0
  %v3030 = vadd.f32 %v396, %v3029
  %v3031 = vpop.f32.mrb[0].mxu0
  %v3032 = vadd.f32 %v400, %v3031
  %v3033 = vpop.f32.mrb[0].mxu0
  %v3034 = vadd.f32 %v396, %v3033
  %v3035 = vpop.f32.mrb[0].mxu0
  %v3036 = vadd.f32 %v400, %v3035
  %3037 = vmatprep.mubr.bf16.mxu0 %v628
  %3038 = vmatmul.mubr.bf16.gmra.mrb[0].mxu0 %v627
  %v3039 = vpop.f32.mrb[0].mxu0
  %v3040 = vadd.f32 %v396, %v3039
  %v3041 = vpop.f32.mrb[0].mxu0
  %v3042 = vadd.f32 %v400, %v3041
  %v3043 = vpop.f32.mrb[0].mxu0
  %v3044 = vadd.f32 %v396, %v3043
  %v3045 = vpop.f32.mrb[0].mxu0
  %v3046 = vadd.f32 %v400, %v3045
  %3047 = vmatprep.mubr.bf16.mxu0 %v631
  %3048 = vmatmul.mubr.bf16.gmra.mrb[0].mxu0 %v630
  %v3049 = vpop.f32.mrb[0].mxu0
  %v3050 = vadd.f32 %v396, %v3049
  %v3051 = vpop.f32.mrb[0].mxu0
  %v3052 = vadd.f32 %v400, %v3051
  %v3053 = vpop.f32.mrb[0].mxu0
  %v3054 = vadd.f32 %v396, %v3053
  %v3055 = vpop.f32.mrb[0].mxu0
  %v3056 = vadd.f32 %v400, %v3055
  %3057 = vmatprep.mubr.bf16.mxu0 %v634
  %3058 = vmatmul.mubr.bf16.gmra.mrb[0].mxu0 %v633
  %v3059 = vpop.f32.mrb[0].mxu0
  %v3060 = vadd.f32 %v396, %v3059
  %v3061 = vpop.f32.mrb[0].mxu0
  %v3062 = vadd.f32 %v400, %v3061
  %v3063 = vpop.f32.mrb[0].mxu0
  %v3064 = vadd.f32 %v396, %v3063
  %v3065 = vpop.f32.mrb[0].mxu0
  %v3066 = vadd.f32 %v400, %v3065
  %3067 = vmatprep.mubr.bf16.mxu0 %v637
  %3068 = vmatmul.mubr.bf16.gmra.mrb[0].mxu0 %v636
  %v3069 = vpop.f32.mrb[0].mxu0
  %v3070 = vadd.f32 %v396, %v3069
  %v3071 = vpop.f32.mrb[0].mxu0
  %v3072 = vadd.f32 %v400, %v3071
  %v3073 = vpop.f32.mrb[0].mxu0
  %v3074 = vadd.f32 %v396, %v3073
  %v3075 = vpop.f32.mrb[0].mxu0
  %v3076 = vadd.f32 %v400, %v3075
  %3077 = vmatprep.mubr.bf16.mxu0 %v640
  %3078 = vmatmul.mubr.bf16.gmra.mrb[0].mxu0 %v639
  %v3079 = vpop.f32.mrb[0].mxu0
  %v3080 = vadd.f32 %v396, %v3079
  %v3081 = vpop.f32.mrb[0].mxu0
  %v3082 = vadd.f32 %v400, %v3081
  %v3083 = vpop.f32.mrb[0].mxu0
  %v3084 = vadd.f32 %v396, %v3083
  %v3085 = vpop.f32.mrb[0].mxu0
  %v3086 = vadd.f32 %v400, %v3085
  %3087 = vmatprep.mubr.bf16.mxu0 %v643
  %3088 = vmatmul.mubr.bf16.gmra.mrb[0].mxu0 %v642
  %v3089 = vpop.f32.mrb[0].mxu0
  %v3090 = vadd.f32 %v396, %v3089
  %v3091 = vpop.f32.mrb[0].mxu0
  %v3092 = vadd.f32 %v400, %v3091
  %v3093 = vpop.f32.mrb[0].mxu0
  %v3094 = vadd.f32 %v396, %v3093
  %v3095 = vpop.f32.mrb[0].mxu0
  %v3096 = vadd.f32 %v400, %v3095
  %3097 = vdwg.mxu0
  %3098 = vmatprep.subr.bf16.mxu0 %v1754
  %3099 = vmatpush1.bf16.msra.mxu0 %v1753
  %3100 = vmatprep.subr.bf16.mxu0 %v1766
  %3101 = vmatpush1.bf16.msra.mxu0 %v1765
  %3102 = vmatprep.subr.bf16.mxu0 %v1778
  %3103 = vmatpush1.bf16.msra.mxu0 %v1777
  %3104 = vmatprep.subr.bf16.mxu0 %v1790
  %3105 = vmatpush1.bf16.msra.mxu0 %v1789
  %3106 = vmatprep.subr.bf16.mxu0 %v1802
  %3107 = vmatpush1.bf16.msra.mxu0 %v1801
  %3108 = vmatprep.subr.bf16.mxu0 %v1814
  %3109 = vmatpush1.bf16.msra.mxu0 %v1813
  %3110 = vmatprep.subr.bf16.mxu0 %v1826
  %3111 = vmatpush1.bf16.msra.mxu0 %v1825
  %3112 = vmatprep.subr.bf16.mxu0 %v1838
  %3113 = vmatpush1.bf16.msra.mxu0 %v1837
  %3114 = vmatprep.subr.bf16.mxu0 0
  %3115 = vmatpush1.bf16.msra.mxu0 0
  %3116 = vmatprep.subr.bf16.mxu0 0
  %3117 = vmatpush1.bf16.msra.mxu0 0
  %3118 = vmatprep.subr.bf16.mxu0 0
  %3119 = vmatpush1.bf16.msra.mxu0 0
  %3120 = vmatprep.subr.bf16.mxu0 0
  %3121 = vmatpush1.bf16.msra.mxu0 0
  %3122 = vmatprep.subr.bf16.mxu0 0
  %3123 = vmatpush1.bf16.msra.mxu0 0
  %3124 = vmatprep.subr.bf16.mxu0 0
  %3125 = vmatpush1.bf16.msra.mxu0 0
  %3126 = vmatprep.subr.bf16.mxu0 0
  %3127 = vmatpush1.bf16.msra.mxu0 0
  %3128 = vmatprep.subr.bf16.mxu0 0
  %3129 = vmatpush1.bf16.msra.mxu0 0
  %3130 = vmatprep.mubr.bf16.mxu0 0
  %3131 = vmatmul.mubr.bf16.gmra.mrb[0].mxu0 %v599
  %v3132 = vpop.f32.mrb[0].mxu0
  %v3133 = vadd.f32 %v2940, %v3132
  %v3134 = vpop.f32.mrb[0].mxu0
  %v3135 = vadd.f32 %v2942, %v3134
  %v3136 = vpop.f32.mrb[0].mxu0
  %v3137 = vadd.f32 %v2944, %v3136
  %v3138 = vpop.f32.mrb[0].mxu0
  %v3139 = vadd.f32 %v2946, %v3138
  %3140 = vmatprep.mubr.bf16.mxu0 0
  %3141 = vmatmul.mubr.bf16.gmra.mrb[0].mxu0 %v602
  %v3142 = vpop.f32.mrb[0].mxu0
  %v3143 = vadd.f32 %v2950, %v3142
  %v3144 = vpop.f32.mrb[0].mxu0
  %v3145 = vadd.f32 %v2952, %v3144
  %v3146 = vpop.f32.mrb[0].mxu0
  %v3147 = vadd.f32 %v2954, %v3146
  %v3148 = vpop.f32.mrb[0].mxu0
  %v3149 = vadd.f32 %v2956, %v3148
  %3150 = vmatprep.mubr.bf16.mxu0 0
  %3151 = vmatmul.mubr.bf16.gmra.mrb[0].mxu0 %v605
  %v3152 = vpop.f32.mrb[0].mxu0
  %v3153 = vadd.f32 %v2960, %v3152
  %v3154 = vpop.f32.mrb[0].mxu0
  %v3155 = vadd.f32 %v2962, %v3154
  %v3156 = vpop.f32.mrb[0].mxu0
  %v3157 = vadd.f32 %v2964, %v3156
  %v3158 = vpop.f32.mrb[0].mxu0
  %v3159 = vadd.f32 %v2966, %v3158
  %3160 = vmatprep.mubr.bf16.mxu0 0
  %3161 = vmatmul.mubr.bf16.gmra.mrb[0].mxu0 %v608
  %v3162 = vpop.f32.mrb[0].mxu0
  %v3163 = vadd.f32 %v2970, %v3162
  %v3164 = vpop.f32.mrb[0].mxu0
  %v3165 = vadd.f32 %v2972, %v3164
  %v3166 = vpop.f32.mrb[0].mxu0
  %v3167 = vadd.f32 %v2974, %v3166
  %v3168 = vpop.f32.mrb[0].mxu0
  %v3169 = vadd.f32 %v2976, %v3168
  %3170 = vmatprep.mubr.bf16.mxu0 0
  %3171 = vmatmul.mubr.bf16.gmra.mrb[0].mxu0 %v611
  %v3172 = vpop.f32.mrb[0].mxu0
  %v3173 = vadd.f32 %v2980, %v3172
  %v3174 = vpop.f32.mrb[0].mxu0
  %v3175 = vadd.f32 %v2982, %v3174
  %v3176 = vpop.f32.mrb[0].mxu0
  %v3177 = vadd.f32 %v2984, %v3176
  %v3178 = vpop.f32.mrb[0].mxu0
  %v3179 = vadd.f32 %v2986, %v3178
  %3180 = vmatprep.mubr.bf16.mxu0 0
  %3181 = vmatmul.mubr.bf16.gmra.mrb[0].mxu0 %v614
  %v3182 = vpop.f32.mrb[0].mxu0
  %v3183 = vadd.f32 %v2990, %v3182
  %v3184 = vpop.f32.mrb[0].mxu0
  %v3185 = vadd.f32 %v2992, %v3184
  %v3186 = vpop.f32.mrb[0].mxu0
  %v3187 = vadd.f32 %v2994, %v3186
  %v3188 = vpop.f32.mrb[0].mxu0
  %v3189 = vadd.f32 %v2996, %v3188
  %3190 = vmatprep.mubr.bf16.mxu0 0
  %3191 = vmatmul.mubr.bf16.gmra.mrb[0].mxu0 %v617
  %v3192 = vpop.f32.mrb[0].mxu0
  %v3193 = vadd.f32 %v3000, %v3192
  %v3194 = vpop.f32.mrb[0].mxu0
  %v3195 = vadd.f32 %v3002, %v3194
  %v3196 = vpop.f32.mrb[0].mxu0
  %v3197 = vadd.f32 %v3004, %v3196
  %v3198 = vpop.f32.mrb[0].mxu0
  %v3199 = vadd.f32 %v3006, %v3198
  %3200 = vmatprep.mubr.bf16.mxu0 0
  %3201 = vmatmul.mubr.bf16.gmra.mrb[0].mxu0 %v620
  %v3202 = vpop.f32.mrb[0].mxu0
  %v3203 = vadd.f32 %v3010, %v3202
  %v3204 = vpop.f32.mrb[0].mxu0
  %v3205 = vadd.f32 %v3012, %v3204
  %v3206 = vpop.f32.mrb[0].mxu0
  %v3207 = vadd.f32 %v3014, %v3206
  %v3208 = vpop.f32.mrb[0].mxu0
  %v3209 = vadd.f32 %v3016, %v3208
  %3210 = vmatprep.mubr.bf16.mxu0 0
  %3211 = vmatmul.mubr.bf16.gmra.mrb[0].mxu0 %v623
  %v3212 = vpop.f32.mrb[0].mxu0
  %v3213 = vadd.f32 %v3020, %v3212
  %v3214 = vpop.f32.mrb[0].mxu0
  %v3215 = vadd.f32 %v3022, %v3214
  %v3216 = vpop.f32.mrb[0].mxu0
  %v3217 = vadd.f32 %v3024, %v3216
  %v3218 = vpop.f32.mrb[0].mxu0
  %v3219 = vadd.f32 %v3026, %v3218
  %3220 = vmatprep.mubr.bf16.mxu0 0
  %3221 = vmatmul.mubr.bf16.gmra.mrb[0].mxu0 %v626
  %v3222 = vpop.f32.mrb[0].mxu0
  %v3223 = vadd.f32 %v3030, %v3222
  %v3224 = vpop.f32.mrb[0].mxu0
  %v3225 = vadd.f32 %v3032, %v3224
  %v3226 = vpop.f32.mrb[0].mxu0
  %v3227 = vadd.f32 %v3034, %v3226
  %v3228 = vpop.f32.mrb[0].mxu0
  %v3229 = vadd.f32 %v3036, %v3228
  %3230 = vmatprep.mubr.bf16.mxu0 0
  %3231 = vmatmul.mubr.bf16.gmra.mrb[0].mxu0 %v629
  %v3232 = vpop.f32.mrb[0].mxu0
  %v3233 = vadd.f32 %v3040, %v3232
  %v3234 = vpop.f32.mrb[0].mxu0
  %v3235 = vadd.f32 %v3042, %v3234
  %v3236 = vpop.f32.mrb[0].mxu0
  %v3237 = vadd.f32 %v3044, %v3236
  %v3238 = vpop.f32.mrb[0].mxu0
  %v3239 = vadd.f32 %v3046, %v3238
  %3240 = vmatprep.mubr.bf16.mxu0 0
  %3241 = vmatmul.mubr.bf16.gmra.mrb[0].mxu0 %v632
  %v3242 = vpop.f32.mrb[0].mxu0
  %v3243 = vadd.f32 %v3050, %v3242
  %v3244 = vpop.f32.mrb[0].mxu0
  %v3245 = vadd.f32 %v3052, %v3244
  %v3246 = vpop.f32.mrb[0].mxu0
  %v3247 = vadd.f32 %v3054, %v3246
  %v3248 = vpop.f32.mrb[0].mxu0
  %v3249 = vadd.f32 %v3056, %v3248
  %3250 = vmatprep.mubr.bf16.mxu0 0
  %3251 = vmatmul.mubr.bf16.gmra.mrb[0].mxu0 %v635
  %v3252 = vpop.f32.mrb[0].mxu0
  %v3253 = vadd.f32 %v3060, %v3252
  %v3254 = vpop.f32.mrb[0].mxu0
  %v3255 = vadd.f32 %v3062, %v3254
  %v3256 = vpop.f32.mrb[0].mxu0
  %v3257 = vadd.f32 %v3064, %v3256
  %v3258 = vpop.f32.mrb[0].mxu0
  %v3259 = vadd.f32 %v3066, %v3258
  %3260 = vmatprep.mubr.bf16.mxu0 0
  %3261 = vmatmul.mubr.bf16.gmra.mrb[0].mxu0 %v638
  %v3262 = vpop.f32.mrb[0].mxu0
  %v3263 = vadd.f32 %v3070, %v3262
  %v3264 = vpop.f32.mrb[0].mxu0
  %v3265 = vadd.f32 %v3072, %v3264
  %v3266 = vpop.f32.mrb[0].mxu0
  %v3267 = vadd.f32 %v3074, %v3266
  %v3268 = vpop.f32.mrb[0].mxu0
  %v3269 = vadd.f32 %v3076, %v3268
  %3270 = vmatprep.mubr.bf16.mxu0 0
  %3271 = vmatmul.mubr.bf16.gmra.mrb[0].mxu0 %v641
  %v3272 = vpop.f32.mrb[0].mxu0
  %v3273 = vadd.f32 %v3080, %v3272
  %v3274 = vpop.f32.mrb[0].mxu0
  %v3275 = vadd.f32 %v3082, %v3274
  %v3276 = vpop.f32.mrb[0].mxu0
  %v3277 = vadd.f32 %v3084, %v3276
  %v3278 = vpop.f32.mrb[0].mxu0
  %v3279 = vadd.f32 %v3086, %v3278
  %3280 = vmatprep.mubr.bf16.mxu0 0
  %3281 = vmatmul.mubr.bf16.gmra.mrb[0].mxu0 %v644
  %v3282 = vpop.f32.mrb[0].mxu0
  %v3283 = vadd.f32 %v3090, %v3282
  %v3284 = vpop.f32.mrb[0].mxu0
  %v3285 = vadd.f32 %v3092, %v3284
  %v3286 = vpop.f32.mrb[0].mxu0
  %v3287 = vadd.f32 %v3094, %v3286
  %v3288 = vpop.f32.mrb[0].mxu0
  %v3289 = vadd.f32 %v3096, %v3288
  %3290 = vdwg.mxu0
  %3291 = vmatprep.subr.bf16.mxu0 %v1564
  %3292 = vmatpush1.bf16.msra.mxu0 %v1563
  %3293 = vmatprep.subr.bf16.mxu0 %v1576
  %3294 = vmatpush1.bf16.msra.mxu0 %v1575
  %3295 = vmatprep.subr.bf16.mxu0 %v1588
  %3296 = vmatpush1.bf16.msra.mxu0 %v1587
  %3297 = vmatprep.subr.bf16.mxu0 %v1600
  %3298 = vmatpush1.bf16.msra.mxu0 %v1599
  %3299 = vmatprep.subr.bf16.mxu0 %v1612
  %3300 = vmatpush1.bf16.msra.mxu0 %v1611
  %3301 = vmatprep.subr.bf16.mxu0 %v1624
  %3302 = vmatpush1.bf16.msra.mxu0 %v1623
  %3303 = vmatprep.subr.bf16.mxu0 %v1636
  %3304 = vmatpush1.bf16.msra.mxu0 %v1635
  %3305 = vmatprep.subr.bf16.mxu0 %v1648
  %3306 = vmatpush1.bf16.msra.mxu0 %v1647
  %3307 = vmatprep.subr.bf16.mxu0 %v1660
  %3308 = vmatpush1.bf16.msra.mxu0 %v1659
  %3309 = vmatprep.subr.bf16.mxu0 %v1672
  %3310 = vmatpush1.bf16.msra.mxu0 %v1671
  %3311 = vmatprep.subr.bf16.mxu0 %v1684
  %3312 = vmatpush1.bf16.msra.mxu0 %v1683
  %3313 = vmatprep.subr.bf16.mxu0 %v1696
  %3314 = vmatpush1.bf16.msra.mxu0 %v1695
  %3315 = vmatprep.subr.bf16.mxu0 %v1708
  %3316 = vmatpush1.bf16.msra.mxu0 %v1707
  %3317 = vmatprep.subr.bf16.mxu0 %v1720
  %3318 = vmatpush1.bf16.msra.mxu0 %v1719
  %3319 = vmatprep.subr.bf16.mxu0 %v1732
  %3320 = vmatpush1.bf16.msra.mxu0 %v1731
  %3321 = vmatprep.subr.bf16.mxu0 %v1744
  %3322 = vmatpush1.bf16.msra.mxu0 %v1743
  %3323 = vmatprep.mubr.bf16.mxu0 %v598
  %3324 = vmatmul.mubr.bf16.gmra.mrb[0].mxu0 %v597
  %v3325 = vpop.f32.mrb[0].mxu0
  %v3326 = vadd.f32 %v404, %v3325
  %v3327 = vpop.f32.mrb[0].mxu0
  %v3328 = vadd.f32 %v408, %v3327
  %v3329 = vpop.f32.mrb[0].mxu0
  %v3330 = vadd.f32 %v404, %v3329
  %v3331 = vpop.f32.mrb[0].mxu0
  %v3332 = vadd.f32 %v408, %v3331
  %3333 = vmatprep.mubr.bf16.mxu0 %v601
  %3334 = vmatmul.mubr.bf16.gmra.mrb[0].mxu0 %v600
  %v3335 = vpop.f32.mrb[0].mxu0
  %v3336 = vadd.f32 %v404, %v3335
  %v3337 = vpop.f32.mrb[0].mxu0
  %v3338 = vadd.f32 %v408, %v3337
  %v3339 = vpop.f32.mrb[0].mxu0
  %v3340 = vadd.f32 %v404, %v3339
  %v3341 = vpop.f32.mrb[0].mxu0
  %v3342 = vadd.f32 %v408, %v3341
  %3343 = vmatprep.mubr.bf16.mxu0 %v604
  %3344 = vmatmul.mubr.bf16.gmra.mrb[0].mxu0 %v603
  %v3345 = vpop.f32.mrb[0].mxu0
  %v3346 = vadd.f32 %v404, %v3345
  %v3347 = vpop.f32.mrb[0].mxu0
  %v3348 = vadd.f32 %v408, %v3347
  %v3349 = vpop.f32.mrb[0].mxu0
  %v3350 = vadd.f32 %v404, %v3349
  %v3351 = vpop.f32.mrb[0].mxu0
  %v3352 = vadd.f32 %v408, %v3351
  %3353 = vmatprep.mubr.bf16.mxu0 %v607
  %3354 = vmatmul.mubr.bf16.gmra.mrb[0].mxu0 %v606
  %v3355 = vpop.f32.mrb[0].mxu0
  %v3356 = vadd.f32 %v404, %v3355
  %v3357 = vpop.f32.mrb[0].mxu0
  %v3358 = vadd.f32 %v408, %v3357
  %v3359 = vpop.f32.mrb[0].mxu0
  %v3360 = vadd.f32 %v404, %v3359
  %v3361 = vpop.f32.mrb[0].mxu0
  %v3362 = vadd.f32 %v408, %v3361
  %3363 = vmatprep.mubr.bf16.mxu0 %v610
  %3364 = vmatmul.mubr.bf16.gmra.mrb[0].mxu0 %v609
  %v3365 = vpop.f32.mrb[0].mxu0
  %v3366 = vadd.f32 %v404, %v3365
  %v3367 = vpop.f32.mrb[0].mxu0
  %v3368 = vadd.f32 %v408, %v3367
  %v3369 = vpop.f32.mrb[0].mxu0
  %v3370 = vadd.f32 %v404, %v3369
  %v3371 = vpop.f32.mrb[0].mxu0
  %v3372 = vadd.f32 %v408, %v3371
  %3373 = vmatprep.mubr.bf16.mxu0 %v613
  %3374 = vmatmul.mubr.bf16.gmra.mrb[0].mxu0 %v612
  %v3375 = vpop.f32.mrb[0].mxu0
  %v3376 = vadd.f32 %v404, %v3375
  %v3377 = vpop.f32.mrb[0].mxu0
  %v3378 = vadd.f32 %v408, %v3377
  %v3379 = vpop.f32.mrb[0].mxu0
  %v3380 = vadd.f32 %v404, %v3379
  %v3381 = vpop.f32.mrb[0].mxu0
  %v3382 = vadd.f32 %v408, %v3381
  %3383 = vmatprep.mubr.bf16.mxu0 %v616
  %3384 = vmatmul.mubr.bf16.gmra.mrb[0].mxu0 %v615
  %v3385 = vpop.f32.mrb[0].mxu0
  %v3386 = vadd.f32 %v404, %v3385
  %v3387 = vpop.f32.mrb[0].mxu0
  %v3388 = vadd.f32 %v408, %v3387
  %v3389 = vpop.f32.mrb[0].mxu0
  %v3390 = vadd.f32 %v404, %v3389
  %v3391 = vpop.f32.mrb[0].mxu0
  %v3392 = vadd.f32 %v408, %v3391
  %3393 = vmatprep.mubr.bf16.mxu0 %v619
  %3394 = vmatmul.mubr.bf16.gmra.mrb[0].mxu0 %v618
  %v3395 = vpop.f32.mrb[0].mxu0
  %v3396 = vadd.f32 %v404, %v3395
  %v3397 = vpop.f32.mrb[0].mxu0
  %v3398 = vadd.f32 %v408, %v3397
  %v3399 = vpop.f32.mrb[0].mxu0
  %v3400 = vadd.f32 %v404, %v3399
  %v3401 = vpop.f32.mrb[0].mxu0
  %v3402 = vadd.f32 %v408, %v3401
  %3403 = vmatprep.mubr.bf16.mxu0 %v622
  %3404 = vmatmul.mubr.bf16.gmra.mrb[0].mxu0 %v621
  %v3405 = vpop.f32.mrb[0].mxu0
  %v3406 = vadd.f32 %v404, %v3405
  %v3407 = vpop.f32.mrb[0].mxu0
  %v3408 = vadd.f32 %v408, %v3407
  %v3409 = vpop.f32.mrb[0].mxu0
  %v3410 = vadd.f32 %v404, %v3409
  %v3411 = vpop.f32.mrb[0].mxu0
  %v3412 = vadd.f32 %v408, %v3411
  %3413 = vmatprep.mubr.bf16.mxu0 %v625
  %3414 = vmatmul.mubr.bf16.gmra.mrb[0].mxu0 %v624
  %v3415 = vpop.f32.mrb[0].mxu0
  %v3416 = vadd.f32 %v404, %v3415
  %v3417 = vpop.f32.mrb[0].mxu0
  %v3418 = vadd.f32 %v408, %v3417
  %v3419 = vpop.f32.mrb[0].mxu0
  %v3420 = vadd.f32 %v404, %v3419
  %v3421 = vpop.f32.mrb[0].mxu0
  %v3422 = vadd.f32 %v408, %v3421
  %3423 = vmatprep.mubr.bf16.mxu0 %v628
  %3424 = vmatmul.mubr.bf16.gmra.mrb[0].mxu0 %v627
  %v3425 = vpop.f32.mrb[0].mxu0
  %v3426 = vadd.f32 %v404, %v3425
  %v3427 = vpop.f32.mrb[0].mxu0
  %v3428 = vadd.f32 %v408, %v3427
  %v3429 = vpop.f32.mrb[0].mxu0
  %v3430 = vadd.f32 %v404, %v3429
  %v3431 = vpop.f32.mrb[0].mxu0
  %v3432 = vadd.f32 %v408, %v3431
  %3433 = vmatprep.mubr.bf16.mxu0 %v631
  %3434 = vmatmul.mubr.bf16.gmra.mrb[0].mxu0 %v630
  %v3435 = vpop.f32.mrb[0].mxu0
  %v3436 = vadd.f32 %v404, %v3435
  %v3437 = vpop.f32.mrb[0].mxu0
  %v3438 = vadd.f32 %v408, %v3437
  %v3439 = vpop.f32.mrb[0].mxu0
  %v3440 = vadd.f32 %v404, %v3439
  %v3441 = vpop.f32.mrb[0].mxu0
  %v3442 = vadd.f32 %v408, %v3441
  %3443 = vmatprep.mubr.bf16.mxu0 %v634
  %3444 = vmatmul.mubr.bf16.gmra.mrb[0].mxu0 %v633
  %v3445 = vpop.f32.mrb[0].mxu0
  %v3446 = vadd.f32 %v404, %v3445
  %v3447 = vpop.f32.mrb[0].mxu0
  %v3448 = vadd.f32 %v408, %v3447
  %v3449 = vpop.f32.mrb[0].mxu0
  %v3450 = vadd.f32 %v404, %v3449
  %v3451 = vpop.f32.mrb[0].mxu0
  %v3452 = vadd.f32 %v408, %v3451
  %3453 = vmatprep.mubr.bf16.mxu0 %v637
  %3454 = vmatmul.mubr.bf16.gmra.mrb[0].mxu0 %v636
  %v3455 = vpop.f32.mrb[0].mxu0
  %v3456 = vadd.f32 %v404, %v3455
  %v3457 = vpop.f32.mrb[0].mxu0
  %v3458 = vadd.f32 %v408, %v3457
  %v3459 = vpop.f32.mrb[0].mxu0
  %v3460 = vadd.f32 %v404, %v3459
  %v3461 = vpop.f32.mrb[0].mxu0
  %v3462 = vadd.f32 %v408, %v3461
  %3463 = vmatprep.mubr.bf16.mxu0 %v640
  %3464 = vmatmul.mubr.bf16.gmra.mrb[0].mxu0 %v639
  %v3465 = vpop.f32.mrb[0].mxu0
  %v3466 = vadd.f32 %v404, %v3465
  %v3467 = vpop.f32.mrb[0].mxu0
  %v3468 = vadd.f32 %v408, %v3467
  %v3469 = vpop.f32.mrb[0].mxu0
  %v3470 = vadd.f32 %v404, %v3469
  %v3471 = vpop.f32.mrb[0].mxu0
  %v3472 = vadd.f32 %v408, %v3471
  %3473 = vmatprep.mubr.bf16.mxu0 %v643
  %3474 = vmatmul.mubr.bf16.gmra.mrb[0].mxu0 %v642
  %v3475 = vpop.f32.mrb[0].mxu0
  %v3476 = vadd.f32 %v404, %v3475
  %v3477 = vpop.f32.mrb[0].mxu0
  %v3478 = vadd.f32 %v408, %v3477
  %v3479 = vpop.f32.mrb[0].mxu0
  %v3480 = vadd.f32 %v404, %v3479
  %v3481 = vpop.f32.mrb[0].mxu0
  %v3482 = vadd.f32 %v408, %v3481
  %3483 = vdwg.mxu0
  %3484 = vmatprep.subr.bf16.mxu0 %v1756
  %3485 = vmatpush1.bf16.msra.mxu0 %v1755
  %3486 = vmatprep.subr.bf16.mxu0 %v1768
  %3487 = vmatpush1.bf16.msra.mxu0 %v1767
  %3488 = vmatprep.subr.bf16.mxu0 %v1780
  %3489 = vmatpush1.bf16.msra.mxu0 %v1779
  %3490 = vmatprep.subr.bf16.mxu0 %v1792
  %3491 = vmatpush1.bf16.msra.mxu0 %v1791
  %3492 = vmatprep.subr.bf16.mxu0 %v1804
  %3493 = vmatpush1.bf16.msra.mxu0 %v1803
  %3494 = vmatprep.subr.bf16.mxu0 %v1816
  %3495 = vmatpush1.bf16.msra.mxu0 %v1815
  %3496 = vmatprep.subr.bf16.mxu0 %v1828
  %3497 = vmatpush1.bf16.msra.mxu0 %v1827
  %3498 = vmatprep.subr.bf16.mxu0 %v1840
  %3499 = vmatpush1.bf16.msra.mxu0 %v1839
  %3500 = vmatprep.subr.bf16.mxu0 0
  %3501 = vmatpush1.bf16.msra.mxu0 0
  %3502 = vmatprep.subr.bf16.mxu0 0
  %3503 = vmatpush1.bf16.msra.mxu0 0
  %3504 = vmatprep.subr.bf16.mxu0 0
  %3505 = vmatpush1.bf16.msra.mxu0 0
  %3506 = vmatprep.subr.bf16.mxu0 0
  %3507 = vmatpush1.bf16.msra.mxu0 0
  %3508 = vmatprep.subr.bf16.mxu0 0
  %3509 = vmatpush1.bf16.msra.mxu0 0
  %3510 = vmatprep.subr.bf16.mxu0 0
  %3511 = vmatpush1.bf16.msra.mxu0 0
  %3512 = vmatprep.subr.bf16.mxu0 0
  %3513 = vmatpush1.bf16.msra.mxu0 0
  %3514 = vmatprep.subr.bf16.mxu0 0
  %3515 = vmatpush1.bf16.msra.mxu0 0
  %3516 = vmatprep.mubr.bf16.mxu0 0
  %3517 = vmatmul.mubr.bf16.gmra.mrb[0].mxu0 %v599
  %v3518 = vpop.f32.mrb[0].mxu0
  %v3519 = vadd.f32 %v3326, %v3518
  %v3520 = vpop.f32.mrb[0].mxu0
  %v3521 = vadd.f32 %v3328, %v3520
  %v3522 = vpop.f32.mrb[0].mxu0
  %v3523 = vadd.f32 %v3330, %v3522
  %v3524 = vpop.f32.mrb[0].mxu0
  %v3525 = vadd.f32 %v3332, %v3524
  %3526 = vmatprep.mubr.bf16.mxu0 0
  %3527 = vmatmul.mubr.bf16.gmra.mrb[0].mxu0 %v602
  %v3528 = vpop.f32.mrb[0].mxu0
  %v3529 = vadd.f32 %v3336, %v3528
  %v3530 = vpop.f32.mrb[0].mxu0
  %v3531 = vadd.f32 %v3338, %v3530
  %v3532 = vpop.f32.mrb[0].mxu0
  %v3533 = vadd.f32 %v3340, %v3532
  %v3534 = vpop.f32.mrb[0].mxu0
  %v3535 = vadd.f32 %v3342, %v3534
  %3536 = vmatprep.mubr.bf16.mxu0 0
  %3537 = vmatmul.mubr.bf16.gmra.mrb[0].mxu0 %v605
  %v3538 = vpop.f32.mrb[0].mxu0
  %v3539 = vadd.f32 %v3346, %v3538
  %v3540 = vpop.f32.mrb[0].mxu0
  %v3541 = vadd.f32 %v3348, %v3540
  %v3542 = vpop.f32.mrb[0].mxu0
  %v3543 = vadd.f32 %v3350, %v3542
  %v3544 = vpop.f32.mrb[0].mxu0
  %v3545 = vadd.f32 %v3352, %v3544
  %3546 = vmatprep.mubr.bf16.mxu0 0
  %3547 = vmatmul.mubr.bf16.gmra.mrb[0].mxu0 %v608
  %v3548 = vpop.f32.mrb[0].mxu0
  %v3549 = vadd.f32 %v3356, %v3548
  %v3550 = vpop.f32.mrb[0].mxu0
  %v3551 = vadd.f32 %v3358, %v3550
  %v3552 = vpop.f32.mrb[0].mxu0
  %v3553 = vadd.f32 %v3360, %v3552
  %v3554 = vpop.f32.mrb[0].mxu0
  %v3555 = vadd.f32 %v3362, %v3554
  %3556 = vmatprep.mubr.bf16.mxu0 0
  %3557 = vmatmul.mubr.bf16.gmra.mrb[0].mxu0 %v611
  %v3558 = vpop.f32.mrb[0].mxu0
  %v3559 = vadd.f32 %v3366, %v3558
  %v3560 = vpop.f32.mrb[0].mxu0
  %v3561 = vadd.f32 %v3368, %v3560
  %v3562 = vpop.f32.mrb[0].mxu0
  %v3563 = vadd.f32 %v3370, %v3562
  %v3564 = vpop.f32.mrb[0].mxu0
  %v3565 = vadd.f32 %v3372, %v3564
  %3566 = vmatprep.mubr.bf16.mxu0 0
  %3567 = vmatmul.mubr.bf16.gmra.mrb[0].mxu0 %v614
  %v3568 = vpop.f32.mrb[0].mxu0
  %v3569 = vadd.f32 %v3376, %v3568
  %v3570 = vpop.f32.mrb[0].mxu0
  %v3571 = vadd.f32 %v3378, %v3570
  %v3572 = vpop.f32.mrb[0].mxu0
  %v3573 = vadd.f32 %v3380, %v3572
  %v3574 = vpop.f32.mrb[0].mxu0
  %v3575 = vadd.f32 %v3382, %v3574
  %3576 = vmatprep.mubr.bf16.mxu0 0
  %3577 = vmatmul.mubr.bf16.gmra.mrb[0].mxu0 %v617
  %v3578 = vpop.f32.mrb[0].mxu0
  %v3579 = vadd.f32 %v3386, %v3578
  %v3580 = vpop.f32.mrb[0].mxu0
  %v3581 = vadd.f32 %v3388, %v3580
  %v3582 = vpop.f32.mrb[0].mxu0
  %v3583 = vadd.f32 %v3390, %v3582
  %v3584 = vpop.f32.mrb[0].mxu0
  %v3585 = vadd.f32 %v3392, %v3584
  %3586 = vmatprep.mubr.bf16.mxu0 0
  %3587 = vmatmul.mubr.bf16.gmra.mrb[0].mxu0 %v620
  %v3588 = vpop.f32.mrb[0].mxu0
  %v3589 = vadd.f32 %v3396, %v3588
  %v3590 = vpop.f32.mrb[0].mxu0
  %v3591 = vadd.f32 %v3398, %v3590
  %v3592 = vpop.f32.mrb[0].mxu0
  %v3593 = vadd.f32 %v3400, %v3592
  %v3594 = vpop.f32.mrb[0].mxu0
  %v3595 = vadd.f32 %v3402, %v3594
  %3596 = vmatprep.mubr.bf16.mxu0 0
  %3597 = vmatmul.mubr.bf16.gmra.mrb[0].mxu0 %v623
  %v3598 = vpop.f32.mrb[0].mxu0
  %v3599 = vadd.f32 %v3406, %v3598
  %v3600 = vpop.f32.mrb[0].mxu0
  %v3601 = vadd.f32 %v3408, %v3600
  %v3602 = vpop.f32.mrb[0].mxu0
  %v3603 = vadd.f32 %v3410, %v3602
  %v3604 = vpop.f32.mrb[0].mxu0
  %v3605 = vadd.f32 %v3412, %v3604
  %3606 = vmatprep.mubr.bf16.mxu0 0
  %3607 = vmatmul.mubr.bf16.gmra.mrb[0].mxu0 %v626
  %v3608 = vpop.f32.mrb[0].mxu0
  %v3609 = vadd.f32 %v3416, %v3608
  %v3610 = vpop.f32.mrb[0].mxu0
  %v3611 = vadd.f32 %v3418, %v3610
  %v3612 = vpop.f32.mrb[0].mxu0
  %v3613 = vadd.f32 %v3420, %v3612
  %v3614 = vpop.f32.mrb[0].mxu0
  %v3615 = vadd.f32 %v3422, %v3614
  %3616 = vmatprep.mubr.bf16.mxu0 0
  %3617 = vmatmul.mubr.bf16.gmra.mrb[0].mxu0 %v629
  %v3618 = vpop.f32.mrb[0].mxu0
  %v3619 = vadd.f32 %v3426, %v3618
  %v3620 = vpop.f32.mrb[0].mxu0
  %v3621 = vadd.f32 %v3428, %v3620
  %v3622 = vpop.f32.mrb[0].mxu0
  %v3623 = vadd.f32 %v3430, %v3622
  %v3624 = vpop.f32.mrb[0].mxu0
  %v3625 = vadd.f32 %v3432, %v3624
  %3626 = vmatprep.mubr.bf16.mxu0 0
  %3627 = vmatmul.mubr.bf16.gmra.mrb[0].mxu0 %v632
  %v3628 = vpop.f32.mrb[0].mxu0
  %v3629 = vadd.f32 %v3436, %v3628
  %v3630 = vpop.f32.mrb[0].mxu0
  %v3631 = vadd.f32 %v3438, %v3630
  %v3632 = vpop.f32.mrb[0].mxu0
  %v3633 = vadd.f32 %v3440, %v3632
  %v3634 = vpop.f32.mrb[0].mxu0
  %v3635 = vadd.f32 %v3442, %v3634
  %3636 = vmatprep.mubr.bf16.mxu0 0
  %3637 = vmatmul.mubr.bf16.gmra.mrb[0].mxu0 %v635
  %v3638 = vpop.f32.mrb[0].mxu0
  %v3639 = vadd.f32 %v3446, %v3638
  %v3640 = vpop.f32.mrb[0].mxu0
  %v3641 = vadd.f32 %v3448, %v3640
  %v3642 = vpop.f32.mrb[0].mxu0
  %v3643 = vadd.f32 %v3450, %v3642
  %v3644 = vpop.f32.mrb[0].mxu0
  %v3645 = vadd.f32 %v3452, %v3644
  %3646 = vmatprep.mubr.bf16.mxu0 0
  %3647 = vmatmul.mubr.bf16.gmra.mrb[0].mxu0 %v638
  %v3648 = vpop.f32.mrb[0].mxu0
  %v3649 = vadd.f32 %v3456, %v3648
  %v3650 = vpop.f32.mrb[0].mxu0
  %v3651 = vadd.f32 %v3458, %v3650
  %v3652 = vpop.f32.mrb[0].mxu0
  %v3653 = vadd.f32 %v3460, %v3652
  %v3654 = vpop.f32.mrb[0].mxu0
  %v3655 = vadd.f32 %v3462, %v3654
  %3656 = vmatprep.mubr.bf16.mxu0 0
  %3657 = vmatmul.mubr.bf16.gmra.mrb[0].mxu0 %v641
  %v3658 = vpop.f32.mrb[0].mxu0
  %v3659 = vadd.f32 %v3466, %v3658
  %v3660 = vpop.f32.mrb[0].mxu0
  %v3661 = vadd.f32 %v3468, %v3660
  %v3662 = vpop.f32.mrb[0].mxu0
  %v3663 = vadd.f32 %v3470, %v3662
  %v3664 = vpop.f32.mrb[0].mxu0
  %v3665 = vadd.f32 %v3472, %v3664
  %3666 = vmatprep.mubr.bf16.mxu0 0
  %3667 = vmatmul.mubr.bf16.gmra.mrb[0].mxu0 %v644
  %v3668 = vpop.f32.mrb[0].mxu0
  %v3669 = vadd.f32 %v3476, %v3668
  %v3670 = vpop.f32.mrb[0].mxu0
  %v3671 = vadd.f32 %v3478, %v3670
  %v3672 = vpop.f32.mrb[0].mxu0
  %v3673 = vadd.f32 %v3480, %v3672
  %v3674 = vpop.f32.mrb[0].mxu0
  %v3675 = vadd.f32 %v3482, %v3674
  %3676 = vdwg.mxu0
  %3677 = vmatprep.subr.bf16.mxu0 %v1566
  %3678 = vmatpush1.bf16.msra.mxu0 %v1565
  %3679 = vmatprep.subr.bf16.mxu0 %v1578
  %3680 = vmatpush1.bf16.msra.mxu0 %v1577
  %3681 = vmatprep.subr.bf16.mxu0 %v1590
  %3682 = vmatpush1.bf16.msra.mxu0 %v1589
  %3683 = vmatprep.subr.bf16.mxu0 %v1602
  %3684 = vmatpush1.bf16.msra.mxu0 %v1601
  %3685 = vmatprep.subr.bf16.mxu0 %v1614
  %3686 = vmatpush1.bf16.msra.mxu0 %v1613
  %3687 = vmatprep.subr.bf16.mxu0 %v1626
  %3688 = vmatpush1.bf16.msra.mxu0 %v1625
  %3689 = vmatprep.subr.bf16.mxu0 %v1638
  %3690 = vmatpush1.bf16.msra.mxu0 %v1637
  %3691 = vmatprep.subr.bf16.mxu0 %v1650
  %3692 = vmatpush1.bf16.msra.mxu0 %v1649
  %3693 = vmatprep.subr.bf16.mxu0 %v1662
  %3694 = vmatpush1.bf16.msra.mxu0 %v1661
  %3695 = vmatprep.subr.bf16.mxu0 %v1674
  %3696 = vmatpush1.bf16.msra.mxu0 %v1673
  %3697 = vmatprep.subr.bf16.mxu0 %v1686
  %3698 = vmatpush1.bf16.msra.mxu0 %v1685
  %3699 = vmatprep.subr.bf16.mxu0 %v1698
  %3700 = vmatpush1.bf16.msra.mxu0 %v1697
  %3701 = vmatprep.subr.bf16.mxu0 %v1710
  %3702 = vmatpush1.bf16.msra.mxu0 %v1709
  %3703 = vmatprep.subr.bf16.mxu0 %v1722
  %3704 = vmatpush1.bf16.msra.mxu0 %v1721
  %3705 = vmatprep.subr.bf16.mxu0 %v1734
  %3706 = vmatpush1.bf16.msra.mxu0 %v1733
  %3707 = vmatprep.subr.bf16.mxu0 %v1746
  %3708 = vmatpush1.bf16.msra.mxu0 %v1745
  %3709 = vmatprep.mubr.bf16.mxu0 %v598
  %3710 = vmatmul.mubr.bf16.gmra.mrb[0].mxu0 %v597
  %v3711 = vpop.f32.mrb[0].mxu0
  %v3712 = vadd.f32 %v412, %v3711
  %v3713 = vpop.f32.mrb[0].mxu0
  %v3714 = vadd.f32 %v416, %v3713
  %v3715 = vpop.f32.mrb[0].mxu0
  %v3716 = vadd.f32 %v412, %v3715
  %v3717 = vpop.f32.mrb[0].mxu0
  %v3718 = vadd.f32 %v416, %v3717
  %3719 = vmatprep.mubr.bf16.mxu0 %v601
  %3720 = vmatmul.mubr.bf16.gmra.mrb[0].mxu0 %v600
  %v3721 = vpop.f32.mrb[0].mxu0
  %v3722 = vadd.f32 %v412, %v3721
  %v3723 = vpop.f32.mrb[0].mxu0
  %v3724 = vadd.f32 %v416, %v3723
  %v3725 = vpop.f32.mrb[0].mxu0
  %v3726 = vadd.f32 %v412, %v3725
  %v3727 = vpop.f32.mrb[0].mxu0
  %v3728 = vadd.f32 %v416, %v3727
  %3729 = vmatprep.mubr.bf16.mxu0 %v604
  %3730 = vmatmul.mubr.bf16.gmra.mrb[0].mxu0 %v603
  %v3731 = vpop.f32.mrb[0].mxu0
  %v3732 = vadd.f32 %v412, %v3731
  %v3733 = vpop.f32.mrb[0].mxu0
  %v3734 = vadd.f32 %v416, %v3733
  %v3735 = vpop.f32.mrb[0].mxu0
  %v3736 = vadd.f32 %v412, %v3735
  %v3737 = vpop.f32.mrb[0].mxu0
  %v3738 = vadd.f32 %v416, %v3737
  %3739 = vmatprep.mubr.bf16.mxu0 %v607
  %3740 = vmatmul.mubr.bf16.gmra.mrb[0].mxu0 %v606
  %v3741 = vpop.f32.mrb[0].mxu0
  %v3742 = vadd.f32 %v412, %v3741
  %v3743 = vpop.f32.mrb[0].mxu0
  %v3744 = vadd.f32 %v416, %v3743
  %v3745 = vpop.f32.mrb[0].mxu0
  %v3746 = vadd.f32 %v412, %v3745
  %v3747 = vpop.f32.mrb[0].mxu0
  %v3748 = vadd.f32 %v416, %v3747
  %3749 = vmatprep.mubr.bf16.mxu0 %v610
  %3750 = vmatmul.mubr.bf16.gmra.mrb[0].mxu0 %v609
  %v3751 = vpop.f32.mrb[0].mxu0
  %v3752 = vadd.f32 %v412, %v3751
  %v3753 = vpop.f32.mrb[0].mxu0
  %v3754 = vadd.f32 %v416, %v3753
  %v3755 = vpop.f32.mrb[0].mxu0
  %v3756 = vadd.f32 %v412, %v3755
  %v3757 = vpop.f32.mrb[0].mxu0
  %v3758 = vadd.f32 %v416, %v3757
  %3759 = vmatprep.mubr.bf16.mxu0 %v613
  %3760 = vmatmul.mubr.bf16.gmra.mrb[0].mxu0 %v612
  %v3761 = vpop.f32.mrb[0].mxu0
  %v3762 = vadd.f32 %v412, %v3761
  %v3763 = vpop.f32.mrb[0].mxu0
  %v3764 = vadd.f32 %v416, %v3763
  %v3765 = vpop.f32.mrb[0].mxu0
  %v3766 = vadd.f32 %v412, %v3765
  %v3767 = vpop.f32.mrb[0].mxu0
  %v3768 = vadd.f32 %v416, %v3767
  %3769 = vmatprep.mubr.bf16.mxu0 %v616
  %3770 = vmatmul.mubr.bf16.gmra.mrb[0].mxu0 %v615
  %v3771 = vpop.f32.mrb[0].mxu0
  %v3772 = vadd.f32 %v412, %v3771
  %v3773 = vpop.f32.mrb[0].mxu0
  %v3774 = vadd.f32 %v416, %v3773
  %v3775 = vpop.f32.mrb[0].mxu0
  %v3776 = vadd.f32 %v412, %v3775
  %v3777 = vpop.f32.mrb[0].mxu0
  %v3778 = vadd.f32 %v416, %v3777
  %3779 = vmatprep.mubr.bf16.mxu0 %v619
  %3780 = vmatmul.mubr.bf16.gmra.mrb[0].mxu0 %v618
  %v3781 = vpop.f32.mrb[0].mxu0
  %v3782 = vadd.f32 %v412, %v3781
  %v3783 = vpop.f32.mrb[0].mxu0
  %v3784 = vadd.f32 %v416, %v3783
  %v3785 = vpop.f32.mrb[0].mxu0
  %v3786 = vadd.f32 %v412, %v3785
  %v3787 = vpop.f32.mrb[0].mxu0
  %v3788 = vadd.f32 %v416, %v3787
  %3789 = vmatprep.mubr.bf16.mxu0 %v622
  %3790 = vmatmul.mubr.bf16.gmra.mrb[0].mxu0 %v621
  %v3791 = vpop.f32.mrb[0].mxu0
  %v3792 = vadd.f32 %v412, %v3791
  %v3793 = vpop.f32.mrb[0].mxu0
  %v3794 = vadd.f32 %v416, %v3793
  %v3795 = vpop.f32.mrb[0].mxu0
  %v3796 = vadd.f32 %v412, %v3795
  %v3797 = vpop.f32.mrb[0].mxu0
  %v3798 = vadd.f32 %v416, %v3797
  %3799 = vmatprep.mubr.bf16.mxu0 %v625
  %3800 = vmatmul.mubr.bf16.gmra.mrb[0].mxu0 %v624
  %v3801 = vpop.f32.mrb[0].mxu0
  %v3802 = vadd.f32 %v412, %v3801
  %v3803 = vpop.f32.mrb[0].mxu0
  %v3804 = vadd.f32 %v416, %v3803
  %v3805 = vpop.f32.mrb[0].mxu0
  %v3806 = vadd.f32 %v412, %v3805
  %v3807 = vpop.f32.mrb[0].mxu0
  %v3808 = vadd.f32 %v416, %v3807
  %3809 = vmatprep.mubr.bf16.mxu0 %v628
  %3810 = vmatmul.mubr.bf16.gmra.mrb[0].mxu0 %v627
  %v3811 = vpop.f32.mrb[0].mxu0
  %v3812 = vadd.f32 %v412, %v3811
  %v3813 = vpop.f32.mrb[0].mxu0
  %v3814 = vadd.f32 %v416, %v3813
  %v3815 = vpop.f32.mrb[0].mxu0
  %v3816 = vadd.f32 %v412, %v3815
  %v3817 = vpop.f32.mrb[0].mxu0
  %v3818 = vadd.f32 %v416, %v3817
  %3819 = vmatprep.mubr.bf16.mxu0 %v631
  %3820 = vmatmul.mubr.bf16.gmra.mrb[0].mxu0 %v630
  %v3821 = vpop.f32.mrb[0].mxu0
  %v3822 = vadd.f32 %v412, %v3821
  %v3823 = vpop.f32.mrb[0].mxu0
  %v3824 = vadd.f32 %v416, %v3823
  %v3825 = vpop.f32.mrb[0].mxu0
  %v3826 = vadd.f32 %v412, %v3825
  %v3827 = vpop.f32.mrb[0].mxu0
  %v3828 = vadd.f32 %v416, %v3827
  %3829 = vmatprep.mubr.bf16.mxu0 %v634
  %3830 = vmatmul.mubr.bf16.gmra.mrb[0].mxu0 %v633
  %v3831 = vpop.f32.mrb[0].mxu0
  %v3832 = vadd.f32 %v412, %v3831
  %v3833 = vpop.f32.mrb[0].mxu0
  %v3834 = vadd.f32 %v416, %v3833
  %v3835 = vpop.f32.mrb[0].mxu0
  %v3836 = vadd.f32 %v412, %v3835
  %v3837 = vpop.f32.mrb[0].mxu0
  %v3838 = vadd.f32 %v416, %v3837
  %3839 = vmatprep.mubr.bf16.mxu0 %v637
  %3840 = vmatmul.mubr.bf16.gmra.mrb[0].mxu0 %v636
  %v3841 = vpop.f32.mrb[0].mxu0
  %v3842 = vadd.f32 %v412, %v3841
  %v3843 = vpop.f32.mrb[0].mxu0
  %v3844 = vadd.f32 %v416, %v3843
  %v3845 = vpop.f32.mrb[0].mxu0
  %v3846 = vadd.f32 %v412, %v3845
  %v3847 = vpop.f32.mrb[0].mxu0
  %v3848 = vadd.f32 %v416, %v3847
  %3849 = vmatprep.mubr.bf16.mxu0 %v640
  %3850 = vmatmul.mubr.bf16.gmra.mrb[0].mxu0 %v639
  %v3851 = vpop.f32.mrb[0].mxu0
  %v3852 = vadd.f32 %v412, %v3851
  %v3853 = vpop.f32.mrb[0].mxu0
  %v3854 = vadd.f32 %v416, %v3853
  %v3855 = vpop.f32.mrb[0].mxu0
  %v3856 = vadd.f32 %v412, %v3855
  %v3857 = vpop.f32.mrb[0].mxu0
  %v3858 = vadd.f32 %v416, %v3857
  %3859 = vmatprep.mubr.bf16.mxu0 %v643
  %3860 = vmatmul.mubr.bf16.gmra.mrb[0].mxu0 %v642
  %v3861 = vpop.f32.mrb[0].mxu0
  %v3862 = vadd.f32 %v412, %v3861
  %v3863 = vpop.f32.mrb[0].mxu0
  %v3864 = vadd.f32 %v416, %v3863
  %v3865 = vpop.f32.mrb[0].mxu0
  %v3866 = vadd.f32 %v412, %v3865
  %v3867 = vpop.f32.mrb[0].mxu0
  %v3868 = vadd.f32 %v416, %v3867
  %3869 = vdwg.mxu0
  %3870 = vmatprep.subr.bf16.mxu0 %v1758
  %3871 = vmatpush1.bf16.msra.mxu0 %v1757
  %3872 = vmatprep.subr.bf16.mxu0 %v1770
  %3873 = vmatpush1.bf16.msra.mxu0 %v1769
  %3874 = vmatprep.subr.bf16.mxu0 %v1782
  %3875 = vmatpush1.bf16.msra.mxu0 %v1781
  %3876 = vmatprep.subr.bf16.mxu0 %v1794
  %3877 = vmatpush1.bf16.msra.mxu0 %v1793
  %3878 = vmatprep.subr.bf16.mxu0 %v1806
  %3879 = vmatpush1.bf16.msra.mxu0 %v1805
  %3880 = vmatprep.subr.bf16.mxu0 %v1818
  %3881 = vmatpush1.bf16.msra.mxu0 %v1817
  %3882 = vmatprep.subr.bf16.mxu0 %v1830
  %3883 = vmatpush1.bf16.msra.mxu0 %v1829
  %3884 = vmatprep.subr.bf16.mxu0 %v1842
  %3885 = vmatpush1.bf16.msra.mxu0 %v1841
  %3886 = vmatprep.subr.bf16.mxu0 0
  %3887 = vmatpush1.bf16.msra.mxu0 0
  %3888 = vmatprep.subr.bf16.mxu0 0
  %3889 = vmatpush1.bf16.msra.mxu0 0
  %3890 = vmatprep.subr.bf16.mxu0 0
  %3891 = vmatpush1.bf16.msra.mxu0 0
  %3892 = vmatprep.subr.bf16.mxu0 0
  %3893 = vmatpush1.bf16.msra.mxu0 0
  %3894 = vmatprep.subr.bf16.mxu0 0
  %3895 = vmatpush1.bf16.msra.mxu0 0
  %3896 = vmatprep.subr.bf16.mxu0 0
  %3897 = vmatpush1.bf16.msra.mxu0 0
  %3898 = vmatprep.subr.bf16.mxu0 0
  %3899 = vmatpush1.bf16.msra.mxu0 0
  %3900 = vmatprep.subr.bf16.mxu0 0
  %3901 = vmatpush1.bf16.msra.mxu0 0
  %3902 = vmatprep.mubr.bf16.mxu0 0
  %3903 = vmatmul.mubr.bf16.gmra.mrb[0].mxu0 %v599
  %v3904 = vpop.f32.mrb[0].mxu0
  %v3905 = vadd.f32 %v3712, %v3904
  %v3906 = vpop.f32.mrb[0].mxu0
  %v3907 = vadd.f32 %v3714, %v3906
  %v3908 = vpop.f32.mrb[0].mxu0
  %v3909 = vadd.f32 %v3716, %v3908
  %v3910 = vpop.f32.mrb[0].mxu0
  %v3911 = vadd.f32 %v3718, %v3910
  %3912 = vmatprep.mubr.bf16.mxu0 0
  %3913 = vmatmul.mubr.bf16.gmra.mrb[0].mxu0 %v602
  %v3914 = vpop.f32.mrb[0].mxu0
  %v3915 = vadd.f32 %v3722, %v3914
  %v3916 = vpop.f32.mrb[0].mxu0
  %v3917 = vadd.f32 %v3724, %v3916
  %v3918 = vpop.f32.mrb[0].mxu0
  %v3919 = vadd.f32 %v3726, %v3918
  %v3920 = vpop.f32.mrb[0].mxu0
  %v3921 = vadd.f32 %v3728, %v3920
  %3922 = vmatprep.mubr.bf16.mxu0 0
  %3923 = vmatmul.mubr.bf16.gmra.mrb[0].mxu0 %v605
  %v3924 = vpop.f32.mrb[0].mxu0
  %v3925 = vadd.f32 %v3732, %v3924
  %v3926 = vpop.f32.mrb[0].mxu0
  %v3927 = vadd.f32 %v3734, %v3926
  %v3928 = vpop.f32.mrb[0].mxu0
  %v3929 = vadd.f32 %v3736, %v3928
  %v3930 = vpop.f32.mrb[0].mxu0
  %v3931 = vadd.f32 %v3738, %v3930
  %3932 = vmatprep.mubr.bf16.mxu0 0
  %3933 = vmatmul.mubr.bf16.gmra.mrb[0].mxu0 %v608
  %v3934 = vpop.f32.mrb[0].mxu0
  %v3935 = vadd.f32 %v3742, %v3934
  %v3936 = vpop.f32.mrb[0].mxu0
  %v3937 = vadd.f32 %v3744, %v3936
  %v3938 = vpop.f32.mrb[0].mxu0
  %v3939 = vadd.f32 %v3746, %v3938
  %v3940 = vpop.f32.mrb[0].mxu0
  %v3941 = vadd.f32 %v3748, %v3940
  %3942 = vmatprep.mubr.bf16.mxu0 0
  %3943 = vmatmul.mubr.bf16.gmra.mrb[0].mxu0 %v611
  %v3944 = vpop.f32.mrb[0].mxu0
  %v3945 = vadd.f32 %v3752, %v3944
  %v3946 = vpop.f32.mrb[0].mxu0
  %v3947 = vadd.f32 %v3754, %v3946
  %v3948 = vpop.f32.mrb[0].mxu0
  %v3949 = vadd.f32 %v3756, %v3948
  %v3950 = vpop.f32.mrb[0].mxu0
  %v3951 = vadd.f32 %v3758, %v3950
  %3952 = vmatprep.mubr.bf16.mxu0 0
  %3953 = vmatmul.mubr.bf16.gmra.mrb[0].mxu0 %v614
  %v3954 = vpop.f32.mrb[0].mxu0
  %v3955 = vadd.f32 %v3762, %v3954
  %v3956 = vpop.f32.mrb[0].mxu0
  %v3957 = vadd.f32 %v3764, %v3956
  %v3958 = vpop.f32.mrb[0].mxu0
  %v3959 = vadd.f32 %v3766, %v3958
  %v3960 = vpop.f32.mrb[0].mxu0
  %v3961 = vadd.f32 %v3768, %v3960
  %3962 = vmatprep.mubr.bf16.mxu0 0
  %3963 = vmatmul.mubr.bf16.gmra.mrb[0].mxu0 %v617
  %v3964 = vpop.f32.mrb[0].mxu0
  %v3965 = vadd.f32 %v3772, %v3964
  %v3966 = vpop.f32.mrb[0].mxu0
  %v3967 = vadd.f32 %v3774, %v3966
  %v3968 = vpop.f32.mrb[0].mxu0
  %v3969 = vadd.f32 %v3776, %v3968
  %v3970 = vpop.f32.mrb[0].mxu0
  %v3971 = vadd.f32 %v3778, %v3970
  %3972 = vmatprep.mubr.bf16.mxu0 0
  %3973 = vmatmul.mubr.bf16.gmra.mrb[0].mxu0 %v620
  %v3974 = vpop.f32.mrb[0].mxu0
  %v3975 = vadd.f32 %v3782, %v3974
  %v3976 = vpop.f32.mrb[0].mxu0
  %v3977 = vadd.f32 %v3784, %v3976
  %v3978 = vpop.f32.mrb[0].mxu0
  %v3979 = vadd.f32 %v3786, %v3978
  %v3980 = vpop.f32.mrb[0].mxu0
  %v3981 = vadd.f32 %v3788, %v3980
  %3982 = vmatprep.mubr.bf16.mxu0 0
  %3983 = vmatmul.mubr.bf16.gmra.mrb[0].mxu0 %v623
  %v3984 = vpop.f32.mrb[0].mxu0
  %v3985 = vadd.f32 %v3792, %v3984
  %v3986 = vpop.f32.mrb[0].mxu0
  %v3987 = vadd.f32 %v3794, %v3986
  %v3988 = vpop.f32.mrb[0].mxu0
  %v3989 = vadd.f32 %v3796, %v3988
  %v3990 = vpop.f32.mrb[0].mxu0
  %v3991 = vadd.f32 %v3798, %v3990
  %3992 = vmatprep.mubr.bf16.mxu0 0
  %3993 = vmatmul.mubr.bf16.gmra.mrb[0].mxu0 %v626
  %v3994 = vpop.f32.mrb[0].mxu0
  %v3995 = vadd.f32 %v3802, %v3994
  %v3996 = vpop.f32.mrb[0].mxu0
  %v3997 = vadd.f32 %v3804, %v3996
  %v3998 = vpop.f32.mrb[0].mxu0
  %v3999 = vadd.f32 %v3806, %v3998
  %v4000 = vpop.f32.mrb[0].mxu0
  %v4001 = vadd.f32 %v3808, %v4000
  %4002 = vmatprep.mubr.bf16.mxu0 0
  %4003 = vmatmul.mubr.bf16.gmra.mrb[0].mxu0 %v629
  %v4004 = vpop.f32.mrb[0].mxu0
  %v4005 = vadd.f32 %v3812, %v4004
  %v4006 = vpop.f32.mrb[0].mxu0
  %v4007 = vadd.f32 %v3814, %v4006
  %v4008 = vpop.f32.mrb[0].mxu0
  %v4009 = vadd.f32 %v3816, %v4008
  %v4010 = vpop.f32.mrb[0].mxu0
  %v4011 = vadd.f32 %v3818, %v4010
  %4012 = vmatprep.mubr.bf16.mxu0 0
  %4013 = vmatmul.mubr.bf16.gmra.mrb[0].mxu0 %v632
  %v4014 = vpop.f32.mrb[0].mxu0
  %v4015 = vadd.f32 %v3822, %v4014
  %v4016 = vpop.f32.mrb[0].mxu0
  %v4017 = vadd.f32 %v3824, %v4016
  %v4018 = vpop.f32.mrb[0].mxu0
  %v4019 = vadd.f32 %v3826, %v4018
  %v4020 = vpop.f32.mrb[0].mxu0
  %v4021 = vadd.f32 %v3828, %v4020
  %4022 = vmatprep.mubr.bf16.mxu0 0
  %4023 = vmatmul.mubr.bf16.gmra.mrb[0].mxu0 %v635
  %v4024 = vpop.f32.mrb[0].mxu0
  %v4025 = vadd.f32 %v3832, %v4024
  %v4026 = vpop.f32.mrb[0].mxu0
  %v4027 = vadd.f32 %v3834, %v4026
  %v4028 = vpop.f32.mrb[0].mxu0
  %v4029 = vadd.f32 %v3836, %v4028
  %v4030 = vpop.f32.mrb[0].mxu0
  %v4031 = vadd.f32 %v3838, %v4030
  %4032 = vmatprep.mubr.bf16.mxu0 0
  %4033 = vmatmul.mubr.bf16.gmra.mrb[0].mxu0 %v638
  %v4034 = vpop.f32.mrb[0].mxu0
  %v4035 = vadd.f32 %v3842, %v4034
  %v4036 = vpop.f32.mrb[0].mxu0
  %v4037 = vadd.f32 %v3844, %v4036
  %v4038 = vpop.f32.mrb[0].mxu0
  %v4039 = vadd.f32 %v3846, %v4038
  %v4040 = vpop.f32.mrb[0].mxu0
  %v4041 = vadd.f32 %v3848, %v4040
  %4042 = vmatprep.mubr.bf16.mxu0 0
  %4043 = vmatmul.mubr.bf16.gmra.mrb[0].mxu0 %v641
  %v4044 = vpop.f32.mrb[0].mxu0
  %v4045 = vadd.f32 %v3852, %v4044
  %v4046 = vpop.f32.mrb[0].mxu0
  %v4047 = vadd.f32 %v3854, %v4046
  %v4048 = vpop.f32.mrb[0].mxu0
  %v4049 = vadd.f32 %v3856, %v4048
  %v4050 = vpop.f32.mrb[0].mxu0
  %v4051 = vadd.f32 %v3858, %v4050
  %4052 = vmatprep.mubr.bf16.mxu0 0
  %4053 = vmatmul.mubr.bf16.gmra.mrb[0].mxu0 %v644
  %v4054 = vpop.f32.mrb[0].mxu0
  %v4055 = vadd.f32 %v3862, %v4054
  %v4056 = vpop.f32.mrb[0].mxu0
  %v4057 = vadd.f32 %v3864, %v4056
  %v4058 = vpop.f32.mrb[0].mxu0
  %v4059 = vadd.f32 %v3866, %v4058
  %v4060 = vpop.f32.mrb[0].mxu0
  %v4061 = vadd.f32 %v3868, %v4060
  %4062 = vdwg.mxu0
  %4063 = vmatprep.subr.bf16.mxu0 %v1568
  %4064 = vmatpush1.bf16.msra.mxu0 %v1567
  %4065 = vmatprep.subr.bf16.mxu0 %v1580
  %4066 = vmatpush1.bf16.msra.mxu0 %v1579
  %4067 = vmatprep.subr.bf16.mxu0 %v1592
  %4068 = vmatpush1.bf16.msra.mxu0 %v1591
  %4069 = vmatprep.subr.bf16.mxu0 %v1604
  %4070 = vmatpush1.bf16.msra.mxu0 %v1603
  %4071 = vmatprep.subr.bf16.mxu0 %v1616
  %4072 = vmatpush1.bf16.msra.mxu0 %v1615
  %4073 = vmatprep.subr.bf16.mxu0 %v1628
  %4074 = vmatpush1.bf16.msra.mxu0 %v1627
  %4075 = vmatprep.subr.bf16.mxu0 %v1640
  %4076 = vmatpush1.bf16.msra.mxu0 %v1639
  %4077 = vmatprep.subr.bf16.mxu0 %v1652
  %4078 = vmatpush1.bf16.msra.mxu0 %v1651
  %4079 = vmatprep.subr.bf16.mxu0 %v1664
  %4080 = vmatpush1.bf16.msra.mxu0 %v1663
  %4081 = vmatprep.subr.bf16.mxu0 %v1676
  %4082 = vmatpush1.bf16.msra.mxu0 %v1675
  %4083 = vmatprep.subr.bf16.mxu0 %v1688
  %4084 = vmatpush1.bf16.msra.mxu0 %v1687
  %4085 = vmatprep.subr.bf16.mxu0 %v1700
  %4086 = vmatpush1.bf16.msra.mxu0 %v1699
  %4087 = vmatprep.subr.bf16.mxu0 %v1712
  %4088 = vmatpush1.bf16.msra.mxu0 %v1711
  %4089 = vmatprep.subr.bf16.mxu0 %v1724
  %4090 = vmatpush1.bf16.msra.mxu0 %v1723
  %4091 = vmatprep.subr.bf16.mxu0 %v1736
  %4092 = vmatpush1.bf16.msra.mxu0 %v1735
  %4093 = vmatprep.subr.bf16.mxu0 %v1748
  %4094 = vmatpush1.bf16.msra.mxu0 %v1747
  %4095 = vmatprep.mubr.bf16.mxu0 %v598
  %4096 = vmatmul.mubr.bf16.gmra.mrb[0].mxu0 %v597
  %v4097 = vpop.f32.mrb[0].mxu0
  %v4098 = vadd.f32 %v420, %v4097
  %v4099 = vpop.f32.mrb[0].mxu0
  %v4100 = vadd.f32 %v424, %v4099
  %v4101 = vpop.f32.mrb[0].mxu0
  %v4102 = vadd.f32 %v420, %v4101
  %v4103 = vpop.f32.mrb[0].mxu0
  %v4104 = vadd.f32 %v424, %v4103
  %4105 = vmatprep.mubr.bf16.mxu0 %v601
  %4106 = vmatmul.mubr.bf16.gmra.mrb[0].mxu0 %v600
  %v4107 = vpop.f32.mrb[0].mxu0
  %v4108 = vadd.f32 %v420, %v4107
  %v4109 = vpop.f32.mrb[0].mxu0
  %v4110 = vadd.f32 %v424, %v4109
  %v4111 = vpop.f32.mrb[0].mxu0
  %v4112 = vadd.f32 %v420, %v4111
  %v4113 = vpop.f32.mrb[0].mxu0
  %v4114 = vadd.f32 %v424, %v4113
  %4115 = vmatprep.mubr.bf16.mxu0 %v604
  %4116 = vmatmul.mubr.bf16.gmra.mrb[0].mxu0 %v603
  %v4117 = vpop.f32.mrb[0].mxu0
  %v4118 = vadd.f32 %v420, %v4117
  %v4119 = vpop.f32.mrb[0].mxu0
  %v4120 = vadd.f32 %v424, %v4119
  %v4121 = vpop.f32.mrb[0].mxu0
  %v4122 = vadd.f32 %v420, %v4121
  %v4123 = vpop.f32.mrb[0].mxu0
  %v4124 = vadd.f32 %v424, %v4123
  %4125 = vmatprep.mubr.bf16.mxu0 %v607
  %4126 = vmatmul.mubr.bf16.gmra.mrb[0].mxu0 %v606
  %v4127 = vpop.f32.mrb[0].mxu0
  %v4128 = vadd.f32 %v420, %v4127
  %v4129 = vpop.f32.mrb[0].mxu0
  %v4130 = vadd.f32 %v424, %v4129
  %v4131 = vpop.f32.mrb[0].mxu0
  %v4132 = vadd.f32 %v420, %v4131
  %v4133 = vpop.f32.mrb[0].mxu0
  %v4134 = vadd.f32 %v424, %v4133
  %4135 = vmatprep.mubr.bf16.mxu0 %v610
  %4136 = vmatmul.mubr.bf16.gmra.mrb[0].mxu0 %v609
  %v4137 = vpop.f32.mrb[0].mxu0
  %v4138 = vadd.f32 %v420, %v4137
  %v4139 = vpop.f32.mrb[0].mxu0
  %v4140 = vadd.f32 %v424, %v4139
  %v4141 = vpop.f32.mrb[0].mxu0
  %v4142 = vadd.f32 %v420, %v4141
  %v4143 = vpop.f32.mrb[0].mxu0
  %v4144 = vadd.f32 %v424, %v4143
  %4145 = vmatprep.mubr.bf16.mxu0 %v613
  %4146 = vmatmul.mubr.bf16.gmra.mrb[0].mxu0 %v612
  %v4147 = vpop.f32.mrb[0].mxu0
  %v4148 = vadd.f32 %v420, %v4147
  %v4149 = vpop.f32.mrb[0].mxu0
  %v4150 = vadd.f32 %v424, %v4149
  %v4151 = vpop.f32.mrb[0].mxu0
  %v4152 = vadd.f32 %v420, %v4151
  %v4153 = vpop.f32.mrb[0].mxu0
  %v4154 = vadd.f32 %v424, %v4153
  %4155 = vmatprep.mubr.bf16.mxu0 %v616
  %4156 = vmatmul.mubr.bf16.gmra.mrb[0].mxu0 %v615
  %v4157 = vpop.f32.mrb[0].mxu0
  %v4158 = vadd.f32 %v420, %v4157
  %v4159 = vpop.f32.mrb[0].mxu0
  %v4160 = vadd.f32 %v424, %v4159
  %v4161 = vpop.f32.mrb[0].mxu0
  %v4162 = vadd.f32 %v420, %v4161
  %v4163 = vpop.f32.mrb[0].mxu0
  %v4164 = vadd.f32 %v424, %v4163
  %4165 = vmatprep.mubr.bf16.mxu0 %v619
  %4166 = vmatmul.mubr.bf16.gmra.mrb[0].mxu0 %v618
  %v4167 = vpop.f32.mrb[0].mxu0
  %v4168 = vadd.f32 %v420, %v4167
  %v4169 = vpop.f32.mrb[0].mxu0
  %v4170 = vadd.f32 %v424, %v4169
  %v4171 = vpop.f32.mrb[0].mxu0
  %v4172 = vadd.f32 %v420, %v4171
  %v4173 = vpop.f32.mrb[0].mxu0
  %v4174 = vadd.f32 %v424, %v4173
  %4175 = vmatprep.mubr.bf16.mxu0 %v622
  %4176 = vmatmul.mubr.bf16.gmra.mrb[0].mxu0 %v621
  %v4177 = vpop.f32.mrb[0].mxu0
  %v4178 = vadd.f32 %v420, %v4177
  %v4179 = vpop.f32.mrb[0].mxu0
  %v4180 = vadd.f32 %v424, %v4179
  %v4181 = vpop.f32.mrb[0].mxu0
  %v4182 = vadd.f32 %v420, %v4181
  %v4183 = vpop.f32.mrb[0].mxu0
  %v4184 = vadd.f32 %v424, %v4183
  %4185 = vmatprep.mubr.bf16.mxu0 %v625
  %4186 = vmatmul.mubr.bf16.gmra.mrb[0].mxu0 %v624
  %v4187 = vpop.f32.mrb[0].mxu0
  %v4188 = vadd.f32 %v420, %v4187
  %v4189 = vpop.f32.mrb[0].mxu0
  %v4190 = vadd.f32 %v424, %v4189
  %v4191 = vpop.f32.mrb[0].mxu0
  %v4192 = vadd.f32 %v420, %v4191
  %v4193 = vpop.f32.mrb[0].mxu0
  %v4194 = vadd.f32 %v424, %v4193
  %4195 = vmatprep.mubr.bf16.mxu0 %v628
  %4196 = vmatmul.mubr.bf16.gmra.mrb[0].mxu0 %v627
  %v4197 = vpop.f32.mrb[0].mxu0
  %v4198 = vadd.f32 %v420, %v4197
  %v4199 = vpop.f32.mrb[0].mxu0
  %v4200 = vadd.f32 %v424, %v4199
  %v4201 = vpop.f32.mrb[0].mxu0
  %v4202 = vadd.f32 %v420, %v4201
  %v4203 = vpop.f32.mrb[0].mxu0
  %v4204 = vadd.f32 %v424, %v4203
  %4205 = vmatprep.mubr.bf16.mxu0 %v631
  %4206 = vmatmul.mubr.bf16.gmra.mrb[0].mxu0 %v630
  %v4207 = vpop.f32.mrb[0].mxu0
  %v4208 = vadd.f32 %v420, %v4207
  %v4209 = vpop.f32.mrb[0].mxu0
  %v4210 = vadd.f32 %v424, %v4209
  %v4211 = vpop.f32.mrb[0].mxu0
  %v4212 = vadd.f32 %v420, %v4211
  %v4213 = vpop.f32.mrb[0].mxu0
  %v4214 = vadd.f32 %v424, %v4213
  %4215 = vmatprep.mubr.bf16.mxu0 %v634
  %4216 = vmatmul.mubr.bf16.gmra.mrb[0].mxu0 %v633
  %v4217 = vpop.f32.mrb[0].mxu0
  %v4218 = vadd.f32 %v420, %v4217
  %v4219 = vpop.f32.mrb[0].mxu0
  %v4220 = vadd.f32 %v424, %v4219
  %v4221 = vpop.f32.mrb[0].mxu0
  %v4222 = vadd.f32 %v420, %v4221
  %v4223 = vpop.f32.mrb[0].mxu0
  %v4224 = vadd.f32 %v424, %v4223
  %4225 = vmatprep.mubr.bf16.mxu0 %v637
  %4226 = vmatmul.mubr.bf16.gmra.mrb[0].mxu0 %v636
  %v4227 = vpop.f32.mrb[0].mxu0
  %v4228 = vadd.f32 %v420, %v4227
  %v4229 = vpop.f32.mrb[0].mxu0
  %v4230 = vadd.f32 %v424, %v4229
  %v4231 = vpop.f32.mrb[0].mxu0
  %v4232 = vadd.f32 %v420, %v4231
  %v4233 = vpop.f32.mrb[0].mxu0
  %v4234 = vadd.f32 %v424, %v4233
  %4235 = vmatprep.mubr.bf16.mxu0 %v640
  %4236 = vmatmul.mubr.bf16.gmra.mrb[0].mxu0 %v639
  %v4237 = vpop.f32.mrb[0].mxu0
  %v4238 = vadd.f32 %v420, %v4237
  %v4239 = vpop.f32.mrb[0].mxu0
  %v4240 = vadd.f32 %v424, %v4239
  %v4241 = vpop.f32.mrb[0].mxu0
  %v4242 = vadd.f32 %v420, %v4241
  %v4243 = vpop.f32.mrb[0].mxu0
  %v4244 = vadd.f32 %v424, %v4243
  %4245 = vmatprep.mubr.bf16.mxu0 %v643
  %4246 = vmatmul.mubr.bf16.gmra.mrb[0].mxu0 %v642
  %v4247 = vpop.f32.mrb[0].mxu0
  %v4248 = vadd.f32 %v420, %v4247
  %v4249 = vpop.f32.mrb[0].mxu0
  %v4250 = vadd.f32 %v424, %v4249
  %v4251 = vpop.f32.mrb[0].mxu0
  %v4252 = vadd.f32 %v420, %v4251
  %v4253 = vpop.f32.mrb[0].mxu0
  %v4254 = vadd.f32 %v424, %v4253
  %4255 = vdwg.mxu0
  %4256 = vmatprep.subr.bf16.mxu0 %v1760
  %4257 = vmatpush1.bf16.msra.mxu0 %v1759
  %4258 = vmatprep.subr.bf16.mxu0 %v1772
  %4259 = vmatpush1.bf16.msra.mxu0 %v1771
  %4260 = vmatprep.subr.bf16.mxu0 %v1784
  %4261 = vmatpush1.bf16.msra.mxu0 %v1783
  %4262 = vmatprep.subr.bf16.mxu0 %v1796
  %4263 = vmatpush1.bf16.msra.mxu0 %v1795
  %4264 = vmatprep.subr.bf16.mxu0 %v1808
  %4265 = vmatpush1.bf16.msra.mxu0 %v1807
  %4266 = vmatprep.subr.bf16.mxu0 %v1820
  %4267 = vmatpush1.bf16.msra.mxu0 %v1819
  %4268 = vmatprep.subr.bf16.mxu0 %v1832
  %4269 = vmatpush1.bf16.msra.mxu0 %v1831
  %4270 = vmatprep.subr.bf16.mxu0 %v1844
  %4271 = vmatpush1.bf16.msra.mxu0 %v1843
  %4272 = vmatprep.subr.bf16.mxu0 0
  %4273 = vmatpush1.bf16.msra.mxu0 0
  %4274 = vmatprep.subr.bf16.mxu0 0
  %4275 = vmatpush1.bf16.msra.mxu0 0
  %4276 = vmatprep.subr.bf16.mxu0 0
  %4277 = vmatpush1.bf16.msra.mxu0 0
  %4278 = vmatprep.subr.bf16.mxu0 0
  %4279 = vmatpush1.bf16.msra.mxu0 0
  %4280 = vmatprep.subr.bf16.mxu0 0
  %4281 = vmatpush1.bf16.msra.mxu0 0
  %4282 = vmatprep.subr.bf16.mxu0 0
  %4283 = vmatpush1.bf16.msra.mxu0 0
  %4284 = vmatprep.subr.bf16.mxu0 0
  %4285 = vmatpush1.bf16.msra.mxu0 0
  %4286 = vmatprep.subr.bf16.mxu0 0
  %4287 = vmatpush1.bf16.msra.mxu0 0
  %4288 = vmatprep.mubr.bf16.mxu0 0
  %4289 = vmatmul.mubr.bf16.gmra.mrb[0].mxu0 %v599
  %v4290 = vpop.f32.mrb[0].mxu0
  %v4291 = vadd.f32 %v4098, %v4290
  %v4292 = vpop.f32.mrb[0].mxu0
  %v4293 = vadd.f32 %v4100, %v4292
  %v4294 = vpop.f32.mrb[0].mxu0
  %v4295 = vadd.f32 %v4102, %v4294
  %v4296 = vpop.f32.mrb[0].mxu0
  %v4297 = vadd.f32 %v4104, %v4296
  %4298 = vmatprep.mubr.bf16.mxu0 0
  %4299 = vmatmul.mubr.bf16.gmra.mrb[0].mxu0 %v602
  %v4300 = vpop.f32.mrb[0].mxu0
  %v4301 = vadd.f32 %v4108, %v4300
  %v4302 = vpop.f32.mrb[0].mxu0
  %v4303 = vadd.f32 %v4110, %v4302
  %v4304 = vpop.f32.mrb[0].mxu0
  %v4305 = vadd.f32 %v4112, %v4304
  %v4306 = vpop.f32.mrb[0].mxu0
  %v4307 = vadd.f32 %v4114, %v4306
  %4308 = vmatprep.mubr.bf16.mxu0 0
  %4309 = vmatmul.mubr.bf16.gmra.mrb[0].mxu0 %v605
  %v4310 = vpop.f32.mrb[0].mxu0
  %v4311 = vadd.f32 %v4118, %v4310
  %v4312 = vpop.f32.mrb[0].mxu0
  %v4313 = vadd.f32 %v4120, %v4312
  %v4314 = vpop.f32.mrb[0].mxu0
  %v4315 = vadd.f32 %v4122, %v4314
  %v4316 = vpop.f32.mrb[0].mxu0
  %v4317 = vadd.f32 %v4124, %v4316
  %4318 = vmatprep.mubr.bf16.mxu0 0
  %4319 = vmatmul.mubr.bf16.gmra.mrb[0].mxu0 %v608
  %v4320 = vpop.f32.mrb[0].mxu0
  %v4321 = vadd.f32 %v4128, %v4320
  %v4322 = vpop.f32.mrb[0].mxu0
  %v4323 = vadd.f32 %v4130, %v4322
  %v4324 = vpop.f32.mrb[0].mxu0
  %v4325 = vadd.f32 %v4132, %v4324
  %v4326 = vpop.f32.mrb[0].mxu0
  %v4327 = vadd.f32 %v4134, %v4326
  %4328 = vmatprep.mubr.bf16.mxu0 0
  %4329 = vmatmul.mubr.bf16.gmra.mrb[0].mxu0 %v611
  %v4330 = vpop.f32.mrb[0].mxu0
  %v4331 = vadd.f32 %v4138, %v4330
  %v4332 = vpop.f32.mrb[0].mxu0
  %v4333 = vadd.f32 %v4140, %v4332
  %v4334 = vpop.f32.mrb[0].mxu0
  %v4335 = vadd.f32 %v4142, %v4334
  %v4336 = vpop.f32.mrb[0].mxu0
  %v4337 = vadd.f32 %v4144, %v4336
  %4338 = vmatprep.mubr.bf16.mxu0 0
  %4339 = vmatmul.mubr.bf16.gmra.mrb[0].mxu0 %v614
  %v4340 = vpop.f32.mrb[0].mxu0
  %v4341 = vadd.f32 %v4148, %v4340
  %v4342 = vpop.f32.mrb[0].mxu0
  %v4343 = vadd.f32 %v4150, %v4342
  %v4344 = vpop.f32.mrb[0].mxu0
  %v4345 = vadd.f32 %v4152, %v4344
  %v4346 = vpop.f32.mrb[0].mxu0
  %v4347 = vadd.f32 %v4154, %v4346
  %4348 = vmatprep.mubr.bf16.mxu0 0
  %4349 = vmatmul.mubr.bf16.gmra.mrb[0].mxu0 %v617
  %v4350 = vpop.f32.mrb[0].mxu0
  %v4351 = vadd.f32 %v4158, %v4350
  %v4352 = vpop.f32.mrb[0].mxu0
  %v4353 = vadd.f32 %v4160, %v4352
  %v4354 = vpop.f32.mrb[0].mxu0
  %v4355 = vadd.f32 %v4162, %v4354
  %v4356 = vpop.f32.mrb[0].mxu0
  %v4357 = vadd.f32 %v4164, %v4356
  %4358 = vmatprep.mubr.bf16.mxu0 0
  %4359 = vmatmul.mubr.bf16.gmra.mrb[0].mxu0 %v620
  %v4360 = vpop.f32.mrb[0].mxu0
  %v4361 = vadd.f32 %v4168, %v4360
  %v4362 = vpop.f32.mrb[0].mxu0
  %v4363 = vadd.f32 %v4170, %v4362
  %v4364 = vpop.f32.mrb[0].mxu0
  %v4365 = vadd.f32 %v4172, %v4364
  %v4366 = vpop.f32.mrb[0].mxu0
  %v4367 = vadd.f32 %v4174, %v4366
  %4368 = vmatprep.mubr.bf16.mxu0 0
  %4369 = vmatmul.mubr.bf16.gmra.mrb[0].mxu0 %v623
  %v4370 = vpop.f32.mrb[0].mxu0
  %v4371 = vadd.f32 %v4178, %v4370
  %v4372 = vpop.f32.mrb[0].mxu0
  %v4373 = vadd.f32 %v4180, %v4372
  %v4374 = vpop.f32.mrb[0].mxu0
  %v4375 = vadd.f32 %v4182, %v4374
  %v4376 = vpop.f32.mrb[0].mxu0
  %v4377 = vadd.f32 %v4184, %v4376
  %4378 = vmatprep.mubr.bf16.mxu0 0
  %4379 = vmatmul.mubr.bf16.gmra.mrb[0].mxu0 %v626
  %v4380 = vpop.f32.mrb[0].mxu0
  %v4381 = vadd.f32 %v4188, %v4380
  %v4382 = vpop.f32.mrb[0].mxu0
  %v4383 = vadd.f32 %v4190, %v4382
  %v4384 = vpop.f32.mrb[0].mxu0
  %v4385 = vadd.f32 %v4192, %v4384
  %v4386 = vpop.f32.mrb[0].mxu0
  %v4387 = vadd.f32 %v4194, %v4386
  %4388 = vmatprep.mubr.bf16.mxu0 0
  %4389 = vmatmul.mubr.bf16.gmra.mrb[0].mxu0 %v629
  %v4390 = vpop.f32.mrb[0].mxu0
  %v4391 = vadd.f32 %v4198, %v4390
  %v4392 = vpop.f32.mrb[0].mxu0
  %v4393 = vadd.f32 %v4200, %v4392
  %v4394 = vpop.f32.mrb[0].mxu0
  %v4395 = vadd.f32 %v4202, %v4394
  %v4396 = vpop.f32.mrb[0].mxu0
  %v4397 = vadd.f32 %v4204, %v4396
  %4398 = vmatprep.mubr.bf16.mxu0 0
  %4399 = vmatmul.mubr.bf16.gmra.mrb[0].mxu0 %v632
  %v4400 = vpop.f32.mrb[0].mxu0
  %v4401 = vadd.f32 %v4208, %v4400
  %v4402 = vpop.f32.mrb[0].mxu0
  %v4403 = vadd.f32 %v4210, %v4402
  %v4404 = vpop.f32.mrb[0].mxu0
  %v4405 = vadd.f32 %v4212, %v4404
  %v4406 = vpop.f32.mrb[0].mxu0
  %v4407 = vadd.f32 %v4214, %v4406
  %4408 = vmatprep.mubr.bf16.mxu0 0
  %4409 = vmatmul.mubr.bf16.gmra.mrb[0].mxu0 %v635
  %v4410 = vpop.f32.mrb[0].mxu0
  %v4411 = vadd.f32 %v4218, %v4410
  %v4412 = vpop.f32.mrb[0].mxu0
  %v4413 = vadd.f32 %v4220, %v4412
  %v4414 = vpop.f32.mrb[0].mxu0
  %v4415 = vadd.f32 %v4222, %v4414
  %v4416 = vpop.f32.mrb[0].mxu0
  %v4417 = vadd.f32 %v4224, %v4416
  %4418 = vmatprep.mubr.bf16.mxu0 0
  %4419 = vmatmul.mubr.bf16.gmra.mrb[0].mxu0 %v638
  %v4420 = vpop.f32.mrb[0].mxu0
  %v4421 = vadd.f32 %v4228, %v4420
  %v4422 = vpop.f32.mrb[0].mxu0
  %v4423 = vadd.f32 %v4230, %v4422
  %v4424 = vpop.f32.mrb[0].mxu0
  %v4425 = vadd.f32 %v4232, %v4424
  %v4426 = vpop.f32.mrb[0].mxu0
  %v4427 = vadd.f32 %v4234, %v4426
  %4428 = vmatprep.mubr.bf16.mxu0 0
  %4429 = vmatmul.mubr.bf16.gmra.mrb[0].mxu0 %v641
  %v4430 = vpop.f32.mrb[0].mxu0
  %v4431 = vadd.f32 %v4238, %v4430
  %v4432 = vpop.f32.mrb[0].mxu0
  %v4433 = vadd.f32 %v4240, %v4432
  %v4434 = vpop.f32.mrb[0].mxu0
  %v4435 = vadd.f32 %v4242, %v4434
  %v4436 = vpop.f32.mrb[0].mxu0
  %v4437 = vadd.f32 %v4244, %v4436
  %4438 = vmatprep.mubr.bf16.mxu0 0
  %4439 = vmatmul.mubr.bf16.gmra.mrb[0].mxu0 %v644
  %v4440 = vpop.f32.mrb[0].mxu0
  %v4441 = vadd.f32 %v4248, %v4440
  %v4442 = vpop.f32.mrb[0].mxu0
  %v4443 = vadd.f32 %v4250, %v4442
  %v4444 = vpop.f32.mrb[0].mxu0
  %v4445 = vadd.f32 %v4252, %v4444
  %v4446 = vpop.f32.mrb[0].mxu0
  %v4447 = vadd.f32 %v4254, %v4446
  %4448 = vdwg.mxu0
  %v4449 = vmax.f32 %v2361, 0.0
  %v4450 = vmax.f32 %v2363, 0.0
  %v4451 = vmax.f32 %v2747, 0.0
  %v4452 = vmax.f32 %v2749, 0.0
  %v4453 = vmax.f32 %v3133, 0.0
  %v4454 = vmax.f32 %v3135, 0.0
  %v4455 = vmax.f32 %v3519, 0.0
  %v4456 = vmax.f32 %v3521, 0.0
  %v4457 = vmax.f32 %v3905, 0.0
  %v4458 = vmax.f32 %v3907, 0.0
  %v4459 = vmax.f32 %v4291, 0.0
  %v4460 = vmax.f32 %v4293, 0.0
  %v4461 = vmax.f32 %v2365, 0.0
  %v4462 = vmax.f32 %v2367, 0.0
  %v4463 = vmax.f32 %v2751, 0.0
  %v4464 = vmax.f32 %v2753, 0.0
  %v4465 = vmax.f32 %v3137, 0.0
  %v4466 = vmax.f32 %v3139, 0.0
  %v4467 = vmax.f32 %v3523, 0.0
  %v4468 = vmax.f32 %v3525, 0.0
  %v4469 = vmax.f32 %v3909, 0.0
  %v4470 = vmax.f32 %v3911, 0.0
  %v4471 = vmax.f32 %v4295, 0.0
  %v4472 = vmax.f32 %v4297, 0.0
  %v4473 = vmax.f32 %v2371, 0.0
  %v4474 = vmax.f32 %v2373, 0.0
  %v4475 = vmax.f32 %v2757, 0.0
  %v4476 = vmax.f32 %v2759, 0.0
  %v4477 = vmax.f32 %v3143, 0.0
  %v4478 = vmax.f32 %v3145, 0.0
  %v4479 = vmax.f32 %v3529, 0.0
  %v4480 = vmax.f32 %v3531, 0.0
  %v4481 = vmax.f32 %v3915, 0.0
  %v4482 = vmax.f32 %v3917, 0.0
  %v4483 = vmax.f32 %v4301, 0.0
  %v4484 = vmax.f32 %v4303, 0.0
  %v4485 = vmax.f32 %v2375, 0.0
  %v4486 = vmax.f32 %v2377, 0.0
  %v4487 = vmax.f32 %v2761, 0.0
  %v4488 = vmax.f32 %v2763, 0.0
  %v4489 = vmax.f32 %v3147, 0.0
  %v4490 = vmax.f32 %v3149, 0.0
  %v4491 = vmax.f32 %v3533, 0.0
  %v4492 = vmax.f32 %v3535, 0.0
  %v4493 = vmax.f32 %v3919, 0.0
  %v4494 = vmax.f32 %v3921, 0.0
  %v4495 = vmax.f32 %v4305, 0.0
  %v4496 = vmax.f32 %v4307, 0.0
  %v4497 = vmax.f32 %v2381, 0.0
  %v4498 = vmax.f32 %v2383, 0.0
  %v4499 = vmax.f32 %v2767, 0.0
  %v4500 = vmax.f32 %v2769, 0.0
  %v4501 = vmax.f32 %v3153, 0.0
  %v4502 = vmax.f32 %v3155, 0.0
  %v4503 = vmax.f32 %v3539, 0.0
  %v4504 = vmax.f32 %v3541, 0.0
  %v4505 = vmax.f32 %v3925, 0.0
  %v4506 = vmax.f32 %v3927, 0.0
  %v4507 = vmax.f32 %v4311, 0.0
  %v4508 = vmax.f32 %v4313, 0.0
  %v4509 = vmax.f32 %v2385, 0.0
  %v4510 = vmax.f32 %v2387, 0.0
  %v4511 = vmax.f32 %v2771, 0.0
  %v4512 = vmax.f32 %v2773, 0.0
  %v4513 = vmax.f32 %v3157, 0.0
  %v4514 = vmax.f32 %v3159, 0.0
  %v4515 = vmax.f32 %v3543, 0.0
  %v4516 = vmax.f32 %v3545, 0.0
  %v4517 = vmax.f32 %v3929, 0.0
  %v4518 = vmax.f32 %v3931, 0.0
  %v4519 = vmax.f32 %v4315, 0.0
  %v4520 = vmax.f32 %v4317, 0.0
  %v4521 = vmax.f32 %v2391, 0.0
  %v4522 = vmax.f32 %v2393, 0.0
  %v4523 = vmax.f32 %v2777, 0.0
  %v4524 = vmax.f32 %v2779, 0.0
  %v4525 = vmax.f32 %v3163, 0.0
  %v4526 = vmax.f32 %v3165, 0.0
  %v4527 = vmax.f32 %v3549, 0.0
  %v4528 = vmax.f32 %v3551, 0.0
  %v4529 = vmax.f32 %v3935, 0.0
  %v4530 = vmax.f32 %v3937, 0.0
  %v4531 = vmax.f32 %v4321, 0.0
  %v4532 = vmax.f32 %v4323, 0.0
  %v4533 = vmax.f32 %v2395, 0.0
  %v4534 = vmax.f32 %v2397, 0.0
  %v4535 = vmax.f32 %v2781, 0.0
  %v4536 = vmax.f32 %v2783, 0.0
  %v4537 = vmax.f32 %v3167, 0.0
  %v4538 = vmax.f32 %v3169, 0.0
  %v4539 = vmax.f32 %v3553, 0.0
  %v4540 = vmax.f32 %v3555, 0.0
  %v4541 = vmax.f32 %v3939, 0.0
  %v4542 = vmax.f32 %v3941, 0.0
  %v4543 = vmax.f32 %v4325, 0.0
  %v4544 = vmax.f32 %v4327, 0.0
  %v4545 = vmax.f32 %v2401, 0.0
  %v4546 = vmax.f32 %v2403, 0.0
  %v4547 = vmax.f32 %v2787, 0.0
  %v4548 = vmax.f32 %v2789, 0.0
  %v4549 = vmax.f32 %v3173, 0.0
  %v4550 = vmax.f32 %v3175, 0.0
  %v4551 = vmax.f32 %v3559, 0.0
  %v4552 = vmax.f32 %v3561, 0.0
  %v4553 = vmax.f32 %v3945, 0.0
  %v4554 = vmax.f32 %v3947, 0.0
  %v4555 = vmax.f32 %v4331, 0.0
  %v4556 = vmax.f32 %v4333, 0.0
  %v4557 = vmax.f32 %v2405, 0.0
  %v4558 = vmax.f32 %v2407, 0.0
  %v4559 = vmax.f32 %v2791, 0.0
  %v4560 = vmax.f32 %v2793, 0.0
  %v4561 = vmax.f32 %v3177, 0.0
  %v4562 = vmax.f32 %v3179, 0.0
  %v4563 = vmax.f32 %v3563, 0.0
  %v4564 = vmax.f32 %v3565, 0.0
  %v4565 = vmax.f32 %v3949, 0.0
  %v4566 = vmax.f32 %v3951, 0.0
  %v4567 = vmax.f32 %v4335, 0.0
  %v4568 = vmax.f32 %v4337, 0.0
  %v4569 = vmax.f32 %v2411, 0.0
  %v4570 = vmax.f32 %v2413, 0.0
  %v4571 = vmax.f32 %v2797, 0.0
  %v4572 = vmax.f32 %v2799, 0.0
  %v4573 = vmax.f32 %v3183, 0.0
  %v4574 = vmax.f32 %v3185, 0.0
  %v4575 = vmax.f32 %v3569, 0.0
  %v4576 = vmax.f32 %v3571, 0.0
  %v4577 = vmax.f32 %v3955, 0.0
  %v4578 = vmax.f32 %v3957, 0.0
  %v4579 = vmax.f32 %v4341, 0.0
  %v4580 = vmax.f32 %v4343, 0.0
  %v4581 = vmax.f32 %v2415, 0.0
  %v4582 = vmax.f32 %v2417, 0.0
  %v4583 = vmax.f32 %v2801, 0.0
  %v4584 = vmax.f32 %v2803, 0.0
  %v4585 = vmax.f32 %v3187, 0.0
  %v4586 = vmax.f32 %v3189, 0.0
  %v4587 = vmax.f32 %v3573, 0.0
  %v4588 = vmax.f32 %v3575, 0.0
  %v4589 = vmax.f32 %v3959, 0.0
  %v4590 = vmax.f32 %v3961, 0.0
  %v4591 = vmax.f32 %v4345, 0.0
  %v4592 = vmax.f32 %v4347, 0.0
  %v4593 = vmax.f32 %v2421, 0.0
  %v4594 = vmax.f32 %v2423, 0.0
  %v4595 = vmax.f32 %v2807, 0.0
  %v4596 = vmax.f32 %v2809, 0.0
  %v4597 = vmax.f32 %v3193, 0.0
  %v4598 = vmax.f32 %v3195, 0.0
  %v4599 = vmax.f32 %v3579, 0.0
  %v4600 = vmax.f32 %v3581, 0.0
  %v4601 = vmax.f32 %v3965, 0.0
  %v4602 = vmax.f32 %v3967, 0.0
  %v4603 = vmax.f32 %v4351, 0.0
  %v4604 = vmax.f32 %v4353, 0.0
  %v4605 = vmax.f32 %v2425, 0.0
  %v4606 = vmax.f32 %v2427, 0.0
  %v4607 = vmax.f32 %v2811, 0.0
  %v4608 = vmax.f32 %v2813, 0.0
  %v4609 = vmax.f32 %v3197, 0.0
  %v4610 = vmax.f32 %v3199, 0.0
  %v4611 = vmax.f32 %v3583, 0.0
  %v4612 = vmax.f32 %v3585, 0.0
  %v4613 = vmax.f32 %v3969, 0.0
  %v4614 = vmax.f32 %v3971, 0.0
  %v4615 = vmax.f32 %v4355, 0.0
  %v4616 = vmax.f32 %v4357, 0.0
  %v4617 = vmax.f32 %v2431, 0.0
  %v4618 = vmax.f32 %v2433, 0.0
  %v4619 = vmax.f32 %v2817, 0.0
  %v4620 = vmax.f32 %v2819, 0.0
  %v4621 = vmax.f32 %v3203, 0.0
  %v4622 = vmax.f32 %v3205, 0.0
  %v4623 = vmax.f32 %v3589, 0.0
  %v4624 = vmax.f32 %v3591, 0.0
  %v4625 = vmax.f32 %v3975, 0.0
  %v4626 = vmax.f32 %v3977, 0.0
  %v4627 = vmax.f32 %v4361, 0.0
  %v4628 = vmax.f32 %v4363, 0.0
  %v4629 = vmax.f32 %v2435, 0.0
  %v4630 = vmax.f32 %v2437, 0.0
  %v4631 = vmax.f32 %v2821, 0.0
  %v4632 = vmax.f32 %v2823, 0.0
  %v4633 = vmax.f32 %v3207, 0.0
  %v4634 = vmax.f32 %v3209, 0.0
  %v4635 = vmax.f32 %v3593, 0.0
  %v4636 = vmax.f32 %v3595, 0.0
  %v4637 = vmax.f32 %v3979, 0.0
  %v4638 = vmax.f32 %v3981, 0.0
  %v4639 = vmax.f32 %v4365, 0.0
  %v4640 = vmax.f32 %v4367, 0.0
  %v4641 = vmax.f32 %v2441, 0.0
  %v4642 = vmax.f32 %v2443, 0.0
  %v4643 = vmax.f32 %v2827, 0.0
  %v4644 = vmax.f32 %v2829, 0.0
  %v4645 = vmax.f32 %v3213, 0.0
  %v4646 = vmax.f32 %v3215, 0.0
  %v4647 = vmax.f32 %v3599, 0.0
  %v4648 = vmax.f32 %v3601, 0.0
  %v4649 = vmax.f32 %v3985, 0.0
  %v4650 = vmax.f32 %v3987, 0.0
  %v4651 = vmax.f32 %v4371, 0.0
  %v4652 = vmax.f32 %v4373, 0.0
  %v4653 = vmax.f32 %v2445, 0.0
  %v4654 = vmax.f32 %v2447, 0.0
  %v4655 = vmax.f32 %v2831, 0.0
  %v4656 = vmax.f32 %v2833, 0.0
  %v4657 = vmax.f32 %v3217, 0.0
  %v4658 = vmax.f32 %v3219, 0.0
  %v4659 = vmax.f32 %v3603, 0.0
  %v4660 = vmax.f32 %v3605, 0.0
  %v4661 = vmax.f32 %v3989, 0.0
  %v4662 = vmax.f32 %v3991, 0.0
  %v4663 = vmax.f32 %v4375, 0.0
  %v4664 = vmax.f32 %v4377, 0.0
  %v4665 = vmax.f32 %v2451, 0.0
  %v4666 = vmax.f32 %v2453, 0.0
  %v4667 = vmax.f32 %v2837, 0.0
  %v4668 = vmax.f32 %v2839, 0.0
  %v4669 = vmax.f32 %v3223, 0.0
  %v4670 = vmax.f32 %v3225, 0.0
  %v4671 = vmax.f32 %v3609, 0.0
  %v4672 = vmax.f32 %v3611, 0.0
  %v4673 = vmax.f32 %v3995, 0.0
  %v4674 = vmax.f32 %v3997, 0.0
  %v4675 = vmax.f32 %v4381, 0.0
  %v4676 = vmax.f32 %v4383, 0.0
  %v4677 = vmax.f32 %v2455, 0.0
  %v4678 = vmax.f32 %v2457, 0.0
  %v4679 = vmax.f32 %v2841, 0.0
  %v4680 = vmax.f32 %v2843, 0.0
  %v4681 = vmax.f32 %v3227, 0.0
  %v4682 = vmax.f32 %v3229, 0.0
  %v4683 = vmax.f32 %v3613, 0.0
  %v4684 = vmax.f32 %v3615, 0.0
  %v4685 = vmax.f32 %v3999, 0.0
  %v4686 = vmax.f32 %v4001, 0.0
  %v4687 = vmax.f32 %v4385, 0.0
  %v4688 = vmax.f32 %v4387, 0.0
  %v4689 = vmax.f32 %v2461, 0.0
  %v4690 = vmax.f32 %v2463, 0.0
  %v4691 = vmax.f32 %v2847, 0.0
  %v4692 = vmax.f32 %v2849, 0.0
  %v4693 = vmax.f32 %v3233, 0.0
  %v4694 = vmax.f32 %v3235, 0.0
  %v4695 = vmax.f32 %v3619, 0.0
  %v4696 = vmax.f32 %v3621, 0.0
  %v4697 = vmax.f32 %v4005, 0.0
  %v4698 = vmax.f32 %v4007, 0.0
  %v4699 = vmax.f32 %v4391, 0.0
  %v4700 = vmax.f32 %v4393, 0.0
  %v4701 = vmax.f32 %v2465, 0.0
  %v4702 = vmax.f32 %v2467, 0.0
  %v4703 = vmax.f32 %v2851, 0.0
  %v4704 = vmax.f32 %v2853, 0.0
  %v4705 = vmax.f32 %v3237, 0.0
  %v4706 = vmax.f32 %v3239, 0.0
  %v4707 = vmax.f32 %v3623, 0.0
  %v4708 = vmax.f32 %v3625, 0.0
  %v4709 = vmax.f32 %v4009, 0.0
  %v4710 = vmax.f32 %v4011, 0.0
  %v4711 = vmax.f32 %v4395, 0.0
  %v4712 = vmax.f32 %v4397, 0.0
  %v4713 = vmax.f32 %v2471, 0.0
  %v4714 = vmax.f32 %v2473, 0.0
  %v4715 = vmax.f32 %v2857, 0.0
  %v4716 = vmax.f32 %v2859, 0.0
  %v4717 = vmax.f32 %v3243, 0.0
  %v4718 = vmax.f32 %v3245, 0.0
  %v4719 = vmax.f32 %v3629, 0.0
  %v4720 = vmax.f32 %v3631, 0.0
  %v4721 = vmax.f32 %v4015, 0.0
  %v4722 = vmax.f32 %v4017, 0.0
  %v4723 = vmax.f32 %v4401, 0.0
  %v4724 = vmax.f32 %v4403, 0.0
  %v4725 = vmax.f32 %v2475, 0.0
  %v4726 = vmax.f32 %v2477, 0.0
  %v4727 = vmax.f32 %v2861, 0.0
  %v4728 = vmax.f32 %v2863, 0.0
  %v4729 = vmax.f32 %v3247, 0.0
  %v4730 = vmax.f32 %v3249, 0.0
  %v4731 = vmax.f32 %v3633, 0.0
  %v4732 = vmax.f32 %v3635, 0.0
  %v4733 = vmax.f32 %v4019, 0.0
  %v4734 = vmax.f32 %v4021, 0.0
  %v4735 = vmax.f32 %v4405, 0.0
  %v4736 = vmax.f32 %v4407, 0.0
  %v4737 = vmax.f32 %v2481, 0.0
  %v4738 = vmax.f32 %v2483, 0.0
  %v4739 = vmax.f32 %v2867, 0.0
  %v4740 = vmax.f32 %v2869, 0.0
  %v4741 = vmax.f32 %v3253, 0.0
  %v4742 = vmax.f32 %v3255, 0.0
  %v4743 = vmax.f32 %v3639, 0.0
  %v4744 = vmax.f32 %v3641, 0.0
  %v4745 = vmax.f32 %v4025, 0.0
  %v4746 = vmax.f32 %v4027, 0.0
  %v4747 = vmax.f32 %v4411, 0.0
  %v4748 = vmax.f32 %v4413, 0.0
  %v4749 = vmax.f32 %v2485, 0.0
  %v4750 = vmax.f32 %v2487, 0.0
  %v4751 = vmax.f32 %v2871, 0.0
  %v4752 = vmax.f32 %v2873, 0.0
  %v4753 = vmax.f32 %v3257, 0.0
  %v4754 = vmax.f32 %v3259, 0.0
  %v4755 = vmax.f32 %v3643, 0.0
  %v4756 = vmax.f32 %v3645, 0.0
  %v4757 = vmax.f32 %v4029, 0.0
  %v4758 = vmax.f32 %v4031, 0.0
  %v4759 = vmax.f32 %v4415, 0.0
  %v4760 = vmax.f32 %v4417, 0.0
  %v4761 = vmax.f32 %v2491, 0.0
  %v4762 = vmax.f32 %v2493, 0.0
  %v4763 = vmax.f32 %v2877, 0.0
  %v4764 = vmax.f32 %v2879, 0.0
  %v4765 = vmax.f32 %v3263, 0.0
  %v4766 = vmax.f32 %v3265, 0.0
  %v4767 = vmax.f32 %v3649, 0.0
  %v4768 = vmax.f32 %v3651, 0.0
  %v4769 = vmax.f32 %v4035, 0.0
  %v4770 = vmax.f32 %v4037, 0.0
  %v4771 = vmax.f32 %v4421, 0.0
  %v4772 = vmax.f32 %v4423, 0.0
  %v4773 = vmax.f32 %v2495, 0.0
  %v4774 = vmax.f32 %v2497, 0.0
  %v4775 = vmax.f32 %v2881, 0.0
  %v4776 = vmax.f32 %v2883, 0.0
  %v4777 = vmax.f32 %v3267, 0.0
  %v4778 = vmax.f32 %v3269, 0.0
  %v4779 = vmax.f32 %v3653, 0.0
  %v4780 = vmax.f32 %v3655, 0.0
  %v4781 = vmax.f32 %v4039, 0.0
  %v4782 = vmax.f32 %v4041, 0.0
  %v4783 = vmax.f32 %v4425, 0.0
  %v4784 = vmax.f32 %v4427, 0.0
  %v4785 = vmax.f32 %v2501, 0.0
  %v4786 = vmax.f32 %v2503, 0.0
  %v4787 = vmax.f32 %v2887, 0.0
  %v4788 = vmax.f32 %v2889, 0.0
  %v4789 = vmax.f32 %v3273, 0.0
  %v4790 = vmax.f32 %v3275, 0.0
  %v4791 = vmax.f32 %v3659, 0.0
  %v4792 = vmax.f32 %v3661, 0.0
  %v4793 = vmax.f32 %v4045, 0.0
  %v4794 = vmax.f32 %v4047, 0.0
  %v4795 = vmax.f32 %v4431, 0.0
  %v4796 = vmax.f32 %v4433, 0.0
  %v4797 = vmax.f32 %v2505, 0.0
  %v4798 = vmax.f32 %v2507, 0.0
  %v4799 = vmax.f32 %v2891, 0.0
  %v4800 = vmax.f32 %v2893, 0.0
  %v4801 = vmax.f32 %v3277, 0.0
  %v4802 = vmax.f32 %v3279, 0.0
  %v4803 = vmax.f32 %v3663, 0.0
  %v4804 = vmax.f32 %v3665, 0.0
  %v4805 = vmax.f32 %v4049, 0.0
  %v4806 = vmax.f32 %v4051, 0.0
  %v4807 = vmax.f32 %v4435, 0.0
  %v4808 = vmax.f32 %v4437, 0.0
  %v4809 = vmax.f32 %v2511, 0.0
  %v4810 = vmax.f32 %v2513, 0.0
  %v4811 = vmax.f32 %v2897, 0.0
  %v4812 = vmax.f32 %v2899, 0.0
  %v4813 = vmax.f32 %v3283, 0.0
  %v4814 = vmax.f32 %v3285, 0.0
  %v4815 = vmax.f32 %v3669, 0.0
  %v4816 = vmax.f32 %v3671, 0.0
  %v4817 = vmax.f32 %v4055, 0.0
  %v4818 = vmax.f32 %v4057, 0.0
  %v4819 = vmax.f32 %v4441, 0.0
  %v4820 = vmax.f32 %v4443, 0.0
  %v4821 = vmax.f32 %v2515, 0.0
  %v4822 = vmax.f32 %v2517, 0.0
  %v4823 = vmax.f32 %v2901, 0.0
  %v4824 = vmax.f32 %v2903, 0.0
  %v4825 = vmax.f32 %v3287, 0.0
  %v4826 = vmax.f32 %v3289, 0.0
  %v4827 = vmax.f32 %v3673, 0.0
  %v4828 = vmax.f32 %v3675, 0.0
  %v4829 = vmax.f32 %v4059, 0.0
  %v4830 = vmax.f32 %v4061, 0.0
  %v4831 = vmax.f32 %v4445, 0.0
  %v4832 = vmax.f32 %v4447, 0.0
  %v4833 = vpack.c.bf16 %v4461, %v4449
  %v4834 = vpack.c.bf16 %v4462, %v4450
  %v4835 = vpack.c.bf16 %v4463, %v4451
  %v4836 = vpack.c.bf16 %v4464, %v4452
  %v4837 = vpack.c.bf16 %v4465, %v4453
  %v4838 = vpack.c.bf16 %v4466, %v4454
  %v4839 = vpack.c.bf16 %v4467, %v4455
  %v4840 = vpack.c.bf16 %v4468, %v4456
  %v4841 = vpack.c.bf16 %v4469, %v4457
  %v4842 = vpack.c.bf16 %v4470, %v4458
  %v4843 = vpack.c.bf16 %v4471, %v4459
  %v4844 = vpack.c.bf16 %v4472, %v4460
  %v4845 = vpack.c.bf16 %v4485, %v4473
  %v4846 = vpack.c.bf16 %v4486, %v4474
  %v4847 = vpack.c.bf16 %v4487, %v4475
  %v4848 = vpack.c.bf16 %v4488, %v4476
  %v4849 = vpack.c.bf16 %v4489, %v4477
  %v4850 = vpack.c.bf16 %v4490, %v4478
  %v4851 = vpack.c.bf16 %v4491, %v4479
  %v4852 = vpack.c.bf16 %v4492, %v4480
  %v4853 = vpack.c.bf16 %v4493, %v4481
  %v4854 = vpack.c.bf16 %v4494, %v4482
  %v4855 = vpack.c.bf16 %v4495, %v4483
  %v4856 = vpack.c.bf16 %v4496, %v4484
  %v4857 = vpack.c.bf16 %v4509, %v4497
  %v4858 = vpack.c.bf16 %v4510, %v4498
  %v4859 = vpack.c.bf16 %v4511, %v4499
  %v4860 = vpack.c.bf16 %v4512, %v4500
  %v4861 = vpack.c.bf16 %v4513, %v4501
  %v4862 = vpack.c.bf16 %v4514, %v4502
  %v4863 = vpack.c.bf16 %v4515, %v4503
  %v4864 = vpack.c.bf16 %v4516, %v4504
  %v4865 = vpack.c.bf16 %v4517, %v4505
  %v4866 = vpack.c.bf16 %v4518, %v4506
  %v4867 = vpack.c.bf16 %v4519, %v4507
  %v4868 = vpack.c.bf16 %v4520, %v4508
  %v4869 = vpack.c.bf16 %v4533, %v4521
  %v4870 = vpack.c.bf16 %v4534, %v4522
  %v4871 = vpack.c.bf16 %v4535, %v4523
  %v4872 = vpack.c.bf16 %v4536, %v4524
  %v4873 = vpack.c.bf16 %v4537, %v4525
  %v4874 = vpack.c.bf16 %v4538, %v4526
  %v4875 = vpack.c.bf16 %v4539, %v4527
  %v4876 = vpack.c.bf16 %v4540, %v4528
  %v4877 = vpack.c.bf16 %v4541, %v4529
  %v4878 = vpack.c.bf16 %v4542, %v4530
  %v4879 = vpack.c.bf16 %v4543, %v4531
  %v4880 = vpack.c.bf16 %v4544, %v4532
  %v4881 = vpack.c.bf16 %v4557, %v4545
  %v4882 = vpack.c.bf16 %v4558, %v4546
  %v4883 = vpack.c.bf16 %v4559, %v4547
  %v4884 = vpack.c.bf16 %v4560, %v4548
  %v4885 = vpack.c.bf16 %v4561, %v4549
  %v4886 = vpack.c.bf16 %v4562, %v4550
  %v4887 = vpack.c.bf16 %v4563, %v4551
  %v4888 = vpack.c.bf16 %v4564, %v4552
  %v4889 = vpack.c.bf16 %v4565, %v4553
  %v4890 = vpack.c.bf16 %v4566, %v4554
  %v4891 = vpack.c.bf16 %v4567, %v4555
  %v4892 = vpack.c.bf16 %v4568, %v4556
  %v4893 = vpack.c.bf16 %v4581, %v4569
  %v4894 = vpack.c.bf16 %v4582, %v4570
  %v4895 = vpack.c.bf16 %v4583, %v4571
  %v4896 = vpack.c.bf16 %v4584, %v4572
  %v4897 = vpack.c.bf16 %v4585, %v4573
  %v4898 = vpack.c.bf16 %v4586, %v4574
  %v4899 = vpack.c.bf16 %v4587, %v4575
  %v4900 = vpack.c.bf16 %v4588, %v4576
  %v4901 = vpack.c.bf16 %v4589, %v4577
  %v4902 = vpack.c.bf16 %v4590, %v4578
  %v4903 = vpack.c.bf16 %v4591, %v4579
  %v4904 = vpack.c.bf16 %v4592, %v4580
  %v4905 = vpack.c.bf16 %v4605, %v4593
  %v4906 = vpack.c.bf16 %v4606, %v4594
  %v4907 = vpack.c.bf16 %v4607, %v4595
  %v4908 = vpack.c.bf16 %v4608, %v4596
  %v4909 = vpack.c.bf16 %v4609, %v4597
  %v4910 = vpack.c.bf16 %v4610, %v4598
  %v4911 = vpack.c.bf16 %v4611, %v4599
  %v4912 = vpack.c.bf16 %v4612, %v4600
  %v4913 = vpack.c.bf16 %v4613, %v4601
  %v4914 = vpack.c.bf16 %v4614, %v4602
  %v4915 = vpack.c.bf16 %v4615, %v4603
  %v4916 = vpack.c.bf16 %v4616, %v4604
  %v4917 = vpack.c.bf16 %v4629, %v4617
  %v4918 = vpack.c.bf16 %v4630, %v4618
  %v4919 = vpack.c.bf16 %v4631, %v4619
  %v4920 = vpack.c.bf16 %v4632, %v4620
  %v4921 = vpack.c.bf16 %v4633, %v4621
  %v4922 = vpack.c.bf16 %v4634, %v4622
  %v4923 = vpack.c.bf16 %v4635, %v4623
  %v4924 = vpack.c.bf16 %v4636, %v4624
  %v4925 = vpack.c.bf16 %v4637, %v4625
  %v4926 = vpack.c.bf16 %v4638, %v4626
  %v4927 = vpack.c.bf16 %v4639, %v4627
  %v4928 = vpack.c.bf16 %v4640, %v4628
  %v4929 = vpack.c.bf16 %v4653, %v4641
  %v4930 = vpack.c.bf16 %v4654, %v4642
  %v4931 = vpack.c.bf16 %v4655, %v4643
  %v4932 = vpack.c.bf16 %v4656, %v4644
  %v4933 = vpack.c.bf16 %v4657, %v4645
  %v4934 = vpack.c.bf16 %v4658, %v4646
  %v4935 = vpack.c.bf16 %v4659, %v4647
  %v4936 = vpack.c.bf16 %v4660, %v4648
  %v4937 = vpack.c.bf16 %v4661, %v4649
  %v4938 = vpack.c.bf16 %v4662, %v4650
  %v4939 = vpack.c.bf16 %v4663, %v4651
  %v4940 = vpack.c.bf16 %v4664, %v4652
  %v4941 = vpack.c.bf16 %v4677, %v4665
  %v4942 = vpack.c.bf16 %v4678, %v4666
  %v4943 = vpack.c.bf16 %v4679, %v4667
  %v4944 = vpack.c.bf16 %v4680, %v4668
  %v4945 = vpack.c.bf16 %v4681, %v4669
  %v4946 = vpack.c.bf16 %v4682, %v4670
  %v4947 = vpack.c.bf16 %v4683, %v4671
  %v4948 = vpack.c.bf16 %v4684, %v4672
  %v4949 = vpack.c.bf16 %v4685, %v4673
  %v4950 = vpack.c.bf16 %v4686, %v4674
  %v4951 = vpack.c.bf16 %v4687, %v4675
  %v4952 = vpack.c.bf16 %v4688, %v4676
  %v4953 = vpack.c.bf16 %v4701, %v4689
  %v4954 = vpack.c.bf16 %v4702, %v4690
  %v4955 = vpack.c.bf16 %v4703, %v4691
  %v4956 = vpack.c.bf16 %v4704, %v4692
  %v4957 = vpack.c.bf16 %v4705, %v4693
  %v4958 = vpack.c.bf16 %v4706, %v4694
  %v4959 = vpack.c.bf16 %v4707, %v4695
  %v4960 = vpack.c.bf16 %v4708, %v4696
  %v4961 = vpack.c.bf16 %v4709, %v4697
  %v4962 = vpack.c.bf16 %v4710, %v4698
  %v4963 = vpack.c.bf16 %v4711, %v4699
  %v4964 = vpack.c.bf16 %v4712, %v4700
  %v4965 = vpack.c.bf16 %v4725, %v4713
  %v4966 = vpack.c.bf16 %v4726, %v4714
  %v4967 = vpack.c.bf16 %v4727, %v4715
  %v4968 = vpack.c.bf16 %v4728, %v4716
  %v4969 = vpack.c.bf16 %v4729, %v4717
  %v4970 = vpack.c.bf16 %v4730, %v4718
  %v4971 = vpack.c.bf16 %v4731, %v4719
  %v4972 = vpack.c.bf16 %v4732, %v4720
  %v4973 = vpack.c.bf16 %v4733, %v4721
  %v4974 = vpack.c.bf16 %v4734, %v4722
  %v4975 = vpack.c.bf16 %v4735, %v4723
  %v4976 = vpack.c.bf16 %v4736, %v4724
  %v4977 = vpack.c.bf16 %v4749, %v4737
  %v4978 = vpack.c.bf16 %v4750, %v4738
  %v4979 = vpack.c.bf16 %v4751, %v4739
  %v4980 = vpack.c.bf16 %v4752, %v4740
  %v4981 = vpack.c.bf16 %v4753, %v4741
  %v4982 = vpack.c.bf16 %v4754, %v4742
  %v4983 = vpack.c.bf16 %v4755, %v4743
  %v4984 = vpack.c.bf16 %v4756, %v4744
  %v4985 = vpack.c.bf16 %v4757, %v4745
  %v4986 = vpack.c.bf16 %v4758, %v4746
  %v4987 = vpack.c.bf16 %v4759, %v4747
  %v4988 = vpack.c.bf16 %v4760, %v4748
  %v4989 = vpack.c.bf16 %v4773, %v4761
  %v4990 = vpack.c.bf16 %v4774, %v4762
  %v4991 = vpack.c.bf16 %v4775, %v4763
  %v4992 = vpack.c.bf16 %v4776, %v4764
  %v4993 = vpack.c.bf16 %v4777, %v4765
  %v4994 = vpack.c.bf16 %v4778, %v4766
  %v4995 = vpack.c.bf16 %v4779, %v4767
  %v4996 = vpack.c.bf16 %v4780, %v4768
  %v4997 = vpack.c.bf16 %v4781, %v4769
  %v4998 = vpack.c.bf16 %v4782, %v4770
  %v4999 = vpack.c.bf16 %v4783, %v4771
  %v5000 = vpack.c.bf16 %v4784, %v4772
  %v5001 = vpack.c.bf16 %v4797, %v4785
  %v5002 = vpack.c.bf16 %v4798, %v4786
  %v5003 = vpack.c.bf16 %v4799, %v4787
  %v5004 = vpack.c.bf16 %v4800, %v4788
  %v5005 = vpack.c.bf16 %v4801, %v4789
  %v5006 = vpack.c.bf16 %v4802, %v4790
  %v5007 = vpack.c.bf16 %v4803, %v4791
  %v5008 = vpack.c.bf16 %v4804, %v4792
  %v5009 = vpack.c.bf16 %v4805, %v4793
  %v5010 = vpack.c.bf16 %v4806, %v4794
  %v5011 = vpack.c.bf16 %v4807, %v4795
  %v5012 = vpack.c.bf16 %v4808, %v4796
  %v5013 = vpack.c.bf16 %v4821, %v4809
  %v5014 = vpack.c.bf16 %v4822, %v4810
  %v5015 = vpack.c.bf16 %v4823, %v4811
  %v5016 = vpack.c.bf16 %v4824, %v4812
  %v5017 = vpack.c.bf16 %v4825, %v4813
  %v5018 = vpack.c.bf16 %v4826, %v4814
  %v5019 = vpack.c.bf16 %v4827, %v4815
  %v5020 = vpack.c.bf16 %v4828, %v4816
  %v5021 = vpack.c.bf16 %v4829, %v4817
  %v5022 = vpack.c.bf16 %v4830, %v4818
  %v5023 = vpack.c.bf16 %v4831, %v4819
  %v5024 = vpack.c.bf16 %v4832, %v4820
  %v5025 = vld [vmem:[%s3] sm:$0xff]
  %v5026 = vld [vmem:[%s3 + $0x8] sm:$0xf]
  %v5027 = vld [vmem:[%s3 + $0xc] sm:$0xff]
  %v5028 = vld [vmem:[%s3 + $0x14] sm:$0xf]
  %v5029 = vld [vmem:[%s3 + $0x18] sm:$0xff]
  %v5030 = vld [vmem:[%s3 + $0x20] sm:$0xf]
  %v5031 = vld [vmem:[%s3 + $0x24] sm:$0xff]
  %v5032 = vld [vmem:[%s3 + $0x2c] sm:$0xf]
  %v5033 = vld [vmem:[%s3 + $0x30] sm:$0xff]
  %v5034 = vld [vmem:[%s3 + $0x38] sm:$0xf]
  %v5035 = vld [vmem:[%s3 + $0x3c] sm:$0xff]
  %v5036 = vld [vmem:[%s3 + $0x44] sm:$0xf]
  %v5037 = vld [vmem:[%s3 + $0x48] sm:$0xff]
  %v5038 = vld [vmem:[%s3 + $0x50] sm:$0xf]
  %v5039 = vld [vmem:[%s3 + $0x54] sm:$0xff]
  %v5040 = vld [vmem:[%s3 + $0x5c] sm:$0xf]
  %v5041 = vld [vmem:[%s3 + $0x60] sm:$0xff]
  %v5042 = vld [vmem:[%s3 + $0x68] sm:$0xf]
  %v5043 = vld [vmem:[%s3 + $0x6c] sm:$0xff]
  %v5044 = vld [vmem:[%s3 + $0x74] sm:$0xf]
  %v5045 = vld [vmem:[%s3 + $0x78] sm:$0xff]
  %v5046 = vld [vmem:[%s3 + $0x80] sm:$0xf]
  %v5047 = vld [vmem:[%s3 + $0x84] sm:$0xff]
  %v5048 = vld [vmem:[%s3 + $0x8c] sm:$0xf]
  %v5049 = vld [vmem:[%s3 + $0x90] sm:$0xff]
  %v5050 = vld [vmem:[%s3 + $0x98] sm:$0xf]
  %v5051 = vld [vmem:[%s3 + $0x9c] sm:$0xff]
  %v5052 = vld [vmem:[%s3 + $0xa4] sm:$0xf]
  %v5053 = vld [vmem:[%s3 + $0xa8] sm:$0xff]
  %v5054 = vld [vmem:[%s3 + $0xb0] sm:$0xf]
  %v5055 = vld [vmem:[%s3 + $0xb4] sm:$0xff]
  %v5056 = vld [vmem:[%s3 + $0xbc] sm:$0xf]
  %v5057 = vld [vmem:[%s3 + $0xc0] sm:$0xff]
  %v5058 = vld [vmem:[%s3 + $0xc8] sm:$0xf]
  %v5059 = vld [vmem:[%s3 + $0xcc] sm:$0xff]
  %v5060 = vld [vmem:[%s3 + $0xd4] sm:$0xf]
  %v5061 = vld [vmem:[%s3 + $0xd8] sm:$0xff]
  %v5062 = vld [vmem:[%s3 + $0xe0] sm:$0xf]
  %v5063 = vld [vmem:[%s3 + $0xe4] sm:$0xff]
  %v5064 = vld [vmem:[%s3 + $0xec] sm:$0xf]
  %v5065 = vld [vmem:[%s3 + $0xf0] sm:$0xff]
  %v5066 = vld [vmem:[%s3 + $0xf8] sm:$0xf]
  %v5067 = vld [vmem:[%s3 + $0xfc] sm:$0xff]
  %v5068 = vld [vmem:[%s3 + $0x104] sm:$0xf]
  %v5069 = vld [vmem:[%s3 + $0x108] sm:$0xff]
  %v5070 = vld [vmem:[%s3 + $0x110] sm:$0xf]
  %v5071 = vld [vmem:[%s3 + $0x114] sm:$0xff]
  %v5072 = vld [vmem:[%s3 + $0x11c] sm:$0xf]
  %v5073 = vld [vmem:[%s3 + $0x120] sm:$0xff]
  %v5074 = vld [vmem:[%s3 + $0x128] sm:$0xf]
  %v5075 = vld [vmem:[%s3 + $0x12c] sm:$0xff]
  %v5076 = vld [vmem:[%s3 + $0x134] sm:$0xf]
  %v5077 = vld [vmem:[%s3 + $0x138] sm:$0xff]
  %v5078 = vld [vmem:[%s3 + $0x140] sm:$0xf]
  %v5079 = vld [vmem:[%s3 + $0x144] sm:$0xff]
  %v5080 = vld [vmem:[%s3 + $0x14c] sm:$0xf]
  %v5081 = vld [vmem:[%s3 + $0x150] sm:$0xff]
  %v5082 = vld [vmem:[%s3 + $0x158] sm:$0xf]
  %v5083 = vld [vmem:[%s3 + $0x15c] sm:$0xff]
  %v5084 = vld [vmem:[%s3 + $0x164] sm:$0xf]
  %v5085 = vld [vmem:[%s3 + $0x168] sm:$0xff]
  %v5086 = vld [vmem:[%s3 + $0x170] sm:$0xf]
  %v5087 = vld [vmem:[%s3 + $0x174] sm:$0xff]
  %v5088 = vld [vmem:[%s3 + $0x17c] sm:$0xf]
  %v5089 = vld [vmem:[%s3 + $0x180] sm:$0xff]
  %v5090 = vld [vmem:[%s3 + $0x188] sm:$0xf]
  %v5091 = vld [vmem:[%s3 + $0x18c] sm:$0xff]
  %v5092 = vld [vmem:[%s3 + $0x194] sm:$0xf]
  %v5093 = vld [vmem:[%s3 + $0x198] sm:$0xff]
  %v5094 = vld [vmem:[%s3 + $0x1a0] sm:$0xf]
  %v5095 = vld [vmem:[%s3 + $0x1a4] sm:$0xff]
  %v5096 = vld [vmem:[%s3 + $0x1ac] sm:$0xf]
  %v5097 = vld [vmem:[%s3 + $0x1b0] sm:$0xff]
  %v5098 = vld [vmem:[%s3 + $0x1b8] sm:$0xf]
  %v5099 = vld [vmem:[%s3 + $0x1bc] sm:$0xff]
  %v5100 = vld [vmem:[%s3 + $0x1c4] sm:$0xf]
  %v5101 = vld [vmem:[%s3 + $0x1c8] sm:$0xff]
  %v5102 = vld [vmem:[%s3 + $0x1d0] sm:$0xf]
  %v5103 = vld [vmem:[%s3 + $0x1d4] sm:$0xff]
  %v5104 = vld [vmem:[%s3 + $0x1dc] sm:$0xf]
  %v5105 = vld [vmem:[%s3 + $0x1e0] sm:$0xff]
  %v5106 = vld [vmem:[%s3 + $0x1e8] sm:$0xf]
  %v5107 = vld [vmem:[%s3 + $0x1ec] sm:$0xff]
  %v5108 = vld [vmem:[%s3 + $0x1f4] sm:$0xf]
  %v5109 = vld [vmem:[%s3 + $0x1f8] sm:$0xff]
  %v5110 = vld [vmem:[%s3 + $0x200] sm:$0xf]
  %v5111 = vld [vmem:[%s3 + $0x204] sm:$0xff]
  %v5112 = vld [vmem:[%s3 + $0x20c] sm:$0xf]
  %v5113 = vld [vmem:[%s3 + $0x210] sm:$0xff]
  %v5114 = vld [vmem:[%s3 + $0x218] sm:$0xf]
  %v5115 = vld [vmem:[%s3 + $0x21c] sm:$0xff]
  %v5116 = vld [vmem:[%s3 + $0x224] sm:$0xf]
  %v5117 = vld [vmem:[%s3 + $0x228] sm:$0xff]
  %v5118 = vld [vmem:[%s3 + $0x230] sm:$0xf]
  %v5119 = vld [vmem:[%s3 + $0x234] sm:$0xff]
  %v5120 = vld [vmem:[%s3 + $0x23c] sm:$0xf]
  %v5121 = vld [vmem:[%s3 + $0x240] sm:$0xff]
  %v5122 = vld [vmem:[%s3 + $0x248] sm:$0xf]
  %v5123 = vld [vmem:[%s3 + $0x24c] sm:$0xff]
  %v5124 = vld [vmem:[%s3 + $0x254] sm:$0xf]
  %v5125 = vld [vmem:[%s3 + $0x258] sm:$0xff]
  %v5126 = vld [vmem:[%s3 + $0x260] sm:$0xf]
  %v5127 = vld [vmem:[%s3 + $0x264] sm:$0xff]
  %v5128 = vld [vmem:[%s3 + $0x26c] sm:$0xf]
  %v5129 = vld [vmem:[%s3 + $0x270] sm:$0xff]
  %v5130 = vld [vmem:[%s3 + $0x278] sm:$0xf]
  %v5131 = vld [vmem:[%s3 + $0x27c] sm:$0xff]
  %v5132 = vld [vmem:[%s3 + $0x284] sm:$0xf]
  %v5133 = vld [vmem:[%s3 + $0x288] sm:$0xff]
  %v5134 = vld [vmem:[%s3 + $0x290] sm:$0xf]
  %v5135 = vld [vmem:[%s3 + $0x294] sm:$0xff]
  %v5136 = vld [vmem:[%s3 + $0x29c] sm:$0xf]
  %v5137 = vld [vmem:[%s3 + $0x2a0] sm:$0xff]
  %v5138 = vld [vmem:[%s3 + $0x2a8] sm:$0xf]
  %v5139 = vld [vmem:[%s3 + $0x2ac] sm:$0xff]
  %v5140 = vld [vmem:[%s3 + $0x2b4] sm:$0xf]
  %v5141 = vld [vmem:[%s3 + $0x2b8] sm:$0xff]
  %v5142 = vld [vmem:[%s3 + $0x2c0] sm:$0xf]
  %v5143 = vld [vmem:[%s3 + $0x2c4] sm:$0xff]
  %v5144 = vld [vmem:[%s3 + $0x2cc] sm:$0xf]
  %v5145 = vld [vmem:[%s3 + $0x2d0] sm:$0xff]
  %v5146 = vld [vmem:[%s3 + $0x2d8] sm:$0xf]
  %v5147 = vld [vmem:[%s3 + $0x2dc] sm:$0xff]
  %v5148 = vld [vmem:[%s3 + $0x2e4] sm:$0xf]
  %v5149 = vld [vmem:[%s3 + $0x2e8] sm:$0xff]
  %v5150 = vld [vmem:[%s3 + $0x2f0] sm:$0xf]
  %v5151 = vld [vmem:[%s3 + $0x2f4] sm:$0xff]
  %v5152 = vld [vmem:[%s3 + $0x2fc] sm:$0xf]
  %v5153 = vld [vmem:[%s3 + $0x300] sm:$0xff]
  %v5154 = vld [vmem:[%s3 + $0x308] sm:$0xf]
  %v5155 = vld [vmem:[%s3 + $0x30c] sm:$0xff]
  %v5156 = vld [vmem:[%s3 + $0x314] sm:$0xf]
  %v5157 = vld [vmem:[%s3 + $0x318] sm:$0xff]
  %v5158 = vld [vmem:[%s3 + $0x320] sm:$0xf]
  %v5159 = vld [vmem:[%s3 + $0x324] sm:$0xff]
  %v5160 = vld [vmem:[%s3 + $0x32c] sm:$0xf]
  %v5161 = vld [vmem:[%s3 + $0x330] sm:$0xff]
  %v5162 = vld [vmem:[%s3 + $0x338] sm:$0xf]
  %v5163 = vld [vmem:[%s3 + $0x33c] sm:$0xff]
  %v5164 = vld [vmem:[%s3 + $0x344] sm:$0xf]
  %v5165 = vld [vmem:[%s3 + $0x348] sm:$0xff]
  %v5166 = vld [vmem:[%s3 + $0x350] sm:$0xf]
  %v5167 = vld [vmem:[%s3 + $0x354] sm:$0xff]
  %v5168 = vld [vmem:[%s3 + $0x35c] sm:$0xf]
  %v5169 = vld [vmem:[%s3 + $0x360] sm:$0xff]
  %v5170 = vld [vmem:[%s3 + $0x368] sm:$0xf]
  %v5171 = vld [vmem:[%s3 + $0x36c] sm:$0xff]
  %v5172 = vld [vmem:[%s3 + $0x374] sm:$0xf]
  %v5173 = vld [vmem:[%s3 + $0x378] sm:$0xff]
  %v5174 = vld [vmem:[%s3 + $0x380] sm:$0xf]
  %v5175 = vld [vmem:[%s3 + $0x384] sm:$0xff]
  %v5176 = vld [vmem:[%s3 + $0x38c] sm:$0xf]
  %v5177 = vld [vmem:[%s3 + $0x390] sm:$0xff]
  %v5178 = vld [vmem:[%s3 + $0x398] sm:$0xf]
  %v5179 = vld [vmem:[%s3 + $0x39c] sm:$0xff]
  %v5180 = vld [vmem:[%s3 + $0x3a4] sm:$0xf]
  %v5181 = vld [vmem:[%s3 + $0x3a8] sm:$0xff]
  %v5182 = vld [vmem:[%s3 + $0x3b0] sm:$0xf]
  %v5183 = vld [vmem:[%s3 + $0x3b4] sm:$0xff]
  %v5184 = vld [vmem:[%s3 + $0x3bc] sm:$0xf]
  %v5185 = vld [vmem:[%s3 + $0x3c0] sm:$0xff]
  %v5186 = vld [vmem:[%s3 + $0x3c8] sm:$0xf]
  %v5187 = vld [vmem:[%s3 + $0x3cc] sm:$0xff]
  %v5188 = vld [vmem:[%s3 + $0x3d4] sm:$0xf]
  %v5189 = vld [vmem:[%s3 + $0x3d8] sm:$0xff]
  %v5190 = vld [vmem:[%s3 + $0x3e0] sm:$0xf]
  %v5191 = vld [vmem:[%s3 + $0x3e4] sm:$0xff]
  %v5192 = vld [vmem:[%s3 + $0x3ec] sm:$0xf]
  %v5193 = vld [vmem:[%s3 + $0x3f0] sm:$0xff]
  %v5194 = vld [vmem:[%s3 + $0x3f8] sm:$0xf]
  %v5195 = vld [vmem:[%s3 + $0x3fc] sm:$0xff]
  %v5196 = vld [vmem:[%s3 + $0x404] sm:$0xf]
  %v5197 = vld [vmem:[%s3 + $0x408] sm:$0xff]
  %v5198 = vld [vmem:[%s3 + $0x410] sm:$0xf]
  %v5199 = vld [vmem:[%s3 + $0x414] sm:$0xff]
  %v5200 = vld [vmem:[%s3 + $0x41c] sm:$0xf]
  %v5201 = vld [vmem:[%s3 + $0x420] sm:$0xff]
  %v5202 = vld [vmem:[%s3 + $0x428] sm:$0xf]
  %v5203 = vld [vmem:[%s3 + $0x42c] sm:$0xff]
  %v5204 = vld [vmem:[%s3 + $0x434] sm:$0xf]
  %v5205 = vld [vmem:[%s3 + $0x438] sm:$0xff]
  %v5206 = vld [vmem:[%s3 + $0x440] sm:$0xf]
  %v5207 = vld [vmem:[%s3 + $0x444] sm:$0xff]
  %v5208 = vld [vmem:[%s3 + $0x44c] sm:$0xf]
  %v5209 = vld [vmem:[%s3 + $0x450] sm:$0xff]
  %v5210 = vld [vmem:[%s3 + $0x458] sm:$0xf]
  %v5211 = vld [vmem:[%s3 + $0x45c] sm:$0xff]
  %v5212 = vld [vmem:[%s3 + $0x464] sm:$0xf]
  %v5213 = vld [vmem:[%s3 + $0x468] sm:$0xff]
  %v5214 = vld [vmem:[%s3 + $0x470] sm:$0xf]
  %v5215 = vld [vmem:[%s3 + $0x474] sm:$0xff]
  %v5216 = vld [vmem:[%s3 + $0x47c] sm:$0xf]
  %v5217 = vld [vmem:[%s3 + $0x480] sm:$0xff]
  %v5218 = vld [vmem:[%s3 + $0x488] sm:$0xf]
  %v5219 = vld [vmem:[%s3 + $0x48c] sm:$0xff]
  %v5220 = vld [vmem:[%s3 + $0x494] sm:$0xf]
  %v5221 = vld [vmem:[%s3 + $0x498] sm:$0xff]
  %v5222 = vld [vmem:[%s3 + $0x4a0] sm:$0xf]
  %v5223 = vld [vmem:[%s3 + $0x4a4] sm:$0xff]
  %v5224 = vld [vmem:[%s3 + $0x4ac] sm:$0xf]
  %v5225 = vld [vmem:[%s3 + $0x4b0] sm:$0xff]
  %v5226 = vld [vmem:[%s3 + $0x4b8] sm:$0xf]
  %v5227 = vld [vmem:[%s3 + $0x4bc] sm:$0xff]
  %v5228 = vld [vmem:[%s3 + $0x4c4] sm:$0xf]
  %v5229 = vld [vmem:[%s3 + $0x4c8] sm:$0xff]
  %v5230 = vld [vmem:[%s3 + $0x4d0] sm:$0xf]
  %v5231 = vld [vmem:[%s3 + $0x4d4] sm:$0xff]
  %v5232 = vld [vmem:[%s3 + $0x4dc] sm:$0xf]
  %v5233 = vld [vmem:[%s3 + $0x4e0] sm:$0xff]
  %v5234 = vld [vmem:[%s3 + $0x4e8] sm:$0xf]
  %v5235 = vld [vmem:[%s3 + $0x4ec] sm:$0xff]
  %v5236 = vld [vmem:[%s3 + $0x4f4] sm:$0xf]
  %v5237 = vld [vmem:[%s3 + $0x4f8] sm:$0xff]
  %v5238 = vld [vmem:[%s3 + $0x500] sm:$0xf]
  %v5239 = vld [vmem:[%s3 + $0x504] sm:$0xff]
  %v5240 = vld [vmem:[%s3 + $0x50c] sm:$0xf]
  %v5241 = vld [vmem:[%s3 + $0x510] sm:$0xff]
  %v5242 = vld [vmem:[%s3 + $0x518] sm:$0xf]
  %v5243 = vld [vmem:[%s3 + $0x51c] sm:$0xff]
  %v5244 = vld [vmem:[%s3 + $0x524] sm:$0xf]
  %v5245 = vld [vmem:[%s3 + $0x528] sm:$0xff]
  %v5246 = vld [vmem:[%s3 + $0x530] sm:$0xf]
  %v5247 = vld [vmem:[%s3 + $0x534] sm:$0xff]
  %v5248 = vld [vmem:[%s3 + $0x53c] sm:$0xf]
  %v5249 = vld [vmem:[%s3 + $0x540] sm:$0xff]
  %v5250 = vld [vmem:[%s3 + $0x548] sm:$0xf]
  %v5251 = vld [vmem:[%s3 + $0x54c] sm:$0xff]
  %v5252 = vld [vmem:[%s3 + $0x554] sm:$0xf]
  %v5253 = vld [vmem:[%s3 + $0x558] sm:$0xff]
  %v5254 = vld [vmem:[%s3 + $0x560] sm:$0xf]
  %v5255 = vld [vmem:[%s3 + $0x564] sm:$0xff]
  %v5256 = vld [vmem:[%s3 + $0x56c] sm:$0xf]
  %v5257 = vld [vmem:[%s3 + $0x570] sm:$0xff]
  %v5258 = vld [vmem:[%s3 + $0x578] sm:$0xf]
  %v5259 = vld [vmem:[%s3 + $0x57c] sm:$0xff]
  %v5260 = vld [vmem:[%s3 + $0x584] sm:$0xf]
  %v5261 = vld [vmem:[%s3 + $0x588] sm:$0xff]
  %v5262 = vld [vmem:[%s3 + $0x590] sm:$0xf]
  %v5263 = vld [vmem:[%s3 + $0x594] sm:$0xff]
  %v5264 = vld [vmem:[%s3 + $0x59c] sm:$0xf]
  %v5265 = vld [vmem:[%s3 + $0x5a0] sm:$0xff]
  %v5266 = vld [vmem:[%s3 + $0x5a8] sm:$0xf]
  %v5267 = vld [vmem:[%s3 + $0x5ac] sm:$0xff]
  %v5268 = vld [vmem:[%s3 + $0x5b4] sm:$0xf]
  %v5269 = vld [vmem:[%s3 + $0x5b8] sm:$0xff]
  %v5270 = vld [vmem:[%s3 + $0x5c0] sm:$0xf]
  %v5271 = vld [vmem:[%s3 + $0x5c4] sm:$0xff]
  %v5272 = vld [vmem:[%s3 + $0x5cc] sm:$0xf]
  %v5273 = vld [vmem:[%s3 + $0x5d0] sm:$0xff]
  %v5274 = vld [vmem:[%s3 + $0x5d8] sm:$0xf]
  %v5275 = vld [vmem:[%s3 + $0x5dc] sm:$0xff]
  %v5276 = vld [vmem:[%s3 + $0x5e4] sm:$0xf]
  %v5277 = vld [vmem:[%s3 + $0x5e8] sm:$0xff]
  %v5278 = vld [vmem:[%s3 + $0x5f0] sm:$0xf]
  %v5279 = vld [vmem:[%s3 + $0x5f4] sm:$0xff]
  %v5280 = vld [vmem:[%s3 + $0x5fc] sm:$0xf]
  %v5281 = vld [vmem:[%s3 + $0x600] sm:$0xff]
  %v5282 = vld [vmem:[%s3 + $0x608] sm:$0xf]
  %v5283 = vld [vmem:[%s3 + $0x60c] sm:$0xff]
  %v5284 = vld [vmem:[%s3 + $0x614] sm:$0xf]
  %v5285 = vld [vmem:[%s3 + $0x618] sm:$0xff]
  %v5286 = vld [vmem:[%s3 + $0x620] sm:$0xf]
  %v5287 = vld [vmem:[%s3 + $0x624] sm:$0xff]
  %v5288 = vld [vmem:[%s3 + $0x62c] sm:$0xf]
  %v5289 = vld [vmem:[%s3 + $0x630] sm:$0xff]
  %v5290 = vld [vmem:[%s3 + $0x638] sm:$0xf]
  %v5291 = vld [vmem:[%s3 + $0x63c] sm:$0xff]
  %v5292 = vld [vmem:[%s3 + $0x644] sm:$0xf]
  %v5293 = vld [vmem:[%s3 + $0x648] sm:$0xff]
  %v5294 = vld [vmem:[%s3 + $0x650] sm:$0xf]
  %v5295 = vld [vmem:[%s3 + $0x654] sm:$0xff]
  %v5296 = vld [vmem:[%s3 + $0x65c] sm:$0xf]
  %v5297 = vld [vmem:[%s3 + $0x660] sm:$0xff]
  %v5298 = vld [vmem:[%s3 + $0x668] sm:$0xf]
  %v5299 = vld [vmem:[%s3 + $0x66c] sm:$0xff]
  %v5300 = vld [vmem:[%s3 + $0x674] sm:$0xf]
  %v5301 = vld [vmem:[%s3 + $0x678] sm:$0xff]
  %v5302 = vld [vmem:[%s3 + $0x680] sm:$0xf]
  %v5303 = vld [vmem:[%s3 + $0x684] sm:$0xff]
  %v5304 = vld [vmem:[%s3 + $0x68c] sm:$0xf]
  %v5305 = vld [vmem:[%s3 + $0x690] sm:$0xff]
  %v5306 = vld [vmem:[%s3 + $0x698] sm:$0xf]
  %v5307 = vld [vmem:[%s3 + $0x69c] sm:$0xff]
  %v5308 = vld [vmem:[%s3 + $0x6a4] sm:$0xf]
  %v5309 = vld [vmem:[%s3 + $0x6a8] sm:$0xff]
  %v5310 = vld [vmem:[%s3 + $0x6b0] sm:$0xf]
  %v5311 = vld [vmem:[%s3 + $0x6b4] sm:$0xff]
  %v5312 = vld [vmem:[%s3 + $0x6bc] sm:$0xf]
  %v5313 = vld [vmem:[%s3 + $0x6c0] sm:$0xff]
  %v5314 = vld [vmem:[%s3 + $0x6c8] sm:$0xf]
  %v5315 = vld [vmem:[%s3 + $0x6cc] sm:$0xff]
  %v5316 = vld [vmem:[%s3 + $0x6d4] sm:$0xf]
  %v5317 = vld [vmem:[%s3 + $0x6d8] sm:$0xff]
  %v5318 = vld [vmem:[%s3 + $0x6e0] sm:$0xf]
  %v5319 = vld [vmem:[%s3 + $0x6e4] sm:$0xff]
  %v5320 = vld [vmem:[%s3 + $0x6ec] sm:$0xf]
  %v5321 = vld [vmem:[%s3 + $0x6f0] sm:$0xff]
  %v5322 = vld [vmem:[%s3 + $0x6f8] sm:$0xf]
  %v5323 = vld [vmem:[%s3 + $0x6fc] sm:$0xff]
  %v5324 = vld [vmem:[%s3 + $0x704] sm:$0xf]
  %v5325 = vld [vmem:[%s3 + $0x708] sm:$0xff]
  %v5326 = vld [vmem:[%s3 + $0x710] sm:$0xf]
  %v5327 = vld [vmem:[%s3 + $0x714] sm:$0xff]
  %v5328 = vld [vmem:[%s3 + $0x71c] sm:$0xf]
  %v5329 = vld [vmem:[%s3 + $0x720] sm:$0xff]
  %v5330 = vld [vmem:[%s3 + $0x728] sm:$0xf]
  %v5331 = vld [vmem:[%s3 + $0x72c] sm:$0xff]
  %v5332 = vld [vmem:[%s3 + $0x734] sm:$0xf]
  %v5333 = vld [vmem:[%s3 + $0x738] sm:$0xff]
  %v5334 = vld [vmem:[%s3 + $0x740] sm:$0xf]
  %v5335 = vld [vmem:[%s3 + $0x744] sm:$0xff]
  %v5336 = vld [vmem:[%s3 + $0x74c] sm:$0xf]
  %v5337 = vld [vmem:[%s3 + $0x750] sm:$0xff]
  %v5338 = vld [vmem:[%s3 + $0x758] sm:$0xf]
  %v5339 = vld [vmem:[%s3 + $0x75c] sm:$0xff]
  %v5340 = vld [vmem:[%s3 + $0x764] sm:$0xf]
  %v5341 = vld [vmem:[%s3 + $0x768] sm:$0xff]
  %v5342 = vld [vmem:[%s3 + $0x770] sm:$0xf]
  %v5343 = vld [vmem:[%s3 + $0x774] sm:$0xff]
  %v5344 = vld [vmem:[%s3 + $0x77c] sm:$0xf]
  %v5345 = vld [vmem:[%s3 + $0x780] sm:$0xff]
  %v5346 = vld [vmem:[%s3 + $0x788] sm:$0xf]
  %v5347 = vld [vmem:[%s3 + $0x78c] sm:$0xff]
  %v5348 = vld [vmem:[%s3 + $0x794] sm:$0xf]
  %v5349 = vld [vmem:[%s3 + $0x798] sm:$0xff]
  %v5350 = vld [vmem:[%s3 + $0x7a0] sm:$0xf]
  %v5351 = vld [vmem:[%s3 + $0x7a4] sm:$0xff]
  %v5352 = vld [vmem:[%s3 + $0x7ac] sm:$0xf]
  %v5353 = vld [vmem:[%s3 + $0x7b0] sm:$0xff]
  %v5354 = vld [vmem:[%s3 + $0x7b8] sm:$0xf]
  %v5355 = vld [vmem:[%s3 + $0x7bc] sm:$0xff]
  %v5356 = vld [vmem:[%s3 + $0x7c4] sm:$0xf]
  %v5357 = vld [vmem:[%s3 + $0x7c8] sm:$0xff]
  %v5358 = vld [vmem:[%s3 + $0x7d0] sm:$0xf]
  %v5359 = vld [vmem:[%s3 + $0x7d4] sm:$0xff]
  %v5360 = vld [vmem:[%s3 + $0x7dc] sm:$0xf]
  %v5361 = vld [vmem:[%s3 + $0x7e0] sm:$0xff]
  %v5362 = vld [vmem:[%s3 + $0x7e8] sm:$0xf]
  %v5363 = vld [vmem:[%s3 + $0x7ec] sm:$0xff]
  %v5364 = vld [vmem:[%s3 + $0x7f4] sm:$0xf]
  %v5365 = vld [vmem:[%s3 + $0x7f8] sm:$0xff]
  %v5366 = vld [vmem:[%s3 + $0x800] sm:$0xf]
  %v5367 = vld [vmem:[%s3 + $0x804] sm:$0xff]
  %v5368 = vld [vmem:[%s3 + $0x80c] sm:$0xf]
  %v5369 = vld [vmem:[%s3 + $0x810] sm:$0xff]
  %v5370 = vld [vmem:[%s3 + $0x818] sm:$0xf]
  %v5371 = vld [vmem:[%s3 + $0x81c] sm:$0xff]
  %v5372 = vld [vmem:[%s3 + $0x824] sm:$0xf]
  %v5373 = vld [vmem:[%s3 + $0x828] sm:$0xff]
  %v5374 = vld [vmem:[%s3 + $0x830] sm:$0xf]
  %v5375 = vld [vmem:[%s3 + $0x834] sm:$0xff]
  %v5376 = vld [vmem:[%s3 + $0x83c] sm:$0xf]
  %v5377 = vld [vmem:[%s3 + $0x840] sm:$0xff]
  %v5378 = vld [vmem:[%s3 + $0x848] sm:$0xf]
  %v5379 = vld [vmem:[%s3 + $0x84c] sm:$0xff]
  %v5380 = vld [vmem:[%s3 + $0x854] sm:$0xf]
  %v5381 = vld [vmem:[%s3 + $0x858] sm:$0xff]
  %v5382 = vld [vmem:[%s3 + $0x860] sm:$0xf]
  %v5383 = vld [vmem:[%s3 + $0x864] sm:$0xff]
  %v5384 = vld [vmem:[%s3 + $0x86c] sm:$0xf]
  %v5385 = vld [vmem:[%s3 + $0x870] sm:$0xff]
  %v5386 = vld [vmem:[%s3 + $0x878] sm:$0xf]
  %v5387 = vld [vmem:[%s3 + $0x87c] sm:$0xff]
  %v5388 = vld [vmem:[%s3 + $0x884] sm:$0xf]
  %v5389 = vld [vmem:[%s3 + $0x888] sm:$0xff]
  %v5390 = vld [vmem:[%s3 + $0x890] sm:$0xf]
  %v5391 = vld [vmem:[%s3 + $0x894] sm:$0xff]
  %v5392 = vld [vmem:[%s3 + $0x89c] sm:$0xf]
  %v5393 = vld [vmem:[%s3 + $0x8a0] sm:$0xff]
  %v5394 = vld [vmem:[%s3 + $0x8a8] sm:$0xf]
  %v5395 = vld [vmem:[%s3 + $0x8ac] sm:$0xff]
  %v5396 = vld [vmem:[%s3 + $0x8b4] sm:$0xf]
  %v5397 = vld [vmem:[%s3 + $0x8b8] sm:$0xff]
  %v5398 = vld [vmem:[%s3 + $0x8c0] sm:$0xf]
  %v5399 = vld [vmem:[%s3 + $0x8c4] sm:$0xff]
  %v5400 = vld [vmem:[%s3 + $0x8cc] sm:$0xf]
  %v5401 = vld [vmem:[%s3 + $0x8d0] sm:$0xff]
  %v5402 = vld [vmem:[%s3 + $0x8d8] sm:$0xf]
  %v5403 = vld [vmem:[%s3 + $0x8dc] sm:$0xff]
  %v5404 = vld [vmem:[%s3 + $0x8e4] sm:$0xf]
  %v5405 = vld [vmem:[%s3 + $0x8e8] sm:$0xff]
  %v5406 = vld [vmem:[%s3 + $0x8f0] sm:$0xf]
  %v5407 = vld [vmem:[%s3 + $0x8f4] sm:$0xff]
  %v5408 = vld [vmem:[%s3 + $0x8fc] sm:$0xf]
  %v5409 = vld [vmem:[%s4] sm:$0x7]
  %v5411 = vlaneseq
  %v5412 = vshrl.u32 %v5411, 7
  %v5413 = vsub.s32 0, %v5412
  %v5414 = vrot.slane %v5409, %v5413
  %v5415 = vlaneseq
  %v5416 = vshrl.u32 %v5415, 7
  %v5417 = vsub.s32 1, %v5416
  %v5418 = vrot.slane %v5409, %v5417
  %v5419 = vlaneseq
  %v5420 = vshrl.u32 %v5419, 7
  %v5421 = vsub.s32 2, %v5420
  %v5422 = vrot.slane %v5409, %v5421
  %v5810 = vunpack.c.l.b16 %v5025
  %v5811 = vunpack.c.h.b16 %v5025
  %v5812 = vunpack.c.l.b16 %v5026
  %v5813 = vunpack.c.l.b16 %v5027
  %v5814 = vunpack.c.h.b16 %v5027
  %v5815 = vunpack.c.l.b16 %v5028
  %v5816 = vunpack.c.l.b16 %v5029
  %v5817 = vunpack.c.h.b16 %v5029
  %v5818 = vunpack.c.l.b16 %v5030
  %v5819 = vunpack.c.l.b16 %v5031
  %v5820 = vunpack.c.h.b16 %v5031
  %v5821 = vunpack.c.l.b16 %v5032
  %v5822 = vunpack.c.l.b16 %v5033
  %v5823 = vunpack.c.h.b16 %v5033
  %v5824 = vunpack.c.l.b16 %v5034
  %v5825 = vunpack.c.l.b16 %v5035
  %v5826 = vunpack.c.h.b16 %v5035
  %v5827 = vunpack.c.l.b16 %v5036
  %v5828 = vunpack.c.l.b16 %v5037
  %v5829 = vunpack.c.h.b16 %v5037
  %v5830 = vunpack.c.l.b16 %v5038
  %v5831 = vunpack.c.l.b16 %v5039
  %v5832 = vunpack.c.h.b16 %v5039
  %v5833 = vunpack.c.l.b16 %v5040
  %v5834 = vunpack.c.l.b16 %v5041
  %v5835 = vunpack.c.h.b16 %v5041
  %v5836 = vunpack.c.l.b16 %v5042
  %v5837 = vunpack.c.l.b16 %v5043
  %v5838 = vunpack.c.h.b16 %v5043
  %v5839 = vunpack.c.l.b16 %v5044
  %v5840 = vunpack.c.l.b16 %v5045
  %v5841 = vunpack.c.h.b16 %v5045
  %v5842 = vunpack.c.l.b16 %v5046
  %v5843 = vunpack.c.l.b16 %v5047
  %v5844 = vunpack.c.h.b16 %v5047
  %v5845 = vunpack.c.l.b16 %v5048
  %v5846 = vunpack.c.l.b16 %v5049
  %v5847 = vunpack.c.h.b16 %v5049
  %v5848 = vunpack.c.l.b16 %v5050
  %v5849 = vunpack.c.l.b16 %v5051
  %v5850 = vunpack.c.h.b16 %v5051
  %v5851 = vunpack.c.l.b16 %v5052
  %v5852 = vunpack.c.l.b16 %v5053
  %v5853 = vunpack.c.h.b16 %v5053
  %v5854 = vunpack.c.l.b16 %v5054
  %v5855 = vunpack.c.l.b16 %v5055
  %v5856 = vunpack.c.h.b16 %v5055
  %v5857 = vunpack.c.l.b16 %v5056
  %v5858 = vunpack.c.l.b16 %v5057
  %v5859 = vunpack.c.h.b16 %v5057
  %v5860 = vunpack.c.l.b16 %v5058
  %v5861 = vunpack.c.l.b16 %v5059
  %v5862 = vunpack.c.h.b16 %v5059
  %v5863 = vunpack.c.l.b16 %v5060
  %v5864 = vunpack.c.l.b16 %v5061
  %v5865 = vunpack.c.h.b16 %v5061
  %v5866 = vunpack.c.l.b16 %v5062
  %v5867 = vunpack.c.l.b16 %v5063
  %v5868 = vunpack.c.h.b16 %v5063
  %v5869 = vunpack.c.l.b16 %v5064
  %v5870 = vunpack.c.l.b16 %v5065
  %v5871 = vunpack.c.h.b16 %v5065
  %v5872 = vunpack.c.l.b16 %v5066
  %v5873 = vunpack.c.l.b16 %v5067
  %v5874 = vunpack.c.h.b16 %v5067
  %v5875 = vunpack.c.l.b16 %v5068
  %v5876 = vunpack.c.l.b16 %v5069
  %v5877 = vunpack.c.h.b16 %v5069
  %v5878 = vunpack.c.l.b16 %v5070
  %v5879 = vunpack.c.l.b16 %v5071
  %v5880 = vunpack.c.h.b16 %v5071
  %v5881 = vunpack.c.l.b16 %v5072
  %v5882 = vunpack.c.l.b16 %v5073
  %v5883 = vunpack.c.h.b16 %v5073
  %v5884 = vunpack.c.l.b16 %v5074
  %v5885 = vunpack.c.l.b16 %v5075
  %v5886 = vunpack.c.h.b16 %v5075
  %v5887 = vunpack.c.l.b16 %v5076
  %v5888 = vunpack.c.l.b16 %v5077
  %v5889 = vunpack.c.h.b16 %v5077
  %v5890 = vunpack.c.l.b16 %v5078
  %v5891 = vunpack.c.l.b16 %v5079
  %v5892 = vunpack.c.h.b16 %v5079
  %v5893 = vunpack.c.l.b16 %v5080
  %v5894 = vunpack.c.l.b16 %v5081
  %v5895 = vunpack.c.h.b16 %v5081
  %v5896 = vunpack.c.l.b16 %v5082
  %v5897 = vunpack.c.l.b16 %v5083
  %v5898 = vunpack.c.h.b16 %v5083
  %v5899 = vunpack.c.l.b16 %v5084
  %v5900 = vunpack.c.l.b16 %v5085
  %v5901 = vunpack.c.h.b16 %v5085
  %v5902 = vunpack.c.l.b16 %v5086
  %v5903 = vunpack.c.l.b16 %v5087
  %v5904 = vunpack.c.h.b16 %v5087
  %v5905 = vunpack.c.l.b16 %v5088
  %v5906 = vunpack.c.l.b16 %v5089
  %v5907 = vunpack.c.h.b16 %v5089
  %v5908 = vunpack.c.l.b16 %v5090
  %v5909 = vunpack.c.l.b16 %v5091
  %v5910 = vunpack.c.h.b16 %v5091
  %v5911 = vunpack.c.l.b16 %v5092
  %v5912 = vunpack.c.l.b16 %v5093
  %v5913 = vunpack.c.h.b16 %v5093
  %v5914 = vunpack.c.l.b16 %v5094
  %v5915 = vunpack.c.l.b16 %v5095
  %v5916 = vunpack.c.h.b16 %v5095
  %v5917 = vunpack.c.l.b16 %v5096
  %v5918 = vunpack.c.l.b16 %v5097
  %v5919 = vunpack.c.h.b16 %v5097
  %v5920 = vunpack.c.l.b16 %v5098
  %v5921 = vunpack.c.l.b16 %v5099
  %v5922 = vunpack.c.h.b16 %v5099
  %v5923 = vunpack.c.l.b16 %v5100
  %v5924 = vunpack.c.l.b16 %v5101
  %v5925 = vunpack.c.h.b16 %v5101
  %v5926 = vunpack.c.l.b16 %v5102
  %v5927 = vunpack.c.l.b16 %v5103
  %v5928 = vunpack.c.h.b16 %v5103
  %v5929 = vunpack.c.l.b16 %v5104
  %v5930 = vunpack.c.l.b16 %v5105
  %v5931 = vunpack.c.h.b16 %v5105
  %v5932 = vunpack.c.l.b16 %v5106
  %v5933 = vunpack.c.l.b16 %v5107
  %v5934 = vunpack.c.h.b16 %v5107
  %v5935 = vunpack.c.l.b16 %v5108
  %v5936 = vunpack.c.l.b16 %v5109
  %v5937 = vunpack.c.h.b16 %v5109
  %v5938 = vunpack.c.l.b16 %v5110
  %v5939 = vunpack.c.l.b16 %v5111
  %v5940 = vunpack.c.h.b16 %v5111
  %v5941 = vunpack.c.l.b16 %v5112
  %v5942 = vunpack.c.l.b16 %v5113
  %v5943 = vunpack.c.h.b16 %v5113
  %v5944 = vunpack.c.l.b16 %v5114
  %v5945 = vunpack.c.l.b16 %v5115
  %v5946 = vunpack.c.h.b16 %v5115
  %v5947 = vunpack.c.l.b16 %v5116
  %v5948 = vunpack.c.l.b16 %v5117
  %v5949 = vunpack.c.h.b16 %v5117
  %v5950 = vunpack.c.l.b16 %v5118
  %v5951 = vunpack.c.l.b16 %v5119
  %v5952 = vunpack.c.h.b16 %v5119
  %v5953 = vunpack.c.l.b16 %v5120
  %v5954 = vunpack.c.l.b16 %v5121
  %v5955 = vunpack.c.h.b16 %v5121
  %v5956 = vunpack.c.l.b16 %v5122
  %v5957 = vunpack.c.l.b16 %v5123
  %v5958 = vunpack.c.h.b16 %v5123
  %v5959 = vunpack.c.l.b16 %v5124
  %v5960 = vunpack.c.l.b16 %v5125
  %v5961 = vunpack.c.h.b16 %v5125
  %v5962 = vunpack.c.l.b16 %v5126
  %v5963 = vunpack.c.l.b16 %v5127
  %v5964 = vunpack.c.h.b16 %v5127
  %v5965 = vunpack.c.l.b16 %v5128
  %v5966 = vunpack.c.l.b16 %v5129
  %v5967 = vunpack.c.h.b16 %v5129
  %v5968 = vunpack.c.l.b16 %v5130
  %v5969 = vunpack.c.l.b16 %v5131
  %v5970 = vunpack.c.h.b16 %v5131
  %v5971 = vunpack.c.l.b16 %v5132
  %v5972 = vunpack.c.l.b16 %v5133
  %v5973 = vunpack.c.h.b16 %v5133
  %v5974 = vunpack.c.l.b16 %v5134
  %v5975 = vunpack.c.l.b16 %v5135
  %v5976 = vunpack.c.h.b16 %v5135
  %v5977 = vunpack.c.l.b16 %v5136
  %v5978 = vunpack.c.l.b16 %v5137
  %v5979 = vunpack.c.h.b16 %v5137
  %v5980 = vunpack.c.l.b16 %v5138
  %v5981 = vunpack.c.l.b16 %v5139
  %v5982 = vunpack.c.h.b16 %v5139
  %v5983 = vunpack.c.l.b16 %v5140
  %v5984 = vunpack.c.l.b16 %v5141
  %v5985 = vunpack.c.h.b16 %v5141
  %v5986 = vunpack.c.l.b16 %v5142
  %v5987 = vunpack.c.l.b16 %v5143
  %v5988 = vunpack.c.h.b16 %v5143
  %v5989 = vunpack.c.l.b16 %v5144
  %v5990 = vunpack.c.l.b16 %v5145
  %v5991 = vunpack.c.h.b16 %v5145
  %v5992 = vunpack.c.l.b16 %v5146
  %v5993 = vunpack.c.l.b16 %v5147
  %v5994 = vunpack.c.h.b16 %v5147
  %v5995 = vunpack.c.l.b16 %v5148
  %v5996 = vunpack.c.l.b16 %v5149
  %v5997 = vunpack.c.h.b16 %v5149
  %v5998 = vunpack.c.l.b16 %v5150
  %v5999 = vunpack.c.l.b16 %v5151
  %v6000 = vunpack.c.h.b16 %v5151
  %v6001 = vunpack.c.l.b16 %v5152
  %v6002 = vunpack.c.l.b16 %v5153
  %v6003 = vunpack.c.h.b16 %v5153
  %v6004 = vunpack.c.l.b16 %v5154
  %v6005 = vunpack.c.l.b16 %v5155
  %v6006 = vunpack.c.h.b16 %v5155
  %v6007 = vunpack.c.l.b16 %v5156
  %v6008 = vunpack.c.l.b16 %v5157
  %v6009 = vunpack.c.h.b16 %v5157
  %v6010 = vunpack.c.l.b16 %v5158
  %v6011 = vunpack.c.l.b16 %v5159
  %v6012 = vunpack.c.h.b16 %v5159
  %v6013 = vunpack.c.l.b16 %v5160
  %v6014 = vunpack.c.l.b16 %v5161
  %v6015 = vunpack.c.h.b16 %v5161
  %v6016 = vunpack.c.l.b16 %v5162
  %v6017 = vunpack.c.l.b16 %v5163
  %v6018 = vunpack.c.h.b16 %v5163
  %v6019 = vunpack.c.l.b16 %v5164
  %v6020 = vunpack.c.l.b16 %v5165
  %v6021 = vunpack.c.h.b16 %v5165
  %v6022 = vunpack.c.l.b16 %v5166
  %v6023 = vunpack.c.l.b16 %v5167
  %v6024 = vunpack.c.h.b16 %v5167
  %v6025 = vunpack.c.l.b16 %v5168
  %v6026 = vunpack.c.l.b16 %v5169
  %v6027 = vunpack.c.h.b16 %v5169
  %v6028 = vunpack.c.l.b16 %v5170
  %v6029 = vunpack.c.l.b16 %v5171
  %v6030 = vunpack.c.h.b16 %v5171
  %v6031 = vunpack.c.l.b16 %v5172
  %v6032 = vunpack.c.l.b16 %v5173
  %v6033 = vunpack.c.h.b16 %v5173
  %v6034 = vunpack.c.l.b16 %v5174
  %v6035 = vunpack.c.l.b16 %v5175
  %v6036 = vunpack.c.h.b16 %v5175
  %v6037 = vunpack.c.l.b16 %v5176
  %v6038 = vunpack.c.l.b16 %v5177
  %v6039 = vunpack.c.h.b16 %v5177
  %v6040 = vunpack.c.l.b16 %v5178
  %v6041 = vunpack.c.l.b16 %v5179
  %v6042 = vunpack.c.h.b16 %v5179
  %v6043 = vunpack.c.l.b16 %v5180
  %v6044 = vunpack.c.l.b16 %v5181
  %v6045 = vunpack.c.h.b16 %v5181
  %v6046 = vunpack.c.l.b16 %v5182
  %v6047 = vunpack.c.l.b16 %v5183
  %v6048 = vunpack.c.h.b16 %v5183
  %v6049 = vunpack.c.l.b16 %v5184
  %v6050 = vunpack.c.l.b16 %v5185
  %v6051 = vunpack.c.h.b16 %v5185
  %v6052 = vunpack.c.l.b16 %v5186
  %v6053 = vunpack.c.l.b16 %v5187
  %v6054 = vunpack.c.h.b16 %v5187
  %v6055 = vunpack.c.l.b16 %v5188
  %v6056 = vunpack.c.l.b16 %v5189
  %v6057 = vunpack.c.h.b16 %v5189
  %v6058 = vunpack.c.l.b16 %v5190
  %v6059 = vunpack.c.l.b16 %v5191
  %v6060 = vunpack.c.h.b16 %v5191
  %v6061 = vunpack.c.l.b16 %v5192
  %v6062 = vunpack.c.l.b16 %v5193
  %v6063 = vunpack.c.h.b16 %v5193
  %v6064 = vunpack.c.l.b16 %v5194
  %v6065 = vunpack.c.l.b16 %v5195
  %v6066 = vunpack.c.h.b16 %v5195
  %v6067 = vunpack.c.l.b16 %v5196
  %v6068 = vunpack.c.l.b16 %v5197
  %v6069 = vunpack.c.h.b16 %v5197
  %v6070 = vunpack.c.l.b16 %v5198
  %v6071 = vunpack.c.l.b16 %v5199
  %v6072 = vunpack.c.h.b16 %v5199
  %v6073 = vunpack.c.l.b16 %v5200
  %v6074 = vunpack.c.l.b16 %v5201
  %v6075 = vunpack.c.h.b16 %v5201
  %v6076 = vunpack.c.l.b16 %v5202
  %v6077 = vunpack.c.l.b16 %v5203
  %v6078 = vunpack.c.h.b16 %v5203
  %v6079 = vunpack.c.l.b16 %v5204
  %v6080 = vunpack.c.l.b16 %v5205
  %v6081 = vunpack.c.h.b16 %v5205
  %v6082 = vunpack.c.l.b16 %v5206
  %v6083 = vunpack.c.l.b16 %v5207
  %v6084 = vunpack.c.h.b16 %v5207
  %v6085 = vunpack.c.l.b16 %v5208
  %v6086 = vunpack.c.l.b16 %v5209
  %v6087 = vunpack.c.h.b16 %v5209
  %v6088 = vunpack.c.l.b16 %v5210
  %v6089 = vunpack.c.l.b16 %v5211
  %v6090 = vunpack.c.h.b16 %v5211
  %v6091 = vunpack.c.l.b16 %v5212
  %v6092 = vunpack.c.l.b16 %v5213
  %v6093 = vunpack.c.h.b16 %v5213
  %v6094 = vunpack.c.l.b16 %v5214
  %v6095 = vunpack.c.l.b16 %v5215
  %v6096 = vunpack.c.h.b16 %v5215
  %v6097 = vunpack.c.l.b16 %v5216
  %v6098 = vunpack.c.l.b16 %v5217
  %v6099 = vunpack.c.h.b16 %v5217
  %v6100 = vunpack.c.l.b16 %v5218
  %v6101 = vunpack.c.l.b16 %v5219
  %v6102 = vunpack.c.h.b16 %v5219
  %v6103 = vunpack.c.l.b16 %v5220
  %v6104 = vunpack.c.l.b16 %v5221
  %v6105 = vunpack.c.h.b16 %v5221
  %v6106 = vunpack.c.l.b16 %v5222
  %v6107 = vunpack.c.l.b16 %v5223
  %v6108 = vunpack.c.h.b16 %v5223
  %v6109 = vunpack.c.l.b16 %v5224
  %v6110 = vunpack.c.l.b16 %v5225
  %v6111 = vunpack.c.h.b16 %v5225
  %v6112 = vunpack.c.l.b16 %v5226
  %v6113 = vunpack.c.l.b16 %v5227
  %v6114 = vunpack.c.h.b16 %v5227
  %v6115 = vunpack.c.l.b16 %v5228
  %v6116 = vunpack.c.l.b16 %v5229
  %v6117 = vunpack.c.h.b16 %v5229
  %v6118 = vunpack.c.l.b16 %v5230
  %v6119 = vunpack.c.l.b16 %v5231
  %v6120 = vunpack.c.h.b16 %v5231
  %v6121 = vunpack.c.l.b16 %v5232
  %v6122 = vunpack.c.l.b16 %v5233
  %v6123 = vunpack.c.h.b16 %v5233
  %v6124 = vunpack.c.l.b16 %v5234
  %v6125 = vunpack.c.l.b16 %v5235
  %v6126 = vunpack.c.h.b16 %v5235
  %v6127 = vunpack.c.l.b16 %v5236
  %v6128 = vunpack.c.l.b16 %v5237
  %v6129 = vunpack.c.h.b16 %v5237
  %v6130 = vunpack.c.l.b16 %v5238
  %v6131 = vunpack.c.l.b16 %v5239
  %v6132 = vunpack.c.h.b16 %v5239
  %v6133 = vunpack.c.l.b16 %v5240
  %v6134 = vunpack.c.l.b16 %v5241
  %v6135 = vunpack.c.h.b16 %v5241
  %v6136 = vunpack.c.l.b16 %v5242
  %v6137 = vunpack.c.l.b16 %v5243
  %v6138 = vunpack.c.h.b16 %v5243
  %v6139 = vunpack.c.l.b16 %v5244
  %v6140 = vunpack.c.l.b16 %v5245
  %v6141 = vunpack.c.h.b16 %v5245
  %v6142 = vunpack.c.l.b16 %v5246
  %v6143 = vunpack.c.l.b16 %v5247
  %v6144 = vunpack.c.h.b16 %v5247
  %v6145 = vunpack.c.l.b16 %v5248
  %v6146 = vunpack.c.l.b16 %v5249
  %v6147 = vunpack.c.h.b16 %v5249
  %v6148 = vunpack.c.l.b16 %v5250
  %v6149 = vunpack.c.l.b16 %v5251
  %v6150 = vunpack.c.h.b16 %v5251
  %v6151 = vunpack.c.l.b16 %v5252
  %v6152 = vunpack.c.l.b16 %v5253
  %v6153 = vunpack.c.h.b16 %v5253
  %v6154 = vunpack.c.l.b16 %v5254
  %v6155 = vunpack.c.l.b16 %v5255
  %v6156 = vunpack.c.h.b16 %v5255
  %v6157 = vunpack.c.l.b16 %v5256
  %v6158 = vunpack.c.l.b16 %v5257
  %v6159 = vunpack.c.h.b16 %v5257
  %v6160 = vunpack.c.l.b16 %v5258
  %v6161 = vunpack.c.l.b16 %v5259
  %v6162 = vunpack.c.h.b16 %v5259
  %v6163 = vunpack.c.l.b16 %v5260
  %v6164 = vunpack.c.l.b16 %v5261
  %v6165 = vunpack.c.h.b16 %v5261
  %v6166 = vunpack.c.l.b16 %v5262
  %v6167 = vunpack.c.l.b16 %v5263
  %v6168 = vunpack.c.h.b16 %v5263
  %v6169 = vunpack.c.l.b16 %v5264
  %v6170 = vunpack.c.l.b16 %v5265
  %v6171 = vunpack.c.h.b16 %v5265
  %v6172 = vunpack.c.l.b16 %v5266
  %v6173 = vunpack.c.l.b16 %v5267
  %v6174 = vunpack.c.h.b16 %v5267
  %v6175 = vunpack.c.l.b16 %v5268
  %v6176 = vunpack.c.l.b16 %v5269
  %v6177 = vunpack.c.h.b16 %v5269
  %v6178 = vunpack.c.l.b16 %v5270
  %v6179 = vunpack.c.l.b16 %v5271
  %v6180 = vunpack.c.h.b16 %v5271
  %v6181 = vunpack.c.l.b16 %v5272
  %v6182 = vunpack.c.l.b16 %v5273
  %v6183 = vunpack.c.h.b16 %v5273
  %v6184 = vunpack.c.l.b16 %v5274
  %v6185 = vunpack.c.l.b16 %v5275
  %v6186 = vunpack.c.h.b16 %v5275
  %v6187 = vunpack.c.l.b16 %v5276
  %v6188 = vunpack.c.l.b16 %v5277
  %v6189 = vunpack.c.h.b16 %v5277
  %v6190 = vunpack.c.l.b16 %v5278
  %v6191 = vunpack.c.l.b16 %v5279
  %v6192 = vunpack.c.h.b16 %v5279
  %v6193 = vunpack.c.l.b16 %v5280
  %v6194 = vunpack.c.l.b16 %v5281
  %v6195 = vunpack.c.h.b16 %v5281
  %v6196 = vunpack.c.l.b16 %v5282
  %v6197 = vunpack.c.l.b16 %v5283
  %v6198 = vunpack.c.h.b16 %v5283
  %v6199 = vunpack.c.l.b16 %v5284
  %v6200 = vunpack.c.l.b16 %v5285
  %v6201 = vunpack.c.h.b16 %v5285
  %v6202 = vunpack.c.l.b16 %v5286
  %v6203 = vunpack.c.l.b16 %v5287
  %v6204 = vunpack.c.h.b16 %v5287
  %v6205 = vunpack.c.l.b16 %v5288
  %v6206 = vunpack.c.l.b16 %v5289
  %v6207 = vunpack.c.h.b16 %v5289
  %v6208 = vunpack.c.l.b16 %v5290
  %v6209 = vunpack.c.l.b16 %v5291
  %v6210 = vunpack.c.h.b16 %v5291
  %v6211 = vunpack.c.l.b16 %v5292
  %v6212 = vunpack.c.l.b16 %v5293
  %v6213 = vunpack.c.h.b16 %v5293
  %v6214 = vunpack.c.l.b16 %v5294
  %v6215 = vunpack.c.l.b16 %v5295
  %v6216 = vunpack.c.h.b16 %v5295
  %v6217 = vunpack.c.l.b16 %v5296
  %v6218 = vunpack.c.l.b16 %v5297
  %v6219 = vunpack.c.h.b16 %v5297
  %v6220 = vunpack.c.l.b16 %v5298
  %v6221 = vunpack.c.l.b16 %v5299
  %v6222 = vunpack.c.h.b16 %v5299
  %v6223 = vunpack.c.l.b16 %v5300
  %v6224 = vunpack.c.l.b16 %v5301
  %v6225 = vunpack.c.h.b16 %v5301
  %v6226 = vunpack.c.l.b16 %v5302
  %v6227 = vunpack.c.l.b16 %v5303
  %v6228 = vunpack.c.h.b16 %v5303
  %v6229 = vunpack.c.l.b16 %v5304
  %v6230 = vunpack.c.l.b16 %v5305
  %v6231 = vunpack.c.h.b16 %v5305
  %v6232 = vunpack.c.l.b16 %v5306
  %v6233 = vunpack.c.l.b16 %v5307
  %v6234 = vunpack.c.h.b16 %v5307
  %v6235 = vunpack.c.l.b16 %v5308
  %v6236 = vunpack.c.l.b16 %v5309
  %v6237 = vunpack.c.h.b16 %v5309
  %v6238 = vunpack.c.l.b16 %v5310
  %v6239 = vunpack.c.l.b16 %v5311
  %v6240 = vunpack.c.h.b16 %v5311
  %v6241 = vunpack.c.l.b16 %v5312
  %v6242 = vunpack.c.l.b16 %v5313
  %v6243 = vunpack.c.h.b16 %v5313
  %v6244 = vunpack.c.l.b16 %v5314
  %v6245 = vunpack.c.l.b16 %v5315
  %v6246 = vunpack.c.h.b16 %v5315
  %v6247 = vunpack.c.l.b16 %v5316
  %v6248 = vunpack.c.l.b16 %v5317
  %v6249 = vunpack.c.h.b16 %v5317
  %v6250 = vunpack.c.l.b16 %v5318
  %v6251 = vunpack.c.l.b16 %v5319
  %v6252 = vunpack.c.h.b16 %v5319
  %v6253 = vunpack.c.l.b16 %v5320
  %v6254 = vunpack.c.l.b16 %v5321
  %v6255 = vunpack.c.h.b16 %v5321
  %v6256 = vunpack.c.l.b16 %v5322
  %v6257 = vunpack.c.l.b16 %v5323
  %v6258 = vunpack.c.h.b16 %v5323
  %v6259 = vunpack.c.l.b16 %v5324
  %v6260 = vunpack.c.l.b16 %v5325
  %v6261 = vunpack.c.h.b16 %v5325
  %v6262 = vunpack.c.l.b16 %v5326
  %v6263 = vunpack.c.l.b16 %v5327
  %v6264 = vunpack.c.h.b16 %v5327
  %v6265 = vunpack.c.l.b16 %v5328
  %v6266 = vunpack.c.l.b16 %v5329
  %v6267 = vunpack.c.h.b16 %v5329
  %v6268 = vunpack.c.l.b16 %v5330
  %v6269 = vunpack.c.l.b16 %v5331
  %v6270 = vunpack.c.h.b16 %v5331
  %v6271 = vunpack.c.l.b16 %v5332
  %v6272 = vunpack.c.l.b16 %v5333
  %v6273 = vunpack.c.h.b16 %v5333
  %v6274 = vunpack.c.l.b16 %v5334
  %v6275 = vunpack.c.l.b16 %v5335
  %v6276 = vunpack.c.h.b16 %v5335
  %v6277 = vunpack.c.l.b16 %v5336
  %v6278 = vunpack.c.l.b16 %v5337
  %v6279 = vunpack.c.h.b16 %v5337
  %v6280 = vunpack.c.l.b16 %v5338
  %v6281 = vunpack.c.l.b16 %v5339
  %v6282 = vunpack.c.h.b16 %v5339
  %v6283 = vunpack.c.l.b16 %v5340
  %v6284 = vunpack.c.l.b16 %v5341
  %v6285 = vunpack.c.h.b16 %v5341
  %v6286 = vunpack.c.l.b16 %v5342
  %v6287 = vunpack.c.l.b16 %v5343
  %v6288 = vunpack.c.h.b16 %v5343
  %v6289 = vunpack.c.l.b16 %v5344
  %v6290 = vunpack.c.l.b16 %v5345
  %v6291 = vunpack.c.h.b16 %v5345
  %v6292 = vunpack.c.l.b16 %v5346
  %v6293 = vunpack.c.l.b16 %v5347
  %v6294 = vunpack.c.h.b16 %v5347
  %v6295 = vunpack.c.l.b16 %v5348
  %v6296 = vunpack.c.l.b16 %v5349
  %v6297 = vunpack.c.h.b16 %v5349
  %v6298 = vunpack.c.l.b16 %v5350
  %v6299 = vunpack.c.l.b16 %v5351
  %v6300 = vunpack.c.h.b16 %v5351
  %v6301 = vunpack.c.l.b16 %v5352
  %v6302 = vunpack.c.l.b16 %v5353
  %v6303 = vunpack.c.h.b16 %v5353
  %v6304 = vunpack.c.l.b16 %v5354
  %v6305 = vunpack.c.l.b16 %v5355
  %v6306 = vunpack.c.h.b16 %v5355
  %v6307 = vunpack.c.l.b16 %v5356
  %v6308 = vunpack.c.l.b16 %v5357
  %v6309 = vunpack.c.h.b16 %v5357
  %v6310 = vunpack.c.l.b16 %v5358
  %v6311 = vunpack.c.l.b16 %v5359
  %v6312 = vunpack.c.h.b16 %v5359
  %v6313 = vunpack.c.l.b16 %v5360
  %v6314 = vunpack.c.l.b16 %v5361
  %v6315 = vunpack.c.h.b16 %v5361
  %v6316 = vunpack.c.l.b16 %v5362
  %v6317 = vunpack.c.l.b16 %v5363
  %v6318 = vunpack.c.h.b16 %v5363
  %v6319 = vunpack.c.l.b16 %v5364
  %v6320 = vunpack.c.l.b16 %v5365
  %v6321 = vunpack.c.h.b16 %v5365
  %v6322 = vunpack.c.l.b16 %v5366
  %v6323 = vunpack.c.l.b16 %v5367
  %v6324 = vunpack.c.h.b16 %v5367
  %v6325 = vunpack.c.l.b16 %v5368
  %v6326 = vunpack.c.l.b16 %v5369
  %v6327 = vunpack.c.h.b16 %v5369
  %v6328 = vunpack.c.l.b16 %v5370
  %v6329 = vunpack.c.l.b16 %v5371
  %v6330 = vunpack.c.h.b16 %v5371
  %v6331 = vunpack.c.l.b16 %v5372
  %v6332 = vunpack.c.l.b16 %v5373
  %v6333 = vunpack.c.h.b16 %v5373
  %v6334 = vunpack.c.l.b16 %v5374
  %v6335 = vunpack.c.l.b16 %v5375
  %v6336 = vunpack.c.h.b16 %v5375
  %v6337 = vunpack.c.l.b16 %v5376
  %v6338 = vunpack.c.l.b16 %v5377
  %v6339 = vunpack.c.h.b16 %v5377
  %v6340 = vunpack.c.l.b16 %v5378
  %v6341 = vunpack.c.l.b16 %v5379
  %v6342 = vunpack.c.h.b16 %v5379
  %v6343 = vunpack.c.l.b16 %v5380
  %v6344 = vunpack.c.l.b16 %v5381
  %v6345 = vunpack.c.h.b16 %v5381
  %v6346 = vunpack.c.l.b16 %v5382
  %v6347 = vunpack.c.l.b16 %v5383
  %v6348 = vunpack.c.h.b16 %v5383
  %v6349 = vunpack.c.l.b16 %v5384
  %v6350 = vunpack.c.l.b16 %v5385
  %v6351 = vunpack.c.h.b16 %v5385
  %v6352 = vunpack.c.l.b16 %v5386
  %v6353 = vunpack.c.l.b16 %v5387
  %v6354 = vunpack.c.h.b16 %v5387
  %v6355 = vunpack.c.l.b16 %v5388
  %v6356 = vunpack.c.l.b16 %v5389
  %v6357 = vunpack.c.h.b16 %v5389
  %v6358 = vunpack.c.l.b16 %v5390
  %v6359 = vunpack.c.l.b16 %v5391
  %v6360 = vunpack.c.h.b16 %v5391
  %v6361 = vunpack.c.l.b16 %v5392
  %v6362 = vunpack.c.l.b16 %v5393
  %v6363 = vunpack.c.h.b16 %v5393
  %v6364 = vunpack.c.l.b16 %v5394
  %v6365 = vunpack.c.l.b16 %v5395
  %v6366 = vunpack.c.h.b16 %v5395
  %v6367 = vunpack.c.l.b16 %v5396
  %v6368 = vunpack.c.l.b16 %v5397
  %v6369 = vunpack.c.h.b16 %v5397
  %v6370 = vunpack.c.l.b16 %v5398
  %v6371 = vunpack.c.l.b16 %v5399
  %v6372 = vunpack.c.h.b16 %v5399
  %v6373 = vunpack.c.l.b16 %v5400
  %v6374 = vunpack.c.l.b16 %v5401
  %v6375 = vunpack.c.h.b16 %v5401
  %v6376 = vunpack.c.l.b16 %v5402
  %v6377 = vunpack.c.l.b16 %v5403
  %v6378 = vunpack.c.h.b16 %v5403
  %v6379 = vunpack.c.l.b16 %v5404
  %v6380 = vunpack.c.l.b16 %v5405
  %v6381 = vunpack.c.h.b16 %v5405
  %v6382 = vunpack.c.l.b16 %v5406
  %v6383 = vunpack.c.l.b16 %v5407
  %v6384 = vunpack.c.h.b16 %v5407
  %v6385 = vunpack.c.l.b16 %v5408
  %v6386 = vpack.c.b16 %v5813, %v5810
  %v6387 = vpack.c.b16 %v5814, %v5811
  %v6388 = vpack.c.b16 %v5815, %v5812
  %v6389 = vpack.c.b16 %v5819, %v5816
  %v6390 = vpack.c.b16 %v5820, %v5817
  %v6391 = vpack.c.b16 %v5821, %v5818
  %v6392 = vpack.c.b16 %v5825, %v5822
  %v6393 = vpack.c.b16 %v5826, %v5823
  %v6394 = vpack.c.b16 %v5827, %v5824
  %v6395 = vpack.c.b16 %v5831, %v5828
  %v6396 = vpack.c.b16 %v5832, %v5829
  %v6397 = vpack.c.b16 %v5833, %v5830
  %v6398 = vpack.c.b16 %v5837, %v5834
  %v6399 = vpack.c.b16 %v5838, %v5835
  %v6400 = vpack.c.b16 %v5839, %v5836
  %v6401 = vpack.c.b16 %v5843, %v5840
  %v6402 = vpack.c.b16 %v5844, %v5841
  %v6403 = vpack.c.b16 %v5845, %v5842
  %v6404 = vpack.c.b16 %v5849, %v5846
  %v6405 = vpack.c.b16 %v5850, %v5847
  %v6406 = vpack.c.b16 %v5851, %v5848
  %v6407 = vpack.c.b16 %v5855, %v5852
  %v6408 = vpack.c.b16 %v5856, %v5853
  %v6409 = vpack.c.b16 %v5857, %v5854
  %v6410 = vpack.c.b16 %v5861, %v5858
  %v6411 = vpack.c.b16 %v5862, %v5859
  %v6412 = vpack.c.b16 %v5863, %v5860
  %v6413 = vpack.c.b16 %v5867, %v5864
  %v6414 = vpack.c.b16 %v5868, %v5865
  %v6415 = vpack.c.b16 %v5869, %v5866
  %v6416 = vpack.c.b16 %v5873, %v5870
  %v6417 = vpack.c.b16 %v5874, %v5871
  %v6418 = vpack.c.b16 %v5875, %v5872
  %v6419 = vpack.c.b16 %v5879, %v5876
  %v6420 = vpack.c.b16 %v5880, %v5877
  %v6421 = vpack.c.b16 %v5881, %v5878
  %v6422 = vpack.c.b16 %v5885, %v5882
  %v6423 = vpack.c.b16 %v5886, %v5883
  %v6424 = vpack.c.b16 %v5887, %v5884
  %v6425 = vpack.c.b16 %v5891, %v5888
  %v6426 = vpack.c.b16 %v5892, %v5889
  %v6427 = vpack.c.b16 %v5893, %v5890
  %v6428 = vpack.c.b16 %v5897, %v5894
  %v6429 = vpack.c.b16 %v5898, %v5895
  %v6430 = vpack.c.b16 %v5899, %v5896
  %v6431 = vpack.c.b16 %v5903, %v5900
  %v6432 = vpack.c.b16 %v5904, %v5901
  %v6433 = vpack.c.b16 %v5905, %v5902
  %v6434 = vpack.c.b16 %v5909, %v5906
  %v6435 = vpack.c.b16 %v5910, %v5907
  %v6436 = vpack.c.b16 %v5911, %v5908
  %v6437 = vpack.c.b16 %v5915, %v5912
  %v6438 = vpack.c.b16 %v5916, %v5913
  %v6439 = vpack.c.b16 %v5917, %v5914
  %v6440 = vpack.c.b16 %v5921, %v5918
  %v6441 = vpack.c.b16 %v5922, %v5919
  %v6442 = vpack.c.b16 %v5923, %v5920
  %v6443 = vpack.c.b16 %v5927, %v5924
  %v6444 = vpack.c.b16 %v5928, %v5925
  %v6445 = vpack.c.b16 %v5929, %v5926
  %v6446 = vpack.c.b16 %v5933, %v5930
  %v6447 = vpack.c.b16 %v5934, %v5931
  %v6448 = vpack.c.b16 %v5935, %v5932
  %v6449 = vpack.c.b16 %v5939, %v5936
  %v6450 = vpack.c.b16 %v5940, %v5937
  %v6451 = vpack.c.b16 %v5941, %v5938
  %v6452 = vpack.c.b16 %v5945, %v5942
  %v6453 = vpack.c.b16 %v5946, %v5943
  %v6454 = vpack.c.b16 %v5947, %v5944
  %v6455 = vpack.c.b16 %v5951, %v5948
  %v6456 = vpack.c.b16 %v5952, %v5949
  %v6457 = vpack.c.b16 %v5953, %v5950
  %v6458 = vpack.c.b16 %v5957, %v5954
  %v6459 = vpack.c.b16 %v5958, %v5955
  %v6460 = vpack.c.b16 %v5959, %v5956
  %v6461 = vpack.c.b16 %v5963, %v5960
  %v6462 = vpack.c.b16 %v5964, %v5961
  %v6463 = vpack.c.b16 %v5965, %v5962
  %v6464 = vpack.c.b16 %v5969, %v5966
  %v6465 = vpack.c.b16 %v5970, %v5967
  %v6466 = vpack.c.b16 %v5971, %v5968
  %v6467 = vpack.c.b16 %v5975, %v5972
  %v6468 = vpack.c.b16 %v5976, %v5973
  %v6469 = vpack.c.b16 %v5977, %v5974
  %v6470 = vpack.c.b16 %v5981, %v5978
  %v6471 = vpack.c.b16 %v5982, %v5979
  %v6472 = vpack.c.b16 %v5983, %v5980
  %v6473 = vpack.c.b16 %v5987, %v5984
  %v6474 = vpack.c.b16 %v5988, %v5985
  %v6475 = vpack.c.b16 %v5989, %v5986
  %v6476 = vpack.c.b16 %v5993, %v5990
  %v6477 = vpack.c.b16 %v5994, %v5991
  %v6478 = vpack.c.b16 %v5995, %v5992
  %v6479 = vpack.c.b16 %v5999, %v5996
  %v6480 = vpack.c.b16 %v6000, %v5997
  %v6481 = vpack.c.b16 %v6001, %v5998
  %v6482 = vpack.c.b16 %v6005, %v6002
  %v6483 = vpack.c.b16 %v6006, %v6003
  %v6484 = vpack.c.b16 %v6007, %v6004
  %v6485 = vpack.c.b16 %v6011, %v6008
  %v6486 = vpack.c.b16 %v6012, %v6009
  %v6487 = vpack.c.b16 %v6013, %v6010
  %v6488 = vpack.c.b16 %v6017, %v6014
  %v6489 = vpack.c.b16 %v6018, %v6015
  %v6490 = vpack.c.b16 %v6019, %v6016
  %v6491 = vpack.c.b16 %v6023, %v6020
  %v6492 = vpack.c.b16 %v6024, %v6021
  %v6493 = vpack.c.b16 %v6025, %v6022
  %v6494 = vpack.c.b16 %v6029, %v6026
  %v6495 = vpack.c.b16 %v6030, %v6027
  %v6496 = vpack.c.b16 %v6031, %v6028
  %v6497 = vpack.c.b16 %v6035, %v6032
  %v6498 = vpack.c.b16 %v6036, %v6033
  %v6499 = vpack.c.b16 %v6037, %v6034
  %v6500 = vpack.c.b16 %v6041, %v6038
  %v6501 = vpack.c.b16 %v6042, %v6039
  %v6502 = vpack.c.b16 %v6043, %v6040
  %v6503 = vpack.c.b16 %v6047, %v6044
  %v6504 = vpack.c.b16 %v6048, %v6045
  %v6505 = vpack.c.b16 %v6049, %v6046
  %v6506 = vpack.c.b16 %v6053, %v6050
  %v6507 = vpack.c.b16 %v6054, %v6051
  %v6508 = vpack.c.b16 %v6055, %v6052
  %v6509 = vpack.c.b16 %v6059, %v6056
  %v6510 = vpack.c.b16 %v6060, %v6057
  %v6511 = vpack.c.b16 %v6061, %v6058
  %v6512 = vpack.c.b16 %v6065, %v6062
  %v6513 = vpack.c.b16 %v6066, %v6063
  %v6514 = vpack.c.b16 %v6067, %v6064
  %v6515 = vpack.c.b16 %v6071, %v6068
  %v6516 = vpack.c.b16 %v6072, %v6069
  %v6517 = vpack.c.b16 %v6073, %v6070
  %v6518 = vpack.c.b16 %v6077, %v6074
  %v6519 = vpack.c.b16 %v6078, %v6075
  %v6520 = vpack.c.b16 %v6079, %v6076
  %v6521 = vpack.c.b16 %v6083, %v6080
  %v6522 = vpack.c.b16 %v6084, %v6081
  %v6523 = vpack.c.b16 %v6085, %v6082
  %v6524 = vpack.c.b16 %v6089, %v6086
  %v6525 = vpack.c.b16 %v6090, %v6087
  %v6526 = vpack.c.b16 %v6091, %v6088
  %v6527 = vpack.c.b16 %v6095, %v6092
  %v6528 = vpack.c.b16 %v6096, %v6093
  %v6529 = vpack.c.b16 %v6097, %v6094
  %v6530 = vpack.c.b16 %v6101, %v6098
  %v6531 = vpack.c.b16 %v6102, %v6099
  %v6532 = vpack.c.b16 %v6103, %v6100
  %v6533 = vpack.c.b16 %v6107, %v6104
  %v6534 = vpack.c.b16 %v6108, %v6105
  %v6535 = vpack.c.b16 %v6109, %v6106
  %v6536 = vpack.c.b16 %v6113, %v6110
  %v6537 = vpack.c.b16 %v6114, %v6111
  %v6538 = vpack.c.b16 %v6115, %v6112
  %v6539 = vpack.c.b16 %v6119, %v6116
  %v6540 = vpack.c.b16 %v6120, %v6117
  %v6541 = vpack.c.b16 %v6121, %v6118
  %v6542 = vpack.c.b16 %v6125, %v6122
  %v6543 = vpack.c.b16 %v6126, %v6123
  %v6544 = vpack.c.b16 %v6127, %v6124
  %v6545 = vpack.c.b16 %v6131, %v6128
  %v6546 = vpack.c.b16 %v6132, %v6129
  %v6547 = vpack.c.b16 %v6133, %v6130
  %v6548 = vpack.c.b16 %v6137, %v6134
  %v6549 = vpack.c.b16 %v6138, %v6135
  %v6550 = vpack.c.b16 %v6139, %v6136
  %v6551 = vpack.c.b16 %v6143, %v6140
  %v6552 = vpack.c.b16 %v6144, %v6141
  %v6553 = vpack.c.b16 %v6145, %v6142
  %v6554 = vpack.c.b16 %v6149, %v6146
  %v6555 = vpack.c.b16 %v6150, %v6147
  %v6556 = vpack.c.b16 %v6151, %v6148
  %v6557 = vpack.c.b16 %v6155, %v6152
  %v6558 = vpack.c.b16 %v6156, %v6153
  %v6559 = vpack.c.b16 %v6157, %v6154
  %v6560 = vpack.c.b16 %v6161, %v6158
  %v6561 = vpack.c.b16 %v6162, %v6159
  %v6562 = vpack.c.b16 %v6163, %v6160
  %v6563 = vpack.c.b16 %v6167, %v6164
  %v6564 = vpack.c.b16 %v6168, %v6165
  %v6565 = vpack.c.b16 %v6169, %v6166
  %v6566 = vpack.c.b16 %v6173, %v6170
  %v6567 = vpack.c.b16 %v6174, %v6171
  %v6568 = vpack.c.b16 %v6175, %v6172
  %v6569 = vpack.c.b16 %v6179, %v6176
  %v6570 = vpack.c.b16 %v6180, %v6177
  %v6571 = vpack.c.b16 %v6181, %v6178
  %v6572 = vpack.c.b16 %v6185, %v6182
  %v6573 = vpack.c.b16 %v6186, %v6183
  %v6574 = vpack.c.b16 %v6187, %v6184
  %v6575 = vpack.c.b16 %v6191, %v6188
  %v6576 = vpack.c.b16 %v6192, %v6189
  %v6577 = vpack.c.b16 %v6193, %v6190
  %v6578 = vpack.c.b16 %v6197, %v6194
  %v6579 = vpack.c.b16 %v6198, %v6195
  %v6580 = vpack.c.b16 %v6199, %v6196
  %v6581 = vpack.c.b16 %v6203, %v6200
  %v6582 = vpack.c.b16 %v6204, %v6201
  %v6583 = vpack.c.b16 %v6205, %v6202
  %v6584 = vpack.c.b16 %v6209, %v6206
  %v6585 = vpack.c.b16 %v6210, %v6207
  %v6586 = vpack.c.b16 %v6211, %v6208
  %v6587 = vpack.c.b16 %v6215, %v6212
  %v6588 = vpack.c.b16 %v6216, %v6213
  %v6589 = vpack.c.b16 %v6217, %v6214
  %v6590 = vpack.c.b16 %v6221, %v6218
  %v6591 = vpack.c.b16 %v6222, %v6219
  %v6592 = vpack.c.b16 %v6223, %v6220
  %v6593 = vpack.c.b16 %v6227, %v6224
  %v6594 = vpack.c.b16 %v6228, %v6225
  %v6595 = vpack.c.b16 %v6229, %v6226
  %v6596 = vpack.c.b16 %v6233, %v6230
  %v6597 = vpack.c.b16 %v6234, %v6231
  %v6598 = vpack.c.b16 %v6235, %v6232
  %v6599 = vpack.c.b16 %v6239, %v6236
  %v6600 = vpack.c.b16 %v6240, %v6237
  %v6601 = vpack.c.b16 %v6241, %v6238
  %v6602 = vpack.c.b16 %v6245, %v6242
  %v6603 = vpack.c.b16 %v6246, %v6243
  %v6604 = vpack.c.b16 %v6247, %v6244
  %v6605 = vpack.c.b16 %v6251, %v6248
  %v6606 = vpack.c.b16 %v6252, %v6249
  %v6607 = vpack.c.b16 %v6253, %v6250
  %v6608 = vpack.c.b16 %v6257, %v6254
  %v6609 = vpack.c.b16 %v6258, %v6255
  %v6610 = vpack.c.b16 %v6259, %v6256
  %v6611 = vpack.c.b16 %v6263, %v6260
  %v6612 = vpack.c.b16 %v6264, %v6261
  %v6613 = vpack.c.b16 %v6265, %v6262
  %v6614 = vpack.c.b16 %v6269, %v6266
  %v6615 = vpack.c.b16 %v6270, %v6267
  %v6616 = vpack.c.b16 %v6271, %v6268
  %v6617 = vpack.c.b16 %v6275, %v6272
  %v6618 = vpack.c.b16 %v6276, %v6273
  %v6619 = vpack.c.b16 %v6277, %v6274
  %v6620 = vpack.c.b16 %v6281, %v6278
  %v6621 = vpack.c.b16 %v6282, %v6279
  %v6622 = vpack.c.b16 %v6283, %v6280
  %v6623 = vpack.c.b16 %v6287, %v6284
  %v6624 = vpack.c.b16 %v6288, %v6285
  %v6625 = vpack.c.b16 %v6289, %v6286
  %v6626 = vpack.c.b16 %v6293, %v6290
  %v6627 = vpack.c.b16 %v6294, %v6291
  %v6628 = vpack.c.b16 %v6295, %v6292
  %v6629 = vpack.c.b16 %v6299, %v6296
  %v6630 = vpack.c.b16 %v6300, %v6297
  %v6631 = vpack.c.b16 %v6301, %v6298
  %v6632 = vpack.c.b16 %v6305, %v6302
  %v6633 = vpack.c.b16 %v6306, %v6303
  %v6634 = vpack.c.b16 %v6307, %v6304
  %v6635 = vpack.c.b16 %v6311, %v6308
  %v6636 = vpack.c.b16 %v6312, %v6309
  %v6637 = vpack.c.b16 %v6313, %v6310
  %v6638 = vpack.c.b16 %v6317, %v6314
  %v6639 = vpack.c.b16 %v6318, %v6315
  %v6640 = vpack.c.b16 %v6319, %v6316
  %v6641 = vpack.c.b16 %v6323, %v6320
  %v6642 = vpack.c.b16 %v6324, %v6321
  %v6643 = vpack.c.b16 %v6325, %v6322
  %v6644 = vpack.c.b16 %v6329, %v6326
  %v6645 = vpack.c.b16 %v6330, %v6327
  %v6646 = vpack.c.b16 %v6331, %v6328
  %v6647 = vpack.c.b16 %v6335, %v6332
  %v6648 = vpack.c.b16 %v6336, %v6333
  %v6649 = vpack.c.b16 %v6337, %v6334
  %v6650 = vpack.c.b16 %v6341, %v6338
  %v6651 = vpack.c.b16 %v6342, %v6339
  %v6652 = vpack.c.b16 %v6343, %v6340
  %v6653 = vpack.c.b16 %v6347, %v6344
  %v6654 = vpack.c.b16 %v6348, %v6345
  %v6655 = vpack.c.b16 %v6349, %v6346
  %v6656 = vpack.c.b16 %v6353, %v6350
  %v6657 = vpack.c.b16 %v6354, %v6351
  %v6658 = vpack.c.b16 %v6355, %v6352
  %v6659 = vpack.c.b16 %v6359, %v6356
  %v6660 = vpack.c.b16 %v6360, %v6357
  %v6661 = vpack.c.b16 %v6361, %v6358
  %v6662 = vpack.c.b16 %v6365, %v6362
  %v6663 = vpack.c.b16 %v6366, %v6363
  %v6664 = vpack.c.b16 %v6367, %v6364
  %v6665 = vpack.c.b16 %v6371, %v6368
  %v6666 = vpack.c.b16 %v6372, %v6369
  %v6667 = vpack.c.b16 %v6373, %v6370
  %v6668 = vpack.c.b16 %v6377, %v6374
  %v6669 = vpack.c.b16 %v6378, %v6375
  %v6670 = vpack.c.b16 %v6379, %v6376
  %v6671 = vpack.c.b16 %v6383, %v6380
  %v6672 = vpack.c.b16 %v6384, %v6381
  %v6673 = vpack.c.b16 %v6385, %v6382
  %6962 = vmatprep.subr.bf16.mxu0 %v6387
  %6963 = vmatpush1.bf16.msra.mxu0 %v6386
  %6964 = vmatprep.subr.bf16.mxu0 %v6390
  %6965 = vmatpush1.bf16.msra.mxu0 %v6389
  %6966 = vmatprep.subr.bf16.mxu0 %v6393
  %6967 = vmatpush1.bf16.msra.mxu0 %v6392
  %6968 = vmatprep.subr.bf16.mxu0 %v6396
  %6969 = vmatpush1.bf16.msra.mxu0 %v6395
  %6970 = vmatprep.subr.bf16.mxu0 %v6399
  %6971 = vmatpush1.bf16.msra.mxu0 %v6398
  %6972 = vmatprep.subr.bf16.mxu0 %v6402
  %6973 = vmatpush1.bf16.msra.mxu0 %v6401
  %6974 = vmatprep.subr.bf16.mxu0 %v6405
  %6975 = vmatpush1.bf16.msra.mxu0 %v6404
  %6976 = vmatprep.subr.bf16.mxu0 %v6408
  %6977 = vmatpush1.bf16.msra.mxu0 %v6407
  %6978 = vmatprep.subr.bf16.mxu0 %v6411
  %6979 = vmatpush1.bf16.msra.mxu0 %v6410
  %6980 = vmatprep.subr.bf16.mxu0 %v6414
  %6981 = vmatpush1.bf16.msra.mxu0 %v6413
  %6982 = vmatprep.subr.bf16.mxu0 %v6417
  %6983 = vmatpush1.bf16.msra.mxu0 %v6416
  %6984 = vmatprep.subr.bf16.mxu0 %v6420
  %6985 = vmatpush1.bf16.msra.mxu0 %v6419
  %6986 = vmatprep.subr.bf16.mxu0 %v6423
  %6987 = vmatpush1.bf16.msra.mxu0 %v6422
  %6988 = vmatprep.subr.bf16.mxu0 %v6426
  %6989 = vmatpush1.bf16.msra.mxu0 %v6425
  %6990 = vmatprep.subr.bf16.mxu0 %v6429
  %6991 = vmatpush1.bf16.msra.mxu0 %v6428
  %6992 = vmatprep.subr.bf16.mxu0 %v6432
  %6993 = vmatpush1.bf16.msra.mxu0 %v6431
  %6994 = vmatprep.mubr.bf16.mxu0 %v4834
  %6995 = vmatmul.mubr.bf16.gmra.mrb[0].mxu0 %v4833
  %v6996 = vpop.f32.mrb[0].mxu0
  %v6997 = vadd.f32 %v5414, %v6996
  %v6998 = vpop.f32.mrb[0].mxu0
  %v6999 = vadd.f32 %v5418, %v6998
  %v7000 = vpop.f32.mrb[0].mxu0
  %v7001 = vadd.f32 %v5414, %v7000
  %v7002 = vpop.f32.mrb[0].mxu0
  %v7003 = vadd.f32 %v5418, %v7002
  %7004 = vmatprep.mubr.bf16.mxu0 %v4846
  %7005 = vmatmul.mubr.bf16.gmra.mrb[0].mxu0 %v4845
  %v7006 = vpop.f32.mrb[0].mxu0
  %v7007 = vadd.f32 %v5414, %v7006
  %v7008 = vpop.f32.mrb[0].mxu0
  %v7009 = vadd.f32 %v5418, %v7008
  %v7010 = vpop.f32.mrb[0].mxu0
  %v7011 = vadd.f32 %v5414, %v7010
  %v7012 = vpop.f32.mrb[0].mxu0
  %v7013 = vadd.f32 %v5418, %v7012
  %7014 = vmatprep.mubr.bf16.mxu0 %v4858
  %7015 = vmatmul.mubr.bf16.gmra.mrb[0].mxu0 %v4857
  %v7016 = vpop.f32.mrb[0].mxu0
  %v7017 = vadd.f32 %v5414, %v7016
  %v7018 = vpop.f32.mrb[0].mxu0
  %v7019 = vadd.f32 %v5418, %v7018
  %v7020 = vpop.f32.mrb[0].mxu0
  %v7021 = vadd.f32 %v5414, %v7020
  %v7022 = vpop.f32.mrb[0].mxu0
  %v7023 = vadd.f32 %v5418, %v7022
  %7024 = vmatprep.mubr.bf16.mxu0 %v4870
  %7025 = vmatmul.mubr.bf16.gmra.mrb[0].mxu0 %v4869
  %v7026 = vpop.f32.mrb[0].mxu0
  %v7027 = vadd.f32 %v5414, %v7026
  %v7028 = vpop.f32.mrb[0].mxu0
  %v7029 = vadd.f32 %v5418, %v7028
  %v7030 = vpop.f32.mrb[0].mxu0
  %v7031 = vadd.f32 %v5414, %v7030
  %v7032 = vpop.f32.mrb[0].mxu0
  %v7033 = vadd.f32 %v5418, %v7032
  %7034 = vmatprep.mubr.bf16.mxu0 %v4882
  %7035 = vmatmul.mubr.bf16.gmra.mrb[0].mxu0 %v4881
  %v7036 = vpop.f32.mrb[0].mxu0
  %v7037 = vadd.f32 %v5414, %v7036
  %v7038 = vpop.f32.mrb[0].mxu0
  %v7039 = vadd.f32 %v5418, %v7038
  %v7040 = vpop.f32.mrb[0].mxu0
  %v7041 = vadd.f32 %v5414, %v7040
  %v7042 = vpop.f32.mrb[0].mxu0
  %v7043 = vadd.f32 %v5418, %v7042
  %7044 = vmatprep.mubr.bf16.mxu0 %v4894
  %7045 = vmatmul.mubr.bf16.gmra.mrb[0].mxu0 %v4893
  %v7046 = vpop.f32.mrb[0].mxu0
  %v7047 = vadd.f32 %v5414, %v7046
  %v7048 = vpop.f32.mrb[0].mxu0
  %v7049 = vadd.f32 %v5418, %v7048
  %v7050 = vpop.f32.mrb[0].mxu0
  %v7051 = vadd.f32 %v5414, %v7050
  %v7052 = vpop.f32.mrb[0].mxu0
  %v7053 = vadd.f32 %v5418, %v7052
  %7054 = vmatprep.mubr.bf16.mxu0 %v4906
  %7055 = vmatmul.mubr.bf16.gmra.mrb[0].mxu0 %v4905
  %v7056 = vpop.f32.mrb[0].mxu0
  %v7057 = vadd.f32 %v5414, %v7056
  %v7058 = vpop.f32.mrb[0].mxu0
  %v7059 = vadd.f32 %v5418, %v7058
  %v7060 = vpop.f32.mrb[0].mxu0
  %v7061 = vadd.f32 %v5414, %v7060
  %v7062 = vpop.f32.mrb[0].mxu0
  %v7063 = vadd.f32 %v5418, %v7062
  %7064 = vmatprep.mubr.bf16.mxu0 %v4918
  %7065 = vmatmul.mubr.bf16.gmra.mrb[0].mxu0 %v4917
  %v7066 = vpop.f32.mrb[0].mxu0
  %v7067 = vadd.f32 %v5414, %v7066
  %v7068 = vpop.f32.mrb[0].mxu0
  %v7069 = vadd.f32 %v5418, %v7068
  %v7070 = vpop.f32.mrb[0].mxu0
  %v7071 = vadd.f32 %v5414, %v7070
  %v7072 = vpop.f32.mrb[0].mxu0
  %v7073 = vadd.f32 %v5418, %v7072
  %7074 = vmatprep.mubr.bf16.mxu0 %v4930
  %7075 = vmatmul.mubr.bf16.gmra.mrb[0].mxu0 %v4929
  %v7076 = vpop.f32.mrb[0].mxu0
  %v7077 = vadd.f32 %v5414, %v7076
  %v7078 = vpop.f32.mrb[0].mxu0
  %v7079 = vadd.f32 %v5418, %v7078
  %v7080 = vpop.f32.mrb[0].mxu0
  %v7081 = vadd.f32 %v5414, %v7080
  %v7082 = vpop.f32.mrb[0].mxu0
  %v7083 = vadd.f32 %v5418, %v7082
  %7084 = vmatprep.mubr.bf16.mxu0 %v4942
  %7085 = vmatmul.mubr.bf16.gmra.mrb[0].mxu0 %v4941
  %v7086 = vpop.f32.mrb[0].mxu0
  %v7087 = vadd.f32 %v5414, %v7086
  %v7088 = vpop.f32.mrb[0].mxu0
  %v7089 = vadd.f32 %v5418, %v7088
  %v7090 = vpop.f32.mrb[0].mxu0
  %v7091 = vadd.f32 %v5414, %v7090
  %v7092 = vpop.f32.mrb[0].mxu0
  %v7093 = vadd.f32 %v5418, %v7092
  %7094 = vmatprep.mubr.bf16.mxu0 %v4954
  %7095 = vmatmul.mubr.bf16.gmra.mrb[0].mxu0 %v4953
  %v7096 = vpop.f32.mrb[0].mxu0
  %v7097 = vadd.f32 %v5414, %v7096
  %v7098 = vpop.f32.mrb[0].mxu0
  %v7099 = vadd.f32 %v5418, %v7098
  %v7100 = vpop.f32.mrb[0].mxu0
  %v7101 = vadd.f32 %v5414, %v7100
  %v7102 = vpop.f32.mrb[0].mxu0
  %v7103 = vadd.f32 %v5418, %v7102
  %7104 = vmatprep.mubr.bf16.mxu0 %v4966
  %7105 = vmatmul.mubr.bf16.gmra.mrb[0].mxu0 %v4965
  %v7106 = vpop.f32.mrb[0].mxu0
  %v7107 = vadd.f32 %v5414, %v7106
  %v7108 = vpop.f32.mrb[0].mxu0
  %v7109 = vadd.f32 %v5418, %v7108
  %v7110 = vpop.f32.mrb[0].mxu0
  %v7111 = vadd.f32 %v5414, %v7110
  %v7112 = vpop.f32.mrb[0].mxu0
  %v7113 = vadd.f32 %v5418, %v7112
  %7114 = vmatprep.mubr.bf16.mxu0 %v4978
  %7115 = vmatmul.mubr.bf16.gmra.mrb[0].mxu0 %v4977
  %v7116 = vpop.f32.mrb[0].mxu0
  %v7117 = vadd.f32 %v5414, %v7116
  %v7118 = vpop.f32.mrb[0].mxu0
  %v7119 = vadd.f32 %v5418, %v7118
  %v7120 = vpop.f32.mrb[0].mxu0
  %v7121 = vadd.f32 %v5414, %v7120
  %v7122 = vpop.f32.mrb[0].mxu0
  %v7123 = vadd.f32 %v5418, %v7122
  %7124 = vmatprep.mubr.bf16.mxu0 %v4990
  %7125 = vmatmul.mubr.bf16.gmra.mrb[0].mxu0 %v4989
  %v7126 = vpop.f32.mrb[0].mxu0
  %v7127 = vadd.f32 %v5414, %v7126
  %v7128 = vpop.f32.mrb[0].mxu0
  %v7129 = vadd.f32 %v5418, %v7128
  %v7130 = vpop.f32.mrb[0].mxu0
  %v7131 = vadd.f32 %v5414, %v7130
  %v7132 = vpop.f32.mrb[0].mxu0
  %v7133 = vadd.f32 %v5418, %v7132
  %7134 = vmatprep.mubr.bf16.mxu0 %v5002
  %7135 = vmatmul.mubr.bf16.gmra.mrb[0].mxu0 %v5001
  %v7136 = vpop.f32.mrb[0].mxu0
  %v7137 = vadd.f32 %v5414, %v7136
  %v7138 = vpop.f32.mrb[0].mxu0
  %v7139 = vadd.f32 %v5418, %v7138
  %v7140 = vpop.f32.mrb[0].mxu0
  %v7141 = vadd.f32 %v5414, %v7140
  %v7142 = vpop.f32.mrb[0].mxu0
  %v7143 = vadd.f32 %v5418, %v7142
  %7144 = vmatprep.mubr.bf16.mxu0 %v5014
  %7145 = vmatmul.mubr.bf16.gmra.mrb[0].mxu0 %v5013
  %v7146 = vpop.f32.mrb[0].mxu0
  %v7147 = vadd.f32 %v5414, %v7146
  %v7148 = vpop.f32.mrb[0].mxu0
  %v7149 = vadd.f32 %v5418, %v7148
  %v7150 = vpop.f32.mrb[0].mxu0
  %v7151 = vadd.f32 %v5414, %v7150
  %v7152 = vpop.f32.mrb[0].mxu0
  %v7153 = vadd.f32 %v5418, %v7152
  %7154 = vdwg.mxu0
  %7155 = vmatprep.subr.bf16.mxu0 %v6435
  %7156 = vmatpush1.bf16.msra.mxu0 %v6434
  %7157 = vmatprep.subr.bf16.mxu0 %v6438
  %7158 = vmatpush1.bf16.msra.mxu0 %v6437
  %7159 = vmatprep.subr.bf16.mxu0 %v6441
  %7160 = vmatpush1.bf16.msra.mxu0 %v6440
  %7161 = vmatprep.subr.bf16.mxu0 %v6444
  %7162 = vmatpush1.bf16.msra.mxu0 %v6443
  %7163 = vmatprep.subr.bf16.mxu0 %v6447
  %7164 = vmatpush1.bf16.msra.mxu0 %v6446
  %7165 = vmatprep.subr.bf16.mxu0 %v6450
  %7166 = vmatpush1.bf16.msra.mxu0 %v6449
  %7167 = vmatprep.subr.bf16.mxu0 %v6453
  %7168 = vmatpush1.bf16.msra.mxu0 %v6452
  %7169 = vmatprep.subr.bf16.mxu0 %v6456
  %7170 = vmatpush1.bf16.msra.mxu0 %v6455
  %7171 = vmatprep.subr.bf16.mxu0 %v6459
  %7172 = vmatpush1.bf16.msra.mxu0 %v6458
  %7173 = vmatprep.subr.bf16.mxu0 %v6462
  %7174 = vmatpush1.bf16.msra.mxu0 %v6461
  %7175 = vmatprep.subr.bf16.mxu0 %v6465
  %7176 = vmatpush1.bf16.msra.mxu0 %v6464
  %7177 = vmatprep.subr.bf16.mxu0 %v6468
  %7178 = vmatpush1.bf16.msra.mxu0 %v6467
  %7179 = vmatprep.subr.bf16.mxu0 %v6471
  %7180 = vmatpush1.bf16.msra.mxu0 %v6470
  %7181 = vmatprep.subr.bf16.mxu0 %v6474
  %7182 = vmatpush1.bf16.msra.mxu0 %v6473
  %7183 = vmatprep.subr.bf16.mxu0 %v6477
  %7184 = vmatpush1.bf16.msra.mxu0 %v6476
  %7185 = vmatprep.subr.bf16.mxu0 %v6480
  %7186 = vmatpush1.bf16.msra.mxu0 %v6479
  %7187 = vmatprep.mubr.bf16.mxu0 %v4836
  %7188 = vmatmul.mubr.bf16.gmra.mrb[0].mxu0 %v4835
  %v7189 = vpop.f32.mrb[0].mxu0
  %v7190 = vadd.f32 %v6997, %v7189
  %v7191 = vpop.f32.mrb[0].mxu0
  %v7192 = vadd.f32 %v6999, %v7191
  %v7193 = vpop.f32.mrb[0].mxu0
  %v7194 = vadd.f32 %v7001, %v7193
  %v7195 = vpop.f32.mrb[0].mxu0
  %v7196 = vadd.f32 %v7003, %v7195
  %7197 = vmatprep.mubr.bf16.mxu0 %v4848
  %7198 = vmatmul.mubr.bf16.gmra.mrb[0].mxu0 %v4847
  %v7199 = vpop.f32.mrb[0].mxu0
  %v7200 = vadd.f32 %v7007, %v7199
  %v7201 = vpop.f32.mrb[0].mxu0
  %v7202 = vadd.f32 %v7009, %v7201
  %v7203 = vpop.f32.mrb[0].mxu0
  %v7204 = vadd.f32 %v7011, %v7203
  %v7205 = vpop.f32.mrb[0].mxu0
  %v7206 = vadd.f32 %v7013, %v7205
  %7207 = vmatprep.mubr.bf16.mxu0 %v4860
  %7208 = vmatmul.mubr.bf16.gmra.mrb[0].mxu0 %v4859
  %v7209 = vpop.f32.mrb[0].mxu0
  %v7210 = vadd.f32 %v7017, %v7209
  %v7211 = vpop.f32.mrb[0].mxu0
  %v7212 = vadd.f32 %v7019, %v7211
  %v7213 = vpop.f32.mrb[0].mxu0
  %v7214 = vadd.f32 %v7021, %v7213
  %v7215 = vpop.f32.mrb[0].mxu0
  %v7216 = vadd.f32 %v7023, %v7215
  %7217 = vmatprep.mubr.bf16.mxu0 %v4872
  %7218 = vmatmul.mubr.bf16.gmra.mrb[0].mxu0 %v4871
  %v7219 = vpop.f32.mrb[0].mxu0
  %v7220 = vadd.f32 %v7027, %v7219
  %v7221 = vpop.f32.mrb[0].mxu0
  %v7222 = vadd.f32 %v7029, %v7221
  %v7223 = vpop.f32.mrb[0].mxu0
  %v7224 = vadd.f32 %v7031, %v7223
  %v7225 = vpop.f32.mrb[0].mxu0
  %v7226 = vadd.f32 %v7033, %v7225
  %7227 = vmatprep.mubr.bf16.mxu0 %v4884
  %7228 = vmatmul.mubr.bf16.gmra.mrb[0].mxu0 %v4883
  %v7229 = vpop.f32.mrb[0].mxu0
  %v7230 = vadd.f32 %v7037, %v7229
  %v7231 = vpop.f32.mrb[0].mxu0
  %v7232 = vadd.f32 %v7039, %v7231
  %v7233 = vpop.f32.mrb[0].mxu0
  %v7234 = vadd.f32 %v7041, %v7233
  %v7235 = vpop.f32.mrb[0].mxu0
  %v7236 = vadd.f32 %v7043, %v7235
  %7237 = vmatprep.mubr.bf16.mxu0 %v4896
  %7238 = vmatmul.mubr.bf16.gmra.mrb[0].mxu0 %v4895
  %v7239 = vpop.f32.mrb[0].mxu0
  %v7240 = vadd.f32 %v7047, %v7239
  %v7241 = vpop.f32.mrb[0].mxu0
  %v7242 = vadd.f32 %v7049, %v7241
  %v7243 = vpop.f32.mrb[0].mxu0
  %v7244 = vadd.f32 %v7051, %v7243
  %v7245 = vpop.f32.mrb[0].mxu0
  %v7246 = vadd.f32 %v7053, %v7245
  %7247 = vmatprep.mubr.bf16.mxu0 %v4908
  %7248 = vmatmul.mubr.bf16.gmra.mrb[0].mxu0 %v4907
  %v7249 = vpop.f32.mrb[0].mxu0
  %v7250 = vadd.f32 %v7057, %v7249
  %v7251 = vpop.f32.mrb[0].mxu0
  %v7252 = vadd.f32 %v7059, %v7251
  %v7253 = vpop.f32.mrb[0].mxu0
  %v7254 = vadd.f32 %v7061, %v7253
  %v7255 = vpop.f32.mrb[0].mxu0
  %v7256 = vadd.f32 %v7063, %v7255
  %7257 = vmatprep.mubr.bf16.mxu0 %v4920
  %7258 = vmatmul.mubr.bf16.gmra.mrb[0].mxu0 %v4919
  %v7259 = vpop.f32.mrb[0].mxu0
  %v7260 = vadd.f32 %v7067, %v7259
  %v7261 = vpop.f32.mrb[0].mxu0
  %v7262 = vadd.f32 %v7069, %v7261
  %v7263 = vpop.f32.mrb[0].mxu0
  %v7264 = vadd.f32 %v7071, %v7263
  %v7265 = vpop.f32.mrb[0].mxu0
  %v7266 = vadd.f32 %v7073, %v7265
  %7267 = vmatprep.mubr.bf16.mxu0 %v4932
  %7268 = vmatmul.mubr.bf16.gmra.mrb[0].mxu0 %v4931
  %v7269 = vpop.f32.mrb[0].mxu0
  %v7270 = vadd.f32 %v7077, %v7269
  %v7271 = vpop.f32.mrb[0].mxu0
  %v7272 = vadd.f32 %v7079, %v7271
  %v7273 = vpop.f32.mrb[0].mxu0
  %v7274 = vadd.f32 %v7081, %v7273
  %v7275 = vpop.f32.mrb[0].mxu0
  %v7276 = vadd.f32 %v7083, %v7275
  %7277 = vmatprep.mubr.bf16.mxu0 %v4944
  %7278 = vmatmul.mubr.bf16.gmra.mrb[0].mxu0 %v4943
  %v7279 = vpop.f32.mrb[0].mxu0
  %v7280 = vadd.f32 %v7087, %v7279
  %v7281 = vpop.f32.mrb[0].mxu0
  %v7282 = vadd.f32 %v7089, %v7281
  %v7283 = vpop.f32.mrb[0].mxu0
  %v7284 = vadd.f32 %v7091, %v7283
  %v7285 = vpop.f32.mrb[0].mxu0
  %v7286 = vadd.f32 %v7093, %v7285
  %7287 = vmatprep.mubr.bf16.mxu0 %v4956
  %7288 = vmatmul.mubr.bf16.gmra.mrb[0].mxu0 %v4955
  %v7289 = vpop.f32.mrb[0].mxu0
  %v7290 = vadd.f32 %v7097, %v7289
  %v7291 = vpop.f32.mrb[0].mxu0
  %v7292 = vadd.f32 %v7099, %v7291
  %v7293 = vpop.f32.mrb[0].mxu0
  %v7294 = vadd.f32 %v7101, %v7293
  %v7295 = vpop.f32.mrb[0].mxu0
  %v7296 = vadd.f32 %v7103, %v7295
  %7297 = vmatprep.mubr.bf16.mxu0 %v4968
  %7298 = vmatmul.mubr.bf16.gmra.mrb[0].mxu0 %v4967
  %v7299 = vpop.f32.mrb[0].mxu0
  %v7300 = vadd.f32 %v7107, %v7299
  %v7301 = vpop.f32.mrb[0].mxu0
  %v7302 = vadd.f32 %v7109, %v7301
  %v7303 = vpop.f32.mrb[0].mxu0
  %v7304 = vadd.f32 %v7111, %v7303
  %v7305 = vpop.f32.mrb[0].mxu0
  %v7306 = vadd.f32 %v7113, %v7305
  %7307 = vmatprep.mubr.bf16.mxu0 %v4980
  %7308 = vmatmul.mubr.bf16.gmra.mrb[0].mxu0 %v4979
  %v7309 = vpop.f32.mrb[0].mxu0
  %v7310 = vadd.f32 %v7117, %v7309
  %v7311 = vpop.f32.mrb[0].mxu0
  %v7312 = vadd.f32 %v7119, %v7311
  %v7313 = vpop.f32.mrb[0].mxu0
  %v7314 = vadd.f32 %v7121, %v7313
  %v7315 = vpop.f32.mrb[0].mxu0
  %v7316 = vadd.f32 %v7123, %v7315
  %7317 = vmatprep.mubr.bf16.mxu0 %v4992
  %7318 = vmatmul.mubr.bf16.gmra.mrb[0].mxu0 %v4991
  %v7319 = vpop.f32.mrb[0].mxu0
  %v7320 = vadd.f32 %v7127, %v7319
  %v7321 = vpop.f32.mrb[0].mxu0
  %v7322 = vadd.f32 %v7129, %v7321
  %v7323 = vpop.f32.mrb[0].mxu0
  %v7324 = vadd.f32 %v7131, %v7323
  %v7325 = vpop.f32.mrb[0].mxu0
  %v7326 = vadd.f32 %v7133, %v7325
  %7327 = vmatprep.mubr.bf16.mxu0 %v5004
  %7328 = vmatmul.mubr.bf16.gmra.mrb[0].mxu0 %v5003
  %v7329 = vpop.f32.mrb[0].mxu0
  %v7330 = vadd.f32 %v7137, %v7329
  %v7331 = vpop.f32.mrb[0].mxu0
  %v7332 = vadd.f32 %v7139, %v7331
  %v7333 = vpop.f32.mrb[0].mxu0
  %v7334 = vadd.f32 %v7141, %v7333
  %v7335 = vpop.f32.mrb[0].mxu0
  %v7336 = vadd.f32 %v7143, %v7335
  %7337 = vmatprep.mubr.bf16.mxu0 %v5016
  %7338 = vmatmul.mubr.bf16.gmra.mrb[0].mxu0 %v5015
  %v7339 = vpop.f32.mrb[0].mxu0
  %v7340 = vadd.f32 %v7147, %v7339
  %v7341 = vpop.f32.mrb[0].mxu0
  %v7342 = vadd.f32 %v7149, %v7341
  %v7343 = vpop.f32.mrb[0].mxu0
  %v7344 = vadd.f32 %v7151, %v7343
  %v7345 = vpop.f32.mrb[0].mxu0
  %v7346 = vadd.f32 %v7153, %v7345
  %7347 = vdwg.mxu0
  %7348 = vmatprep.subr.bf16.mxu0 %v6483
  %7349 = vmatpush1.bf16.msra.mxu0 %v6482
  %7350 = vmatprep.subr.bf16.mxu0 %v6486
  %7351 = vmatpush1.bf16.msra.mxu0 %v6485
  %7352 = vmatprep.subr.bf16.mxu0 %v6489
  %7353 = vmatpush1.bf16.msra.mxu0 %v6488
  %7354 = vmatprep.subr.bf16.mxu0 %v6492
  %7355 = vmatpush1.bf16.msra.mxu0 %v6491
  %7356 = vmatprep.subr.bf16.mxu0 %v6495
  %7357 = vmatpush1.bf16.msra.mxu0 %v6494
  %7358 = vmatprep.subr.bf16.mxu0 %v6498
  %7359 = vmatpush1.bf16.msra.mxu0 %v6497
  %7360 = vmatprep.subr.bf16.mxu0 %v6501
  %7361 = vmatpush1.bf16.msra.mxu0 %v6500
  %7362 = vmatprep.subr.bf16.mxu0 %v6504
  %7363 = vmatpush1.bf16.msra.mxu0 %v6503
  %7364 = vmatprep.subr.bf16.mxu0 %v6507
  %7365 = vmatpush1.bf16.msra.mxu0 %v6506
  %7366 = vmatprep.subr.bf16.mxu0 %v6510
  %7367 = vmatpush1.bf16.msra.mxu0 %v6509
  %7368 = vmatprep.subr.bf16.mxu0 %v6513
  %7369 = vmatpush1.bf16.msra.mxu0 %v6512
  %7370 = vmatprep.subr.bf16.mxu0 %v6516
  %7371 = vmatpush1.bf16.msra.mxu0 %v6515
  %7372 = vmatprep.subr.bf16.mxu0 %v6519
  %7373 = vmatpush1.bf16.msra.mxu0 %v6518
  %7374 = vmatprep.subr.bf16.mxu0 %v6522
  %7375 = vmatpush1.bf16.msra.mxu0 %v6521
  %7376 = vmatprep.subr.bf16.mxu0 %v6525
  %7377 = vmatpush1.bf16.msra.mxu0 %v6524
  %7378 = vmatprep.subr.bf16.mxu0 %v6528
  %7379 = vmatpush1.bf16.msra.mxu0 %v6527
  %7380 = vmatprep.mubr.bf16.mxu0 %v4838
  %7381 = vmatmul.mubr.bf16.gmra.mrb[0].mxu0 %v4837
  %v7382 = vpop.f32.mrb[0].mxu0
  %v7383 = vadd.f32 %v7190, %v7382
  %v7384 = vpop.f32.mrb[0].mxu0
  %v7385 = vadd.f32 %v7192, %v7384
  %v7386 = vpop.f32.mrb[0].mxu0
  %v7387 = vadd.f32 %v7194, %v7386
  %v7388 = vpop.f32.mrb[0].mxu0
  %v7389 = vadd.f32 %v7196, %v7388
  %7390 = vmatprep.mubr.bf16.mxu0 %v4850
  %7391 = vmatmul.mubr.bf16.gmra.mrb[0].mxu0 %v4849
  %v7392 = vpop.f32.mrb[0].mxu0
  %v7393 = vadd.f32 %v7200, %v7392
  %v7394 = vpop.f32.mrb[0].mxu0
  %v7395 = vadd.f32 %v7202, %v7394
  %v7396 = vpop.f32.mrb[0].mxu0
  %v7397 = vadd.f32 %v7204, %v7396
  %v7398 = vpop.f32.mrb[0].mxu0
  %v7399 = vadd.f32 %v7206, %v7398
  %7400 = vmatprep.mubr.bf16.mxu0 %v4862
  %7401 = vmatmul.mubr.bf16.gmra.mrb[0].mxu0 %v4861
  %v7402 = vpop.f32.mrb[0].mxu0
  %v7403 = vadd.f32 %v7210, %v7402
  %v7404 = vpop.f32.mrb[0].mxu0
  %v7405 = vadd.f32 %v7212, %v7404
  %v7406 = vpop.f32.mrb[0].mxu0
  %v7407 = vadd.f32 %v7214, %v7406
  %v7408 = vpop.f32.mrb[0].mxu0
  %v7409 = vadd.f32 %v7216, %v7408
  %7410 = vmatprep.mubr.bf16.mxu0 %v4874
  %7411 = vmatmul.mubr.bf16.gmra.mrb[0].mxu0 %v4873
  %v7412 = vpop.f32.mrb[0].mxu0
  %v7413 = vadd.f32 %v7220, %v7412
  %v7414 = vpop.f32.mrb[0].mxu0
  %v7415 = vadd.f32 %v7222, %v7414
  %v7416 = vpop.f32.mrb[0].mxu0
  %v7417 = vadd.f32 %v7224, %v7416
  %v7418 = vpop.f32.mrb[0].mxu0
  %v7419 = vadd.f32 %v7226, %v7418
  %7420 = vmatprep.mubr.bf16.mxu0 %v4886
  %7421 = vmatmul.mubr.bf16.gmra.mrb[0].mxu0 %v4885
  %v7422 = vpop.f32.mrb[0].mxu0
  %v7423 = vadd.f32 %v7230, %v7422
  %v7424 = vpop.f32.mrb[0].mxu0
  %v7425 = vadd.f32 %v7232, %v7424
  %v7426 = vpop.f32.mrb[0].mxu0
  %v7427 = vadd.f32 %v7234, %v7426
  %v7428 = vpop.f32.mrb[0].mxu0
  %v7429 = vadd.f32 %v7236, %v7428
  %7430 = vmatprep.mubr.bf16.mxu0 %v4898
  %7431 = vmatmul.mubr.bf16.gmra.mrb[0].mxu0 %v4897
  %v7432 = vpop.f32.mrb[0].mxu0
  %v7433 = vadd.f32 %v7240, %v7432
  %v7434 = vpop.f32.mrb[0].mxu0
  %v7435 = vadd.f32 %v7242, %v7434
  %v7436 = vpop.f32.mrb[0].mxu0
  %v7437 = vadd.f32 %v7244, %v7436
  %v7438 = vpop.f32.mrb[0].mxu0
  %v7439 = vadd.f32 %v7246, %v7438
  %7440 = vmatprep.mubr.bf16.mxu0 %v4910
  %7441 = vmatmul.mubr.bf16.gmra.mrb[0].mxu0 %v4909
  %v7442 = vpop.f32.mrb[0].mxu0
  %v7443 = vadd.f32 %v7250, %v7442
  %v7444 = vpop.f32.mrb[0].mxu0
  %v7445 = vadd.f32 %v7252, %v7444
  %v7446 = vpop.f32.mrb[0].mxu0
  %v7447 = vadd.f32 %v7254, %v7446
  %v7448 = vpop.f32.mrb[0].mxu0
  %v7449 = vadd.f32 %v7256, %v7448
  %7450 = vmatprep.mubr.bf16.mxu0 %v4922
  %7451 = vmatmul.mubr.bf16.gmra.mrb[0].mxu0 %v4921
  %v7452 = vpop.f32.mrb[0].mxu0
  %v7453 = vadd.f32 %v7260, %v7452
  %v7454 = vpop.f32.mrb[0].mxu0
  %v7455 = vadd.f32 %v7262, %v7454
  %v7456 = vpop.f32.mrb[0].mxu0
  %v7457 = vadd.f32 %v7264, %v7456
  %v7458 = vpop.f32.mrb[0].mxu0
  %v7459 = vadd.f32 %v7266, %v7458
  %7460 = vmatprep.mubr.bf16.mxu0 %v4934
  %7461 = vmatmul.mubr.bf16.gmra.mrb[0].mxu0 %v4933
  %v7462 = vpop.f32.mrb[0].mxu0
  %v7463 = vadd.f32 %v7270, %v7462
  %v7464 = vpop.f32.mrb[0].mxu0
  %v7465 = vadd.f32 %v7272, %v7464
  %v7466 = vpop.f32.mrb[0].mxu0
  %v7467 = vadd.f32 %v7274, %v7466
  %v7468 = vpop.f32.mrb[0].mxu0
  %v7469 = vadd.f32 %v7276, %v7468
  %7470 = vmatprep.mubr.bf16.mxu0 %v4946
  %7471 = vmatmul.mubr.bf16.gmra.mrb[0].mxu0 %v4945
  %v7472 = vpop.f32.mrb[0].mxu0
  %v7473 = vadd.f32 %v7280, %v7472
  %v7474 = vpop.f32.mrb[0].mxu0
  %v7475 = vadd.f32 %v7282, %v7474
  %v7476 = vpop.f32.mrb[0].mxu0
  %v7477 = vadd.f32 %v7284, %v7476
  %v7478 = vpop.f32.mrb[0].mxu0
  %v7479 = vadd.f32 %v7286, %v7478
  %7480 = vmatprep.mubr.bf16.mxu0 %v4958
  %7481 = vmatmul.mubr.bf16.gmra.mrb[0].mxu0 %v4957
  %v7482 = vpop.f32.mrb[0].mxu0
  %v7483 = vadd.f32 %v7290, %v7482
  %v7484 = vpop.f32.mrb[0].mxu0
  %v7485 = vadd.f32 %v7292, %v7484
  %v7486 = vpop.f32.mrb[0].mxu0
  %v7487 = vadd.f32 %v7294, %v7486
  %v7488 = vpop.f32.mrb[0].mxu0
  %v7489 = vadd.f32 %v7296, %v7488
  %7490 = vmatprep.mubr.bf16.mxu0 %v4970
  %7491 = vmatmul.mubr.bf16.gmra.mrb[0].mxu0 %v4969
  %v7492 = vpop.f32.mrb[0].mxu0
  %v7493 = vadd.f32 %v7300, %v7492
  %v7494 = vpop.f32.mrb[0].mxu0
  %v7495 = vadd.f32 %v7302, %v7494
  %v7496 = vpop.f32.mrb[0].mxu0
  %v7497 = vadd.f32 %v7304, %v7496
  %v7498 = vpop.f32.mrb[0].mxu0
  %v7499 = vadd.f32 %v7306, %v7498
  %7500 = vmatprep.mubr.bf16.mxu0 %v4982
  %7501 = vmatmul.mubr.bf16.gmra.mrb[0].mxu0 %v4981
  %v7502 = vpop.f32.mrb[0].mxu0
  %v7503 = vadd.f32 %v7310, %v7502
  %v7504 = vpop.f32.mrb[0].mxu0
  %v7505 = vadd.f32 %v7312, %v7504
  %v7506 = vpop.f32.mrb[0].mxu0
  %v7507 = vadd.f32 %v7314, %v7506
  %v7508 = vpop.f32.mrb[0].mxu0
  %v7509 = vadd.f32 %v7316, %v7508
  %7510 = vmatprep.mubr.bf16.mxu0 %v4994
  %7511 = vmatmul.mubr.bf16.gmra.mrb[0].mxu0 %v4993
  %v7512 = vpop.f32.mrb[0].mxu0
  %v7513 = vadd.f32 %v7320, %v7512
  %v7514 = vpop.f32.mrb[0].mxu0
  %v7515 = vadd.f32 %v7322, %v7514
  %v7516 = vpop.f32.mrb[0].mxu0
  %v7517 = vadd.f32 %v7324, %v7516
  %v7518 = vpop.f32.mrb[0].mxu0
  %v7519 = vadd.f32 %v7326, %v7518
  %7520 = vmatprep.mubr.bf16.mxu0 %v5006
  %7521 = vmatmul.mubr.bf16.gmra.mrb[0].mxu0 %v5005
  %v7522 = vpop.f32.mrb[0].mxu0
  %v7523 = vadd.f32 %v7330, %v7522
  %v7524 = vpop.f32.mrb[0].mxu0
  %v7525 = vadd.f32 %v7332, %v7524
  %v7526 = vpop.f32.mrb[0].mxu0
  %v7527 = vadd.f32 %v7334, %v7526
  %v7528 = vpop.f32.mrb[0].mxu0
  %v7529 = vadd.f32 %v7336, %v7528
  %7530 = vmatprep.mubr.bf16.mxu0 %v5018
  %7531 = vmatmul.mubr.bf16.gmra.mrb[0].mxu0 %v5017
  %v7532 = vpop.f32.mrb[0].mxu0
  %v7533 = vadd.f32 %v7340, %v7532
  %v7534 = vpop.f32.mrb[0].mxu0
  %v7535 = vadd.f32 %v7342, %v7534
  %v7536 = vpop.f32.mrb[0].mxu0
  %v7537 = vadd.f32 %v7344, %v7536
  %v7538 = vpop.f32.mrb[0].mxu0
  %v7539 = vadd.f32 %v7346, %v7538
  %7540 = vdwg.mxu0
  %7541 = vmatprep.subr.bf16.mxu0 %v6531
  %7542 = vmatpush1.bf16.msra.mxu0 %v6530
  %7543 = vmatprep.subr.bf16.mxu0 %v6534
  %7544 = vmatpush1.bf16.msra.mxu0 %v6533
  %7545 = vmatprep.subr.bf16.mxu0 %v6537
  %7546 = vmatpush1.bf16.msra.mxu0 %v6536
  %7547 = vmatprep.subr.bf16.mxu0 %v6540
  %7548 = vmatpush1.bf16.msra.mxu0 %v6539
  %7549 = vmatprep.subr.bf16.mxu0 %v6543
  %7550 = vmatpush1.bf16.msra.mxu0 %v6542
  %7551 = vmatprep.subr.bf16.mxu0 %v6546
  %7552 = vmatpush1.bf16.msra.mxu0 %v6545
  %7553 = vmatprep.subr.bf16.mxu0 %v6549
  %7554 = vmatpush1.bf16.msra.mxu0 %v6548
  %7555 = vmatprep.subr.bf16.mxu0 %v6552
  %7556 = vmatpush1.bf16.msra.mxu0 %v6551
  %7557 = vmatprep.subr.bf16.mxu0 %v6555
  %7558 = vmatpush1.bf16.msra.mxu0 %v6554
  %7559 = vmatprep.subr.bf16.mxu0 %v6558
  %7560 = vmatpush1.bf16.msra.mxu0 %v6557
  %7561 = vmatprep.subr.bf16.mxu0 %v6561
  %7562 = vmatpush1.bf16.msra.mxu0 %v6560
  %7563 = vmatprep.subr.bf16.mxu0 %v6564
  %7564 = vmatpush1.bf16.msra.mxu0 %v6563
  %7565 = vmatprep.subr.bf16.mxu0 %v6567
  %7566 = vmatpush1.bf16.msra.mxu0 %v6566
  %7567 = vmatprep.subr.bf16.mxu0 %v6570
  %7568 = vmatpush1.bf16.msra.mxu0 %v6569
  %7569 = vmatprep.subr.bf16.mxu0 %v6573
  %7570 = vmatpush1.bf16.msra.mxu0 %v6572
  %7571 = vmatprep.subr.bf16.mxu0 %v6576
  %7572 = vmatpush1.bf16.msra.mxu0 %v6575
  %7573 = vmatprep.mubr.bf16.mxu0 %v4840
  %7574 = vmatmul.mubr.bf16.gmra.mrb[0].mxu0 %v4839
  %v7575 = vpop.f32.mrb[0].mxu0
  %v7576 = vadd.f32 %v7383, %v7575
  %v7577 = vpop.f32.mrb[0].mxu0
  %v7578 = vadd.f32 %v7385, %v7577
  %v7579 = vpop.f32.mrb[0].mxu0
  %v7580 = vadd.f32 %v7387, %v7579
  %v7581 = vpop.f32.mrb[0].mxu0
  %v7582 = vadd.f32 %v7389, %v7581
  %7583 = vmatprep.mubr.bf16.mxu0 %v4852
  %7584 = vmatmul.mubr.bf16.gmra.mrb[0].mxu0 %v4851
  %v7585 = vpop.f32.mrb[0].mxu0
  %v7586 = vadd.f32 %v7393, %v7585
  %v7587 = vpop.f32.mrb[0].mxu0
  %v7588 = vadd.f32 %v7395, %v7587
  %v7589 = vpop.f32.mrb[0].mxu0
  %v7590 = vadd.f32 %v7397, %v7589
  %v7591 = vpop.f32.mrb[0].mxu0
  %v7592 = vadd.f32 %v7399, %v7591
  %7593 = vmatprep.mubr.bf16.mxu0 %v4864
  %7594 = vmatmul.mubr.bf16.gmra.mrb[0].mxu0 %v4863
  %v7595 = vpop.f32.mrb[0].mxu0
  %v7596 = vadd.f32 %v7403, %v7595
  %v7597 = vpop.f32.mrb[0].mxu0
  %v7598 = vadd.f32 %v7405, %v7597
  %v7599 = vpop.f32.mrb[0].mxu0
  %v7600 = vadd.f32 %v7407, %v7599
  %v7601 = vpop.f32.mrb[0].mxu0
  %v7602 = vadd.f32 %v7409, %v7601
  %7603 = vmatprep.mubr.bf16.mxu0 %v4876
  %7604 = vmatmul.mubr.bf16.gmra.mrb[0].mxu0 %v4875
  %v7605 = vpop.f32.mrb[0].mxu0
  %v7606 = vadd.f32 %v7413, %v7605
  %v7607 = vpop.f32.mrb[0].mxu0
  %v7608 = vadd.f32 %v7415, %v7607
  %v7609 = vpop.f32.mrb[0].mxu0
  %v7610 = vadd.f32 %v7417, %v7609
  %v7611 = vpop.f32.mrb[0].mxu0
  %v7612 = vadd.f32 %v7419, %v7611
  %7613 = vmatprep.mubr.bf16.mxu0 %v4888
  %7614 = vmatmul.mubr.bf16.gmra.mrb[0].mxu0 %v4887
  %v7615 = vpop.f32.mrb[0].mxu0
  %v7616 = vadd.f32 %v7423, %v7615
  %v7617 = vpop.f32.mrb[0].mxu0
  %v7618 = vadd.f32 %v7425, %v7617
  %v7619 = vpop.f32.mrb[0].mxu0
  %v7620 = vadd.f32 %v7427, %v7619
  %v7621 = vpop.f32.mrb[0].mxu0
  %v7622 = vadd.f32 %v7429, %v7621
  %7623 = vmatprep.mubr.bf16.mxu0 %v4900
  %7624 = vmatmul.mubr.bf16.gmra.mrb[0].mxu0 %v4899
  %v7625 = vpop.f32.mrb[0].mxu0
  %v7626 = vadd.f32 %v7433, %v7625
  %v7627 = vpop.f32.mrb[0].mxu0
  %v7628 = vadd.f32 %v7435, %v7627
  %v7629 = vpop.f32.mrb[0].mxu0
  %v7630 = vadd.f32 %v7437, %v7629
  %v7631 = vpop.f32.mrb[0].mxu0
  %v7632 = vadd.f32 %v7439, %v7631
  %7633 = vmatprep.mubr.bf16.mxu0 %v4912
  %7634 = vmatmul.mubr.bf16.gmra.mrb[0].mxu0 %v4911
  %v7635 = vpop.f32.mrb[0].mxu0
  %v7636 = vadd.f32 %v7443, %v7635
  %v7637 = vpop.f32.mrb[0].mxu0
  %v7638 = vadd.f32 %v7445, %v7637
  %v7639 = vpop.f32.mrb[0].mxu0
  %v7640 = vadd.f32 %v7447, %v7639
  %v7641 = vpop.f32.mrb[0].mxu0
  %v7642 = vadd.f32 %v7449, %v7641
  %7643 = vmatprep.mubr.bf16.mxu0 %v4924
  %7644 = vmatmul.mubr.bf16.gmra.mrb[0].mxu0 %v4923
  %v7645 = vpop.f32.mrb[0].mxu0
  %v7646 = vadd.f32 %v7453, %v7645
  %v7647 = vpop.f32.mrb[0].mxu0
  %v7648 = vadd.f32 %v7455, %v7647
  %v7649 = vpop.f32.mrb[0].mxu0
  %v7650 = vadd.f32 %v7457, %v7649
  %v7651 = vpop.f32.mrb[0].mxu0
  %v7652 = vadd.f32 %v7459, %v7651
  %7653 = vmatprep.mubr.bf16.mxu0 %v4936
  %7654 = vmatmul.mubr.bf16.gmra.mrb[0].mxu0 %v4935
  %v7655 = vpop.f32.mrb[0].mxu0
  %v7656 = vadd.f32 %v7463, %v7655
  %v7657 = vpop.f32.mrb[0].mxu0
  %v7658 = vadd.f32 %v7465, %v7657
  %v7659 = vpop.f32.mrb[0].mxu0
  %v7660 = vadd.f32 %v7467, %v7659
  %v7661 = vpop.f32.mrb[0].mxu0
  %v7662 = vadd.f32 %v7469, %v7661
  %7663 = vmatprep.mubr.bf16.mxu0 %v4948
  %7664 = vmatmul.mubr.bf16.gmra.mrb[0].mxu0 %v4947
  %v7665 = vpop.f32.mrb[0].mxu0
  %v7666 = vadd.f32 %v7473, %v7665
  %v7667 = vpop.f32.mrb[0].mxu0
  %v7668 = vadd.f32 %v7475, %v7667
  %v7669 = vpop.f32.mrb[0].mxu0
  %v7670 = vadd.f32 %v7477, %v7669
  %v7671 = vpop.f32.mrb[0].mxu0
  %v7672 = vadd.f32 %v7479, %v7671
  %7673 = vmatprep.mubr.bf16.mxu0 %v4960
  %7674 = vmatmul.mubr.bf16.gmra.mrb[0].mxu0 %v4959
  %v7675 = vpop.f32.mrb[0].mxu0
  %v7676 = vadd.f32 %v7483, %v7675
  %v7677 = vpop.f32.mrb[0].mxu0
  %v7678 = vadd.f32 %v7485, %v7677
  %v7679 = vpop.f32.mrb[0].mxu0
  %v7680 = vadd.f32 %v7487, %v7679
  %v7681 = vpop.f32.mrb[0].mxu0
  %v7682 = vadd.f32 %v7489, %v7681
  %7683 = vmatprep.mubr.bf16.mxu0 %v4972
  %7684 = vmatmul.mubr.bf16.gmra.mrb[0].mxu0 %v4971
  %v7685 = vpop.f32.mrb[0].mxu0
  %v7686 = vadd.f32 %v7493, %v7685
  %v7687 = vpop.f32.mrb[0].mxu0
  %v7688 = vadd.f32 %v7495, %v7687
  %v7689 = vpop.f32.mrb[0].mxu0
  %v7690 = vadd.f32 %v7497, %v7689
  %v7691 = vpop.f32.mrb[0].mxu0
  %v7692 = vadd.f32 %v7499, %v7691
  %7693 = vmatprep.mubr.bf16.mxu0 %v4984
  %7694 = vmatmul.mubr.bf16.gmra.mrb[0].mxu0 %v4983
  %v7695 = vpop.f32.mrb[0].mxu0
  %v7696 = vadd.f32 %v7503, %v7695
  %v7697 = vpop.f32.mrb[0].mxu0
  %v7698 = vadd.f32 %v7505, %v7697
  %v7699 = vpop.f32.mrb[0].mxu0
  %v7700 = vadd.f32 %v7507, %v7699
  %v7701 = vpop.f32.mrb[0].mxu0
  %v7702 = vadd.f32 %v7509, %v7701
  %7703 = vmatprep.mubr.bf16.mxu0 %v4996
  %7704 = vmatmul.mubr.bf16.gmra.mrb[0].mxu0 %v4995
  %v7705 = vpop.f32.mrb[0].mxu0
  %v7706 = vadd.f32 %v7513, %v7705
  %v7707 = vpop.f32.mrb[0].mxu0
  %v7708 = vadd.f32 %v7515, %v7707
  %v7709 = vpop.f32.mrb[0].mxu0
  %v7710 = vadd.f32 %v7517, %v7709
  %v7711 = vpop.f32.mrb[0].mxu0
  %v7712 = vadd.f32 %v7519, %v7711
  %7713 = vmatprep.mubr.bf16.mxu0 %v5008
  %7714 = vmatmul.mubr.bf16.gmra.mrb[0].mxu0 %v5007
  %v7715 = vpop.f32.mrb[0].mxu0
  %v7716 = vadd.f32 %v7523, %v7715
  %v7717 = vpop.f32.mrb[0].mxu0
  %v7718 = vadd.f32 %v7525, %v7717
  %v7719 = vpop.f32.mrb[0].mxu0
  %v7720 = vadd.f32 %v7527, %v7719
  %v7721 = vpop.f32.mrb[0].mxu0
  %v7722 = vadd.f32 %v7529, %v7721
  %7723 = vmatprep.mubr.bf16.mxu0 %v5020
  %7724 = vmatmul.mubr.bf16.gmra.mrb[0].mxu0 %v5019
  %v7725 = vpop.f32.mrb[0].mxu0
  %v7726 = vadd.f32 %v7533, %v7725
  %v7727 = vpop.f32.mrb[0].mxu0
  %v7728 = vadd.f32 %v7535, %v7727
  %v7729 = vpop.f32.mrb[0].mxu0
  %v7730 = vadd.f32 %v7537, %v7729
  %v7731 = vpop.f32.mrb[0].mxu0
  %v7732 = vadd.f32 %v7539, %v7731
  %7733 = vdwg.mxu0
  %7734 = vmatprep.subr.bf16.mxu0 %v6579
  %7735 = vmatpush1.bf16.msra.mxu0 %v6578
  %7736 = vmatprep.subr.bf16.mxu0 %v6582
  %7737 = vmatpush1.bf16.msra.mxu0 %v6581
  %7738 = vmatprep.subr.bf16.mxu0 %v6585
  %7739 = vmatpush1.bf16.msra.mxu0 %v6584
  %7740 = vmatprep.subr.bf16.mxu0 %v6588
  %7741 = vmatpush1.bf16.msra.mxu0 %v6587
  %7742 = vmatprep.subr.bf16.mxu0 %v6591
  %7743 = vmatpush1.bf16.msra.mxu0 %v6590
  %7744 = vmatprep.subr.bf16.mxu0 %v6594
  %7745 = vmatpush1.bf16.msra.mxu0 %v6593
  %7746 = vmatprep.subr.bf16.mxu0 %v6597
  %7747 = vmatpush1.bf16.msra.mxu0 %v6596
  %7748 = vmatprep.subr.bf16.mxu0 %v6600
  %7749 = vmatpush1.bf16.msra.mxu0 %v6599
  %7750 = vmatprep.subr.bf16.mxu0 %v6603
  %7751 = vmatpush1.bf16.msra.mxu0 %v6602
  %7752 = vmatprep.subr.bf16.mxu0 %v6606
  %7753 = vmatpush1.bf16.msra.mxu0 %v6605
  %7754 = vmatprep.subr.bf16.mxu0 %v6609
  %7755 = vmatpush1.bf16.msra.mxu0 %v6608
  %7756 = vmatprep.subr.bf16.mxu0 %v6612
  %7757 = vmatpush1.bf16.msra.mxu0 %v6611
  %7758 = vmatprep.subr.bf16.mxu0 %v6615
  %7759 = vmatpush1.bf16.msra.mxu0 %v6614
  %7760 = vmatprep.subr.bf16.mxu0 %v6618
  %7761 = vmatpush1.bf16.msra.mxu0 %v6617
  %7762 = vmatprep.subr.bf16.mxu0 %v6621
  %7763 = vmatpush1.bf16.msra.mxu0 %v6620
  %7764 = vmatprep.subr.bf16.mxu0 %v6624
  %7765 = vmatpush1.bf16.msra.mxu0 %v6623
  %7766 = vmatprep.mubr.bf16.mxu0 %v4842
  %7767 = vmatmul.mubr.bf16.gmra.mrb[0].mxu0 %v4841
  %v7768 = vpop.f32.mrb[0].mxu0
  %v7769 = vadd.f32 %v7576, %v7768
  %v7770 = vpop.f32.mrb[0].mxu0
  %v7771 = vadd.f32 %v7578, %v7770
  %v7772 = vpop.f32.mrb[0].mxu0
  %v7773 = vadd.f32 %v7580, %v7772
  %v7774 = vpop.f32.mrb[0].mxu0
  %v7775 = vadd.f32 %v7582, %v7774
  %7776 = vmatprep.mubr.bf16.mxu0 %v4854
  %7777 = vmatmul.mubr.bf16.gmra.mrb[0].mxu0 %v4853
  %v7778 = vpop.f32.mrb[0].mxu0
  %v7779 = vadd.f32 %v7586, %v7778
  %v7780 = vpop.f32.mrb[0].mxu0
  %v7781 = vadd.f32 %v7588, %v7780
  %v7782 = vpop.f32.mrb[0].mxu0
  %v7783 = vadd.f32 %v7590, %v7782
  %v7784 = vpop.f32.mrb[0].mxu0
  %v7785 = vadd.f32 %v7592, %v7784
  %7786 = vmatprep.mubr.bf16.mxu0 %v4866
  %7787 = vmatmul.mubr.bf16.gmra.mrb[0].mxu0 %v4865
  %v7788 = vpop.f32.mrb[0].mxu0
  %v7789 = vadd.f32 %v7596, %v7788
  %v7790 = vpop.f32.mrb[0].mxu0
  %v7791 = vadd.f32 %v7598, %v7790
  %v7792 = vpop.f32.mrb[0].mxu0
  %v7793 = vadd.f32 %v7600, %v7792
  %v7794 = vpop.f32.mrb[0].mxu0
  %v7795 = vadd.f32 %v7602, %v7794
  %7796 = vmatprep.mubr.bf16.mxu0 %v4878
  %7797 = vmatmul.mubr.bf16.gmra.mrb[0].mxu0 %v4877
  %v7798 = vpop.f32.mrb[0].mxu0
  %v7799 = vadd.f32 %v7606, %v7798
  %v7800 = vpop.f32.mrb[0].mxu0
  %v7801 = vadd.f32 %v7608, %v7800
  %v7802 = vpop.f32.mrb[0].mxu0
  %v7803 = vadd.f32 %v7610, %v7802
  %v7804 = vpop.f32.mrb[0].mxu0
  %v7805 = vadd.f32 %v7612, %v7804
  %7806 = vmatprep.mubr.bf16.mxu0 %v4890
  %7807 = vmatmul.mubr.bf16.gmra.mrb[0].mxu0 %v4889
  %v7808 = vpop.f32.mrb[0].mxu0
  %v7809 = vadd.f32 %v7616, %v7808
  %v7810 = vpop.f32.mrb[0].mxu0
  %v7811 = vadd.f32 %v7618, %v7810
  %v7812 = vpop.f32.mrb[0].mxu0
  %v7813 = vadd.f32 %v7620, %v7812
  %v7814 = vpop.f32.mrb[0].mxu0
  %v7815 = vadd.f32 %v7622, %v7814
  %7816 = vmatprep.mubr.bf16.mxu0 %v4902
  %7817 = vmatmul.mubr.bf16.gmra.mrb[0].mxu0 %v4901
  %v7818 = vpop.f32.mrb[0].mxu0
  %v7819 = vadd.f32 %v7626, %v7818
  %v7820 = vpop.f32.mrb[0].mxu0
  %v7821 = vadd.f32 %v7628, %v7820
  %v7822 = vpop.f32.mrb[0].mxu0
  %v7823 = vadd.f32 %v7630, %v7822
  %v7824 = vpop.f32.mrb[0].mxu0
  %v7825 = vadd.f32 %v7632, %v7824
  %7826 = vmatprep.mubr.bf16.mxu0 %v4914
  %7827 = vmatmul.mubr.bf16.gmra.mrb[0].mxu0 %v4913
  %v7828 = vpop.f32.mrb[0].mxu0
  %v7829 = vadd.f32 %v7636, %v7828
  %v7830 = vpop.f32.mrb[0].mxu0
  %v7831 = vadd.f32 %v7638, %v7830
  %v7832 = vpop.f32.mrb[0].mxu0
  %v7833 = vadd.f32 %v7640, %v7832
  %v7834 = vpop.f32.mrb[0].mxu0
  %v7835 = vadd.f32 %v7642, %v7834
  %7836 = vmatprep.mubr.bf16.mxu0 %v4926
  %7837 = vmatmul.mubr.bf16.gmra.mrb[0].mxu0 %v4925
  %v7838 = vpop.f32.mrb[0].mxu0
  %v7839 = vadd.f32 %v7646, %v7838
  %v7840 = vpop.f32.mrb[0].mxu0
  %v7841 = vadd.f32 %v7648, %v7840
  %v7842 = vpop.f32.mrb[0].mxu0
  %v7843 = vadd.f32 %v7650, %v7842
  %v7844 = vpop.f32.mrb[0].mxu0
  %v7845 = vadd.f32 %v7652, %v7844
  %7846 = vmatprep.mubr.bf16.mxu0 %v4938
  %7847 = vmatmul.mubr.bf16.gmra.mrb[0].mxu0 %v4937
  %v7848 = vpop.f32.mrb[0].mxu0
  %v7849 = vadd.f32 %v7656, %v7848
  %v7850 = vpop.f32.mrb[0].mxu0
  %v7851 = vadd.f32 %v7658, %v7850
  %v7852 = vpop.f32.mrb[0].mxu0
  %v7853 = vadd.f32 %v7660, %v7852
  %v7854 = vpop.f32.mrb[0].mxu0
  %v7855 = vadd.f32 %v7662, %v7854
  %7856 = vmatprep.mubr.bf16.mxu0 %v4950
  %7857 = vmatmul.mubr.bf16.gmra.mrb[0].mxu0 %v4949
  %v7858 = vpop.f32.mrb[0].mxu0
  %v7859 = vadd.f32 %v7666, %v7858
  %v7860 = vpop.f32.mrb[0].mxu0
  %v7861 = vadd.f32 %v7668, %v7860
  %v7862 = vpop.f32.mrb[0].mxu0
  %v7863 = vadd.f32 %v7670, %v7862
  %v7864 = vpop.f32.mrb[0].mxu0
  %v7865 = vadd.f32 %v7672, %v7864
  %7866 = vmatprep.mubr.bf16.mxu0 %v4962
  %7867 = vmatmul.mubr.bf16.gmra.mrb[0].mxu0 %v4961
  %v7868 = vpop.f32.mrb[0].mxu0
  %v7869 = vadd.f32 %v7676, %v7868
  %v7870 = vpop.f32.mrb[0].mxu0
  %v7871 = vadd.f32 %v7678, %v7870
  %v7872 = vpop.f32.mrb[0].mxu0
  %v7873 = vadd.f32 %v7680, %v7872
  %v7874 = vpop.f32.mrb[0].mxu0
  %v7875 = vadd.f32 %v7682, %v7874
  %7876 = vmatprep.mubr.bf16.mxu0 %v4974
  %7877 = vmatmul.mubr.bf16.gmra.mrb[0].mxu0 %v4973
  %v7878 = vpop.f32.mrb[0].mxu0
  %v7879 = vadd.f32 %v7686, %v7878
  %v7880 = vpop.f32.mrb[0].mxu0
  %v7881 = vadd.f32 %v7688, %v7880
  %v7882 = vpop.f32.mrb[0].mxu0
  %v7883 = vadd.f32 %v7690, %v7882
  %v7884 = vpop.f32.mrb[0].mxu0
  %v7885 = vadd.f32 %v7692, %v7884
  %7886 = vmatprep.mubr.bf16.mxu0 %v4986
  %7887 = vmatmul.mubr.bf16.gmra.mrb[0].mxu0 %v4985
  %v7888 = vpop.f32.mrb[0].mxu0
  %v7889 = vadd.f32 %v7696, %v7888
  %v7890 = vpop.f32.mrb[0].mxu0
  %v7891 = vadd.f32 %v7698, %v7890
  %v7892 = vpop.f32.mrb[0].mxu0
  %v7893 = vadd.f32 %v7700, %v7892
  %v7894 = vpop.f32.mrb[0].mxu0
  %v7895 = vadd.f32 %v7702, %v7894
  %7896 = vmatprep.mubr.bf16.mxu0 %v4998
  %7897 = vmatmul.mubr.bf16.gmra.mrb[0].mxu0 %v4997
  %v7898 = vpop.f32.mrb[0].mxu0
  %v7899 = vadd.f32 %v7706, %v7898
  %v7900 = vpop.f32.mrb[0].mxu0
  %v7901 = vadd.f32 %v7708, %v7900
  %v7902 = vpop.f32.mrb[0].mxu0
  %v7903 = vadd.f32 %v7710, %v7902
  %v7904 = vpop.f32.mrb[0].mxu0
  %v7905 = vadd.f32 %v7712, %v7904
  %7906 = vmatprep.mubr.bf16.mxu0 %v5010
  %7907 = vmatmul.mubr.bf16.gmra.mrb[0].mxu0 %v5009
  %v7908 = vpop.f32.mrb[0].mxu0
  %v7909 = vadd.f32 %v7716, %v7908
  %v7910 = vpop.f32.mrb[0].mxu0
  %v7911 = vadd.f32 %v7718, %v7910
  %v7912 = vpop.f32.mrb[0].mxu0
  %v7913 = vadd.f32 %v7720, %v7912
  %v7914 = vpop.f32.mrb[0].mxu0
  %v7915 = vadd.f32 %v7722, %v7914
  %7916 = vmatprep.mubr.bf16.mxu0 %v5022
  %7917 = vmatmul.mubr.bf16.gmra.mrb[0].mxu0 %v5021
  %v7918 = vpop.f32.mrb[0].mxu0
  %v7919 = vadd.f32 %v7726, %v7918
  %v7920 = vpop.f32.mrb[0].mxu0
  %v7921 = vadd.f32 %v7728, %v7920
  %v7922 = vpop.f32.mrb[0].mxu0
  %v7923 = vadd.f32 %v7730, %v7922
  %v7924 = vpop.f32.mrb[0].mxu0
  %v7925 = vadd.f32 %v7732, %v7924
  %7926 = vdwg.mxu0
  %7927 = vmatprep.subr.bf16.mxu0 %v6627
  %7928 = vmatpush1.bf16.msra.mxu0 %v6626
  %7929 = vmatprep.subr.bf16.mxu0 %v6630
  %7930 = vmatpush1.bf16.msra.mxu0 %v6629
  %7931 = vmatprep.subr.bf16.mxu0 %v6633
  %7932 = vmatpush1.bf16.msra.mxu0 %v6632
  %7933 = vmatprep.subr.bf16.mxu0 %v6636
  %7934 = vmatpush1.bf16.msra.mxu0 %v6635
  %7935 = vmatprep.subr.bf16.mxu0 %v6639
  %7936 = vmatpush1.bf16.msra.mxu0 %v6638
  %7937 = vmatprep.subr.bf16.mxu0 %v6642
  %7938 = vmatpush1.bf16.msra.mxu0 %v6641
  %7939 = vmatprep.subr.bf16.mxu0 %v6645
  %7940 = vmatpush1.bf16.msra.mxu0 %v6644
  %7941 = vmatprep.subr.bf16.mxu0 %v6648
  %7942 = vmatpush1.bf16.msra.mxu0 %v6647
  %7943 = vmatprep.subr.bf16.mxu0 %v6651
  %7944 = vmatpush1.bf16.msra.mxu0 %v6650
  %7945 = vmatprep.subr.bf16.mxu0 %v6654
  %7946 = vmatpush1.bf16.msra.mxu0 %v6653
  %7947 = vmatprep.subr.bf16.mxu0 %v6657
  %7948 = vmatpush1.bf16.msra.mxu0 %v6656
  %7949 = vmatprep.subr.bf16.mxu0 %v6660
  %7950 = vmatpush1.bf16.msra.mxu0 %v6659
  %7951 = vmatprep.subr.bf16.mxu0 %v6663
  %7952 = vmatpush1.bf16.msra.mxu0 %v6662
  %7953 = vmatprep.subr.bf16.mxu0 %v6666
  %7954 = vmatpush1.bf16.msra.mxu0 %v6665
  %7955 = vmatprep.subr.bf16.mxu0 %v6669
  %7956 = vmatpush1.bf16.msra.mxu0 %v6668
  %7957 = vmatprep.subr.bf16.mxu0 %v6672
  %7958 = vmatpush1.bf16.msra.mxu0 %v6671
  %7959 = vmatprep.mubr.bf16.mxu0 %v4844
  %7960 = vmatmul.mubr.bf16.gmra.mrb[0].mxu0 %v4843
  %v7961 = vpop.f32.mrb[0].mxu0
  %v7962 = vadd.f32 %v7769, %v7961
  %v7963 = vpop.f32.mrb[0].mxu0
  %v7964 = vadd.f32 %v7771, %v7963
  %v7965 = vpop.f32.mrb[0].mxu0
  %v7966 = vadd.f32 %v7773, %v7965
  %v7967 = vpop.f32.mrb[0].mxu0
  %v7968 = vadd.f32 %v7775, %v7967
  %7969 = vmatprep.mubr.bf16.mxu0 %v4856
  %7970 = vmatmul.mubr.bf16.gmra.mrb[0].mxu0 %v4855
  %v7971 = vpop.f32.mrb[0].mxu0
  %v7972 = vadd.f32 %v7779, %v7971
  %v7973 = vpop.f32.mrb[0].mxu0
  %v7974 = vadd.f32 %v7781, %v7973
  %v7975 = vpop.f32.mrb[0].mxu0
  %v7976 = vadd.f32 %v7783, %v7975
  %v7977 = vpop.f32.mrb[0].mxu0
  %v7978 = vadd.f32 %v7785, %v7977
  %7979 = vmatprep.mubr.bf16.mxu0 %v4868
  %7980 = vmatmul.mubr.bf16.gmra.mrb[0].mxu0 %v4867
  %v7981 = vpop.f32.mrb[0].mxu0
  %v7982 = vadd.f32 %v7789, %v7981
  %v7983 = vpop.f32.mrb[0].mxu0
  %v7984 = vadd.f32 %v7791, %v7983
  %v7985 = vpop.f32.mrb[0].mxu0
  %v7986 = vadd.f32 %v7793, %v7985
  %v7987 = vpop.f32.mrb[0].mxu0
  %v7988 = vadd.f32 %v7795, %v7987
  %7989 = vmatprep.mubr.bf16.mxu0 %v4880
  %7990 = vmatmul.mubr.bf16.gmra.mrb[0].mxu0 %v4879
  %v7991 = vpop.f32.mrb[0].mxu0
  %v7992 = vadd.f32 %v7799, %v7991
  %v7993 = vpop.f32.mrb[0].mxu0
  %v7994 = vadd.f32 %v7801, %v7993
  %v7995 = vpop.f32.mrb[0].mxu0
  %v7996 = vadd.f32 %v7803, %v7995
  %v7997 = vpop.f32.mrb[0].mxu0
  %v7998 = vadd.f32 %v7805, %v7997
  %7999 = vmatprep.mubr.bf16.mxu0 %v4892
  %8000 = vmatmul.mubr.bf16.gmra.mrb[0].mxu0 %v4891
  %v8001 = vpop.f32.mrb[0].mxu0
  %v8002 = vadd.f32 %v7809, %v8001
  %v8003 = vpop.f32.mrb[0].mxu0
  %v8004 = vadd.f32 %v7811, %v8003
  %v8005 = vpop.f32.mrb[0].mxu0
  %v8006 = vadd.f32 %v7813, %v8005
  %v8007 = vpop.f32.mrb[0].mxu0
  %v8008 = vadd.f32 %v7815, %v8007
  %8009 = vmatprep.mubr.bf16.mxu0 %v4904
  %8010 = vmatmul.mubr.bf16.gmra.mrb[0].mxu0 %v4903
  %v8011 = vpop.f32.mrb[0].mxu0
  %v8012 = vadd.f32 %v7819, %v8011
  %v8013 = vpop.f32.mrb[0].mxu0
  %v8014 = vadd.f32 %v7821, %v8013
  %v8015 = vpop.f32.mrb[0].mxu0
  %v8016 = vadd.f32 %v7823, %v8015
  %v8017 = vpop.f32.mrb[0].mxu0
  %v8018 = vadd.f32 %v7825, %v8017
  %8019 = vmatprep.mubr.bf16.mxu0 %v4916
  %8020 = vmatmul.mubr.bf16.gmra.mrb[0].mxu0 %v4915
  %v8021 = vpop.f32.mrb[0].mxu0
  %v8022 = vadd.f32 %v7829, %v8021
  %v8023 = vpop.f32.mrb[0].mxu0
  %v8024 = vadd.f32 %v7831, %v8023
  %v8025 = vpop.f32.mrb[0].mxu0
  %v8026 = vadd.f32 %v7833, %v8025
  %v8027 = vpop.f32.mrb[0].mxu0
  %v8028 = vadd.f32 %v7835, %v8027
  %8029 = vmatprep.mubr.bf16.mxu0 %v4928
  %8030 = vmatmul.mubr.bf16.gmra.mrb[0].mxu0 %v4927
  %v8031 = vpop.f32.mrb[0].mxu0
  %v8032 = vadd.f32 %v7839, %v8031
  %v8033 = vpop.f32.mrb[0].mxu0
  %v8034 = vadd.f32 %v7841, %v8033
  %v8035 = vpop.f32.mrb[0].mxu0
  %v8036 = vadd.f32 %v7843, %v8035
  %v8037 = vpop.f32.mrb[0].mxu0
  %v8038 = vadd.f32 %v7845, %v8037
  %8039 = vmatprep.mubr.bf16.mxu0 %v4940
  %8040 = vmatmul.mubr.bf16.gmra.mrb[0].mxu0 %v4939
  %v8041 = vpop.f32.mrb[0].mxu0
  %v8042 = vadd.f32 %v7849, %v8041
  %v8043 = vpop.f32.mrb[0].mxu0
  %v8044 = vadd.f32 %v7851, %v8043
  %v8045 = vpop.f32.mrb[0].mxu0
  %v8046 = vadd.f32 %v7853, %v8045
  %v8047 = vpop.f32.mrb[0].mxu0
  %v8048 = vadd.f32 %v7855, %v8047
  %8049 = vmatprep.mubr.bf16.mxu0 %v4952
  %8050 = vmatmul.mubr.bf16.gmra.mrb[0].mxu0 %v4951
  %v8051 = vpop.f32.mrb[0].mxu0
  %v8052 = vadd.f32 %v7859, %v8051
  %v8053 = vpop.f32.mrb[0].mxu0
  %v8054 = vadd.f32 %v7861, %v8053
  %v8055 = vpop.f32.mrb[0].mxu0
  %v8056 = vadd.f32 %v7863, %v8055
  %v8057 = vpop.f32.mrb[0].mxu0
  %v8058 = vadd.f32 %v7865, %v8057
  %8059 = vmatprep.mubr.bf16.mxu0 %v4964
  %8060 = vmatmul.mubr.bf16.gmra.mrb[0].mxu0 %v4963
  %v8061 = vpop.f32.mrb[0].mxu0
  %v8062 = vadd.f32 %v7869, %v8061
  %v8063 = vpop.f32.mrb[0].mxu0
  %v8064 = vadd.f32 %v7871, %v8063
  %v8065 = vpop.f32.mrb[0].mxu0
  %v8066 = vadd.f32 %v7873, %v8065
  %v8067 = vpop.f32.mrb[0].mxu0
  %v8068 = vadd.f32 %v7875, %v8067
  %8069 = vmatprep.mubr.bf16.mxu0 %v4976
  %8070 = vmatmul.mubr.bf16.gmra.mrb[0].mxu0 %v4975
  %v8071 = vpop.f32.mrb[0].mxu0
  %v8072 = vadd.f32 %v7879, %v8071
  %v8073 = vpop.f32.mrb[0].mxu0
  %v8074 = vadd.f32 %v7881, %v8073
  %v8075 = vpop.f32.mrb[0].mxu0
  %v8076 = vadd.f32 %v7883, %v8075
  %v8077 = vpop.f32.mrb[0].mxu0
  %v8078 = vadd.f32 %v7885, %v8077
  %8079 = vmatprep.mubr.bf16.mxu0 %v4988
  %8080 = vmatmul.mubr.bf16.gmra.mrb[0].mxu0 %v4987
  %v8081 = vpop.f32.mrb[0].mxu0
  %v8082 = vadd.f32 %v7889, %v8081
  %v8083 = vpop.f32.mrb[0].mxu0
  %v8084 = vadd.f32 %v7891, %v8083
  %v8085 = vpop.f32.mrb[0].mxu0
  %v8086 = vadd.f32 %v7893, %v8085
  %v8087 = vpop.f32.mrb[0].mxu0
  %v8088 = vadd.f32 %v7895, %v8087
  %8089 = vmatprep.mubr.bf16.mxu0 %v5000
  %8090 = vmatmul.mubr.bf16.gmra.mrb[0].mxu0 %v4999
  %v8091 = vpop.f32.mrb[0].mxu0
  %v8092 = vadd.f32 %v7899, %v8091
  %v8093 = vpop.f32.mrb[0].mxu0
  %v8094 = vadd.f32 %v7901, %v8093
  %v8095 = vpop.f32.mrb[0].mxu0
  %v8096 = vadd.f32 %v7903, %v8095
  %v8097 = vpop.f32.mrb[0].mxu0
  %v8098 = vadd.f32 %v7905, %v8097
  %8099 = vmatprep.mubr.bf16.mxu0 %v5012
  %8100 = vmatmul.mubr.bf16.gmra.mrb[0].mxu0 %v5011
  %v8101 = vpop.f32.mrb[0].mxu0
  %v8102 = vadd.f32 %v7909, %v8101
  %v8103 = vpop.f32.mrb[0].mxu0
  %v8104 = vadd.f32 %v7911, %v8103
  %v8105 = vpop.f32.mrb[0].mxu0
  %v8106 = vadd.f32 %v7913, %v8105
  %v8107 = vpop.f32.mrb[0].mxu0
  %v8108 = vadd.f32 %v7915, %v8107
  %8109 = vmatprep.mubr.bf16.mxu0 %v5024
  %8110 = vmatmul.mubr.bf16.gmra.mrb[0].mxu0 %v5023
  %v8111 = vpop.f32.mrb[0].mxu0
  %v8112 = vadd.f32 %v7919, %v8111
  %v8113 = vpop.f32.mrb[0].mxu0
  %v8114 = vadd.f32 %v7921, %v8113
  %v8115 = vpop.f32.mrb[0].mxu0
  %v8116 = vadd.f32 %v7923, %v8115
  %v8117 = vpop.f32.mrb[0].mxu0
  %v8118 = vadd.f32 %v7925, %v8117
  %8119 = vdwg.mxu0
  %8120 = vmatprep.subr.bf16.mxu0 0
  %8121 = vmatpush1.bf16.msra.mxu0 %v6388
  %8122 = vmatprep.subr.bf16.mxu0 0
  %8123 = vmatpush1.bf16.msra.mxu0 %v6391
  %8124 = vmatprep.subr.bf16.mxu0 0
  %8125 = vmatpush1.bf16.msra.mxu0 %v6394
  %8126 = vmatprep.subr.bf16.mxu0 0
  %8127 = vmatpush1.bf16.msra.mxu0 %v6397
  %8128 = vmatprep.subr.bf16.mxu0 0
  %8129 = vmatpush1.bf16.msra.mxu0 %v6400
  %8130 = vmatprep.subr.bf16.mxu0 0
  %8131 = vmatpush1.bf16.msra.mxu0 %v6403
  %8132 = vmatprep.subr.bf16.mxu0 0
  %8133 = vmatpush1.bf16.msra.mxu0 %v6406
  %8134 = vmatprep.subr.bf16.mxu0 0
  %8135 = vmatpush1.bf16.msra.mxu0 %v6409
  %8136 = vmatprep.subr.bf16.mxu0 0
  %8137 = vmatpush1.bf16.msra.mxu0 %v6412
  %8138 = vmatprep.subr.bf16.mxu0 0
  %8139 = vmatpush1.bf16.msra.mxu0 %v6415
  %8140 = vmatprep.subr.bf16.mxu0 0
  %8141 = vmatpush1.bf16.msra.mxu0 %v6418
  %8142 = vmatprep.subr.bf16.mxu0 0
  %8143 = vmatpush1.bf16.msra.mxu0 %v6421
  %8144 = vmatprep.subr.bf16.mxu0 0
  %8145 = vmatpush1.bf16.msra.mxu0 %v6424
  %8146 = vmatprep.subr.bf16.mxu0 0
  %8147 = vmatpush1.bf16.msra.mxu0 %v6427
  %8148 = vmatprep.subr.bf16.mxu0 0
  %8149 = vmatpush1.bf16.msra.mxu0 %v6430
  %8150 = vmatprep.subr.bf16.mxu0 0
  %8151 = vmatpush1.bf16.msra.mxu0 %v6433
  %8152 = vmatprep.mubr.bf16.mxu0 %v4834
  %8153 = vmatmul.mubr.bf16.gmra.mrb[0].mxu0 %v4833
  %v8154 = vpop.f32.mrb[0].mxu0
  %v8155 = vadd.f32 %v5422, %v8154
  %v8156 = vpop.f32.mrb[0].mxu0
  %v8157 = vpop.f32.mrb[0].mxu0
  %v8158 = vadd.f32 %v5422, %v8157
  %v8159 = vpop.f32.mrb[0].mxu0
  %8160 = vmatprep.mubr.bf16.mxu0 %v4846
  %8161 = vmatmul.mubr.bf16.gmra.mrb[0].mxu0 %v4845
  %v8162 = vpop.f32.mrb[0].mxu0
  %v8163 = vadd.f32 %v5422, %v8162
  %v8164 = vpop.f32.mrb[0].mxu0
  %v8165 = vpop.f32.mrb[0].mxu0
  %v8166 = vadd.f32 %v5422, %v8165
  %v8167 = vpop.f32.mrb[0].mxu0
  %8168 = vmatprep.mubr.bf16.mxu0 %v4858
  %8169 = vmatmul.mubr.bf16.gmra.mrb[0].mxu0 %v4857
  %v8170 = vpop.f32.mrb[0].mxu0
  %v8171 = vadd.f32 %v5422, %v8170
  %v8172 = vpop.f32.mrb[0].mxu0
  %v8173 = vpop.f32.mrb[0].mxu0
  %v8174 = vadd.f32 %v5422, %v8173
  %v8175 = vpop.f32.mrb[0].mxu0
  %8176 = vmatprep.mubr.bf16.mxu0 %v4870
  %8177 = vmatmul.mubr.bf16.gmra.mrb[0].mxu0 %v4869
  %v8178 = vpop.f32.mrb[0].mxu0
  %v8179 = vadd.f32 %v5422, %v8178
  %v8180 = vpop.f32.mrb[0].mxu0
  %v8181 = vpop.f32.mrb[0].mxu0
  %v8182 = vadd.f32 %v5422, %v8181
  %v8183 = vpop.f32.mrb[0].mxu0
  %8184 = vmatprep.mubr.bf16.mxu0 %v4882
  %8185 = vmatmul.mubr.bf16.gmra.mrb[0].mxu0 %v4881
  %v8186 = vpop.f32.mrb[0].mxu0
  %v8187 = vadd.f32 %v5422, %v8186
  %v8188 = vpop.f32.mrb[0].mxu0
  %v8189 = vpop.f32.mrb[0].mxu0
  %v8190 = vadd.f32 %v5422, %v8189
  %v8191 = vpop.f32.mrb[0].mxu0
  %8192 = vmatprep.mubr.bf16.mxu0 %v4894
  %8193 = vmatmul.mubr.bf16.gmra.mrb[0].mxu0 %v4893
  %v8194 = vpop.f32.mrb[0].mxu0
  %v8195 = vadd.f32 %v5422, %v8194
  %v8196 = vpop.f32.mrb[0].mxu0
  %v8197 = vpop.f32.mrb[0].mxu0
  %v8198 = vadd.f32 %v5422, %v8197
  %v8199 = vpop.f32.mrb[0].mxu0
  %8200 = vmatprep.mubr.bf16.mxu0 %v4906
  %8201 = vmatmul.mubr.bf16.gmra.mrb[0].mxu0 %v4905
  %v8202 = vpop.f32.mrb[0].mxu0
  %v8203 = vadd.f32 %v5422, %v8202
  %v8204 = vpop.f32.mrb[0].mxu0
  %v8205 = vpop.f32.mrb[0].mxu0
  %v8206 = vadd.f32 %v5422, %v8205
  %v8207 = vpop.f32.mrb[0].mxu0
  %8208 = vmatprep.mubr.bf16.mxu0 %v4918
  %8209 = vmatmul.mubr.bf16.gmra.mrb[0].mxu0 %v4917
  %v8210 = vpop.f32.mrb[0].mxu0
  %v8211 = vadd.f32 %v5422, %v8210
  %v8212 = vpop.f32.mrb[0].mxu0
  %v8213 = vpop.f32.mrb[0].mxu0
  %v8214 = vadd.f32 %v5422, %v8213
  %v8215 = vpop.f32.mrb[0].mxu0
  %8216 = vmatprep.mubr.bf16.mxu0 %v4930
  %8217 = vmatmul.mubr.bf16.gmra.mrb[0].mxu0 %v4929
  %v8218 = vpop.f32.mrb[0].mxu0
  %v8219 = vadd.f32 %v5422, %v8218
  %v8220 = vpop.f32.mrb[0].mxu0
  %v8221 = vpop.f32.mrb[0].mxu0
  %v8222 = vadd.f32 %v5422, %v8221
  %v8223 = vpop.f32.mrb[0].mxu0
  %8224 = vmatprep.mubr.bf16.mxu0 %v4942
  %8225 = vmatmul.mubr.bf16.gmra.mrb[0].mxu0 %v4941
  %v8226 = vpop.f32.mrb[0].mxu0
  %v8227 = vadd.f32 %v5422, %v8226
  %v8228 = vpop.f32.mrb[0].mxu0
  %v8229 = vpop.f32.mrb[0].mxu0
  %v8230 = vadd.f32 %v5422, %v8229
  %v8231 = vpop.f32.mrb[0].mxu0
  %8232 = vmatprep.mubr.bf16.mxu0 %v4954
  %8233 = vmatmul.mubr.bf16.gmra.mrb[0].mxu0 %v4953
  %v8234 = vpop.f32.mrb[0].mxu0
  %v8235 = vadd.f32 %v5422, %v8234
  %v8236 = vpop.f32.mrb[0].mxu0
  %v8237 = vpop.f32.mrb[0].mxu0
  %v8238 = vadd.f32 %v5422, %v8237
  %v8239 = vpop.f32.mrb[0].mxu0
  %8240 = vmatprep.mubr.bf16.mxu0 %v4966
  %8241 = vmatmul.mubr.bf16.gmra.mrb[0].mxu0 %v4965
  %v8242 = vpop.f32.mrb[0].mxu0
  %v8243 = vadd.f32 %v5422, %v8242
  %v8244 = vpop.f32.mrb[0].mxu0
  %v8245 = vpop.f32.mrb[0].mxu0
  %v8246 = vadd.f32 %v5422, %v8245
  %v8247 = vpop.f32.mrb[0].mxu0
  %8248 = vmatprep.mubr.bf16.mxu0 %v4978
  %8249 = vmatmul.mubr.bf16.gmra.mrb[0].mxu0 %v4977
  %v8250 = vpop.f32.mrb[0].mxu0
  %v8251 = vadd.f32 %v5422, %v8250
  %v8252 = vpop.f32.mrb[0].mxu0
  %v8253 = vpop.f32.mrb[0].mxu0
  %v8254 = vadd.f32 %v5422, %v8253
  %v8255 = vpop.f32.mrb[0].mxu0
  %8256 = vmatprep.mubr.bf16.mxu0 %v4990
  %8257 = vmatmul.mubr.bf16.gmra.mrb[0].mxu0 %v4989
  %v8258 = vpop.f32.mrb[0].mxu0
  %v8259 = vadd.f32 %v5422, %v8258
  %v8260 = vpop.f32.mrb[0].mxu0
  %v8261 = vpop.f32.mrb[0].mxu0
  %v8262 = vadd.f32 %v5422, %v8261
  %v8263 = vpop.f32.mrb[0].mxu0
  %8264 = vmatprep.mubr.bf16.mxu0 %v5002
  %8265 = vmatmul.mubr.bf16.gmra.mrb[0].mxu0 %v5001
  %v8266 = vpop.f32.mrb[0].mxu0
  %v8267 = vadd.f32 %v5422, %v8266
  %v8268 = vpop.f32.mrb[0].mxu0
  %v8269 = vpop.f32.mrb[0].mxu0
  %v8270 = vadd.f32 %v5422, %v8269
  %v8271 = vpop.f32.mrb[0].mxu0
  %8272 = vmatprep.mubr.bf16.mxu0 %v5014
  %8273 = vmatmul.mubr.bf16.gmra.mrb[0].mxu0 %v5013
  %v8274 = vpop.f32.mrb[0].mxu0
  %v8275 = vadd.f32 %v5422, %v8274
  %v8276 = vpop.f32.mrb[0].mxu0
  %v8277 = vpop.f32.mrb[0].mxu0
  %v8278 = vadd.f32 %v5422, %v8277
  %v8279 = vpop.f32.mrb[0].mxu0
  %8280 = vdwg.mxu0
  %8281 = vmatprep.subr.bf16.mxu0 0
  %8282 = vmatpush1.bf16.msra.mxu0 %v6436
  %8283 = vmatprep.subr.bf16.mxu0 0
  %8284 = vmatpush1.bf16.msra.mxu0 %v6439
  %8285 = vmatprep.subr.bf16.mxu0 0
  %8286 = vmatpush1.bf16.msra.mxu0 %v6442
  %8287 = vmatprep.subr.bf16.mxu0 0
  %8288 = vmatpush1.bf16.msra.mxu0 %v6445
  %8289 = vmatprep.subr.bf16.mxu0 0
  %8290 = vmatpush1.bf16.msra.mxu0 %v6448
  %8291 = vmatprep.subr.bf16.mxu0 0
  %8292 = vmatpush1.bf16.msra.mxu0 %v6451
  %8293 = vmatprep.subr.bf16.mxu0 0
  %8294 = vmatpush1.bf16.msra.mxu0 %v6454
  %8295 = vmatprep.subr.bf16.mxu0 0
  %8296 = vmatpush1.bf16.msra.mxu0 %v6457
  %8297 = vmatprep.subr.bf16.mxu0 0
  %8298 = vmatpush1.bf16.msra.mxu0 %v6460
  %8299 = vmatprep.subr.bf16.mxu0 0
  %8300 = vmatpush1.bf16.msra.mxu0 %v6463
  %8301 = vmatprep.subr.bf16.mxu0 0
  %8302 = vmatpush1.bf16.msra.mxu0 %v6466
  %8303 = vmatprep.subr.bf16.mxu0 0
  %8304 = vmatpush1.bf16.msra.mxu0 %v6469
  %8305 = vmatprep.subr.bf16.mxu0 0
  %8306 = vmatpush1.bf16.msra.mxu0 %v6472
  %8307 = vmatprep.subr.bf16.mxu0 0
  %8308 = vmatpush1.bf16.msra.mxu0 %v6475
  %8309 = vmatprep.subr.bf16.mxu0 0
  %8310 = vmatpush1.bf16.msra.mxu0 %v6478
  %8311 = vmatprep.subr.bf16.mxu0 0
  %8312 = vmatpush1.bf16.msra.mxu0 %v6481
  %8313 = vmatprep.mubr.bf16.mxu0 %v4836
  %8314 = vmatmul.mubr.bf16.gmra.mrb[0].mxu0 %v4835
  %v8315 = vpop.f32.mrb[0].mxu0
  %v8316 = vadd.f32 %v8155, %v8315
  %v8317 = vpop.f32.mrb[0].mxu0
  %v8318 = vpop.f32.mrb[0].mxu0
  %v8319 = vadd.f32 %v8158, %v8318
  %v8320 = vpop.f32.mrb[0].mxu0
  %8321 = vmatprep.mubr.bf16.mxu0 %v4848
  %8322 = vmatmul.mubr.bf16.gmra.mrb[0].mxu0 %v4847
  %v8323 = vpop.f32.mrb[0].mxu0
  %v8324 = vadd.f32 %v8163, %v8323
  %v8325 = vpop.f32.mrb[0].mxu0
  %v8326 = vpop.f32.mrb[0].mxu0
  %v8327 = vadd.f32 %v8166, %v8326
  %v8328 = vpop.f32.mrb[0].mxu0
  %8329 = vmatprep.mubr.bf16.mxu0 %v4860
  %8330 = vmatmul.mubr.bf16.gmra.mrb[0].mxu0 %v4859
  %v8331 = vpop.f32.mrb[0].mxu0
  %v8332 = vadd.f32 %v8171, %v8331
  %v8333 = vpop.f32.mrb[0].mxu0
  %v8334 = vpop.f32.mrb[0].mxu0
  %v8335 = vadd.f32 %v8174, %v8334
  %v8336 = vpop.f32.mrb[0].mxu0
  %8337 = vmatprep.mubr.bf16.mxu0 %v4872
  %8338 = vmatmul.mubr.bf16.gmra.mrb[0].mxu0 %v4871
  %v8339 = vpop.f32.mrb[0].mxu0
  %v8340 = vadd.f32 %v8179, %v8339
  %v8341 = vpop.f32.mrb[0].mxu0
  %v8342 = vpop.f32.mrb[0].mxu0
  %v8343 = vadd.f32 %v8182, %v8342
  %v8344 = vpop.f32.mrb[0].mxu0
  %8345 = vmatprep.mubr.bf16.mxu0 %v4884
  %8346 = vmatmul.mubr.bf16.gmra.mrb[0].mxu0 %v4883
  %v8347 = vpop.f32.mrb[0].mxu0
  %v8348 = vadd.f32 %v8187, %v8347
  %v8349 = vpop.f32.mrb[0].mxu0
  %v8350 = vpop.f32.mrb[0].mxu0
  %v8351 = vadd.f32 %v8190, %v8350
  %v8352 = vpop.f32.mrb[0].mxu0
  %8353 = vmatprep.mubr.bf16.mxu0 %v4896
  %8354 = vmatmul.mubr.bf16.gmra.mrb[0].mxu0 %v4895
  %v8355 = vpop.f32.mrb[0].mxu0
  %v8356 = vadd.f32 %v8195, %v8355
  %v8357 = vpop.f32.mrb[0].mxu0
  %v8358 = vpop.f32.mrb[0].mxu0
  %v8359 = vadd.f32 %v8198, %v8358
  %v8360 = vpop.f32.mrb[0].mxu0
  %8361 = vmatprep.mubr.bf16.mxu0 %v4908
  %8362 = vmatmul.mubr.bf16.gmra.mrb[0].mxu0 %v4907
  %v8363 = vpop.f32.mrb[0].mxu0
  %v8364 = vadd.f32 %v8203, %v8363
  %v8365 = vpop.f32.mrb[0].mxu0
  %v8366 = vpop.f32.mrb[0].mxu0
  %v8367 = vadd.f32 %v8206, %v8366
  %v8368 = vpop.f32.mrb[0].mxu0
  %8369 = vmatprep.mubr.bf16.mxu0 %v4920
  %8370 = vmatmul.mubr.bf16.gmra.mrb[0].mxu0 %v4919
  %v8371 = vpop.f32.mrb[0].mxu0
  %v8372 = vadd.f32 %v8211, %v8371
  %v8373 = vpop.f32.mrb[0].mxu0
  %v8374 = vpop.f32.mrb[0].mxu0
  %v8375 = vadd.f32 %v8214, %v8374
  %v8376 = vpop.f32.mrb[0].mxu0
  %8377 = vmatprep.mubr.bf16.mxu0 %v4932
  %8378 = vmatmul.mubr.bf16.gmra.mrb[0].mxu0 %v4931
  %v8379 = vpop.f32.mrb[0].mxu0
  %v8380 = vadd.f32 %v8219, %v8379
  %v8381 = vpop.f32.mrb[0].mxu0
  %v8382 = vpop.f32.mrb[0].mxu0
  %v8383 = vadd.f32 %v8222, %v8382
  %v8384 = vpop.f32.mrb[0].mxu0
  %8385 = vmatprep.mubr.bf16.mxu0 %v4944
  %8386 = vmatmul.mubr.bf16.gmra.mrb[0].mxu0 %v4943
  %v8387 = vpop.f32.mrb[0].mxu0
  %v8388 = vadd.f32 %v8227, %v8387
  %v8389 = vpop.f32.mrb[0].mxu0
  %v8390 = vpop.f32.mrb[0].mxu0
  %v8391 = vadd.f32 %v8230, %v8390
  %v8392 = vpop.f32.mrb[0].mxu0
  %8393 = vmatprep.mubr.bf16.mxu0 %v4956
  %8394 = vmatmul.mubr.bf16.gmra.mrb[0].mxu0 %v4955
  %v8395 = vpop.f32.mrb[0].mxu0
  %v8396 = vadd.f32 %v8235, %v8395
  %v8397 = vpop.f32.mrb[0].mxu0
  %v8398 = vpop.f32.mrb[0].mxu0
  %v8399 = vadd.f32 %v8238, %v8398
  %v8400 = vpop.f32.mrb[0].mxu0
  %8401 = vmatprep.mubr.bf16.mxu0 %v4968
  %8402 = vmatmul.mubr.bf16.gmra.mrb[0].mxu0 %v4967
  %v8403 = vpop.f32.mrb[0].mxu0
  %v8404 = vadd.f32 %v8243, %v8403
  %v8405 = vpop.f32.mrb[0].mxu0
  %v8406 = vpop.f32.mrb[0].mxu0
  %v8407 = vadd.f32 %v8246, %v8406
  %v8408 = vpop.f32.mrb[0].mxu0
  %8409 = vmatprep.mubr.bf16.mxu0 %v4980
  %8410 = vmatmul.mubr.bf16.gmra.mrb[0].mxu0 %v4979
  %v8411 = vpop.f32.mrb[0].mxu0
  %v8412 = vadd.f32 %v8251, %v8411
  %v8413 = vpop.f32.mrb[0].mxu0
  %v8414 = vpop.f32.mrb[0].mxu0
  %v8415 = vadd.f32 %v8254, %v8414
  %v8416 = vpop.f32.mrb[0].mxu0
  %8417 = vmatprep.mubr.bf16.mxu0 %v4992
  %8418 = vmatmul.mubr.bf16.gmra.mrb[0].mxu0 %v4991
  %v8419 = vpop.f32.mrb[0].mxu0
  %v8420 = vadd.f32 %v8259, %v8419
  %v8421 = vpop.f32.mrb[0].mxu0
  %v8422 = vpop.f32.mrb[0].mxu0
  %v8423 = vadd.f32 %v8262, %v8422
  %v8424 = vpop.f32.mrb[0].mxu0
  %8425 = vmatprep.mubr.bf16.mxu0 %v5004
  %8426 = vmatmul.mubr.bf16.gmra.mrb[0].mxu0 %v5003
  %v8427 = vpop.f32.mrb[0].mxu0
  %v8428 = vadd.f32 %v8267, %v8427
  %v8429 = vpop.f32.mrb[0].mxu0
  %v8430 = vpop.f32.mrb[0].mxu0
  %v8431 = vadd.f32 %v8270, %v8430
  %v8432 = vpop.f32.mrb[0].mxu0
  %8433 = vmatprep.mubr.bf16.mxu0 %v5016
  %8434 = vmatmul.mubr.bf16.gmra.mrb[0].mxu0 %v5015
  %v8435 = vpop.f32.mrb[0].mxu0
  %v8436 = vadd.f32 %v8275, %v8435
  %v8437 = vpop.f32.mrb[0].mxu0
  %v8438 = vpop.f32.mrb[0].mxu0
  %v8439 = vadd.f32 %v8278, %v8438
  %v8440 = vpop.f32.mrb[0].mxu0
  %8441 = vdwg.mxu0
  %8442 = vmatprep.subr.bf16.mxu0 0
  %8443 = vmatpush1.bf16.msra.mxu0 %v6484
  %8444 = vmatprep.subr.bf16.mxu0 0
  %8445 = vmatpush1.bf16.msra.mxu0 %v6487
  %8446 = vmatprep.subr.bf16.mxu0 0
  %8447 = vmatpush1.bf16.msra.mxu0 %v6490
  %8448 = vmatprep.subr.bf16.mxu0 0
  %8449 = vmatpush1.bf16.msra.mxu0 %v6493
  %8450 = vmatprep.subr.bf16.mxu0 0
  %8451 = vmatpush1.bf16.msra.mxu0 %v6496
  %8452 = vmatprep.subr.bf16.mxu0 0
  %8453 = vmatpush1.bf16.msra.mxu0 %v6499
  %8454 = vmatprep.subr.bf16.mxu0 0
  %8455 = vmatpush1.bf16.msra.mxu0 %v6502
  %8456 = vmatprep.subr.bf16.mxu0 0
  %8457 = vmatpush1.bf16.msra.mxu0 %v6505
  %8458 = vmatprep.subr.bf16.mxu0 0
  %8459 = vmatpush1.bf16.msra.mxu0 %v6508
  %8460 = vmatprep.subr.bf16.mxu0 0
  %8461 = vmatpush1.bf16.msra.mxu0 %v6511
  %8462 = vmatprep.subr.bf16.mxu0 0
  %8463 = vmatpush1.bf16.msra.mxu0 %v6514
  %8464 = vmatprep.subr.bf16.mxu0 0
  %8465 = vmatpush1.bf16.msra.mxu0 %v6517
  %8466 = vmatprep.subr.bf16.mxu0 0
  %8467 = vmatpush1.bf16.msra.mxu0 %v6520
  %8468 = vmatprep.subr.bf16.mxu0 0
  %8469 = vmatpush1.bf16.msra.mxu0 %v6523
  %8470 = vmatprep.subr.bf16.mxu0 0
  %8471 = vmatpush1.bf16.msra.mxu0 %v6526
  %8472 = vmatprep.subr.bf16.mxu0 0
  %8473 = vmatpush1.bf16.msra.mxu0 %v6529
  %8474 = vmatprep.mubr.bf16.mxu0 %v4838
  %8475 = vmatmul.mubr.bf16.gmra.mrb[0].mxu0 %v4837
  %v8476 = vpop.f32.mrb[0].mxu0
  %v8477 = vadd.f32 %v8316, %v8476
  %v8478 = vpop.f32.mrb[0].mxu0
  %v8479 = vpop.f32.mrb[0].mxu0
  %v8480 = vadd.f32 %v8319, %v8479
  %v8481 = vpop.f32.mrb[0].mxu0
  %8482 = vmatprep.mubr.bf16.mxu0 %v4850
  %8483 = vmatmul.mubr.bf16.gmra.mrb[0].mxu0 %v4849
  %v8484 = vpop.f32.mrb[0].mxu0
  %v8485 = vadd.f32 %v8324, %v8484
  %v8486 = vpop.f32.mrb[0].mxu0
  %v8487 = vpop.f32.mrb[0].mxu0
  %v8488 = vadd.f32 %v8327, %v8487
  %v8489 = vpop.f32.mrb[0].mxu0
  %8490 = vmatprep.mubr.bf16.mxu0 %v4862
  %8491 = vmatmul.mubr.bf16.gmra.mrb[0].mxu0 %v4861
  %v8492 = vpop.f32.mrb[0].mxu0
  %v8493 = vadd.f32 %v8332, %v8492
  %v8494 = vpop.f32.mrb[0].mxu0
  %v8495 = vpop.f32.mrb[0].mxu0
  %v8496 = vadd.f32 %v8335, %v8495
  %v8497 = vpop.f32.mrb[0].mxu0
  %8498 = vmatprep.mubr.bf16.mxu0 %v4874
  %8499 = vmatmul.mubr.bf16.gmra.mrb[0].mxu0 %v4873
  %v8500 = vpop.f32.mrb[0].mxu0
  %v8501 = vadd.f32 %v8340, %v8500
  %v8502 = vpop.f32.mrb[0].mxu0
  %v8503 = vpop.f32.mrb[0].mxu0
  %v8504 = vadd.f32 %v8343, %v8503
  %v8505 = vpop.f32.mrb[0].mxu0
  %8506 = vmatprep.mubr.bf16.mxu0 %v4886
  %8507 = vmatmul.mubr.bf16.gmra.mrb[0].mxu0 %v4885
  %v8508 = vpop.f32.mrb[0].mxu0
  %v8509 = vadd.f32 %v8348, %v8508
  %v8510 = vpop.f32.mrb[0].mxu0
  %v8511 = vpop.f32.mrb[0].mxu0
  %v8512 = vadd.f32 %v8351, %v8511
  %v8513 = vpop.f32.mrb[0].mxu0
  %8514 = vmatprep.mubr.bf16.mxu0 %v4898
  %8515 = vmatmul.mubr.bf16.gmra.mrb[0].mxu0 %v4897
  %v8516 = vpop.f32.mrb[0].mxu0
  %v8517 = vadd.f32 %v8356, %v8516
  %v8518 = vpop.f32.mrb[0].mxu0
  %v8519 = vpop.f32.mrb[0].mxu0
  %v8520 = vadd.f32 %v8359, %v8519
  %v8521 = vpop.f32.mrb[0].mxu0
  %8522 = vmatprep.mubr.bf16.mxu0 %v4910
  %8523 = vmatmul.mubr.bf16.gmra.mrb[0].mxu0 %v4909
  %v8524 = vpop.f32.mrb[0].mxu0
  %v8525 = vadd.f32 %v8364, %v8524
  %v8526 = vpop.f32.mrb[0].mxu0
  %v8527 = vpop.f32.mrb[0].mxu0
  %v8528 = vadd.f32 %v8367, %v8527
  %v8529 = vpop.f32.mrb[0].mxu0
  %8530 = vmatprep.mubr.bf16.mxu0 %v4922
  %8531 = vmatmul.mubr.bf16.gmra.mrb[0].mxu0 %v4921
  %v8532 = vpop.f32.mrb[0].mxu0
  %v8533 = vadd.f32 %v8372, %v8532
  %v8534 = vpop.f32.mrb[0].mxu0
  %v8535 = vpop.f32.mrb[0].mxu0
  %v8536 = vadd.f32 %v8375, %v8535
  %v8537 = vpop.f32.mrb[0].mxu0
  %8538 = vmatprep.mubr.bf16.mxu0 %v4934
  %8539 = vmatmul.mubr.bf16.gmra.mrb[0].mxu0 %v4933
  %v8540 = vpop.f32.mrb[0].mxu0
  %v8541 = vadd.f32 %v8380, %v8540
  %v8542 = vpop.f32.mrb[0].mxu0
  %v8543 = vpop.f32.mrb[0].mxu0
  %v8544 = vadd.f32 %v8383, %v8543
  %v8545 = vpop.f32.mrb[0].mxu0
  %8546 = vmatprep.mubr.bf16.mxu0 %v4946
  %8547 = vmatmul.mubr.bf16.gmra.mrb[0].mxu0 %v4945
  %v8548 = vpop.f32.mrb[0].mxu0
  %v8549 = vadd.f32 %v8388, %v8548
  %v8550 = vpop.f32.mrb[0].mxu0
  %v8551 = vpop.f32.mrb[0].mxu0
  %v8552 = vadd.f32 %v8391, %v8551
  %v8553 = vpop.f32.mrb[0].mxu0
  %8554 = vmatprep.mubr.bf16.mxu0 %v4958
  %8555 = vmatmul.mubr.bf16.gmra.mrb[0].mxu0 %v4957
  %v8556 = vpop.f32.mrb[0].mxu0
  %v8557 = vadd.f32 %v8396, %v8556
  %v8558 = vpop.f32.mrb[0].mxu0
  %v8559 = vpop.f32.mrb[0].mxu0
  %v8560 = vadd.f32 %v8399, %v8559
  %v8561 = vpop.f32.mrb[0].mxu0
  %8562 = vmatprep.mubr.bf16.mxu0 %v4970
  %8563 = vmatmul.mubr.bf16.gmra.mrb[0].mxu0 %v4969
  %v8564 = vpop.f32.mrb[0].mxu0
  %v8565 = vadd.f32 %v8404, %v8564
  %v8566 = vpop.f32.mrb[0].mxu0
  %v8567 = vpop.f32.mrb[0].mxu0
  %v8568 = vadd.f32 %v8407, %v8567
  %v8569 = vpop.f32.mrb[0].mxu0
  %8570 = vmatprep.mubr.bf16.mxu0 %v4982
  %8571 = vmatmul.mubr.bf16.gmra.mrb[0].mxu0 %v4981
  %v8572 = vpop.f32.mrb[0].mxu0
  %v8573 = vadd.f32 %v8412, %v8572
  %v8574 = vpop.f32.mrb[0].mxu0
  %v8575 = vpop.f32.mrb[0].mxu0
  %v8576 = vadd.f32 %v8415, %v8575
  %v8577 = vpop.f32.mrb[0].mxu0
  %8578 = vmatprep.mubr.bf16.mxu0 %v4994
  %8579 = vmatmul.mubr.bf16.gmra.mrb[0].mxu0 %v4993
  %v8580 = vpop.f32.mrb[0].mxu0
  %v8581 = vadd.f32 %v8420, %v8580
  %v8582 = vpop.f32.mrb[0].mxu0
  %v8583 = vpop.f32.mrb[0].mxu0
  %v8584 = vadd.f32 %v8423, %v8583
  %v8585 = vpop.f32.mrb[0].mxu0
  %8586 = vmatprep.mubr.bf16.mxu0 %v5006
  %8587 = vmatmul.mubr.bf16.gmra.mrb[0].mxu0 %v5005
  %v8588 = vpop.f32.mrb[0].mxu0
  %v8589 = vadd.f32 %v8428, %v8588
  %v8590 = vpop.f32.mrb[0].mxu0
  %v8591 = vpop.f32.mrb[0].mxu0
  %v8592 = vadd.f32 %v8431, %v8591
  %v8593 = vpop.f32.mrb[0].mxu0
  %8594 = vmatprep.mubr.bf16.mxu0 %v5018
  %8595 = vmatmul.mubr.bf16.gmra.mrb[0].mxu0 %v5017
  %v8596 = vpop.f32.mrb[0].mxu0
  %v8597 = vadd.f32 %v8436, %v8596
  %v8598 = vpop.f32.mrb[0].mxu0
  %v8599 = vpop.f32.mrb[0].mxu0
  %v8600 = vadd.f32 %v8439, %v8599
  %v8601 = vpop.f32.mrb[0].mxu0
  %8602 = vdwg.mxu0
  %8603 = vmatprep.subr.bf16.mxu0 0
  %8604 = vmatpush1.bf16.msra.mxu0 %v6532
  %8605 = vmatprep.subr.bf16.mxu0 0
  %8606 = vmatpush1.bf16.msra.mxu0 %v6535
  %8607 = vmatprep.subr.bf16.mxu0 0
  %8608 = vmatpush1.bf16.msra.mxu0 %v6538
  %8609 = vmatprep.subr.bf16.mxu0 0
  %8610 = vmatpush1.bf16.msra.mxu0 %v6541
  %8611 = vmatprep.subr.bf16.mxu0 0
  %8612 = vmatpush1.bf16.msra.mxu0 %v6544
  %8613 = vmatprep.subr.bf16.mxu0 0
  %8614 = vmatpush1.bf16.msra.mxu0 %v6547
  %8615 = vmatprep.subr.bf16.mxu0 0
  %8616 = vmatpush1.bf16.msra.mxu0 %v6550
  %8617 = vmatprep.subr.bf16.mxu0 0
  %8618 = vmatpush1.bf16.msra.mxu0 %v6553
  %8619 = vmatprep.subr.bf16.mxu0 0
  %8620 = vmatpush1.bf16.msra.mxu0 %v6556
  %8621 = vmatprep.subr.bf16.mxu0 0
  %8622 = vmatpush1.bf16.msra.mxu0 %v6559
  %8623 = vmatprep.subr.bf16.mxu0 0
  %8624 = vmatpush1.bf16.msra.mxu0 %v6562
  %8625 = vmatprep.subr.bf16.mxu0 0
  %8626 = vmatpush1.bf16.msra.mxu0 %v6565
  %8627 = vmatprep.subr.bf16.mxu0 0
  %8628 = vmatpush1.bf16.msra.mxu0 %v6568
  %8629 = vmatprep.subr.bf16.mxu0 0
  %8630 = vmatpush1.bf16.msra.mxu0 %v6571
  %8631 = vmatprep.subr.bf16.mxu0 0
  %8632 = vmatpush1.bf16.msra.mxu0 %v6574
  %8633 = vmatprep.subr.bf16.mxu0 0
  %8634 = vmatpush1.bf16.msra.mxu0 %v6577
  %8635 = vmatprep.mubr.bf16.mxu0 %v4840
  %8636 = vmatmul.mubr.bf16.gmra.mrb[0].mxu0 %v4839
  %v8637 = vpop.f32.mrb[0].mxu0
  %v8638 = vadd.f32 %v8477, %v8637
  %v8639 = vpop.f32.mrb[0].mxu0
  %v8640 = vpop.f32.mrb[0].mxu0
  %v8641 = vadd.f32 %v8480, %v8640
  %v8642 = vpop.f32.mrb[0].mxu0
  %8643 = vmatprep.mubr.bf16.mxu0 %v4852
  %8644 = vmatmul.mubr.bf16.gmra.mrb[0].mxu0 %v4851
  %v8645 = vpop.f32.mrb[0].mxu0
  %v8646 = vadd.f32 %v8485, %v8645
  %v8647 = vpop.f32.mrb[0].mxu0
  %v8648 = vpop.f32.mrb[0].mxu0
  %v8649 = vadd.f32 %v8488, %v8648
  %v8650 = vpop.f32.mrb[0].mxu0
  %8651 = vmatprep.mubr.bf16.mxu0 %v4864
  %8652 = vmatmul.mubr.bf16.gmra.mrb[0].mxu0 %v4863
  %v8653 = vpop.f32.mrb[0].mxu0
  %v8654 = vadd.f32 %v8493, %v8653
  %v8655 = vpop.f32.mrb[0].mxu0
  %v8656 = vpop.f32.mrb[0].mxu0
  %v8657 = vadd.f32 %v8496, %v8656
  %v8658 = vpop.f32.mrb[0].mxu0
  %8659 = vmatprep.mubr.bf16.mxu0 %v4876
  %8660 = vmatmul.mubr.bf16.gmra.mrb[0].mxu0 %v4875
  %v8661 = vpop.f32.mrb[0].mxu0
  %v8662 = vadd.f32 %v8501, %v8661
  %v8663 = vpop.f32.mrb[0].mxu0
  %v8664 = vpop.f32.mrb[0].mxu0
  %v8665 = vadd.f32 %v8504, %v8664
  %v8666 = vpop.f32.mrb[0].mxu0
  %8667 = vmatprep.mubr.bf16.mxu0 %v4888
  %8668 = vmatmul.mubr.bf16.gmra.mrb[0].mxu0 %v4887
  %v8669 = vpop.f32.mrb[0].mxu0
  %v8670 = vadd.f32 %v8509, %v8669
  %v8671 = vpop.f32.mrb[0].mxu0
  %v8672 = vpop.f32.mrb[0].mxu0
  %v8673 = vadd.f32 %v8512, %v8672
  %v8674 = vpop.f32.mrb[0].mxu0
  %8675 = vmatprep.mubr.bf16.mxu0 %v4900
  %8676 = vmatmul.mubr.bf16.gmra.mrb[0].mxu0 %v4899
  %v8677 = vpop.f32.mrb[0].mxu0
  %v8678 = vadd.f32 %v8517, %v8677
  %v8679 = vpop.f32.mrb[0].mxu0
  %v8680 = vpop.f32.mrb[0].mxu0
  %v8681 = vadd.f32 %v8520, %v8680
  %v8682 = vpop.f32.mrb[0].mxu0
  %8683 = vmatprep.mubr.bf16.mxu0 %v4912
  %8684 = vmatmul.mubr.bf16.gmra.mrb[0].mxu0 %v4911
  %v8685 = vpop.f32.mrb[0].mxu0
  %v8686 = vadd.f32 %v8525, %v8685
  %v8687 = vpop.f32.mrb[0].mxu0
  %v8688 = vpop.f32.mrb[0].mxu0
  %v8689 = vadd.f32 %v8528, %v8688
  %v8690 = vpop.f32.mrb[0].mxu0
  %8691 = vmatprep.mubr.bf16.mxu0 %v4924
  %8692 = vmatmul.mubr.bf16.gmra.mrb[0].mxu0 %v4923
  %v8693 = vpop.f32.mrb[0].mxu0
  %v8694 = vadd.f32 %v8533, %v8693
  %v8695 = vpop.f32.mrb[0].mxu0
  %v8696 = vpop.f32.mrb[0].mxu0
  %v8697 = vadd.f32 %v8536, %v8696
  %v8698 = vpop.f32.mrb[0].mxu0
  %8699 = vmatprep.mubr.bf16.mxu0 %v4936
  %8700 = vmatmul.mubr.bf16.gmra.mrb[0].mxu0 %v4935
  %v8701 = vpop.f32.mrb[0].mxu0
  %v8702 = vadd.f32 %v8541, %v8701
  %v8703 = vpop.f32.mrb[0].mxu0
  %v8704 = vpop.f32.mrb[0].mxu0
  %v8705 = vadd.f32 %v8544, %v8704
  %v8706 = vpop.f32.mrb[0].mxu0
  %8707 = vmatprep.mubr.bf16.mxu0 %v4948
  %8708 = vmatmul.mubr.bf16.gmra.mrb[0].mxu0 %v4947
  %v8709 = vpop.f32.mrb[0].mxu0
  %v8710 = vadd.f32 %v8549, %v8709
  %v8711 = vpop.f32.mrb[0].mxu0
  %v8712 = vpop.f32.mrb[0].mxu0
  %v8713 = vadd.f32 %v8552, %v8712
  %v8714 = vpop.f32.mrb[0].mxu0
  %8715 = vmatprep.mubr.bf16.mxu0 %v4960
  %8716 = vmatmul.mubr.bf16.gmra.mrb[0].mxu0 %v4959
  %v8717 = vpop.f32.mrb[0].mxu0
  %v8718 = vadd.f32 %v8557, %v8717
  %v8719 = vpop.f32.mrb[0].mxu0
  %v8720 = vpop.f32.mrb[0].mxu0
  %v8721 = vadd.f32 %v8560, %v8720
  %v8722 = vpop.f32.mrb[0].mxu0
  %8723 = vmatprep.mubr.bf16.mxu0 %v4972
  %8724 = vmatmul.mubr.bf16.gmra.mrb[0].mxu0 %v4971
  %v8725 = vpop.f32.mrb[0].mxu0
  %v8726 = vadd.f32 %v8565, %v8725
  %v8727 = vpop.f32.mrb[0].mxu0
  %v8728 = vpop.f32.mrb[0].mxu0
  %v8729 = vadd.f32 %v8568, %v8728
  %v8730 = vpop.f32.mrb[0].mxu0
  %8731 = vmatprep.mubr.bf16.mxu0 %v4984
  %8732 = vmatmul.mubr.bf16.gmra.mrb[0].mxu0 %v4983
  %v8733 = vpop.f32.mrb[0].mxu0
  %v8734 = vadd.f32 %v8573, %v8733
  %v8735 = vpop.f32.mrb[0].mxu0
  %v8736 = vpop.f32.mrb[0].mxu0
  %v8737 = vadd.f32 %v8576, %v8736
  %v8738 = vpop.f32.mrb[0].mxu0
  %8739 = vmatprep.mubr.bf16.mxu0 %v4996
  %8740 = vmatmul.mubr.bf16.gmra.mrb[0].mxu0 %v4995
  %v8741 = vpop.f32.mrb[0].mxu0
  %v8742 = vadd.f32 %v8581, %v8741
  %v8743 = vpop.f32.mrb[0].mxu0
  %v8744 = vpop.f32.mrb[0].mxu0
  %v8745 = vadd.f32 %v8584, %v8744
  %v8746 = vpop.f32.mrb[0].mxu0
  %8747 = vmatprep.mubr.bf16.mxu0 %v5008
  %8748 = vmatmul.mubr.bf16.gmra.mrb[0].mxu0 %v5007
  %v8749 = vpop.f32.mrb[0].mxu0
  %v8750 = vadd.f32 %v8589, %v8749
  %v8751 = vpop.f32.mrb[0].mxu0
  %v8752 = vpop.f32.mrb[0].mxu0
  %v8753 = vadd.f32 %v8592, %v8752
  %v8754 = vpop.f32.mrb[0].mxu0
  %8755 = vmatprep.mubr.bf16.mxu0 %v5020
  %8756 = vmatmul.mubr.bf16.gmra.mrb[0].mxu0 %v5019
  %v8757 = vpop.f32.mrb[0].mxu0
  %v8758 = vadd.f32 %v8597, %v8757
  %v8759 = vpop.f32.mrb[0].mxu0
  %v8760 = vpop.f32.mrb[0].mxu0
  %v8761 = vadd.f32 %v8600, %v8760
  %v8762 = vpop.f32.mrb[0].mxu0
  %8763 = vdwg.mxu0
  %8764 = vmatprep.subr.bf16.mxu0 0
  %8765 = vmatpush1.bf16.msra.mxu0 %v6580
  %8766 = vmatprep.subr.bf16.mxu0 0
  %8767 = vmatpush1.bf16.msra.mxu0 %v6583
  %8768 = vmatprep.subr.bf16.mxu0 0
  %8769 = vmatpush1.bf16.msra.mxu0 %v6586
  %8770 = vmatprep.subr.bf16.mxu0 0
  %8771 = vmatpush1.bf16.msra.mxu0 %v6589
  %8772 = vmatprep.subr.bf16.mxu0 0
  %8773 = vmatpush1.bf16.msra.mxu0 %v6592
  %8774 = vmatprep.subr.bf16.mxu0 0
  %8775 = vmatpush1.bf16.msra.mxu0 %v6595
  %8776 = vmatprep.subr.bf16.mxu0 0
  %8777 = vmatpush1.bf16.msra.mxu0 %v6598
  %8778 = vmatprep.subr.bf16.mxu0 0
  %8779 = vmatpush1.bf16.msra.mxu0 %v6601
  %8780 = vmatprep.subr.bf16.mxu0 0
  %8781 = vmatpush1.bf16.msra.mxu0 %v6604
  %8782 = vmatprep.subr.bf16.mxu0 0
  %8783 = vmatpush1.bf16.msra.mxu0 %v6607
  %8784 = vmatprep.subr.bf16.mxu0 0
  %8785 = vmatpush1.bf16.msra.mxu0 %v6610
  %8786 = vmatprep.subr.bf16.mxu0 0
  %8787 = vmatpush1.bf16.msra.mxu0 %v6613
  %8788 = vmatprep.subr.bf16.mxu0 0
  %8789 = vmatpush1.bf16.msra.mxu0 %v6616
  %8790 = vmatprep.subr.bf16.mxu0 0
  %8791 = vmatpush1.bf16.msra.mxu0 %v6619
  %8792 = vmatprep.subr.bf16.mxu0 0
  %8793 = vmatpush1.bf16.msra.mxu0 %v6622
  %8794 = vmatprep.subr.bf16.mxu0 0
  %8795 = vmatpush1.bf16.msra.mxu0 %v6625
  %8796 = vmatprep.mubr.bf16.mxu0 %v4842
  %8797 = vmatmul.mubr.bf16.gmra.mrb[0].mxu0 %v4841
  %v8798 = vpop.f32.mrb[0].mxu0
  %v8799 = vadd.f32 %v8638, %v8798
  %v8800 = vpop.f32.mrb[0].mxu0
  %v8801 = vpop.f32.mrb[0].mxu0
  %v8802 = vadd.f32 %v8641, %v8801
  %v8803 = vpop.f32.mrb[0].mxu0
  %8804 = vmatprep.mubr.bf16.mxu0 %v4854
  %8805 = vmatmul.mubr.bf16.gmra.mrb[0].mxu0 %v4853
  %v8806 = vpop.f32.mrb[0].mxu0
  %v8807 = vadd.f32 %v8646, %v8806
  %v8808 = vpop.f32.mrb[0].mxu0
  %v8809 = vpop.f32.mrb[0].mxu0
  %v8810 = vadd.f32 %v8649, %v8809
  %v8811 = vpop.f32.mrb[0].mxu0
  %8812 = vmatprep.mubr.bf16.mxu0 %v4866
  %8813 = vmatmul.mubr.bf16.gmra.mrb[0].mxu0 %v4865
  %v8814 = vpop.f32.mrb[0].mxu0
  %v8815 = vadd.f32 %v8654, %v8814
  %v8816 = vpop.f32.mrb[0].mxu0
  %v8817 = vpop.f32.mrb[0].mxu0
  %v8818 = vadd.f32 %v8657, %v8817
  %v8819 = vpop.f32.mrb[0].mxu0
  %8820 = vmatprep.mubr.bf16.mxu0 %v4878
  %8821 = vmatmul.mubr.bf16.gmra.mrb[0].mxu0 %v4877
  %v8822 = vpop.f32.mrb[0].mxu0
  %v8823 = vadd.f32 %v8662, %v8822
  %v8824 = vpop.f32.mrb[0].mxu0
  %v8825 = vpop.f32.mrb[0].mxu0
  %v8826 = vadd.f32 %v8665, %v8825
  %v8827 = vpop.f32.mrb[0].mxu0
  %8828 = vmatprep.mubr.bf16.mxu0 %v4890
  %8829 = vmatmul.mubr.bf16.gmra.mrb[0].mxu0 %v4889
  %v8830 = vpop.f32.mrb[0].mxu0
  %v8831 = vadd.f32 %v8670, %v8830
  %v8832 = vpop.f32.mrb[0].mxu0
  %v8833 = vpop.f32.mrb[0].mxu0
  %v8834 = vadd.f32 %v8673, %v8833
  %v8835 = vpop.f32.mrb[0].mxu0
  %8836 = vmatprep.mubr.bf16.mxu0 %v4902
  %8837 = vmatmul.mubr.bf16.gmra.mrb[0].mxu0 %v4901
  %v8838 = vpop.f32.mrb[0].mxu0
  %v8839 = vadd.f32 %v8678, %v8838
  %v8840 = vpop.f32.mrb[0].mxu0
  %v8841 = vpop.f32.mrb[0].mxu0
  %v8842 = vadd.f32 %v8681, %v8841
  %v8843 = vpop.f32.mrb[0].mxu0
  %8844 = vmatprep.mubr.bf16.mxu0 %v4914
  %8845 = vmatmul.mubr.bf16.gmra.mrb[0].mxu0 %v4913
  %v8846 = vpop.f32.mrb[0].mxu0
  %v8847 = vadd.f32 %v8686, %v8846
  %v8848 = vpop.f32.mrb[0].mxu0
  %v8849 = vpop.f32.mrb[0].mxu0
  %v8850 = vadd.f32 %v8689, %v8849
  %v8851 = vpop.f32.mrb[0].mxu0
  %8852 = vmatprep.mubr.bf16.mxu0 %v4926
  %8853 = vmatmul.mubr.bf16.gmra.mrb[0].mxu0 %v4925
  %v8854 = vpop.f32.mrb[0].mxu0
  %v8855 = vadd.f32 %v8694, %v8854
  %v8856 = vpop.f32.mrb[0].mxu0
  %v8857 = vpop.f32.mrb[0].mxu0
  %v8858 = vadd.f32 %v8697, %v8857
  %v8859 = vpop.f32.mrb[0].mxu0
  %8860 = vmatprep.mubr.bf16.mxu0 %v4938
  %8861 = vmatmul.mubr.bf16.gmra.mrb[0].mxu0 %v4937
  %v8862 = vpop.f32.mrb[0].mxu0
  %v8863 = vadd.f32 %v8702, %v8862
  %v8864 = vpop.f32.mrb[0].mxu0
  %v8865 = vpop.f32.mrb[0].mxu0
  %v8866 = vadd.f32 %v8705, %v8865
  %v8867 = vpop.f32.mrb[0].mxu0
  %8868 = vmatprep.mubr.bf16.mxu0 %v4950
  %8869 = vmatmul.mubr.bf16.gmra.mrb[0].mxu0 %v4949
  %v8870 = vpop.f32.mrb[0].mxu0
  %v8871 = vadd.f32 %v8710, %v8870
  %v8872 = vpop.f32.mrb[0].mxu0
  %v8873 = vpop.f32.mrb[0].mxu0
  %v8874 = vadd.f32 %v8713, %v8873
  %v8875 = vpop.f32.mrb[0].mxu0
  %8876 = vmatprep.mubr.bf16.mxu0 %v4962
  %8877 = vmatmul.mubr.bf16.gmra.mrb[0].mxu0 %v4961
  %v8878 = vpop.f32.mrb[0].mxu0
  %v8879 = vadd.f32 %v8718, %v8878
  %v8880 = vpop.f32.mrb[0].mxu0
  %v8881 = vpop.f32.mrb[0].mxu0
  %v8882 = vadd.f32 %v8721, %v8881
  %v8883 = vpop.f32.mrb[0].mxu0
  %8884 = vmatprep.mubr.bf16.mxu0 %v4974
  %8885 = vmatmul.mubr.bf16.gmra.mrb[0].mxu0 %v4973
  %v8886 = vpop.f32.mrb[0].mxu0
  %v8887 = vadd.f32 %v8726, %v8886
  %v8888 = vpop.f32.mrb[0].mxu0
  %v8889 = vpop.f32.mrb[0].mxu0
  %v8890 = vadd.f32 %v8729, %v8889
  %v8891 = vpop.f32.mrb[0].mxu0
  %8892 = vmatprep.mubr.bf16.mxu0 %v4986
  %8893 = vmatmul.mubr.bf16.gmra.mrb[0].mxu0 %v4985
  %v8894 = vpop.f32.mrb[0].mxu0
  %v8895 = vadd.f32 %v8734, %v8894
  %v8896 = vpop.f32.mrb[0].mxu0
  %v8897 = vpop.f32.mrb[0].mxu0
  %v8898 = vadd.f32 %v8737, %v8897
  %v8899 = vpop.f32.mrb[0].mxu0
  %8900 = vmatprep.mubr.bf16.mxu0 %v4998
  %8901 = vmatmul.mubr.bf16.gmra.mrb[0].mxu0 %v4997
  %v8902 = vpop.f32.mrb[0].mxu0
  %v8903 = vadd.f32 %v8742, %v8902
  %v8904 = vpop.f32.mrb[0].mxu0
  %v8905 = vpop.f32.mrb[0].mxu0
  %v8906 = vadd.f32 %v8745, %v8905
  %v8907 = vpop.f32.mrb[0].mxu0
  %8908 = vmatprep.mubr.bf16.mxu0 %v5010
  %8909 = vmatmul.mubr.bf16.gmra.mrb[0].mxu0 %v5009
  %v8910 = vpop.f32.mrb[0].mxu0
  %v8911 = vadd.f32 %v8750, %v8910
  %v8912 = vpop.f32.mrb[0].mxu0
  %v8913 = vpop.f32.mrb[0].mxu0
  %v8914 = vadd.f32 %v8753, %v8913
  %v8915 = vpop.f32.mrb[0].mxu0
  %8916 = vmatprep.mubr.bf16.mxu0 %v5022
  %8917 = vmatmul.mubr.bf16.gmra.mrb[0].mxu0 %v5021
  %v8918 = vpop.f32.mrb[0].mxu0
  %v8919 = vadd.f32 %v8758, %v8918
  %v8920 = vpop.f32.mrb[0].mxu0
  %v8921 = vpop.f32.mrb[0].mxu0
  %v8922 = vadd.f32 %v8761, %v8921
  %v8923 = vpop.f32.mrb[0].mxu0
  %8924 = vdwg.mxu0
  %8925 = vmatprep.subr.bf16.mxu0 0
  %8926 = vmatpush1.bf16.msra.mxu0 %v6628
  %8927 = vmatprep.subr.bf16.mxu0 0
  %8928 = vmatpush1.bf16.msra.mxu0 %v6631
  %8929 = vmatprep.subr.bf16.mxu0 0
  %8930 = vmatpush1.bf16.msra.mxu0 %v6634
  %8931 = vmatprep.subr.bf16.mxu0 0
  %8932 = vmatpush1.bf16.msra.mxu0 %v6637
  %8933 = vmatprep.subr.bf16.mxu0 0
  %8934 = vmatpush1.bf16.msra.mxu0 %v6640
  %8935 = vmatprep.subr.bf16.mxu0 0
  %8936 = vmatpush1.bf16.msra.mxu0 %v6643
  %8937 = vmatprep.subr.bf16.mxu0 0
  %8938 = vmatpush1.bf16.msra.mxu0 %v6646
  %8939 = vmatprep.subr.bf16.mxu0 0
  %8940 = vmatpush1.bf16.msra.mxu0 %v6649
  %8941 = vmatprep.subr.bf16.mxu0 0
  %8942 = vmatpush1.bf16.msra.mxu0 %v6652
  %8943 = vmatprep.subr.bf16.mxu0 0
  %8944 = vmatpush1.bf16.msra.mxu0 %v6655
  %8945 = vmatprep.subr.bf16.mxu0 0
  %8946 = vmatpush1.bf16.msra.mxu0 %v6658
  %8947 = vmatprep.subr.bf16.mxu0 0
  %8948 = vmatpush1.bf16.msra.mxu0 %v6661
  %8949 = vmatprep.subr.bf16.mxu0 0
  %8950 = vmatpush1.bf16.msra.mxu0 %v6664
  %8951 = vmatprep.subr.bf16.mxu0 0
  %8952 = vmatpush1.bf16.msra.mxu0 %v6667
  %8953 = vmatprep.subr.bf16.mxu0 0
  %8954 = vmatpush1.bf16.msra.mxu0 %v6670
  %8955 = vmatprep.subr.bf16.mxu0 0
  %8956 = vmatpush1.bf16.msra.mxu0 %v6673
  %8957 = vmatprep.mubr.bf16.mxu0 %v4844
  %8958 = vmatmul.mubr.bf16.gmra.mrb[0].mxu0 %v4843
  %v8959 = vpop.f32.mrb[0].mxu0
  %v8960 = vadd.f32 %v8799, %v8959
  %v8961 = vpop.f32.mrb[0].mxu0
  %v8962 = vpop.f32.mrb[0].mxu0
  %v8963 = vadd.f32 %v8802, %v8962
  %v8964 = vpop.f32.mrb[0].mxu0
  %8965 = vmatprep.mubr.bf16.mxu0 %v4856
  %8966 = vmatmul.mubr.bf16.gmra.mrb[0].mxu0 %v4855
  %v8967 = vpop.f32.mrb[0].mxu0
  %v8968 = vadd.f32 %v8807, %v8967
  %v8969 = vpop.f32.mrb[0].mxu0
  %v8970 = vpop.f32.mrb[0].mxu0
  %v8971 = vadd.f32 %v8810, %v8970
  %v8972 = vpop.f32.mrb[0].mxu0
  %8973 = vmatprep.mubr.bf16.mxu0 %v4868
  %8974 = vmatmul.mubr.bf16.gmra.mrb[0].mxu0 %v4867
  %v8975 = vpop.f32.mrb[0].mxu0
  %v8976 = vadd.f32 %v8815, %v8975
  %v8977 = vpop.f32.mrb[0].mxu0
  %v8978 = vpop.f32.mrb[0].mxu0
  %v8979 = vadd.f32 %v8818, %v8978
  %v8980 = vpop.f32.mrb[0].mxu0
  %8981 = vmatprep.mubr.bf16.mxu0 %v4880
  %8982 = vmatmul.mubr.bf16.gmra.mrb[0].mxu0 %v4879
  %v8983 = vpop.f32.mrb[0].mxu0
  %v8984 = vadd.f32 %v8823, %v8983
  %v8985 = vpop.f32.mrb[0].mxu0
  %v8986 = vpop.f32.mrb[0].mxu0
  %v8987 = vadd.f32 %v8826, %v8986
  %v8988 = vpop.f32.mrb[0].mxu0
  %8989 = vmatprep.mubr.bf16.mxu0 %v4892
  %8990 = vmatmul.mubr.bf16.gmra.mrb[0].mxu0 %v4891
  %v8991 = vpop.f32.mrb[0].mxu0
  %v8992 = vadd.f32 %v8831, %v8991
  %v8993 = vpop.f32.mrb[0].mxu0
  %v8994 = vpop.f32.mrb[0].mxu0
  %v8995 = vadd.f32 %v8834, %v8994
  %v8996 = vpop.f32.mrb[0].mxu0
  %8997 = vmatprep.mubr.bf16.mxu0 %v4904
  %8998 = vmatmul.mubr.bf16.gmra.mrb[0].mxu0 %v4903
  %v8999 = vpop.f32.mrb[0].mxu0
  %v9000 = vadd.f32 %v8839, %v8999
  %v9001 = vpop.f32.mrb[0].mxu0
  %v9002 = vpop.f32.mrb[0].mxu0
  %v9003 = vadd.f32 %v8842, %v9002
  %v9004 = vpop.f32.mrb[0].mxu0
  %9005 = vmatprep.mubr.bf16.mxu0 %v4916
  %9006 = vmatmul.mubr.bf16.gmra.mrb[0].mxu0 %v4915
  %v9007 = vpop.f32.mrb[0].mxu0
  %v9008 = vadd.f32 %v8847, %v9007
  %v9009 = vpop.f32.mrb[0].mxu0
  %v9010 = vpop.f32.mrb[0].mxu0
  %v9011 = vadd.f32 %v8850, %v9010
  %v9012 = vpop.f32.mrb[0].mxu0
  %9013 = vmatprep.mubr.bf16.mxu0 %v4928
  %9014 = vmatmul.mubr.bf16.gmra.mrb[0].mxu0 %v4927
  %v9015 = vpop.f32.mrb[0].mxu0
  %v9016 = vadd.f32 %v8855, %v9015
  %v9017 = vpop.f32.mrb[0].mxu0
  %v9018 = vpop.f32.mrb[0].mxu0
  %v9019 = vadd.f32 %v8858, %v9018
  %v9020 = vpop.f32.mrb[0].mxu0
  %9021 = vmatprep.mubr.bf16.mxu0 %v4940
  %9022 = vmatmul.mubr.bf16.gmra.mrb[0].mxu0 %v4939
  %v9023 = vpop.f32.mrb[0].mxu0
  %v9024 = vadd.f32 %v8863, %v9023
  %v9025 = vpop.f32.mrb[0].mxu0
  %v9026 = vpop.f32.mrb[0].mxu0
  %v9027 = vadd.f32 %v8866, %v9026
  %v9028 = vpop.f32.mrb[0].mxu0
  %9029 = vmatprep.mubr.bf16.mxu0 %v4952
  %9030 = vmatmul.mubr.bf16.gmra.mrb[0].mxu0 %v4951
  %v9031 = vpop.f32.mrb[0].mxu0
  %v9032 = vadd.f32 %v8871, %v9031
  %v9033 = vpop.f32.mrb[0].mxu0
  %v9034 = vpop.f32.mrb[0].mxu0
  %v9035 = vadd.f32 %v8874, %v9034
  %v9036 = vpop.f32.mrb[0].mxu0
  %9037 = vmatprep.mubr.bf16.mxu0 %v4964
  %9038 = vmatmul.mubr.bf16.gmra.mrb[0].mxu0 %v4963
  %v9039 = vpop.f32.mrb[0].mxu0
  %v9040 = vadd.f32 %v8879, %v9039
  %v9041 = vpop.f32.mrb[0].mxu0
  %v9042 = vpop.f32.mrb[0].mxu0
  %v9043 = vadd.f32 %v8882, %v9042
  %v9044 = vpop.f32.mrb[0].mxu0
  %9045 = vmatprep.mubr.bf16.mxu0 %v4976
  %9046 = vmatmul.mubr.bf16.gmra.mrb[0].mxu0 %v4975
  %v9047 = vpop.f32.mrb[0].mxu0
  %v9048 = vadd.f32 %v8887, %v9047
  %v9049 = vpop.f32.mrb[0].mxu0
  %v9050 = vpop.f32.mrb[0].mxu0
  %v9051 = vadd.f32 %v8890, %v9050
  %v9052 = vpop.f32.mrb[0].mxu0
  %9053 = vmatprep.mubr.bf16.mxu0 %v4988
  %9054 = vmatmul.mubr.bf16.gmra.mrb[0].mxu0 %v4987
  %v9055 = vpop.f32.mrb[0].mxu0
  %v9056 = vadd.f32 %v8895, %v9055
  %v9057 = vpop.f32.mrb[0].mxu0
  %v9058 = vpop.f32.mrb[0].mxu0
  %v9059 = vadd.f32 %v8898, %v9058
  %v9060 = vpop.f32.mrb[0].mxu0
  %9061 = vmatprep.mubr.bf16.mxu0 %v5000
  %9062 = vmatmul.mubr.bf16.gmra.mrb[0].mxu0 %v4999
  %v9063 = vpop.f32.mrb[0].mxu0
  %v9064 = vadd.f32 %v8903, %v9063
  %v9065 = vpop.f32.mrb[0].mxu0
  %v9066 = vpop.f32.mrb[0].mxu0
  %v9067 = vadd.f32 %v8906, %v9066
  %v9068 = vpop.f32.mrb[0].mxu0
  %9069 = vmatprep.mubr.bf16.mxu0 %v5012
  %9070 = vmatmul.mubr.bf16.gmra.mrb[0].mxu0 %v5011
  %v9071 = vpop.f32.mrb[0].mxu0
  %v9072 = vadd.f32 %v8911, %v9071
  %v9073 = vpop.f32.mrb[0].mxu0
  %v9074 = vpop.f32.mrb[0].mxu0
  %v9075 = vadd.f32 %v8914, %v9074
  %v9076 = vpop.f32.mrb[0].mxu0
  %9077 = vmatprep.mubr.bf16.mxu0 %v5024
  %9078 = vmatmul.mubr.bf16.gmra.mrb[0].mxu0 %v5023
  %v9079 = vpop.f32.mrb[0].mxu0
  %v9080 = vadd.f32 %v8919, %v9079
  %v9081 = vpop.f32.mrb[0].mxu0
  %v9082 = vpop.f32.mrb[0].mxu0
  %v9083 = vadd.f32 %v8922, %v9082
  %v9084 = vpop.f32.mrb[0].mxu0
  %9085 = vdwg.mxu0
  %9086 = vst [vmem:[%s5] sm:$0xff] %v7962
  %9087 = vst [vmem:[%s5 + $0x8] sm:$0xff] %v7964
  %9088 = vst [vmem:[%s5 + $0x10] sm:$0xff] %v8960
  %9089 = vst [vmem:[%s5 + $0x18] sm:$0xff] %v7966
  %9090 = vst [vmem:[%s5 + $0x20] sm:$0xff] %v7968
  %9091 = vst [vmem:[%s5 + $0x28] sm:$0xff] %v8963
  %9092 = vst [vmem:[%s5 + $0x30] sm:$0xff] %v7972
  %9093 = vst [vmem:[%s5 + $0x38] sm:$0xff] %v7974
  %9094 = vst [vmem:[%s5 + $0x40] sm:$0xff] %v8968
  %9095 = vst [vmem:[%s5 + $0x48] sm:$0xff] %v7976
  %9096 = vst [vmem:[%s5 + $0x50] sm:$0xff] %v7978
  %9097 = vst [vmem:[%s5 + $0x58] sm:$0xff] %v8971
  %9098 = vst [vmem:[%s5 + $0x60] sm:$0xff] %v7982
  %9099 = vst [vmem:[%s5 + $0x68] sm:$0xff] %v7984
  %9100 = vst [vmem:[%s5 + $0x70] sm:$0xff] %v8976
  %9101 = vst [vmem:[%s5 + $0x78] sm:$0xff] %v7986
  %9102 = vst [vmem:[%s5 + $0x80] sm:$0xff] %v7988
  %9103 = vst [vmem:[%s5 + $0x88] sm:$0xff] %v8979
  %9104 = vst [vmem:[%s5 + $0x90] sm:$0xff] %v7992
  %9105 = vst [vmem:[%s5 + $0x98] sm:$0xff] %v7994
  %9106 = vst [vmem:[%s5 + $0xa0] sm:$0xff] %v8984
  %9107 = vst [vmem:[%s5 + $0xa8] sm:$0xff] %v7996
  %9108 = vst [vmem:[%s5 + $0xb0] sm:$0xff] %v7998
  %9109 = vst [vmem:[%s5 + $0xb8] sm:$0xff] %v8987
  %9110 = vst [vmem:[%s5 + $0xc0] sm:$0xff] %v8002
  %9111 = vst [vmem:[%s5 + $0xc8] sm:$0xff] %v8004
  %9112 = vst [vmem:[%s5 + $0xd0] sm:$0xff] %v8992
  %9113 = vst [vmem:[%s5 + $0xd8] sm:$0xff] %v8006
  %9114 = vst [vmem:[%s5 + $0xe0] sm:$0xff] %v8008
  %9115 = vst [vmem:[%s5 + $0xe8] sm:$0xff] %v8995
  %9116 = vst [vmem:[%s5 + $0xf0] sm:$0xff] %v8012
  %9117 = vst [vmem:[%s5 + $0xf8] sm:$0xff] %v8014
  %9118 = vst [vmem:[%s5 + $0x100] sm:$0xff] %v9000
  %9119 = vst [vmem:[%s5 + $0x108] sm:$0xff] %v8016
  %9120 = vst [vmem:[%s5 + $0x110] sm:$0xff] %v8018
  %9121 = vst [vmem:[%s5 + $0x118] sm:$0xff] %v9003
  %9122 = vst [vmem:[%s5 + $0x120] sm:$0xff] %v8022
  %9123 = vst [vmem:[%s5 + $0x128] sm:$0xff] %v8024
  %9124 = vst [vmem:[%s5 + $0x130] sm:$0xff] %v9008
  %9125 = vst [vmem:[%s5 + $0x138] sm:$0xff] %v8026
  %9126 = vst [vmem:[%s5 + $0x140] sm:$0xff] %v8028
  %9127 = vst [vmem:[%s5 + $0x148] sm:$0xff] %v9011
  %9128 = vst [vmem:[%s5 + $0x150] sm:$0xff] %v8032
  %9129 = vst [vmem:[%s5 + $0x158] sm:$0xff] %v8034
  %9130 = vst [vmem:[%s5 + $0x160] sm:$0xff] %v9016
  %9131 = vst [vmem:[%s5 + $0x168] sm:$0xff] %v8036
  %9132 = vst [vmem:[%s5 + $0x170] sm:$0xff] %v8038
  %9133 = vst [vmem:[%s5 + $0x178] sm:$0xff] %v9019
  %9134 = vst [vmem:[%s5 + $0x180] sm:$0xff] %v8042
  %9135 = vst [vmem:[%s5 + $0x188] sm:$0xff] %v8044
  %9136 = vst [vmem:[%s5 + $0x190] sm:$0xff] %v9024
  %9137 = vst [vmem:[%s5 + $0x198] sm:$0xff] %v8046
  %9138 = vst [vmem:[%s5 + $0x1a0] sm:$0xff] %v8048
  %9139 = vst [vmem:[%s5 + $0x1a8] sm:$0xff] %v9027
  %9140 = vst [vmem:[%s5 + $0x1b0] sm:$0xff] %v8052
  %9141 = vst [vmem:[%s5 + $0x1b8] sm:$0xff] %v8054
  %9142 = vst [vmem:[%s5 + $0x1c0] sm:$0xff] %v9032
  %9143 = vst [vmem:[%s5 + $0x1c8] sm:$0xff] %v8056
  %9144 = vst [vmem:[%s5 + $0x1d0] sm:$0xff] %v8058
  %9145 = vst [vmem:[%s5 + $0x1d8] sm:$0xff] %v9035
  %9146 = vst [vmem:[%s5 + $0x1e0] sm:$0xff] %v8062
  %9147 = vst [vmem:[%s5 + $0x1e8] sm:$0xff] %v8064
  %9148 = vst [vmem:[%s5 + $0x1f0] sm:$0xff] %v9040
  %9149 = vst [vmem:[%s5 + $0x1f8] sm:$0xff] %v8066
  %9150 = vst [vmem:[%s5 + $0x200] sm:$0xff] %v8068
  %9151 = vst [vmem:[%s5 + $0x208] sm:$0xff] %v9043
  %9152 = vst [vmem:[%s5 + $0x210] sm:$0xff] %v8072
  %9153 = vst [vmem:[%s5 + $0x218] sm:$0xff] %v8074
  %9154 = vst [vmem:[%s5 + $0x220] sm:$0xff] %v9048
  %9155 = vst [vmem:[%s5 + $0x228] sm:$0xff] %v8076
  %9156 = vst [vmem:[%s5 + $0x230] sm:$0xff] %v8078
  %9157 = vst [vmem:[%s5 + $0x238] sm:$0xff] %v9051
  %9158 = vst [vmem:[%s5 + $0x240] sm:$0xff] %v8082
  %9159 = vst [vmem:[%s5 + $0x248] sm:$0xff] %v8084
  %9160 = vst [vmem:[%s5 + $0x250] sm:$0xff] %v9056
  %9161 = vst [vmem:[%s5 + $0x258] sm:$0xff] %v8086
  %9162 = vst [vmem:[%s5 + $0x260] sm:$0xff] %v8088
  %9163 = vst [vmem:[%s5 + $0x268] sm:$0xff] %v9059
  %9164 = vst [vmem:[%s5 + $0x270] sm:$0xff] %v8092
  %9165 = vst [vmem:[%s5 + $0x278] sm:$0xff] %v8094
  %9166 = vst [vmem:[%s5 + $0x280] sm:$0xff] %v9064
  %9167 = vst [vmem:[%s5 + $0x288] sm:$0xff] %v8096
  %9168 = vst [vmem:[%s5 + $0x290] sm:$0xff] %v8098
  %9169 = vst [vmem:[%s5 + $0x298] sm:$0xff] %v9067
  %9170 = vst [vmem:[%s5 + $0x2a0] sm:$0xff] %v8102
  %9171 = vst [vmem:[%s5 + $0x2a8] sm:$0xff] %v8104
  %9172 = vst [vmem:[%s5 + $0x2b0] sm:$0xff] %v9072
  %9173 = vst [vmem:[%s5 + $0x2b8] sm:$0xff] %v8106
  %9174 = vst [vmem:[%s5 + $0x2c0] sm:$0xff] %v8108
  %9175 = vst [vmem:[%s5 + $0x2c8] sm:$0xff] %v9075
  %9176 = vst [vmem:[%s5 + $0x2d0] sm:$0xff] %v8112
  %9177 = vst [vmem:[%s5 + $0x2d8] sm:$0xff] %v8114
  %9178 = vst [vmem:[%s5 + $0x2e0] sm:$0xff] %v9080
  %9179 = vst [vmem:[%s5 + $0x2e8] sm:$0xff] %v8116
  %9180 = vst [vmem:[%s5 + $0x2f0] sm:$0xff] %v8118
  %9181 = vst [vmem:[%s5 + $0x2f8] sm:$0xff] %v9083
  // Predicated region
  $region22: #{feed_forward.1} parent=0 // pred_check
    _
  $region23: #{feed_forward.1} parent=0 // pred_check_branch
    %9183 = sbr.rel (0) target = $region25
  $region24: #{feed_forward.1} parent=0 // pred_region
    _
  $region25: #{feed_forward.1} parent=0 // pred_fallthru
    _
  // Predicated region
  $region26: #{feed_forward.1} parent=0 // pred_check
    _
  $region27: #{feed_forward.1} parent=0 // pred_check_branch
    %9185 = sbr.rel (0) target = $region29
  $region28: #{feed_forward.1} parent=0 // pred_region
    _
  $region29: #{feed_forward.1} parent=0 // pred_fallthru
    _

</llo_original>
